<compile_context>
chip_gen: v7x
topology: tpu7x:2x2x1
jax: 0.10.0
libtpu: 0.0.40
codegen_flags: <defaults>
</compile_context>

<pallas_src>
import functools

import jax
import jax.numpy as jnp
import numpy as np
from jax import lax
from jax.experimental import pallas as pl
from jax.experimental.pallas import tpu as pltpu


def _layer_norm_f32(x, gamma, beta, eps):
    mu = jnp.mean(x, axis=-1, keepdims=True)
    xc = x - mu
    var = jnp.mean(xc * xc, axis=-1, keepdims=True)
    return xc * lax.rsqrt(var + eps) * gamma + beta


def _make_mha_layer_kernel(batch, seq_len, n_head, d_k, d_v, eps=1e-5):
    """One fused MultiHeadAttention layer over the whole batch."""

    HDK = n_head * d_k
    HDV = n_head * d_v

    def kernel(x_ref, wqkv_ref, wfc_ref, vecs_ref, o_ref, attn_acc):
        B, L = batch, seq_len
        D = HDV                                     # == d_model (residual add)

        # Packed small vectors: [b_fc, g0, b0, g1, b1, 0, 0, 0] each (1, D).
        vecs = vecs_ref[...]
        b_fc = vecs[0:1, :]
        g0, b0 = vecs[1:2, :], vecs[2:3, :]
        g1, b1 = vecs[3:4, :], vecs[4:5, :]

        # Whole batch as one (B*L, D) slab -> bigger, MXU-friendly matmuls.
        x = x_ref[...].reshape(B * L, D)            # f32 (kept for residual)
        xb = x.astype(jnp.bfloat16)

        # Fused Q/K/V projection: one (B*L, D) x (D, 3*H*d_k) matmul.
        # NOTE: 1/sqrt(d_k) is already folded into the Wq block by the wrapper.
        qkv = jnp.dot(xb, wqkv_ref[...], preferred_element_type=jnp.float32)
        qkv_b = qkv.astype(jnp.bfloat16)            # single cast, sliced below

        # Per-(batch, head) attention.  d_k = d_v = 128, so every slice below
        # sits on a lane-tile boundary; head results go straight into the
        # preallocated VMEM slab (no lane-dim concatenate, no XLU transpose).
        for b in range(B):
            r0 = b * L
            rows = qkv_b[r0:r0 + L]                 # (L, 3*H*d_k) bf16
            for h in range(n_head):
                qh = rows[:, h * d_k:(h + 1) * d_k]                 # (L, d_k)
                kh = rows[:, HDK + h * d_k:HDK + (h + 1) * d_k]     # (L, d_k)
                vh = rows[:, 2 * HDK + h * d_v:2 * HDK + (h + 1) * d_v]

                # scores = qh @ kh^T via transposed contraction (no .T).
                s = lax.dot_general(qh, kh, (((1,), (1,)), ((), ())),
                                    preferred_element_type=jnp.float32)
                # Numerically stable softmax over keys (dim=2 in torch code).
                s = s - jnp.max(s, axis=-1, keepdims=True)
                p = jnp.exp(s)
                p = p * pl.reciprocal(jnp.sum(p, axis=-1, keepdims=True),
                                      approx=True)
                # TODO(synk): attention dropout (p=0.1) is identity in eval mode.
                attn_acc[pl.ds(r0, L), pl.ds(h * d_v, d_v)] = jnp.dot(
                    p.astype(jnp.bfloat16), vh,
                    preferred_element_type=jnp.float32)

        # Residual + LayerNorm0 (f32 elementwise path).
        x1 = attn_acc[...] + x
        ln0 = _layer_norm_f32(x1, g0, b0, eps)

        # fc projection (+ bias).  Dropout is identity in eval mode.
        fc = jnp.dot(ln0.astype(jnp.bfloat16), wfc_ref[...],
                     preferred_element_type=jnp.float32) + b_fc
        # TODO(synk): output dropout (p=0.1) is identity in eval mode.

        # Second residual + LayerNorm.
        y = _layer_norm_f32(fc + ln0, g1, b1, eps)

        o_ref[...] = y.reshape(B, L, D).astype(o_ref.dtype)

    return kernel


def mha_layer_forward(x, wq, wk, wv, w_fc, b_fc, g0, b0, g1, b1, *,
                      n_head, d_k, d_v):
    """One MultiHeadAttention layer (self-attention: q = k = v = x)."""
    B, L, D = x.shape
    assert n_head * d_v == D, "residual add requires n_head * d_v == d_model"
    assert L % 8 == 0 and D % 128 == 0, "keep blocks (8,128)-aligned"

    temperature = float(np.power(d_k, 0.5))

    # Fold the 1/sqrt(d_k) attention scale into Wq and pack Q/K/V weights into
    # a single (D, 3*H*d_k) bf16 slab -> one big MXU matmul in the kernel.
    wqkv_b = jnp.concatenate(
        [(wq / temperature), wk, wv], axis=1).astype(jnp.bfloat16)
    wfc_b = w_fc.astype(jnp.bfloat16)

    # Pack fc bias + both LayerNorm affine pairs into one (8, D) f32 slab.
    vecs = jnp.zeros((8, D), jnp.float32)
    vecs = vecs.at[0].set(b_fc.astype(jnp.float32))
    vecs = vecs.at[1].set(g0.astype(jnp.float32))
    vecs = vecs.at[2].set(b0.astype(jnp.float32))
    vecs = vecs.at[3].set(g1.astype(jnp.float32))
    vecs = vecs.at[4].set(b1.astype(jnp.float32))

    kernel = _make_mha_layer_kernel(B, L, n_head, d_k, d_v)

    def full(shape):
        return pl.BlockSpec(shape, lambda i: (0,) * len(shape))

    return pl.pallas_call(
        kernel,
        out_shape=jax.ShapeDtypeStruct((B, L, D), x.dtype),
        grid=(1,),  # whole batch per invocation: one pipeline step, weights DMA'd once
        in_specs=[
            full((B, L, D)),                         # x  (q = k = v)
            full((D, 3 * n_head * d_k)),             # [Wq*scale | Wk | Wv] bf16
            full((n_head * d_v, D)),                 # W_fc (transposed, bf16)
            full((8, D)),                            # packed bias / LN params
        ],
        out_specs=full((B, L, D)),
        scratch_shapes=[pltpu.VMEM((B * L, D), jnp.float32)],  # head-output slab
        compiler_params=pltpu.CompilerParams(
            dimension_semantics=("arbitrary",)),
    )(x, wqkv_b, wfc_b, vecs)


def transformer_encoder_forward(x, layers, *, n_head, d_k, d_v):
    """transformer_encoder.forward: sequentially apply each MHA layer."""
    for p in layers:
        x = mha_layer_forward(x, **p, n_head=n_head, d_k=d_k, d_v=d_v)
    return x


# ----------------------------- pure-JAX reference ---------------------------

def _mha_layer_reference(x, wq, wk, wv, w_fc, b_fc, g0, b0, g1, b1, *,
                         n_head, d_k, d_v, eps=1e-5):
    """Mirrors the PyTorch forward (eval mode) with the same bf16 MXU casts."""
    B, L, D = x.shape
    temperature = float(np.power(d_k, 0.5))
    bf = jnp.bfloat16

    xb = x.astype(bf)
    qp = jnp.dot(xb, (wq / temperature).astype(bf),
                 preferred_element_type=jnp.float32).reshape(B, L, n_head, d_k)
    kp = jnp.dot(xb, wk.astype(bf),
                 preferred_element_type=jnp.float32).reshape(B, L, n_head, d_k)
    vp = jnp.dot(xb, wv.astype(bf),
                 preferred_element_type=jnp.float32).reshape(B, L, n_head, d_v)

    qh = jnp.transpose(qp, (2, 0, 1, 3)).reshape(n_head * B, L, d_k)
    kh = jnp.transpose(kp, (2, 0, 1, 3)).reshape(n_head * B, L, d_k)
    vh = jnp.transpose(vp, (2, 0, 1, 3)).reshape(n_head * B, L, d_v)

    scores = jnp.einsum("nqd,nkd->nqk", qh.astype(bf), kh.astype(bf),
                        preferred_element_type=jnp.float32)
    attn = jax.nn.softmax(scores, axis=2)
    out = jnp.einsum("nqk,nkd->nqd", attn.astype(bf), vh.astype(bf),
                     preferred_element_type=jnp.float32)

    out = out.reshape(n_head, B, L, d_v)
    out = jnp.transpose(out, (1, 2, 0, 3)).reshape(B, L, n_head * d_v)

    def ln(t, g, b_):
        mu = jnp.mean(t, axis=-1, keepdims=True)
        var = jnp.mean((t - mu) ** 2, axis=-1, keepdims=True)
        return (t - mu) / jnp.sqrt(var + eps) * g + b_

    x1 = ln(out + x, g0, b0)
    fc = jnp.dot(x1.astype(bf), w_fc.astype(bf),
                 preferred_element_type=jnp.float32) + b_fc
    return ln(fc + x1, g1, b1)


def transformer_encoder_reference(x, layers, *, n_head, d_k, d_v):
    for p in layers:
        x = _mha_layer_reference(x, **p, n_head=n_head, d_k=d_k, d_v=d_v)
    return x


# ----------------------------------- demo -----------------------------------

if __name__ == "__main__":
    # Module-consistent config: MultiHeadAttention(4, 512, 128, 128), small
    # batch / sequence, 2 encoder layers.
    n_head, d_model, d_k, d_v = 4, 512, 128, 128
    num_layers = 2
    sz_b, seq_len = 2, 16

    key = jax.random.PRNGKey(0)
    kx, kwq, kwk, kwv, kwfc, kbfc = jax.random.split(key, 6)

    x = jax.random.normal(kx, (sz_b, seq_len, d_model), dtype=jnp.float32)

    # Parameter init matching the module's __init__ (weights stored transposed
    # for x @ W):
    std_qk = np.sqrt(2.0 / (d_model + d_k))
    std_v = np.sqrt(2.0 / (d_model + d_v))
    std_fc = np.sqrt(2.0 / (n_head * d_v + d_model))          # xavier_normal_
    wq = jax.random.normal(kwq, (d_model, n_head * d_k), jnp.float32) * std_qk
    wk = jax.random.normal(kwk, (d_model, n_head * d_k), jnp.float32) * std_qk
    wv = jax.random.normal(kwv, (d_model, n_head * d_v), jnp.float32) * std_v
    w_fc = jax.random.normal(kwfc, (n_head * d_v, d_model), jnp.float32) * std_fc
    bound = 1.0 / np.sqrt(n_head * d_v)                       # Linear bias default
    b_fc = jax.random.uniform(kbfc, (d_model,), jnp.float32, -bound, bound)
    gamma = jnp.ones((d_model,), jnp.float32)                 # LayerNorm defaults
    beta = jnp.zeros((d_model,), jnp.float32)

    layer_params = dict(wq=wq, wk=wk, wv=wv, w_fc=w_fc, b_fc=b_fc,
                        g0=gamma, b0=beta, g1=gamma, b1=beta)
    # clones() deep-copies the base layer -> identical params in every layer.
    layers = [layer_params for _ in range(num_layers)]

    fwd = jax.jit(functools.partial(transformer_encoder_forward,
                                    n_head=n_head, d_k=d_k, d_v=d_v))
    out = jax.block_until_ready(fwd(x, layers))

    ref = transformer_encoder_reference(x, layers,
                                        n_head=n_head, d_k=d_k, d_v=d_v)
    np.testing.assert_allclose(np.asarray(out), np.asarray(ref),
                               rtol=2e-2, atol=2e-2)

    print("KERNEL_OK")
</pallas_src>

<mosaic_0001>
module attributes {stable_mosaic.version = 11 : i64} {
  func.func @kernel(%arg0: i32, %arg1: memref<2x16x512xf32, #tpu.memory_space<vmem>>, %arg2: memref<512x1536xbf16, #tpu.memory_space<vmem>>, %arg3: memref<512x512xbf16, #tpu.memory_space<vmem>>, %arg4: memref<8x512xf32, #tpu.memory_space<vmem>>, %arg5: memref<2x16x512xf32, #tpu.memory_space<vmem>>, %arg6: memref<32x512xf32, #tpu.memory_space<vmem>>) attributes {dimension_semantics = [#tpu.dimension_semantics<arbitrary>], iteration_bounds = array<i64: 1>, scalar_prefetch = 0 : i64, scratch_operands = 1 : i64, tpu.core_type = #tpu.core_type<tc>, window_params = [{pipeline_mode = #tpu.pipeline_mode<synchronous>, transform_indices = @transform_0, window_bounds = array<i64: 2, 16, 512>}, {pipeline_mode = #tpu.pipeline_mode<synchronous>, transform_indices = @transform_1, window_bounds = array<i64: 512, 1536>}, {pipeline_mode = #tpu.pipeline_mode<synchronous>, transform_indices = @transform_2, window_bounds = array<i64: 512, 512>}, {pipeline_mode = #tpu.pipeline_mode<synchronous>, transform_indices = @transform_3, window_bounds = array<i64: 8, 512>}, {pipeline_mode = #tpu.pipeline_mode<synchronous>, transform_indices = @transform_4, window_bounds = array<i64: 2, 16, 512>}]} {
    %c0 = arith.constant 0 : index
    %c0_0 = arith.constant 0 : index
    %0 = vector.load %arg4[%c0, %c0_0] : memref<8x512xf32, #tpu.memory_space<vmem>>, vector<8x512xf32>
    %1 = vector.extract_strided_slice %0 {offsets = [0, 0], sizes = [1, 512], strides = [1, 1]} : vector<8x512xf32> to vector<1x512xf32>
    %2 = vector.extract_strided_slice %0 {offsets = [1, 0], sizes = [1, 512], strides = [1, 1]} : vector<8x512xf32> to vector<1x512xf32>
    %3 = vector.extract_strided_slice %0 {offsets = [2, 0], sizes = [1, 512], strides = [1, 1]} : vector<8x512xf32> to vector<1x512xf32>
    %4 = vector.extract_strided_slice %0 {offsets = [3, 0], sizes = [1, 512], strides = [1, 1]} : vector<8x512xf32> to vector<1x512xf32>
    %5 = vector.extract_strided_slice %0 {offsets = [4, 0], sizes = [1, 512], strides = [1, 1]} : vector<8x512xf32> to vector<1x512xf32>
    %c0_1 = arith.constant 0 : index
    %c0_2 = arith.constant 0 : index
    %c0_3 = arith.constant 0 : index
    %6 = vector.load %arg1[%c0_1, %c0_2, %c0_3] : memref<2x16x512xf32, #tpu.memory_space<vmem>>, vector<2x16x512xf32>
    %7 = vector.shape_cast %6 : vector<2x16x512xf32> to vector<32x512xf32>
    %8 = arith.truncf %7 : vector<32x512xf32> to vector<32x512xbf16>
    %c0_4 = arith.constant 0 : index
    %c0_5 = arith.constant 0 : index
    %9 = vector.load %arg2[%c0_4, %c0_5] : memref<512x1536xbf16, #tpu.memory_space<vmem>>, vector<512x1536xbf16>
    %cst = arith.constant dense<0.000000e+00> : vector<32x1536xf32>
    %10 = tpu.matmul %8, %9, %cst {dimension_numbers = #tpu.dot_dimension_numbers<[1], [0], [0], [1], [0, 0, 1, 1], [], []>} : vector<32x512xbf16>, vector<512x1536xbf16>, vector<32x1536xf32> -> vector<32x1536xf32>
    %11 = arith.truncf %10 : vector<32x1536xf32> to vector<32x1536xbf16>
    %12 = vector.extract_strided_slice %11 {offsets = [0, 0], sizes = [16, 1536], strides = [1, 1]} : vector<32x1536xbf16> to vector<16x1536xbf16>
    %13 = vector.extract_strided_slice %12 {offsets = [0, 0], sizes = [16, 128], strides = [1, 1]} : vector<16x1536xbf16> to vector<16x128xbf16>
    %14 = vector.extract_strided_slice %12 {offsets = [0, 512], sizes = [16, 128], strides = [1, 1]} : vector<16x1536xbf16> to vector<16x128xbf16>
    %15 = vector.extract_strided_slice %12 {offsets = [0, 1024], sizes = [16, 128], strides = [1, 1]} : vector<16x1536xbf16> to vector<16x128xbf16>
    %cst_6 = arith.constant dense<0.000000e+00> : vector<16x16xf32>
    %16 = tpu.matmul %13, %14, %cst_6 {dimension_numbers = #tpu.dot_dimension_numbers<[1], [1], [0], [0], [0, 0, 1, 0], [], []>} : vector<16x128xbf16>, vector<16x128xbf16>, vector<16x16xf32> -> vector<16x16xf32>
    %cst_7 = arith.constant dense<0xFF800000> : vector<16xf32>
    %17 = vector.multi_reduction <maximumf>, %16, %cst_7 [1] : vector<16x16xf32> to vector<16xf32>
    %18 = vector.shape_cast %17 : vector<16xf32> to vector<16x1xf32>
    %19 = vector.broadcast %18 : vector<16x1xf32> to vector<16x16xf32>
    %20 = arith.subf %16, %19 : vector<16x16xf32>
    %21 = math.exp %20 : vector<16x16xf32>
    %cst_8 = arith.constant dense<0.000000e+00> : vector<16xf32>
    %22 = vector.multi_reduction <add>, %21, %cst_8 [1] : vector<16x16xf32> to vector<16xf32>
    %23 = vector.shape_cast %22 : vector<16xf32> to vector<16x1xf32>
    %24 = tpu.reciprocal %23 {approx = true} : vector<16x1xf32> -> vector<16x1xf32>
    %25 = vector.broadcast %24 : vector<16x1xf32> to vector<16x16xf32>
    %26 = arith.mulf %21, %25 : vector<16x16xf32>
    %27 = arith.truncf %26 : vector<16x16xf32> to vector<16x16xbf16>
    %cst_9 = arith.constant dense<0.000000e+00> : vector<16x128xf32>
    %28 = tpu.matmul %27, %15, %cst_9 {dimension_numbers = #tpu.dot_dimension_numbers<[1], [0], [0], [1], [0, 0, 1, 1], [], []>} : vector<16x16xbf16>, vector<16x128xbf16>, vector<16x128xf32> -> vector<16x128xf32>
    %c0_10 = arith.constant 0 : index
    %c0_11 = arith.constant 0 : index
    %29 = vector.load %arg6[%c0_10, %c0_11] : memref<32x512xf32, #tpu.memory_space<vmem>>, vector<16x128xf32>
    tpu.vector_store %arg6[%c0_10, %c0_11], %28 {strides = array<i32>} : memref<32x512xf32, #tpu.memory_space<vmem>>, vector<16x128xf32>,
    %30 = vector.extract_strided_slice %12 {offsets = [0, 128], sizes = [16, 128], strides = [1, 1]} : vector<16x1536xbf16> to vector<16x128xbf16>
    %31 = vector.extract_strided_slice %12 {offsets = [0, 640], sizes = [16, 128], strides = [1, 1]} : vector<16x1536xbf16> to vector<16x128xbf16>
    %32 = vector.extract_strided_slice %12 {offsets = [0, 1152], sizes = [16, 128], strides = [1, 1]} : vector<16x1536xbf16> to vector<16x128xbf16>
    %cst_12 = arith.constant dense<0.000000e+00> : vector<16x16xf32>
    %33 = tpu.matmul %30, %31, %cst_12 {dimension_numbers = #tpu.dot_dimension_numbers<[1], [1], [0], [0], [0, 0, 1, 0], [], []>} : vector<16x128xbf16>, vector<16x128xbf16>, vector<16x16xf32> -> vector<16x16xf32>
    %cst_13 = arith.constant dense<0xFF800000> : vector<16xf32>
    %34 = vector.multi_reduction <maximumf>, %33, %cst_13 [1] : vector<16x16xf32> to vector<16xf32>
    %35 = vector.shape_cast %34 : vector<16xf32> to vector<16x1xf32>
    %36 = vector.broadcast %35 : vector<16x1xf32> to vector<16x16xf32>
    %37 = arith.subf %33, %36 : vector<16x16xf32>
    %38 = math.exp %37 : vector<16x16xf32>
    %cst_14 = arith.constant dense<0.000000e+00> : vector<16xf32>
    %39 = vector.multi_reduction <add>, %38, %cst_14 [1] : vector<16x16xf32> to vector<16xf32>
    %40 = vector.shape_cast %39 : vector<16xf32> to vector<16x1xf32>
    %41 = tpu.reciprocal %40 {approx = true} : vector<16x1xf32> -> vector<16x1xf32>
    %42 = vector.broadcast %41 : vector<16x1xf32> to vector<16x16xf32>
    %43 = arith.mulf %38, %42 : vector<16x16xf32>
    %44 = arith.truncf %43 : vector<16x16xf32> to vector<16x16xbf16>
    %cst_15 = arith.constant dense<0.000000e+00> : vector<16x128xf32>
    %45 = tpu.matmul %44, %32, %cst_15 {dimension_numbers = #tpu.dot_dimension_numbers<[1], [0], [0], [1], [0, 0, 1, 1], [], []>} : vector<16x16xbf16>, vector<16x128xbf16>, vector<16x128xf32> -> vector<16x128xf32>
    %c0_16 = arith.constant 0 : index
    %c128 = arith.constant 128 : index
    %46 = vector.load %arg6[%c0_16, %c128] : memref<32x512xf32, #tpu.memory_space<vmem>>, vector<16x128xf32>
    tpu.vector_store %arg6[%c0_16, %c128], %45 {strides = array<i32>} : memref<32x512xf32, #tpu.memory_space<vmem>>, vector<16x128xf32>,
    %47 = vector.extract_strided_slice %12 {offsets = [0, 256], sizes = [16, 128], strides = [1, 1]} : vector<16x1536xbf16> to vector<16x128xbf16>
    %48 = vector.extract_strided_slice %12 {offsets = [0, 768], sizes = [16, 128], strides = [1, 1]} : vector<16x1536xbf16> to vector<16x128xbf16>
    %49 = vector.extract_strided_slice %12 {offsets = [0, 1280], sizes = [16, 128], strides = [1, 1]} : vector<16x1536xbf16> to vector<16x128xbf16>
    %cst_17 = arith.constant dense<0.000000e+00> : vector<16x16xf32>
    %50 = tpu.matmul %47, %48, %cst_17 {dimension_numbers = #tpu.dot_dimension_numbers<[1], [1], [0], [0], [0, 0, 1, 0], [], []>} : vector<16x128xbf16>, vector<16x128xbf16>, vector<16x16xf32> -> vector<16x16xf32>
    %cst_18 = arith.constant dense<0xFF800000> : vector<16xf32>
    %51 = vector.multi_reduction <maximumf>, %50, %cst_18 [1] : vector<16x16xf32> to vector<16xf32>
    %52 = vector.shape_cast %51 : vector<16xf32> to vector<16x1xf32>
    %53 = vector.broadcast %52 : vector<16x1xf32> to vector<16x16xf32>
    %54 = arith.subf %50, %53 : vector<16x16xf32>
    %55 = math.exp %54 : vector<16x16xf32>
    %cst_19 = arith.constant dense<0.000000e+00> : vector<16xf32>
    %56 = vector.multi_reduction <add>, %55, %cst_19 [1] : vector<16x16xf32> to vector<16xf32>
    %57 = vector.shape_cast %56 : vector<16xf32> to vector<16x1xf32>
    %58 = tpu.reciprocal %57 {approx = true} : vector<16x1xf32> -> vector<16x1xf32>
    %59 = vector.broadcast %58 : vector<16x1xf32> to vector<16x16xf32>
    %60 = arith.mulf %55, %59 : vector<16x16xf32>
    %61 = arith.truncf %60 : vector<16x16xf32> to vector<16x16xbf16>
    %cst_20 = arith.constant dense<0.000000e+00> : vector<16x128xf32>
    %62 = tpu.matmul %61, %49, %cst_20 {dimension_numbers = #tpu.dot_dimension_numbers<[1], [0], [0], [1], [0, 0, 1, 1], [], []>} : vector<16x16xbf16>, vector<16x128xbf16>, vector<16x128xf32> -> vector<16x128xf32>
    %c0_21 = arith.constant 0 : index
    %c256 = arith.constant 256 : index
    %63 = vector.load %arg6[%c0_21, %c256] : memref<32x512xf32, #tpu.memory_space<vmem>>, vector<16x128xf32>
    tpu.vector_store %arg6[%c0_21, %c256], %62 {strides = array<i32>} : memref<32x512xf32, #tpu.memory_space<vmem>>, vector<16x128xf32>,
    %64 = vector.extract_strided_slice %12 {offsets = [0, 384], sizes = [16, 128], strides = [1, 1]} : vector<16x1536xbf16> to vector<16x128xbf16>
    %65 = vector.extract_strided_slice %12 {offsets = [0, 896], sizes = [16, 128], strides = [1, 1]} : vector<16x1536xbf16> to vector<16x128xbf16>
    %66 = vector.extract_strided_slice %12 {offsets = [0, 1408], sizes = [16, 128], strides = [1, 1]} : vector<16x1536xbf16> to vector<16x128xbf16>
    %cst_22 = arith.constant dense<0.000000e+00> : vector<16x16xf32>
    %67 = tpu.matmul %64, %65, %cst_22 {dimension_numbers = #tpu.dot_dimension_numbers<[1], [1], [0], [0], [0, 0, 1, 0], [], []>} : vector<16x128xbf16>, vector<16x128xbf16>, vector<16x16xf32> -> vector<16x16xf32>
    %cst_23 = arith.constant dense<0xFF800000> : vector<16xf32>
    %68 = vector.multi_reduction <maximumf>, %67, %cst_23 [1] : vector<16x16xf32> to vector<16xf32>
    %69 = vector.shape_cast %68 : vector<16xf32> to vector<16x1xf32>
    %70 = vector.broadcast %69 : vector<16x1xf32> to vector<16x16xf32>
    %71 = arith.subf %67, %70 : vector<16x16xf32>
    %72 = math.exp %71 : vector<16x16xf32>
    %cst_24 = arith.constant dense<0.000000e+00> : vector<16xf32>
    %73 = vector.multi_reduction <add>, %72, %cst_24 [1] : vector<16x16xf32> to vector<16xf32>
    %74 = vector.shape_cast %73 : vector<16xf32> to vector<16x1xf32>
    %75 = tpu.reciprocal %74 {approx = true} : vector<16x1xf32> -> vector<16x1xf32>
    %76 = vector.broadcast %75 : vector<16x1xf32> to vector<16x16xf32>
    %77 = arith.mulf %72, %76 : vector<16x16xf32>
    %78 = arith.truncf %77 : vector<16x16xf32> to vector<16x16xbf16>
    %cst_25 = arith.constant dense<0.000000e+00> : vector<16x128xf32>
    %79 = tpu.matmul %78, %66, %cst_25 {dimension_numbers = #tpu.dot_dimension_numbers<[1], [0], [0], [1], [0, 0, 1, 1], [], []>} : vector<16x16xbf16>, vector<16x128xbf16>, vector<16x128xf32> -> vector<16x128xf32>
    %c0_26 = arith.constant 0 : index
    %c384 = arith.constant 384 : index
    %80 = vector.load %arg6[%c0_26, %c384] : memref<32x512xf32, #tpu.memory_space<vmem>>, vector<16x128xf32>
    tpu.vector_store %arg6[%c0_26, %c384], %79 {strides = array<i32>} : memref<32x512xf32, #tpu.memory_space<vmem>>, vector<16x128xf32>,
    %81 = vector.extract_strided_slice %11 {offsets = [16, 0], sizes = [16, 1536], strides = [1, 1]} : vector<32x1536xbf16> to vector<16x1536xbf16>
    %82 = vector.extract_strided_slice %81 {offsets = [0, 0], sizes = [16, 128], strides = [1, 1]} : vector<16x1536xbf16> to vector<16x128xbf16>
    %83 = vector.extract_strided_slice %81 {offsets = [0, 512], sizes = [16, 128], strides = [1, 1]} : vector<16x1536xbf16> to vector<16x128xbf16>
    %84 = vector.extract_strided_slice %81 {offsets = [0, 1024], sizes = [16, 128], strides = [1, 1]} : vector<16x1536xbf16> to vector<16x128xbf16>
    %cst_27 = arith.constant dense<0.000000e+00> : vector<16x16xf32>
    %85 = tpu.matmul %82, %83, %cst_27 {dimension_numbers = #tpu.dot_dimension_numbers<[1], [1], [0], [0], [0, 0, 1, 0], [], []>} : vector<16x128xbf16>, vector<16x128xbf16>, vector<16x16xf32> -> vector<16x16xf32>
    %cst_28 = arith.constant dense<0xFF800000> : vector<16xf32>
    %86 = vector.multi_reduction <maximumf>, %85, %cst_28 [1] : vector<16x16xf32> to vector<16xf32>
    %87 = vector.shape_cast %86 : vector<16xf32> to vector<16x1xf32>
    %88 = vector.broadcast %87 : vector<16x1xf32> to vector<16x16xf32>
    %89 = arith.subf %85, %88 : vector<16x16xf32>
    %90 = math.exp %89 : vector<16x16xf32>
    %cst_29 = arith.constant dense<0.000000e+00> : vector<16xf32>
    %91 = vector.multi_reduction <add>, %90, %cst_29 [1] : vector<16x16xf32> to vector<16xf32>
    %92 = vector.shape_cast %91 : vector<16xf32> to vector<16x1xf32>
    %93 = tpu.reciprocal %92 {approx = true} : vector<16x1xf32> -> vector<16x1xf32>
    %94 = vector.broadcast %93 : vector<16x1xf32> to vector<16x16xf32>
    %95 = arith.mulf %90, %94 : vector<16x16xf32>
    %96 = arith.truncf %95 : vector<16x16xf32> to vector<16x16xbf16>
    %cst_30 = arith.constant dense<0.000000e+00> : vector<16x128xf32>
    %97 = tpu.matmul %96, %84, %cst_30 {dimension_numbers = #tpu.dot_dimension_numbers<[1], [0], [0], [1], [0, 0, 1, 1], [], []>} : vector<16x16xbf16>, vector<16x128xbf16>, vector<16x128xf32> -> vector<16x128xf32>
    %c16 = arith.constant 16 : index
    %c0_31 = arith.constant 0 : index
    %98 = vector.load %arg6[%c16, %c0_31] : memref<32x512xf32, #tpu.memory_space<vmem>>, vector<16x128xf32>
    tpu.vector_store %arg6[%c16, %c0_31], %97 {strides = array<i32>} : memref<32x512xf32, #tpu.memory_space<vmem>>, vector<16x128xf32>,
    %99 = vector.extract_strided_slice %81 {offsets = [0, 128], sizes = [16, 128], strides = [1, 1]} : vector<16x1536xbf16> to vector<16x128xbf16>
    %100 = vector.extract_strided_slice %81 {offsets = [0, 640], sizes = [16, 128], strides = [1, 1]} : vector<16x1536xbf16> to vector<16x128xbf16>
    %101 = vector.extract_strided_slice %81 {offsets = [0, 1152], sizes = [16, 128], strides = [1, 1]} : vector<16x1536xbf16> to vector<16x128xbf16>
    %cst_32 = arith.constant dense<0.000000e+00> : vector<16x16xf32>
    %102 = tpu.matmul %99, %100, %cst_32 {dimension_numbers = #tpu.dot_dimension_numbers<[1], [1], [0], [0], [0, 0, 1, 0], [], []>} : vector<16x128xbf16>, vector<16x128xbf16>, vector<16x16xf32> -> vector<16x16xf32>
    %cst_33 = arith.constant dense<0xFF800000> : vector<16xf32>
    %103 = vector.multi_reduction <maximumf>, %102, %cst_33 [1] : vector<16x16xf32> to vector<16xf32>
    %104 = vector.shape_cast %103 : vector<16xf32> to vector<16x1xf32>
    %105 = vector.broadcast %104 : vector<16x1xf32> to vector<16x16xf32>
    %106 = arith.subf %102, %105 : vector<16x16xf32>
    %107 = math.exp %106 : vector<16x16xf32>
    %cst_34 = arith.constant dense<0.000000e+00> : vector<16xf32>
    %108 = vector.multi_reduction <add>, %107, %cst_34 [1] : vector<16x16xf32> to vector<16xf32>
    %109 = vector.shape_cast %108 : vector<16xf32> to vector<16x1xf32>
    %110 = tpu.reciprocal %109 {approx = true} : vector<16x1xf32> -> vector<16x1xf32>
    %111 = vector.broadcast %110 : vector<16x1xf32> to vector<16x16xf32>
    %112 = arith.mulf %107, %111 : vector<16x16xf32>
    %113 = arith.truncf %112 : vector<16x16xf32> to vector<16x16xbf16>
    %cst_35 = arith.constant dense<0.000000e+00> : vector<16x128xf32>
    %114 = tpu.matmul %113, %101, %cst_35 {dimension_numbers = #tpu.dot_dimension_numbers<[1], [0], [0], [1], [0, 0, 1, 1], [], []>} : vector<16x16xbf16>, vector<16x128xbf16>, vector<16x128xf32> -> vector<16x128xf32>
    %c16_36 = arith.constant 16 : index
    %c128_37 = arith.constant 128 : index
    %115 = vector.load %arg6[%c16_36, %c128_37] : memref<32x512xf32, #tpu.memory_space<vmem>>, vector<16x128xf32>
    tpu.vector_store %arg6[%c16_36, %c128_37], %114 {strides = array<i32>} : memref<32x512xf32, #tpu.memory_space<vmem>>, vector<16x128xf32>,
    %116 = vector.extract_strided_slice %81 {offsets = [0, 256], sizes = [16, 128], strides = [1, 1]} : vector<16x1536xbf16> to vector<16x128xbf16>
    %117 = vector.extract_strided_slice %81 {offsets = [0, 768], sizes = [16, 128], strides = [1, 1]} : vector<16x1536xbf16> to vector<16x128xbf16>
    %118 = vector.extract_strided_slice %81 {offsets = [0, 1280], sizes = [16, 128], strides = [1, 1]} : vector<16x1536xbf16> to vector<16x128xbf16>
    %cst_38 = arith.constant dense<0.000000e+00> : vector<16x16xf32>
    %119 = tpu.matmul %116, %117, %cst_38 {dimension_numbers = #tpu.dot_dimension_numbers<[1], [1], [0], [0], [0, 0, 1, 0], [], []>} : vector<16x128xbf16>, vector<16x128xbf16>, vector<16x16xf32> -> vector<16x16xf32>
    %cst_39 = arith.constant dense<0xFF800000> : vector<16xf32>
    %120 = vector.multi_reduction <maximumf>, %119, %cst_39 [1] : vector<16x16xf32> to vector<16xf32>
    %121 = vector.shape_cast %120 : vector<16xf32> to vector<16x1xf32>
    %122 = vector.broadcast %121 : vector<16x1xf32> to vector<16x16xf32>
    %123 = arith.subf %119, %122 : vector<16x16xf32>
    %124 = math.exp %123 : vector<16x16xf32>
    %cst_40 = arith.constant dense<0.000000e+00> : vector<16xf32>
    %125 = vector.multi_reduction <add>, %124, %cst_40 [1] : vector<16x16xf32> to vector<16xf32>
    %126 = vector.shape_cast %125 : vector<16xf32> to vector<16x1xf32>
    %127 = tpu.reciprocal %126 {approx = true} : vector<16x1xf32> -> vector<16x1xf32>
    %128 = vector.broadcast %127 : vector<16x1xf32> to vector<16x16xf32>
    %129 = arith.mulf %124, %128 : vector<16x16xf32>
    %130 = arith.truncf %129 : vector<16x16xf32> to vector<16x16xbf16>
    %cst_41 = arith.constant dense<0.000000e+00> : vector<16x128xf32>
    %131 = tpu.matmul %130, %118, %cst_41 {dimension_numbers = #tpu.dot_dimension_numbers<[1], [0], [0], [1], [0, 0, 1, 1], [], []>} : vector<16x16xbf16>, vector<16x128xbf16>, vector<16x128xf32> -> vector<16x128xf32>
    %c16_42 = arith.constant 16 : index
    %c256_43 = arith.constant 256 : index
    %132 = vector.load %arg6[%c16_42, %c256_43] : memref<32x512xf32, #tpu.memory_space<vmem>>, vector<16x128xf32>
    tpu.vector_store %arg6[%c16_42, %c256_43], %131 {strides = array<i32>} : memref<32x512xf32, #tpu.memory_space<vmem>>, vector<16x128xf32>,
    %133 = vector.extract_strided_slice %81 {offsets = [0, 384], sizes = [16, 128], strides = [1, 1]} : vector<16x1536xbf16> to vector<16x128xbf16>
    %134 = vector.extract_strided_slice %81 {offsets = [0, 896], sizes = [16, 128], strides = [1, 1]} : vector<16x1536xbf16> to vector<16x128xbf16>
    %135 = vector.extract_strided_slice %81 {offsets = [0, 1408], sizes = [16, 128], strides = [1, 1]} : vector<16x1536xbf16> to vector<16x128xbf16>
    %cst_44 = arith.constant dense<0.000000e+00> : vector<16x16xf32>
    %136 = tpu.matmul %133, %134, %cst_44 {dimension_numbers = #tpu.dot_dimension_numbers<[1], [1], [0], [0], [0, 0, 1, 0], [], []>} : vector<16x128xbf16>, vector<16x128xbf16>, vector<16x16xf32> -> vector<16x16xf32>
    %cst_45 = arith.constant dense<0xFF800000> : vector<16xf32>
    %137 = vector.multi_reduction <maximumf>, %136, %cst_45 [1] : vector<16x16xf32> to vector<16xf32>
    %138 = vector.shape_cast %137 : vector<16xf32> to vector<16x1xf32>
    %139 = vector.broadcast %138 : vector<16x1xf32> to vector<16x16xf32>
    %140 = arith.subf %136, %139 : vector<16x16xf32>
    %141 = math.exp %140 : vector<16x16xf32>
    %cst_46 = arith.constant dense<0.000000e+00> : vector<16xf32>
    %142 = vector.multi_reduction <add>, %141, %cst_46 [1] : vector<16x16xf32> to vector<16xf32>
    %143 = vector.shape_cast %142 : vector<16xf32> to vector<16x1xf32>
    %144 = tpu.reciprocal %143 {approx = true} : vector<16x1xf32> -> vector<16x1xf32>
    %145 = vector.broadcast %144 : vector<16x1xf32> to vector<16x16xf32>
    %146 = arith.mulf %141, %145 : vector<16x16xf32>
    %147 = arith.truncf %146 : vector<16x16xf32> to vector<16x16xbf16>
    %cst_47 = arith.constant dense<0.000000e+00> : vector<16x128xf32>
    %148 = tpu.matmul %147, %135, %cst_47 {dimension_numbers = #tpu.dot_dimension_numbers<[1], [0], [0], [1], [0, 0, 1, 1], [], []>} : vector<16x16xbf16>, vector<16x128xbf16>, vector<16x128xf32> -> vector<16x128xf32>
    %c16_48 = arith.constant 16 : index
    %c384_49 = arith.constant 384 : index
    %149 = vector.load %arg6[%c16_48, %c384_49] : memref<32x512xf32, #tpu.memory_space<vmem>>, vector<16x128xf32>
    tpu.vector_store %arg6[%c16_48, %c384_49], %148 {strides = array<i32>} : memref<32x512xf32, #tpu.memory_space<vmem>>, vector<16x128xf32>,
    %c0_50 = arith.constant 0 : index
    %c0_51 = arith.constant 0 : index
    %150 = vector.load %arg6[%c0_50, %c0_51] : memref<32x512xf32, #tpu.memory_space<vmem>>, vector<32x512xf32>
    %151 = arith.addf %150, %7 : vector<32x512xf32>
    %cst_52 = arith.constant dense<0.000000e+00> : vector<32xf32>
    %152 = vector.multi_reduction <add>, %151, %cst_52 [1] : vector<32x512xf32> to vector<32xf32>
    %153 = vector.shape_cast %152 : vector<32xf32> to vector<32x1xf32>
    %cst_53 = arith.constant 5.120000e+02 : f32
    %154 = vector.broadcast %cst_53 : f32 to vector<32x1xf32>
    %155 = arith.divf %153, %154 : vector<32x1xf32>
    %156 = vector.broadcast %155 : vector<32x1xf32> to vector<32x512xf32>
    %157 = arith.subf %151, %156 : vector<32x512xf32>
    %158 = arith.mulf %157, %157 : vector<32x512xf32>
    %cst_54 = arith.constant dense<0.000000e+00> : vector<32xf32>
    %159 = vector.multi_reduction <add>, %158, %cst_54 [1] : vector<32x512xf32> to vector<32xf32>
    %160 = vector.shape_cast %159 : vector<32xf32> to vector<32x1xf32>
    %cst_55 = arith.constant 5.120000e+02 : f32
    %161 = vector.broadcast %cst_55 : f32 to vector<32x1xf32>
    %162 = arith.divf %160, %161 : vector<32x1xf32>
    %cst_56 = arith.constant 9.99999974E-6 : f32
    %163 = vector.broadcast %cst_56 : f32 to vector<32x1xf32>
    %164 = arith.addf %162, %163 : vector<32x1xf32>
    %165 = math.rsqrt %164 : vector<32x1xf32>
    %166 = vector.broadcast %165 : vector<32x1xf32> to vector<32x512xf32>
    %167 = arith.mulf %157, %166 : vector<32x512xf32>
    %168 = vector.broadcast %2 : vector<1x512xf32> to vector<32x512xf32>
    %169 = arith.mulf %167, %168 : vector<32x512xf32>
    %170 = vector.broadcast %3 : vector<1x512xf32> to vector<32x512xf32>
    %171 = arith.addf %169, %170 : vector<32x512xf32>
    %172 = arith.truncf %171 : vector<32x512xf32> to vector<32x512xbf16>
    %c0_57 = arith.constant 0 : index
    %c0_58 = arith.constant 0 : index
    %173 = vector.load %arg3[%c0_57, %c0_58] : memref<512x512xbf16, #tpu.memory_space<vmem>>, vector<512x512xbf16>
    %cst_59 = arith.constant dense<0.000000e+00> : vector<32x512xf32>
    %174 = tpu.matmul %172, %173, %cst_59 {dimension_numbers = #tpu.dot_dimension_numbers<[1], [0], [0], [1], [0, 0, 1, 1], [], []>} : vector<32x512xbf16>, vector<512x512xbf16>, vector<32x512xf32> -> vector<32x512xf32>
    %175 = vector.broadcast %1 : vector<1x512xf32> to vector<32x512xf32>
    %176 = arith.addf %174, %175 : vector<32x512xf32>
    %177 = arith.addf %176, %171 : vector<32x512xf32>
    %cst_60 = arith.constant dense<0.000000e+00> : vector<32xf32>
    %178 = vector.multi_reduction <add>, %177, %cst_60 [1] : vector<32x512xf32> to vector<32xf32>
    %179 = vector.shape_cast %178 : vector<32xf32> to vector<32x1xf32>
    %cst_61 = arith.constant 5.120000e+02 : f32
    %180 = vector.broadcast %cst_61 : f32 to vector<32x1xf32>
    %181 = arith.divf %179, %180 : vector<32x1xf32>
    %182 = vector.broadcast %181 : vector<32x1xf32> to vector<32x512xf32>
    %183 = arith.subf %177, %182 : vector<32x512xf32>
    %184 = arith.mulf %183, %183 : vector<32x512xf32>
    %cst_62 = arith.constant dense<0.000000e+00> : vector<32xf32>
    %185 = vector.multi_reduction <add>, %184, %cst_62 [1] : vector<32x512xf32> to vector<32xf32>
    %186 = vector.shape_cast %185 : vector<32xf32> to vector<32x1xf32>
    %cst_63 = arith.constant 5.120000e+02 : f32
    %187 = vector.broadcast %cst_63 : f32 to vector<32x1xf32>
    %188 = arith.divf %186, %187 : vector<32x1xf32>
    %cst_64 = arith.constant 9.99999974E-6 : f32
    %189 = vector.broadcast %cst_64 : f32 to vector<32x1xf32>
    %190 = arith.addf %188, %189 : vector<32x1xf32>
    %191 = math.rsqrt %190 : vector<32x1xf32>
    %192 = vector.broadcast %191 : vector<32x1xf32> to vector<32x512xf32>
    %193 = arith.mulf %183, %192 : vector<32x512xf32>
    %194 = vector.broadcast %4 : vector<1x512xf32> to vector<32x512xf32>
    %195 = arith.mulf %193, %194 : vector<32x512xf32>
    %196 = vector.broadcast %5 : vector<1x512xf32> to vector<32x512xf32>
    %197 = arith.addf %195, %196 : vector<32x512xf32>
    %198 = vector.shape_cast %197 : vector<32x512xf32> to vector<2x16x512xf32>
    %c0_65 = arith.constant 0 : index
    %c0_66 = arith.constant 0 : index
    %c0_67 = arith.constant 0 : index
    %199 = vector.load %arg5[%c0_65, %c0_66, %c0_67] : memref<2x16x512xf32, #tpu.memory_space<vmem>>, vector<2x16x512xf32>
    tpu.vector_store %arg5[%c0_65, %c0_66, %c0_67], %198 {strides = array<i32>} : memref<2x16x512xf32, #tpu.memory_space<vmem>>, vector<2x16x512xf32>,
    return
  }
  func.func @transform_0(%arg0: i32) -> (i32, i32, i32) {
    %c0_i32 = arith.constant 0 : i32
    %c0_i32_0 = arith.constant 0 : i32
    %c0_i32_1 = arith.constant 0 : i32
    %c0_i32_2 = arith.constant 0 : i32
    return %c0_i32, %c0_i32_0, %c0_i32_1 : i32, i32, i32
  }
  func.func @transform_1(%arg0: i32) -> (i32, i32) {
    %c0_i32 = arith.constant 0 : i32
    %c0_i32_0 = arith.constant 0 : i32
    %c0_i32_1 = arith.constant 0 : i32
    return %c0_i32, %c0_i32_0 : i32, i32
  }
  func.func @transform_2(%arg0: i32) -> (i32, i32) {
    %c0_i32 = arith.constant 0 : i32
    %c0_i32_0 = arith.constant 0 : i32
    %c0_i32_1 = arith.constant 0 : i32
    return %c0_i32, %c0_i32_0 : i32, i32
  }
  func.func @transform_3(%arg0: i32) -> (i32, i32) {
    %c0_i32 = arith.constant 0 : i32
    %c0_i32_0 = arith.constant 0 : i32
    %c0_i32_1 = arith.constant 0 : i32
    return %c0_i32, %c0_i32_0 : i32, i32
  }
  func.func @transform_4(%arg0: i32) -> (i32, i32, i32) {
    %c0_i32 = arith.constant 0 : i32
    %c0_i32_0 = arith.constant 0 : i32
    %c0_i32_1 = arith.constant 0 : i32
    %c0_i32_2 = arith.constant 0 : i32
    return %c0_i32, %c0_i32_0, %c0_i32_1 : i32, i32, i32
  }
}

module attributes {stable_mosaic.version = 11 : i64} {
  func.func @kernel(%arg0: i32, %arg1: memref<2x16x512xf32, #tpu.memory_space<vmem>>, %arg2: memref<512x1536xbf16, #tpu.memory_space<vmem>>, %arg3: memref<512x512xbf16, #tpu.memory_space<vmem>>, %arg4: memref<8x512xf32, #tpu.memory_space<vmem>>, %arg5: memref<2x16x512xf32, #tpu.memory_space<vmem>>, %arg6: memref<32x512xf32, #tpu.memory_space<vmem>>) attributes {dimension_semantics = [#tpu.dimension_semantics<arbitrary>], iteration_bounds = array<i64: 1>, scalar_prefetch = 0 : i64, scratch_operands = 1 : i64, tpu.core_type = #tpu.core_type<tc>, window_params = [{pipeline_mode = #tpu.pipeline_mode<synchronous>, transform_indices = @transform_0, window_bounds = array<i64: 2, 16, 512>}, {pipeline_mode = #tpu.pipeline_mode<synchronous>, transform_indices = @transform_1, window_bounds = array<i64: 512, 1536>}, {pipeline_mode = #tpu.pipeline_mode<synchronous>, transform_indices = @transform_2, window_bounds = array<i64: 512, 512>}, {pipeline_mode = #tpu.pipeline_mode<synchronous>, transform_indices = @transform_3, window_bounds = array<i64: 8, 512>}, {pipeline_mode = #tpu.pipeline_mode<synchronous>, transform_indices = @transform_4, window_bounds = array<i64: 2, 16, 512>}]} {
    %c0 = arith.constant 0 : index
    %c0_0 = arith.constant 0 : index
    %0 = vector.load %arg4[%c0, %c0_0] : memref<8x512xf32, #tpu.memory_space<vmem>>, vector<8x512xf32>
    %1 = vector.extract_strided_slice %0 {offsets = [0, 0], sizes = [1, 512], strides = [1, 1]} : vector<8x512xf32> to vector<1x512xf32>
    %2 = vector.extract_strided_slice %0 {offsets = [1, 0], sizes = [1, 512], strides = [1, 1]} : vector<8x512xf32> to vector<1x512xf32>
    %3 = vector.extract_strided_slice %0 {offsets = [2, 0], sizes = [1, 512], strides = [1, 1]} : vector<8x512xf32> to vector<1x512xf32>
    %4 = vector.extract_strided_slice %0 {offsets = [3, 0], sizes = [1, 512], strides = [1, 1]} : vector<8x512xf32> to vector<1x512xf32>
    %5 = vector.extract_strided_slice %0 {offsets = [4, 0], sizes = [1, 512], strides = [1, 1]} : vector<8x512xf32> to vector<1x512xf32>
    %c0_1 = arith.constant 0 : index
    %c0_2 = arith.constant 0 : index
    %c0_3 = arith.constant 0 : index
    %6 = vector.load %arg1[%c0_1, %c0_2, %c0_3] : memref<2x16x512xf32, #tpu.memory_space<vmem>>, vector<2x16x512xf32>
    %7 = vector.shape_cast %6 : vector<2x16x512xf32> to vector<32x512xf32>
    %8 = arith.truncf %7 : vector<32x512xf32> to vector<32x512xbf16>
    %c0_4 = arith.constant 0 : index
    %c0_5 = arith.constant 0 : index
    %9 = vector.load %arg2[%c0_4, %c0_5] : memref<512x1536xbf16, #tpu.memory_space<vmem>>, vector<512x1536xbf16>
    %cst = arith.constant dense<0.000000e+00> : vector<32x1536xf32>
    %10 = tpu.matmul %8, %9, %cst {dimension_numbers = #tpu.dot_dimension_numbers<[1], [0], [0], [1], [0, 0, 1, 1], [], []>} : vector<32x512xbf16>, vector<512x1536xbf16>, vector<32x1536xf32> -> vector<32x1536xf32>
    %11 = arith.truncf %10 : vector<32x1536xf32> to vector<32x1536xbf16>
    %12 = vector.extract_strided_slice %11 {offsets = [0, 0], sizes = [16, 1536], strides = [1, 1]} : vector<32x1536xbf16> to vector<16x1536xbf16>
    %13 = vector.extract_strided_slice %12 {offsets = [0, 0], sizes = [16, 128], strides = [1, 1]} : vector<16x1536xbf16> to vector<16x128xbf16>
    %14 = vector.extract_strided_slice %12 {offsets = [0, 512], sizes = [16, 128], strides = [1, 1]} : vector<16x1536xbf16> to vector<16x128xbf16>
    %15 = vector.extract_strided_slice %12 {offsets = [0, 1024], sizes = [16, 128], strides = [1, 1]} : vector<16x1536xbf16> to vector<16x128xbf16>
    %cst_6 = arith.constant dense<0.000000e+00> : vector<16x16xf32>
    %16 = tpu.matmul %13, %14, %cst_6 {dimension_numbers = #tpu.dot_dimension_numbers<[1], [1], [0], [0], [0, 0, 1, 0], [], []>} : vector<16x128xbf16>, vector<16x128xbf16>, vector<16x16xf32> -> vector<16x16xf32>
    %cst_7 = arith.constant dense<0xFF800000> : vector<16xf32>
    %17 = vector.multi_reduction <maximumf>, %16, %cst_7 [1] : vector<16x16xf32> to vector<16xf32>
    %18 = vector.shape_cast %17 : vector<16xf32> to vector<16x1xf32>
    %19 = vector.broadcast %18 : vector<16x1xf32> to vector<16x16xf32>
    %20 = arith.subf %16, %19 : vector<16x16xf32>
    %21 = math.exp %20 : vector<16x16xf32>
    %cst_8 = arith.constant dense<0.000000e+00> : vector<16xf32>
    %22 = vector.multi_reduction <add>, %21, %cst_8 [1] : vector<16x16xf32> to vector<16xf32>
    %23 = vector.shape_cast %22 : vector<16xf32> to vector<16x1xf32>
    %24 = tpu.reciprocal %23 {approx = true} : vector<16x1xf32> -> vector<16x1xf32>
    %25 = vector.broadcast %24 : vector<16x1xf32> to vector<16x16xf32>
    %26 = arith.mulf %21, %25 : vector<16x16xf32>
    %27 = arith.truncf %26 : vector<16x16xf32> to vector<16x16xbf16>
    %cst_9 = arith.constant dense<0.000000e+00> : vector<16x128xf32>
    %28 = tpu.matmul %27, %15, %cst_9 {dimension_numbers = #tpu.dot_dimension_numbers<[1], [0], [0], [1], [0, 0, 1, 1], [], []>} : vector<16x16xbf16>, vector<16x128xbf16>, vector<16x128xf32> -> vector<16x128xf32>
    %c0_10 = arith.constant 0 : index
    %c0_11 = arith.constant 0 : index
    %29 = vector.load %arg6[%c0_10, %c0_11] : memref<32x512xf32, #tpu.memory_space<vmem>>, vector<16x128xf32>
    tpu.vector_store %arg6[%c0_10, %c0_11], %28 {strides = array<i32>} : memref<32x512xf32, #tpu.memory_space<vmem>>, vector<16x128xf32>,
    %30 = vector.extract_strided_slice %12 {offsets = [0, 128], sizes = [16, 128], strides = [1, 1]} : vector<16x1536xbf16> to vector<16x128xbf16>
    %31 = vector.extract_strided_slice %12 {offsets = [0, 640], sizes = [16, 128], strides = [1, 1]} : vector<16x1536xbf16> to vector<16x128xbf16>
    %32 = vector.extract_strided_slice %12 {offsets = [0, 1152], sizes = [16, 128], strides = [1, 1]} : vector<16x1536xbf16> to vector<16x128xbf16>
    %cst_12 = arith.constant dense<0.000000e+00> : vector<16x16xf32>
    %33 = tpu.matmul %30, %31, %cst_12 {dimension_numbers = #tpu.dot_dimension_numbers<[1], [1], [0], [0], [0, 0, 1, 0], [], []>} : vector<16x128xbf16>, vector<16x128xbf16>, vector<16x16xf32> -> vector<16x16xf32>
    %cst_13 = arith.constant dense<0xFF800000> : vector<16xf32>
    %34 = vector.multi_reduction <maximumf>, %33, %cst_13 [1] : vector<16x16xf32> to vector<16xf32>
    %35 = vector.shape_cast %34 : vector<16xf32> to vector<16x1xf32>
    %36 = vector.broadcast %35 : vector<16x1xf32> to vector<16x16xf32>
    %37 = arith.subf %33, %36 : vector<16x16xf32>
    %38 = math.exp %37 : vector<16x16xf32>
    %cst_14 = arith.constant dense<0.000000e+00> : vector<16xf32>
    %39 = vector.multi_reduction <add>, %38, %cst_14 [1] : vector<16x16xf32> to vector<16xf32>
    %40 = vector.shape_cast %39 : vector<16xf32> to vector<16x1xf32>
    %41 = tpu.reciprocal %40 {approx = true} : vector<16x1xf32> -> vector<16x1xf32>
    %42 = vector.broadcast %41 : vector<16x1xf32> to vector<16x16xf32>
    %43 = arith.mulf %38, %42 : vector<16x16xf32>
    %44 = arith.truncf %43 : vector<16x16xf32> to vector<16x16xbf16>
    %cst_15 = arith.constant dense<0.000000e+00> : vector<16x128xf32>
    %45 = tpu.matmul %44, %32, %cst_15 {dimension_numbers = #tpu.dot_dimension_numbers<[1], [0], [0], [1], [0, 0, 1, 1], [], []>} : vector<16x16xbf16>, vector<16x128xbf16>, vector<16x128xf32> -> vector<16x128xf32>
    %c0_16 = arith.constant 0 : index
    %c128 = arith.constant 128 : index
    %46 = vector.load %arg6[%c0_16, %c128] : memref<32x512xf32, #tpu.memory_space<vmem>>, vector<16x128xf32>
    tpu.vector_store %arg6[%c0_16, %c128], %45 {strides = array<i32>} : memref<32x512xf32, #tpu.memory_space<vmem>>, vector<16x128xf32>,
    %47 = vector.extract_strided_slice %12 {offsets = [0, 256], sizes = [16, 128], strides = [1, 1]} : vector<16x1536xbf16> to vector<16x128xbf16>
    %48 = vector.extract_strided_slice %12 {offsets = [0, 768], sizes = [16, 128], strides = [1, 1]} : vector<16x1536xbf16> to vector<16x128xbf16>
    %49 = vector.extract_strided_slice %12 {offsets = [0, 1280], sizes = [16, 128], strides = [1, 1]} : vector<16x1536xbf16> to vector<16x128xbf16>
    %cst_17 = arith.constant dense<0.000000e+00> : vector<16x16xf32>
    %50 = tpu.matmul %47, %48, %cst_17 {dimension_numbers = #tpu.dot_dimension_numbers<[1], [1], [0], [0], [0, 0, 1, 0], [], []>} : vector<16x128xbf16>, vector<16x128xbf16>, vector<16x16xf32> -> vector<16x16xf32>
    %cst_18 = arith.constant dense<0xFF800000> : vector<16xf32>
    %51 = vector.multi_reduction <maximumf>, %50, %cst_18 [1] : vector<16x16xf32> to vector<16xf32>
    %52 = vector.shape_cast %51 : vector<16xf32> to vector<16x1xf32>
    %53 = vector.broadcast %52 : vector<16x1xf32> to vector<16x16xf32>
    %54 = arith.subf %50, %53 : vector<16x16xf32>
    %55 = math.exp %54 : vector<16x16xf32>
    %cst_19 = arith.constant dense<0.000000e+00> : vector<16xf32>
    %56 = vector.multi_reduction <add>, %55, %cst_19 [1] : vector<16x16xf32> to vector<16xf32>
    %57 = vector.shape_cast %56 : vector<16xf32> to vector<16x1xf32>
    %58 = tpu.reciprocal %57 {approx = true} : vector<16x1xf32> -> vector<16x1xf32>
    %59 = vector.broadcast %58 : vector<16x1xf32> to vector<16x16xf32>
    %60 = arith.mulf %55, %59 : vector<16x16xf32>
    %61 = arith.truncf %60 : vector<16x16xf32> to vector<16x16xbf16>
    %cst_20 = arith.constant dense<0.000000e+00> : vector<16x128xf32>
    %62 = tpu.matmul %61, %49, %cst_20 {dimension_numbers = #tpu.dot_dimension_numbers<[1], [0], [0], [1], [0, 0, 1, 1], [], []>} : vector<16x16xbf16>, vector<16x128xbf16>, vector<16x128xf32> -> vector<16x128xf32>
    %c0_21 = arith.constant 0 : index
    %c256 = arith.constant 256 : index
    %63 = vector.load %arg6[%c0_21, %c256] : memref<32x512xf32, #tpu.memory_space<vmem>>, vector<16x128xf32>
    tpu.vector_store %arg6[%c0_21, %c256], %62 {strides = array<i32>} : memref<32x512xf32, #tpu.memory_space<vmem>>, vector<16x128xf32>,
    %64 = vector.extract_strided_slice %12 {offsets = [0, 384], sizes = [16, 128], strides = [1, 1]} : vector<16x1536xbf16> to vector<16x128xbf16>
    %65 = vector.extract_strided_slice %12 {offsets = [0, 896], sizes = [16, 128], strides = [1, 1]} : vector<16x1536xbf16> to vector<16x128xbf16>
    %66 = vector.extract_strided_slice %12 {offsets = [0, 1408], sizes = [16, 128], strides = [1, 1]} : vector<16x1536xbf16> to vector<16x128xbf16>
    %cst_22 = arith.constant dense<0.000000e+00> : vector<16x16xf32>
    %67 = tpu.matmul %64, %65, %cst_22 {dimension_numbers = #tpu.dot_dimension_numbers<[1], [1], [0], [0], [0, 0, 1, 0], [], []>} : vector<16x128xbf16>, vector<16x128xbf16>, vector<16x16xf32> -> vector<16x16xf32>
    %cst_23 = arith.constant dense<0xFF800000> : vector<16xf32>
    %68 = vector.multi_reduction <maximumf>, %67, %cst_23 [1] : vector<16x16xf32> to vector<16xf32>
    %69 = vector.shape_cast %68 : vector<16xf32> to vector<16x1xf32>
    %70 = vector.broadcast %69 : vector<16x1xf32> to vector<16x16xf32>
    %71 = arith.subf %67, %70 : vector<16x16xf32>
    %72 = math.exp %71 : vector<16x16xf32>
    %cst_24 = arith.constant dense<0.000000e+00> : vector<16xf32>
    %73 = vector.multi_reduction <add>, %72, %cst_24 [1] : vector<16x16xf32> to vector<16xf32>
    %74 = vector.shape_cast %73 : vector<16xf32> to vector<16x1xf32>
    %75 = tpu.reciprocal %74 {approx = true} : vector<16x1xf32> -> vector<16x1xf32>
    %76 = vector.broadcast %75 : vector<16x1xf32> to vector<16x16xf32>
    %77 = arith.mulf %72, %76 : vector<16x16xf32>
    %78 = arith.truncf %77 : vector<16x16xf32> to vector<16x16xbf16>
    %cst_25 = arith.constant dense<0.000000e+00> : vector<16x128xf32>
    %79 = tpu.matmul %78, %66, %cst_25 {dimension_numbers = #tpu.dot_dimension_numbers<[1], [0], [0], [1], [0, 0, 1, 1], [], []>} : vector<16x16xbf16>, vector<16x128xbf16>, vector<16x128xf32> -> vector<16x128xf32>
    %c0_26 = arith.constant 0 : index
    %c384 = arith.constant 384 : index
    %80 = vector.load %arg6[%c0_26, %c384] : memref<32x512xf32, #tpu.memory_space<vmem>>, vector<16x128xf32>
    tpu.vector_store %arg6[%c0_26, %c384], %79 {strides = array<i32>} : memref<32x512xf32, #tpu.memory_space<vmem>>, vector<16x128xf32>,
    %81 = vector.extract_strided_slice %11 {offsets = [16, 0], sizes = [16, 1536], strides = [1, 1]} : vector<32x1536xbf16> to vector<16x1536xbf16>
    %82 = vector.extract_strided_slice %81 {offsets = [0, 0], sizes = [16, 128], strides = [1, 1]} : vector<16x1536xbf16> to vector<16x128xbf16>
    %83 = vector.extract_strided_slice %81 {offsets = [0, 512], sizes = [16, 128], strides = [1, 1]} : vector<16x1536xbf16> to vector<16x128xbf16>
    %84 = vector.extract_strided_slice %81 {offsets = [0, 1024], sizes = [16, 128], strides = [1, 1]} : vector<16x1536xbf16> to vector<16x128xbf16>
    %cst_27 = arith.constant dense<0.000000e+00> : vector<16x16xf32>
    %85 = tpu.matmul %82, %83, %cst_27 {dimension_numbers = #tpu.dot_dimension_numbers<[1], [1], [0], [0], [0, 0, 1, 0], [], []>} : vector<16x128xbf16>, vector<16x128xbf16>, vector<16x16xf32> -> vector<16x16xf32>
    %cst_28 = arith.constant dense<0xFF800000> : vector<16xf32>
    %86 = vector.multi_reduction <maximumf>, %85, %cst_28 [1] : vector<16x16xf32> to vector<16xf32>
    %87 = vector.shape_cast %86 : vector<16xf32> to vector<16x1xf32>
    %88 = vector.broadcast %87 : vector<16x1xf32> to vector<16x16xf32>
    %89 = arith.subf %85, %88 : vector<16x16xf32>
    %90 = math.exp %89 : vector<16x16xf32>
    %cst_29 = arith.constant dense<0.000000e+00> : vector<16xf32>
    %91 = vector.multi_reduction <add>, %90, %cst_29 [1] : vector<16x16xf32> to vector<16xf32>
    %92 = vector.shape_cast %91 : vector<16xf32> to vector<16x1xf32>
    %93 = tpu.reciprocal %92 {approx = true} : vector<16x1xf32> -> vector<16x1xf32>
    %94 = vector.broadcast %93 : vector<16x1xf32> to vector<16x16xf32>
    %95 = arith.mulf %90, %94 : vector<16x16xf32>
    %96 = arith.truncf %95 : vector<16x16xf32> to vector<16x16xbf16>
    %cst_30 = arith.constant dense<0.000000e+00> : vector<16x128xf32>
    %97 = tpu.matmul %96, %84, %cst_30 {dimension_numbers = #tpu.dot_dimension_numbers<[1], [0], [0], [1], [0, 0, 1, 1], [], []>} : vector<16x16xbf16>, vector<16x128xbf16>, vector<16x128xf32> -> vector<16x128xf32>
    %c16 = arith.constant 16 : index
    %c0_31 = arith.constant 0 : index
    %98 = vector.load %arg6[%c16, %c0_31] : memref<32x512xf32, #tpu.memory_space<vmem>>, vector<16x128xf32>
    tpu.vector_store %arg6[%c16, %c0_31], %97 {strides = array<i32>} : memref<32x512xf32, #tpu.memory_space<vmem>>, vector<16x128xf32>,
    %99 = vector.extract_strided_slice %81 {offsets = [0, 128], sizes = [16, 128], strides = [1, 1]} : vector<16x1536xbf16> to vector<16x128xbf16>
    %100 = vector.extract_strided_slice %81 {offsets = [0, 640], sizes = [16, 128], strides = [1, 1]} : vector<16x1536xbf16> to vector<16x128xbf16>
    %101 = vector.extract_strided_slice %81 {offsets = [0, 1152], sizes = [16, 128], strides = [1, 1]} : vector<16x1536xbf16> to vector<16x128xbf16>
    %cst_32 = arith.constant dense<0.000000e+00> : vector<16x16xf32>
    %102 = tpu.matmul %99, %100, %cst_32 {dimension_numbers = #tpu.dot_dimension_numbers<[1], [1], [0], [0], [0, 0, 1, 0], [], []>} : vector<16x128xbf16>, vector<16x128xbf16>, vector<16x16xf32> -> vector<16x16xf32>
    %cst_33 = arith.constant dense<0xFF800000> : vector<16xf32>
    %103 = vector.multi_reduction <maximumf>, %102, %cst_33 [1] : vector<16x16xf32> to vector<16xf32>
    %104 = vector.shape_cast %103 : vector<16xf32> to vector<16x1xf32>
    %105 = vector.broadcast %104 : vector<16x1xf32> to vector<16x16xf32>
    %106 = arith.subf %102, %105 : vector<16x16xf32>
    %107 = math.exp %106 : vector<16x16xf32>
    %cst_34 = arith.constant dense<0.000000e+00> : vector<16xf32>
    %108 = vector.multi_reduction <add>, %107, %cst_34 [1] : vector<16x16xf32> to vector<16xf32>
    %109 = vector.shape_cast %108 : vector<16xf32> to vector<16x1xf32>
    %110 = tpu.reciprocal %109 {approx = true} : vector<16x1xf32> -> vector<16x1xf32>
    %111 = vector.broadcast %110 : vector<16x1xf32> to vector<16x16xf32>
    %112 = arith.mulf %107, %111 : vector<16x16xf32>
    %113 = arith.truncf %112 : vector<16x16xf32> to vector<16x16xbf16>
    %cst_35 = arith.constant dense<0.000000e+00> : vector<16x128xf32>
    %114 = tpu.matmul %113, %101, %cst_35 {dimension_numbers = #tpu.dot_dimension_numbers<[1], [0], [0], [1], [0, 0, 1, 1], [], []>} : vector<16x16xbf16>, vector<16x128xbf16>, vector<16x128xf32> -> vector<16x128xf32>
    %c16_36 = arith.constant 16 : index
    %c128_37 = arith.constant 128 : index
    %115 = vector.load %arg6[%c16_36, %c128_37] : memref<32x512xf32, #tpu.memory_space<vmem>>, vector<16x128xf32>
    tpu.vector_store %arg6[%c16_36, %c128_37], %114 {strides = array<i32>} : memref<32x512xf32, #tpu.memory_space<vmem>>, vector<16x128xf32>,
    %116 = vector.extract_strided_slice %81 {offsets = [0, 256], sizes = [16, 128], strides = [1, 1]} : vector<16x1536xbf16> to vector<16x128xbf16>
    %117 = vector.extract_strided_slice %81 {offsets = [0, 768], sizes = [16, 128], strides = [1, 1]} : vector<16x1536xbf16> to vector<16x128xbf16>
    %118 = vector.extract_strided_slice %81 {offsets = [0, 1280], sizes = [16, 128], strides = [1, 1]} : vector<16x1536xbf16> to vector<16x128xbf16>
    %cst_38 = arith.constant dense<0.000000e+00> : vector<16x16xf32>
    %119 = tpu.matmul %116, %117, %cst_38 {dimension_numbers = #tpu.dot_dimension_numbers<[1], [1], [0], [0], [0, 0, 1, 0], [], []>} : vector<16x128xbf16>, vector<16x128xbf16>, vector<16x16xf32> -> vector<16x16xf32>
    %cst_39 = arith.constant dense<0xFF800000> : vector<16xf32>
    %120 = vector.multi_reduction <maximumf>, %119, %cst_39 [1] : vector<16x16xf32> to vector<16xf32>
    %121 = vector.shape_cast %120 : vector<16xf32> to vector<16x1xf32>
    %122 = vector.broadcast %121 : vector<16x1xf32> to vector<16x16xf32>
    %123 = arith.subf %119, %122 : vector<16x16xf32>
    %124 = math.exp %123 : vector<16x16xf32>
    %cst_40 = arith.constant dense<0.000000e+00> : vector<16xf32>
    %125 = vector.multi_reduction <add>, %124, %cst_40 [1] : vector<16x16xf32> to vector<16xf32>
    %126 = vector.shape_cast %125 : vector<16xf32> to vector<16x1xf32>
    %127 = tpu.reciprocal %126 {approx = true} : vector<16x1xf32> -> vector<16x1xf32>
    %128 = vector.broadcast %127 : vector<16x1xf32> to vector<16x16xf32>
    %129 = arith.mulf %124, %128 : vector<16x16xf32>
    %130 = arith.truncf %129 : vector<16x16xf32> to vector<16x16xbf16>
    %cst_41 = arith.constant dense<0.000000e+00> : vector<16x128xf32>
    %131 = tpu.matmul %130, %118, %cst_41 {dimension_numbers = #tpu.dot_dimension_numbers<[1], [0], [0], [1], [0, 0, 1, 1], [], []>} : vector<16x16xbf16>, vector<16x128xbf16>, vector<16x128xf32> -> vector<16x128xf32>
    %c16_42 = arith.constant 16 : index
    %c256_43 = arith.constant 256 : index
    %132 = vector.load %arg6[%c16_42, %c256_43] : memref<32x512xf32, #tpu.memory_space<vmem>>, vector<16x128xf32>
    tpu.vector_store %arg6[%c16_42, %c256_43], %131 {strides = array<i32>} : memref<32x512xf32, #tpu.memory_space<vmem>>, vector<16x128xf32>,
    %133 = vector.extract_strided_slice %81 {offsets = [0, 384], sizes = [16, 128], strides = [1, 1]} : vector<16x1536xbf16> to vector<16x128xbf16>
    %134 = vector.extract_strided_slice %81 {offsets = [0, 896], sizes = [16, 128], strides = [1, 1]} : vector<16x1536xbf16> to vector<16x128xbf16>
    %135 = vector.extract_strided_slice %81 {offsets = [0, 1408], sizes = [16, 128], strides = [1, 1]} : vector<16x1536xbf16> to vector<16x128xbf16>
    %cst_44 = arith.constant dense<0.000000e+00> : vector<16x16xf32>
    %136 = tpu.matmul %133, %134, %cst_44 {dimension_numbers = #tpu.dot_dimension_numbers<[1], [1], [0], [0], [0, 0, 1, 0], [], []>} : vector<16x128xbf16>, vector<16x128xbf16>, vector<16x16xf32> -> vector<16x16xf32>
    %cst_45 = arith.constant dense<0xFF800000> : vector<16xf32>
    %137 = vector.multi_reduction <maximumf>, %136, %cst_45 [1] : vector<16x16xf32> to vector<16xf32>
    %138 = vector.shape_cast %137 : vector<16xf32> to vector<16x1xf32>
    %139 = vector.broadcast %138 : vector<16x1xf32> to vector<16x16xf32>
    %140 = arith.subf %136, %139 : vector<16x16xf32>
    %141 = math.exp %140 : vector<16x16xf32>
    %cst_46 = arith.constant dense<0.000000e+00> : vector<16xf32>
    %142 = vector.multi_reduction <add>, %141, %cst_46 [1] : vector<16x16xf32> to vector<16xf32>
    %143 = vector.shape_cast %142 : vector<16xf32> to vector<16x1xf32>
    %144 = tpu.reciprocal %143 {approx = true} : vector<16x1xf32> -> vector<16x1xf32>
    %145 = vector.broadcast %144 : vector<16x1xf32> to vector<16x16xf32>
    %146 = arith.mulf %141, %145 : vector<16x16xf32>
    %147 = arith.truncf %146 : vector<16x16xf32> to vector<16x16xbf16>
    %cst_47 = arith.constant dense<0.000000e+00> : vector<16x128xf32>
    %148 = tpu.matmul %147, %135, %cst_47 {dimension_numbers = #tpu.dot_dimension_numbers<[1], [0], [0], [1], [0, 0, 1, 1], [], []>} : vector<16x16xbf16>, vector<16x128xbf16>, vector<16x128xf32> -> vector<16x128xf32>
    %c16_48 = arith.constant 16 : index
    %c384_49 = arith.constant 384 : index
    %149 = vector.load %arg6[%c16_48, %c384_49] : memref<32x512xf32, #tpu.memory_space<vmem>>, vector<16x128xf32>
    tpu.vector_store %arg6[%c16_48, %c384_49], %148 {strides = array<i32>} : memref<32x512xf32, #tpu.memory_space<vmem>>, vector<16x128xf32>,
    %c0_50 = arith.constant 0 : index
    %c0_51 = arith.constant 0 : index
    %150 = vector.load %arg6[%c0_50, %c0_51] : memref<32x512xf32, #tpu.memory_space<vmem>>, vector<32x512xf32>
    %151 = arith.addf %150, %7 : vector<32x512xf32>
    %cst_52 = arith.constant dense<0.000000e+00> : vector<32xf32>
    %152 = vector.multi_reduction <add>, %151, %cst_52 [1] : vector<32x512xf32> to vector<32xf32>
    %153 = vector.shape_cast %152 : vector<32xf32> to vector<32x1xf32>
    %cst_53 = arith.constant 5.120000e+02 : f32
    %154 = vector.broadcast %cst_53 : f32 to vector<32x1xf32>
    %155 = arith.divf %153, %154 : vector<32x1xf32>
    %156 = vector.broadcast %155 : vector<32x1xf32> to vector<32x512xf32>
    %157 = arith.subf %151, %156 : vector<32x512xf32>
    %158 = arith.mulf %157, %157 : vector<32x512xf32>
    %cst_54 = arith.constant dense<0.000000e+00> : vector<32xf32>
    %159 = vector.multi_reduction <add>, %158, %cst_54 [1] : vector<32x512xf32> to vector<32xf32>
    %160 = vector.shape_cast %159 : vector<32xf32> to vector<32x1xf32>
    %cst_55 = arith.constant 5.120000e+02 : f32
    %161 = vector.broadcast %cst_55 : f32 to vector<32x1xf32>
    %162 = arith.divf %160, %161 : vector<32x1xf32>
    %cst_56 = arith.constant 9.99999974E-6 : f32
    %163 = vector.broadcast %cst_56 : f32 to vector<32x1xf32>
    %164 = arith.addf %162, %163 : vector<32x1xf32>
    %165 = math.rsqrt %164 : vector<32x1xf32>
    %166 = vector.broadcast %165 : vector<32x1xf32> to vector<32x512xf32>
    %167 = arith.mulf %157, %166 : vector<32x512xf32>
    %168 = vector.broadcast %2 : vector<1x512xf32> to vector<32x512xf32>
    %169 = arith.mulf %167, %168 : vector<32x512xf32>
    %170 = vector.broadcast %3 : vector<1x512xf32> to vector<32x512xf32>
    %171 = arith.addf %169, %170 : vector<32x512xf32>
    %172 = arith.truncf %171 : vector<32x512xf32> to vector<32x512xbf16>
    %c0_57 = arith.constant 0 : index
    %c0_58 = arith.constant 0 : index
    %173 = vector.load %arg3[%c0_57, %c0_58] : memref<512x512xbf16, #tpu.memory_space<vmem>>, vector<512x512xbf16>
    %cst_59 = arith.constant dense<0.000000e+00> : vector<32x512xf32>
    %174 = tpu.matmul %172, %173, %cst_59 {dimension_numbers = #tpu.dot_dimension_numbers<[1], [0], [0], [1], [0, 0, 1, 1], [], []>} : vector<32x512xbf16>, vector<512x512xbf16>, vector<32x512xf32> -> vector<32x512xf32>
    %175 = vector.broadcast %1 : vector<1x512xf32> to vector<32x512xf32>
    %176 = arith.addf %174, %175 : vector<32x512xf32>
    %177 = arith.addf %176, %171 : vector<32x512xf32>
    %cst_60 = arith.constant dense<0.000000e+00> : vector<32xf32>
    %178 = vector.multi_reduction <add>, %177, %cst_60 [1] : vector<32x512xf32> to vector<32xf32>
    %179 = vector.shape_cast %178 : vector<32xf32> to vector<32x1xf32>
    %cst_61 = arith.constant 5.120000e+02 : f32
    %180 = vector.broadcast %cst_61 : f32 to vector<32x1xf32>
    %181 = arith.divf %179, %180 : vector<32x1xf32>
    %182 = vector.broadcast %181 : vector<32x1xf32> to vector<32x512xf32>
    %183 = arith.subf %177, %182 : vector<32x512xf32>
    %184 = arith.mulf %183, %183 : vector<32x512xf32>
    %cst_62 = arith.constant dense<0.000000e+00> : vector<32xf32>
    %185 = vector.multi_reduction <add>, %184, %cst_62 [1] : vector<32x512xf32> to vector<32xf32>
    %186 = vector.shape_cast %185 : vector<32xf32> to vector<32x1xf32>
    %cst_63 = arith.constant 5.120000e+02 : f32
    %187 = vector.broadcast %cst_63 : f32 to vector<32x1xf32>
    %188 = arith.divf %186, %187 : vector<32x1xf32>
    %cst_64 = arith.constant 9.99999974E-6 : f32
    %189 = vector.broadcast %cst_64 : f32 to vector<32x1xf32>
    %190 = arith.addf %188, %189 : vector<32x1xf32>
    %191 = math.rsqrt %190 : vector<32x1xf32>
    %192 = vector.broadcast %191 : vector<32x1xf32> to vector<32x512xf32>
    %193 = arith.mulf %183, %192 : vector<32x512xf32>
    %194 = vector.broadcast %4 : vector<1x512xf32> to vector<32x512xf32>
    %195 = arith.mulf %193, %194 : vector<32x512xf32>
    %196 = vector.broadcast %5 : vector<1x512xf32> to vector<32x512xf32>
    %197 = arith.addf %195, %196 : vector<32x512xf32>
    %198 = vector.shape_cast %197 : vector<32x512xf32> to vector<2x16x512xf32>
    %c0_65 = arith.constant 0 : index
    %c0_66 = arith.constant 0 : index
    %c0_67 = arith.constant 0 : index
    %199 = vector.load %arg5[%c0_65, %c0_66, %c0_67] : memref<2x16x512xf32, #tpu.memory_space<vmem>>, vector<2x16x512xf32>
    tpu.vector_store %arg5[%c0_65, %c0_66, %c0_67], %198 {strides = array<i32>} : memref<2x16x512xf32, #tpu.memory_space<vmem>>, vector<2x16x512xf32>,
    return
  }
  func.func @transform_0(%arg0: i32) -> (i32, i32, i32) {
    %c0_i32 = arith.constant 0 : i32
    %c0_i32_0 = arith.constant 0 : i32
    %c0_i32_1 = arith.constant 0 : i32
    %c0_i32_2 = arith.constant 0 : i32
    return %c0_i32, %c0_i32_0, %c0_i32_1 : i32, i32, i32
  }
  func.func @transform_1(%arg0: i32) -> (i32, i32) {
    %c0_i32 = arith.constant 0 : i32
    %c0_i32_0 = arith.constant 0 : i32
    %c0_i32_1 = arith.constant 0 : i32
    return %c0_i32, %c0_i32_0 : i32, i32
  }
  func.func @transform_2(%arg0: i32) -> (i32, i32) {
    %c0_i32 = arith.constant 0 : i32
    %c0_i32_0 = arith.constant 0 : i32
    %c0_i32_1 = arith.constant 0 : i32
    return %c0_i32, %c0_i32_0 : i32, i32
  }
  func.func @transform_3(%arg0: i32) -> (i32, i32) {
    %c0_i32 = arith.constant 0 : i32
    %c0_i32_0 = arith.constant 0 : i32
    %c0_i32_1 = arith.constant 0 : i32
    return %c0_i32, %c0_i32_0 : i32, i32
  }
  func.func @transform_4(%arg0: i32) -> (i32, i32, i32) {
    %c0_i32 = arith.constant 0 : i32
    %c0_i32_0 = arith.constant 0 : i32
    %c0_i32_1 = arith.constant 0 : i32
    %c0_i32_2 = arith.constant 0 : i32
    return %c0_i32, %c0_i32_0, %c0_i32_1 : i32, i32, i32
  }
}

</mosaic_0001>

<llo_original>
// kernel: transformer_encoder_forward.2
$region0: #{transformer_encoder_forward.2}
  #allocation0 [shape = 'u32[]', space=smem, size = 0x4, offset = 0x4, fixed_abs, tag = 'smem constant byte address 0x4 - core index']
  #allocation1 [shape = 'u32[144,128]{1,0:T(1,128)}', space=vmem, size = 0x12000, scoped, tag = 'internal scratch']
  #allocation2 [shape = 'f32[32,512]{1,0:T(8,128)}', space=vmem, size = 0x10000, scoped, tag = 'scratch operand']
  %s0 = inlined_call_operand.vmem [shape: f32[2,16,512], index: 0, kind: input, shape index: {}]
  %s1 = inlined_call_operand.vmem [shape: bf16[512,1536], index: 1, kind: input, shape index: {}]
  %s2 = inlined_call_operand.vmem [shape: bf16[512,512], index: 2, kind: input, shape index: {}]
  %s3 = inlined_call_operand.vmem [shape: f32[8,512], index: 3, kind: input, shape index: {}]
  %s4 = inlined_call_operand.vmem [shape: f32[2,16,512], index: 4, kind: output, shape index: {}]
  %s5 = sld [smem:[#allocation0]]
  $region26: #{transformer_encoder_forward.2} parent=0
    _
  %s7 = ssub.s32 1, %s5
  %s8 = scalar_select 0, %s7, %s5
  // Predicated region
  $region2: #{transformer_encoder_forward.2} parent=0 // pred_check
    _
  $region3: #{transformer_encoder_forward.2} parent=0 // pred_check_branch
    %10 = sbr.rel (0) target = $region5
  $region4: #{transformer_encoder_forward.2} parent=0 // pred_region
    _
  $region5: #{transformer_encoder_forward.2} parent=0 // pred_fallthru
    _
  // Predicated region
  $region6: #{transformer_encoder_forward.2} parent=0 // pred_check
    _
  $region7: #{transformer_encoder_forward.2} parent=0 // pred_check_branch
    %12 = sbr.rel (0) target = $region9
  $region8: #{transformer_encoder_forward.2} parent=0 // pred_region
    _
  $region9: #{transformer_encoder_forward.2} parent=0 // pred_fallthru
    _
  // Predicated region
  $region10: #{transformer_encoder_forward.2} parent=0 // pred_check
    _
  $region11: #{transformer_encoder_forward.2} parent=0 // pred_check_branch
    %14 = sbr.rel (0) target = $region13
  $region12: #{transformer_encoder_forward.2} parent=0 // pred_region
    _
  $region13: #{transformer_encoder_forward.2} parent=0 // pred_fallthru
    _
  // Predicated region
  $region14: #{transformer_encoder_forward.2} parent=0 // pred_check
    _
  $region15: #{transformer_encoder_forward.2} parent=0 // pred_check_branch
    %16 = sbr.rel (0) target = $region17
  $region16: #{transformer_encoder_forward.2} parent=0 // pred_region
    _
  $region17: #{transformer_encoder_forward.2} parent=0 // pred_fallthru
    _
  %v18 = vld [vmem:[%s3] sm:$0xff]
  %v19 = vld [vmem:[%s3 + $0x8] sm:$0xff]
  %v20 = vld [vmem:[%s3 + $0x10] sm:$0xff]
  %v21 = vld [vmem:[%s3 + $0x18] sm:$0xff]
  %v22 = vld [vmem:[%s0] sm:$0xff]
  %v23 = vld [vmem:[%s0 + $0x8] sm:$0xff]
  %v24 = vld [vmem:[%s0 + $0x10] sm:$0xff]
  %v25 = vld [vmem:[%s0 + $0x18] sm:$0xff]
  %v26 = vld [vmem:[%s0 + $0x20] sm:$0xff]
  %v27 = vld [vmem:[%s0 + $0x28] sm:$0xff]
  %v28 = vld [vmem:[%s0 + $0x30] sm:$0xff]
  %v29 = vld [vmem:[%s0 + $0x38] sm:$0xff]
  %v30 = vld [vmem:[%s0 + $0x40] sm:$0xff]
  %v31 = vld [vmem:[%s0 + $0x48] sm:$0xff]
  %v32 = vld [vmem:[%s0 + $0x50] sm:$0xff]
  %v33 = vld [vmem:[%s0 + $0x58] sm:$0xff]
  %v34 = vld [vmem:[%s0 + $0x60] sm:$0xff]
  %v35 = vld [vmem:[%s0 + $0x68] sm:$0xff]
  %v36 = vld [vmem:[%s0 + $0x70] sm:$0xff]
  %v37 = vld [vmem:[%s0 + $0x78] sm:$0xff]
  %v38 = vpack.c.bf16 %v26, %v22
  %v39 = vpack.c.bf16 %v27, %v23
  %v40 = vpack.c.bf16 %v28, %v24
  %v41 = vpack.c.bf16 %v29, %v25
  %v42 = vpack.c.bf16 %v34, %v30
  %v43 = vpack.c.bf16 %v35, %v31
  %v44 = vpack.c.bf16 %v36, %v32
  %v45 = vpack.c.bf16 %v37, %v33
  %v46 = vld [vmem:[%s1] sm:$0xff]
  %v47 = vld [vmem:[%s1 + $0x8] sm:$0xff]
  %v48 = vld [vmem:[%s1 + $0x10] sm:$0xff]
  %v49 = vld [vmem:[%s1 + $0x18] sm:$0xff]
  %v50 = vld [vmem:[%s1 + $0x20] sm:$0xff]
  %v51 = vld [vmem:[%s1 + $0x28] sm:$0xff]
  %v52 = vld [vmem:[%s1 + $0x30] sm:$0xff]
  %v53 = vld [vmem:[%s1 + $0x38] sm:$0xff]
  %v54 = vld [vmem:[%s1 + $0x40] sm:$0xff]
  %v55 = vld [vmem:[%s1 + $0x48] sm:$0xff]
  %v56 = vld [vmem:[%s1 + $0x50] sm:$0xff]
  %v57 = vld [vmem:[%s1 + $0x58] sm:$0xff]
  %v58 = vld [vmem:[%s1 + $0x60] sm:$0xff]
  %v59 = vld [vmem:[%s1 + $0x68] sm:$0xff]
  %v60 = vld [vmem:[%s1 + $0x70] sm:$0xff]
  %v61 = vld [vmem:[%s1 + $0x78] sm:$0xff]
  %v62 = vld [vmem:[%s1 + $0x80] sm:$0xff]
  %v63 = vld [vmem:[%s1 + $0x88] sm:$0xff]
  %v64 = vld [vmem:[%s1 + $0x90] sm:$0xff]
  %v65 = vld [vmem:[%s1 + $0x98] sm:$0xff]
  %v66 = vld [vmem:[%s1 + $0xa0] sm:$0xff]
  %v67 = vld [vmem:[%s1 + $0xa8] sm:$0xff]
  %v68 = vld [vmem:[%s1 + $0xb0] sm:$0xff]
  %v69 = vld [vmem:[%s1 + $0xb8] sm:$0xff]
  %v70 = vld [vmem:[%s1 + $0xc0] sm:$0xff]
  %v71 = vld [vmem:[%s1 + $0xc8] sm:$0xff]
  %v72 = vld [vmem:[%s1 + $0xd0] sm:$0xff]
  %v73 = vld [vmem:[%s1 + $0xd8] sm:$0xff]
  %v74 = vld [vmem:[%s1 + $0xe0] sm:$0xff]
  %v75 = vld [vmem:[%s1 + $0xe8] sm:$0xff]
  %v76 = vld [vmem:[%s1 + $0xf0] sm:$0xff]
  %v77 = vld [vmem:[%s1 + $0xf8] sm:$0xff]
  %v78 = vld [vmem:[%s1 + $0x100] sm:$0xff]
  %v79 = vld [vmem:[%s1 + $0x108] sm:$0xff]
  %v80 = vld [vmem:[%s1 + $0x110] sm:$0xff]
  %v81 = vld [vmem:[%s1 + $0x118] sm:$0xff]
  %v82 = vld [vmem:[%s1 + $0x120] sm:$0xff]
  %v83 = vld [vmem:[%s1 + $0x128] sm:$0xff]
  %v84 = vld [vmem:[%s1 + $0x130] sm:$0xff]
  %v85 = vld [vmem:[%s1 + $0x138] sm:$0xff]
  %v86 = vld [vmem:[%s1 + $0x140] sm:$0xff]
  %v87 = vld [vmem:[%s1 + $0x148] sm:$0xff]
  %v88 = vld [vmem:[%s1 + $0x150] sm:$0xff]
  %v89 = vld [vmem:[%s1 + $0x158] sm:$0xff]
  %v90 = vld [vmem:[%s1 + $0x160] sm:$0xff]
  %v91 = vld [vmem:[%s1 + $0x168] sm:$0xff]
  %v92 = vld [vmem:[%s1 + $0x170] sm:$0xff]
  %v93 = vld [vmem:[%s1 + $0x178] sm:$0xff]
  %v94 = vld [vmem:[%s1 + $0x180] sm:$0xff]
  %v95 = vld [vmem:[%s1 + $0x188] sm:$0xff]
  %v96 = vld [vmem:[%s1 + $0x190] sm:$0xff]
  %v97 = vld [vmem:[%s1 + $0x198] sm:$0xff]
  %v98 = vld [vmem:[%s1 + $0x1a0] sm:$0xff]
  %v99 = vld [vmem:[%s1 + $0x1a8] sm:$0xff]
  %v100 = vld [vmem:[%s1 + $0x1b0] sm:$0xff]
  %v101 = vld [vmem:[%s1 + $0x1b8] sm:$0xff]
  %v102 = vld [vmem:[%s1 + $0x1c0] sm:$0xff]
  %v103 = vld [vmem:[%s1 + $0x1c8] sm:$0xff]
  %v104 = vld [vmem:[%s1 + $0x1d0] sm:$0xff]
  %v105 = vld [vmem:[%s1 + $0x1d8] sm:$0xff]
  %v106 = vld [vmem:[%s1 + $0x1e0] sm:$0xff]
  %v107 = vld [vmem:[%s1 + $0x1e8] sm:$0xff]
  %v108 = vld [vmem:[%s1 + $0x1f0] sm:$0xff]
  %v109 = vld [vmem:[%s1 + $0x1f8] sm:$0xff]
  %v110 = vld [vmem:[%s1 + $0x200] sm:$0xff]
  %v111 = vld [vmem:[%s1 + $0x208] sm:$0xff]
  %v112 = vld [vmem:[%s1 + $0x210] sm:$0xff]
  %v113 = vld [vmem:[%s1 + $0x218] sm:$0xff]
  %v114 = vld [vmem:[%s1 + $0x220] sm:$0xff]
  %v115 = vld [vmem:[%s1 + $0x228] sm:$0xff]
  %v116 = vld [vmem:[%s1 + $0x230] sm:$0xff]
  %v117 = vld [vmem:[%s1 + $0x238] sm:$0xff]
  %v118 = vld [vmem:[%s1 + $0x240] sm:$0xff]
  %v119 = vld [vmem:[%s1 + $0x248] sm:$0xff]
  %v120 = vld [vmem:[%s1 + $0x250] sm:$0xff]
  %v121 = vld [vmem:[%s1 + $0x258] sm:$0xff]
  %v122 = vld [vmem:[%s1 + $0x260] sm:$0xff]
  %v123 = vld [vmem:[%s1 + $0x268] sm:$0xff]
  %v124 = vld [vmem:[%s1 + $0x270] sm:$0xff]
  %v125 = vld [vmem:[%s1 + $0x278] sm:$0xff]
  %v126 = vld [vmem:[%s1 + $0x280] sm:$0xff]
  %v127 = vld [vmem:[%s1 + $0x288] sm:$0xff]
  %v128 = vld [vmem:[%s1 + $0x290] sm:$0xff]
  %v129 = vld [vmem:[%s1 + $0x298] sm:$0xff]
  %v130 = vld [vmem:[%s1 + $0x2a0] sm:$0xff]
  %v131 = vld [vmem:[%s1 + $0x2a8] sm:$0xff]
  %v132 = vld [vmem:[%s1 + $0x2b0] sm:$0xff]
  %v133 = vld [vmem:[%s1 + $0x2b8] sm:$0xff]
  %v134 = vld [vmem:[%s1 + $0x2c0] sm:$0xff]
  %v135 = vld [vmem:[%s1 + $0x2c8] sm:$0xff]
  %v136 = vld [vmem:[%s1 + $0x2d0] sm:$0xff]
  %v137 = vld [vmem:[%s1 + $0x2d8] sm:$0xff]
  %v138 = vld [vmem:[%s1 + $0x2e0] sm:$0xff]
  %v139 = vld [vmem:[%s1 + $0x2e8] sm:$0xff]
  %v140 = vld [vmem:[%s1 + $0x2f0] sm:$0xff]
  %v141 = vld [vmem:[%s1 + $0x2f8] sm:$0xff]
  %v142 = vld [vmem:[%s1 + $0x300] sm:$0xff]
  %v143 = vld [vmem:[%s1 + $0x308] sm:$0xff]
  %v144 = vld [vmem:[%s1 + $0x310] sm:$0xff]
  %v145 = vld [vmem:[%s1 + $0x318] sm:$0xff]
  %v146 = vld [vmem:[%s1 + $0x320] sm:$0xff]
  %v147 = vld [vmem:[%s1 + $0x328] sm:$0xff]
  %v148 = vld [vmem:[%s1 + $0x330] sm:$0xff]
  %v149 = vld [vmem:[%s1 + $0x338] sm:$0xff]
  %v150 = vld [vmem:[%s1 + $0x340] sm:$0xff]
  %v151 = vld [vmem:[%s1 + $0x348] sm:$0xff]
  %v152 = vld [vmem:[%s1 + $0x350] sm:$0xff]
  %v153 = vld [vmem:[%s1 + $0x358] sm:$0xff]
  %v154 = vld [vmem:[%s1 + $0x360] sm:$0xff]
  %v155 = vld [vmem:[%s1 + $0x368] sm:$0xff]
  %v156 = vld [vmem:[%s1 + $0x370] sm:$0xff]
  %v157 = vld [vmem:[%s1 + $0x378] sm:$0xff]
  %v158 = vld [vmem:[%s1 + $0x380] sm:$0xff]
  %v159 = vld [vmem:[%s1 + $0x388] sm:$0xff]
  %v160 = vld [vmem:[%s1 + $0x390] sm:$0xff]
  %v161 = vld [vmem:[%s1 + $0x398] sm:$0xff]
  %v162 = vld [vmem:[%s1 + $0x3a0] sm:$0xff]
  %v163 = vld [vmem:[%s1 + $0x3a8] sm:$0xff]
  %v164 = vld [vmem:[%s1 + $0x3b0] sm:$0xff]
  %v165 = vld [vmem:[%s1 + $0x3b8] sm:$0xff]
  %v166 = vld [vmem:[%s1 + $0x3c0] sm:$0xff]
  %v167 = vld [vmem:[%s1 + $0x3c8] sm:$0xff]
  %v168 = vld [vmem:[%s1 + $0x3d0] sm:$0xff]
  %v169 = vld [vmem:[%s1 + $0x3d8] sm:$0xff]
  %v170 = vld [vmem:[%s1 + $0x3e0] sm:$0xff]
  %v171 = vld [vmem:[%s1 + $0x3e8] sm:$0xff]
  %v172 = vld [vmem:[%s1 + $0x3f0] sm:$0xff]
  %v173 = vld [vmem:[%s1 + $0x3f8] sm:$0xff]
  %v174 = vld [vmem:[%s1 + $0x400] sm:$0xff]
  %v175 = vld [vmem:[%s1 + $0x408] sm:$0xff]
  %v176 = vld [vmem:[%s1 + $0x410] sm:$0xff]
  %v177 = vld [vmem:[%s1 + $0x418] sm:$0xff]
  %v178 = vld [vmem:[%s1 + $0x420] sm:$0xff]
  %v179 = vld [vmem:[%s1 + $0x428] sm:$0xff]
  %v180 = vld [vmem:[%s1 + $0x430] sm:$0xff]
  %v181 = vld [vmem:[%s1 + $0x438] sm:$0xff]
  %v182 = vld [vmem:[%s1 + $0x440] sm:$0xff]
  %v183 = vld [vmem:[%s1 + $0x448] sm:$0xff]
  %v184 = vld [vmem:[%s1 + $0x450] sm:$0xff]
  %v185 = vld [vmem:[%s1 + $0x458] sm:$0xff]
  %v186 = vld [vmem:[%s1 + $0x460] sm:$0xff]
  %v187 = vld [vmem:[%s1 + $0x468] sm:$0xff]
  %v188 = vld [vmem:[%s1 + $0x470] sm:$0xff]
  %v189 = vld [vmem:[%s1 + $0x478] sm:$0xff]
  %v190 = vld [vmem:[%s1 + $0x480] sm:$0xff]
  %v191 = vld [vmem:[%s1 + $0x488] sm:$0xff]
  %v192 = vld [vmem:[%s1 + $0x490] sm:$0xff]
  %v193 = vld [vmem:[%s1 + $0x498] sm:$0xff]
  %v194 = vld [vmem:[%s1 + $0x4a0] sm:$0xff]
  %v195 = vld [vmem:[%s1 + $0x4a8] sm:$0xff]
  %v196 = vld [vmem:[%s1 + $0x4b0] sm:$0xff]
  %v197 = vld [vmem:[%s1 + $0x4b8] sm:$0xff]
  %v198 = vld [vmem:[%s1 + $0x4c0] sm:$0xff]
  %v199 = vld [vmem:[%s1 + $0x4c8] sm:$0xff]
  %v200 = vld [vmem:[%s1 + $0x4d0] sm:$0xff]
  %v201 = vld [vmem:[%s1 + $0x4d8] sm:$0xff]
  %v202 = vld [vmem:[%s1 + $0x4e0] sm:$0xff]
  %v203 = vld [vmem:[%s1 + $0x4e8] sm:$0xff]
  %v204 = vld [vmem:[%s1 + $0x4f0] sm:$0xff]
  %v205 = vld [vmem:[%s1 + $0x4f8] sm:$0xff]
  %v206 = vld [vmem:[%s1 + $0x500] sm:$0xff]
  %v207 = vld [vmem:[%s1 + $0x508] sm:$0xff]
  %v208 = vld [vmem:[%s1 + $0x510] sm:$0xff]
  %v209 = vld [vmem:[%s1 + $0x518] sm:$0xff]
  %v210 = vld [vmem:[%s1 + $0x520] sm:$0xff]
  %v211 = vld [vmem:[%s1 + $0x528] sm:$0xff]
  %v212 = vld [vmem:[%s1 + $0x530] sm:$0xff]
  %v213 = vld [vmem:[%s1 + $0x538] sm:$0xff]
  %v214 = vld [vmem:[%s1 + $0x540] sm:$0xff]
  %v215 = vld [vmem:[%s1 + $0x548] sm:$0xff]
  %v216 = vld [vmem:[%s1 + $0x550] sm:$0xff]
  %v217 = vld [vmem:[%s1 + $0x558] sm:$0xff]
  %v218 = vld [vmem:[%s1 + $0x560] sm:$0xff]
  %v219 = vld [vmem:[%s1 + $0x568] sm:$0xff]
  %v220 = vld [vmem:[%s1 + $0x570] sm:$0xff]
  %v221 = vld [vmem:[%s1 + $0x578] sm:$0xff]
  %v222 = vld [vmem:[%s1 + $0x580] sm:$0xff]
  %v223 = vld [vmem:[%s1 + $0x588] sm:$0xff]
  %v224 = vld [vmem:[%s1 + $0x590] sm:$0xff]
  %v225 = vld [vmem:[%s1 + $0x598] sm:$0xff]
  %v226 = vld [vmem:[%s1 + $0x5a0] sm:$0xff]
  %v227 = vld [vmem:[%s1 + $0x5a8] sm:$0xff]
  %v228 = vld [vmem:[%s1 + $0x5b0] sm:$0xff]
  %v229 = vld [vmem:[%s1 + $0x5b8] sm:$0xff]
  %v230 = vld [vmem:[%s1 + $0x5c0] sm:$0xff]
  %v231 = vld [vmem:[%s1 + $0x5c8] sm:$0xff]
  %v232 = vld [vmem:[%s1 + $0x5d0] sm:$0xff]
  %v233 = vld [vmem:[%s1 + $0x5d8] sm:$0xff]
  %v234 = vld [vmem:[%s1 + $0x5e0] sm:$0xff]
  %v235 = vld [vmem:[%s1 + $0x5e8] sm:$0xff]
  %v236 = vld [vmem:[%s1 + $0x5f0] sm:$0xff]
  %v237 = vld [vmem:[%s1 + $0x5f8] sm:$0xff]
  %v238 = vld [vmem:[%s1 + $0x600] sm:$0xff]
  %v239 = vld [vmem:[%s1 + $0x608] sm:$0xff]
  %v240 = vld [vmem:[%s1 + $0x610] sm:$0xff]
  %v241 = vld [vmem:[%s1 + $0x618] sm:$0xff]
  %v242 = vld [vmem:[%s1 + $0x620] sm:$0xff]
  %v243 = vld [vmem:[%s1 + $0x628] sm:$0xff]
  %v244 = vld [vmem:[%s1 + $0x630] sm:$0xff]
  %v245 = vld [vmem:[%s1 + $0x638] sm:$0xff]
  %v246 = vld [vmem:[%s1 + $0x640] sm:$0xff]
  %v247 = vld [vmem:[%s1 + $0x648] sm:$0xff]
  %v248 = vld [vmem:[%s1 + $0x650] sm:$0xff]
  %v249 = vld [vmem:[%s1 + $0x658] sm:$0xff]
  %v250 = vld [vmem:[%s1 + $0x660] sm:$0xff]
  %v251 = vld [vmem:[%s1 + $0x668] sm:$0xff]
  %v252 = vld [vmem:[%s1 + $0x670] sm:$0xff]
  %v253 = vld [vmem:[%s1 + $0x678] sm:$0xff]
  %v254 = vld [vmem:[%s1 + $0x680] sm:$0xff]
  %v255 = vld [vmem:[%s1 + $0x688] sm:$0xff]
  %v256 = vld [vmem:[%s1 + $0x690] sm:$0xff]
  %v257 = vld [vmem:[%s1 + $0x698] sm:$0xff]
  %v258 = vld [vmem:[%s1 + $0x6a0] sm:$0xff]
  %v259 = vld [vmem:[%s1 + $0x6a8] sm:$0xff]
  %v260 = vld [vmem:[%s1 + $0x6b0] sm:$0xff]
  %v261 = vld [vmem:[%s1 + $0x6b8] sm:$0xff]
  %v262 = vld [vmem:[%s1 + $0x6c0] sm:$0xff]
  %v263 = vld [vmem:[%s1 + $0x6c8] sm:$0xff]
  %v264 = vld [vmem:[%s1 + $0x6d0] sm:$0xff]
  %v265 = vld [vmem:[%s1 + $0x6d8] sm:$0xff]
  %v266 = vld [vmem:[%s1 + $0x6e0] sm:$0xff]
  %v267 = vld [vmem:[%s1 + $0x6e8] sm:$0xff]
  %v268 = vld [vmem:[%s1 + $0x6f0] sm:$0xff]
  %v269 = vld [vmem:[%s1 + $0x6f8] sm:$0xff]
  %v270 = vld [vmem:[%s1 + $0x700] sm:$0xff]
  %v271 = vld [vmem:[%s1 + $0x708] sm:$0xff]
  %v272 = vld [vmem:[%s1 + $0x710] sm:$0xff]
  %v273 = vld [vmem:[%s1 + $0x718] sm:$0xff]
  %v274 = vld [vmem:[%s1 + $0x720] sm:$0xff]
  %v275 = vld [vmem:[%s1 + $0x728] sm:$0xff]
  %v276 = vld [vmem:[%s1 + $0x730] sm:$0xff]
  %v277 = vld [vmem:[%s1 + $0x738] sm:$0xff]
  %v278 = vld [vmem:[%s1 + $0x740] sm:$0xff]
  %v279 = vld [vmem:[%s1 + $0x748] sm:$0xff]
  %v280 = vld [vmem:[%s1 + $0x750] sm:$0xff]
  %v281 = vld [vmem:[%s1 + $0x758] sm:$0xff]
  %v282 = vld [vmem:[%s1 + $0x760] sm:$0xff]
  %v283 = vld [vmem:[%s1 + $0x768] sm:$0xff]
  %v284 = vld [vmem:[%s1 + $0x770] sm:$0xff]
  %v285 = vld [vmem:[%s1 + $0x778] sm:$0xff]
  %v286 = vld [vmem:[%s1 + $0x780] sm:$0xff]
  %v287 = vld [vmem:[%s1 + $0x788] sm:$0xff]
  %v288 = vld [vmem:[%s1 + $0x790] sm:$0xff]
  %v289 = vld [vmem:[%s1 + $0x798] sm:$0xff]
  %v290 = vld [vmem:[%s1 + $0x7a0] sm:$0xff]
  %v291 = vld [vmem:[%s1 + $0x7a8] sm:$0xff]
  %v292 = vld [vmem:[%s1 + $0x7b0] sm:$0xff]
  %v293 = vld [vmem:[%s1 + $0x7b8] sm:$0xff]
  %v294 = vld [vmem:[%s1 + $0x7c0] sm:$0xff]
  %v295 = vld [vmem:[%s1 + $0x7c8] sm:$0xff]
  %v296 = vld [vmem:[%s1 + $0x7d0] sm:$0xff]
  %v297 = vld [vmem:[%s1 + $0x7d8] sm:$0xff]
  %v298 = vld [vmem:[%s1 + $0x7e0] sm:$0xff]
  %v299 = vld [vmem:[%s1 + $0x7e8] sm:$0xff]
  %v300 = vld [vmem:[%s1 + $0x7f0] sm:$0xff]
  %v301 = vld [vmem:[%s1 + $0x7f8] sm:$0xff]
  %v302 = vld [vmem:[%s1 + $0x800] sm:$0xff]
  %v303 = vld [vmem:[%s1 + $0x808] sm:$0xff]
  %v304 = vld [vmem:[%s1 + $0x810] sm:$0xff]
  %v305 = vld [vmem:[%s1 + $0x818] sm:$0xff]
  %v306 = vld [vmem:[%s1 + $0x820] sm:$0xff]
  %v307 = vld [vmem:[%s1 + $0x828] sm:$0xff]
  %v308 = vld [vmem:[%s1 + $0x830] sm:$0xff]
  %v309 = vld [vmem:[%s1 + $0x838] sm:$0xff]
  %v310 = vld [vmem:[%s1 + $0x840] sm:$0xff]
  %v311 = vld [vmem:[%s1 + $0x848] sm:$0xff]
  %v312 = vld [vmem:[%s1 + $0x850] sm:$0xff]
  %v313 = vld [vmem:[%s1 + $0x858] sm:$0xff]
  %v314 = vld [vmem:[%s1 + $0x860] sm:$0xff]
  %v315 = vld [vmem:[%s1 + $0x868] sm:$0xff]
  %v316 = vld [vmem:[%s1 + $0x870] sm:$0xff]
  %v317 = vld [vmem:[%s1 + $0x878] sm:$0xff]
  %v318 = vld [vmem:[%s1 + $0x880] sm:$0xff]
  %v319 = vld [vmem:[%s1 + $0x888] sm:$0xff]
  %v320 = vld [vmem:[%s1 + $0x890] sm:$0xff]
  %v321 = vld [vmem:[%s1 + $0x898] sm:$0xff]
  %v322 = vld [vmem:[%s1 + $0x8a0] sm:$0xff]
  %v323 = vld [vmem:[%s1 + $0x8a8] sm:$0xff]
  %v324 = vld [vmem:[%s1 + $0x8b0] sm:$0xff]
  %v325 = vld [vmem:[%s1 + $0x8b8] sm:$0xff]
  %v326 = vld [vmem:[%s1 + $0x8c0] sm:$0xff]
  %v327 = vld [vmem:[%s1 + $0x8c8] sm:$0xff]
  %v328 = vld [vmem:[%s1 + $0x8d0] sm:$0xff]
  %v329 = vld [vmem:[%s1 + $0x8d8] sm:$0xff]
  %v330 = vld [vmem:[%s1 + $0x8e0] sm:$0xff]
  %v331 = vld [vmem:[%s1 + $0x8e8] sm:$0xff]
  %v332 = vld [vmem:[%s1 + $0x8f0] sm:$0xff]
  %v333 = vld [vmem:[%s1 + $0x8f8] sm:$0xff]
  %v334 = vld [vmem:[%s1 + $0x900] sm:$0xff]
  %v335 = vld [vmem:[%s1 + $0x908] sm:$0xff]
  %v336 = vld [vmem:[%s1 + $0x910] sm:$0xff]
  %v337 = vld [vmem:[%s1 + $0x918] sm:$0xff]
  %v338 = vld [vmem:[%s1 + $0x920] sm:$0xff]
  %v339 = vld [vmem:[%s1 + $0x928] sm:$0xff]
  %v340 = vld [vmem:[%s1 + $0x930] sm:$0xff]
  %v341 = vld [vmem:[%s1 + $0x938] sm:$0xff]
  %v342 = vld [vmem:[%s1 + $0x940] sm:$0xff]
  %v343 = vld [vmem:[%s1 + $0x948] sm:$0xff]
  %v344 = vld [vmem:[%s1 + $0x950] sm:$0xff]
  %v345 = vld [vmem:[%s1 + $0x958] sm:$0xff]
  %v346 = vld [vmem:[%s1 + $0x960] sm:$0xff]
  %v347 = vld [vmem:[%s1 + $0x968] sm:$0xff]
  %v348 = vld [vmem:[%s1 + $0x970] sm:$0xff]
  %v349 = vld [vmem:[%s1 + $0x978] sm:$0xff]
  %v350 = vld [vmem:[%s1 + $0x980] sm:$0xff]
  %v351 = vld [vmem:[%s1 + $0x988] sm:$0xff]
  %v352 = vld [vmem:[%s1 + $0x990] sm:$0xff]
  %v353 = vld [vmem:[%s1 + $0x998] sm:$0xff]
  %v354 = vld [vmem:[%s1 + $0x9a0] sm:$0xff]
  %v355 = vld [vmem:[%s1 + $0x9a8] sm:$0xff]
  %v356 = vld [vmem:[%s1 + $0x9b0] sm:$0xff]
  %v357 = vld [vmem:[%s1 + $0x9b8] sm:$0xff]
  %v358 = vld [vmem:[%s1 + $0x9c0] sm:$0xff]
  %v359 = vld [vmem:[%s1 + $0x9c8] sm:$0xff]
  %v360 = vld [vmem:[%s1 + $0x9d0] sm:$0xff]
  %v361 = vld [vmem:[%s1 + $0x9d8] sm:$0xff]
  %v362 = vld [vmem:[%s1 + $0x9e0] sm:$0xff]
  %v363 = vld [vmem:[%s1 + $0x9e8] sm:$0xff]
  %v364 = vld [vmem:[%s1 + $0x9f0] sm:$0xff]
  %v365 = vld [vmem:[%s1 + $0x9f8] sm:$0xff]
  %v366 = vld [vmem:[%s1 + $0xa00] sm:$0xff]
  %v367 = vld [vmem:[%s1 + $0xa08] sm:$0xff]
  %v368 = vld [vmem:[%s1 + $0xa10] sm:$0xff]
  %v369 = vld [vmem:[%s1 + $0xa18] sm:$0xff]
  %v370 = vld [vmem:[%s1 + $0xa20] sm:$0xff]
  %v371 = vld [vmem:[%s1 + $0xa28] sm:$0xff]
  %v372 = vld [vmem:[%s1 + $0xa30] sm:$0xff]
  %v373 = vld [vmem:[%s1 + $0xa38] sm:$0xff]
  %v374 = vld [vmem:[%s1 + $0xa40] sm:$0xff]
  %v375 = vld [vmem:[%s1 + $0xa48] sm:$0xff]
  %v376 = vld [vmem:[%s1 + $0xa50] sm:$0xff]
  %v377 = vld [vmem:[%s1 + $0xa58] sm:$0xff]
  %v378 = vld [vmem:[%s1 + $0xa60] sm:$0xff]
  %v379 = vld [vmem:[%s1 + $0xa68] sm:$0xff]
  %v380 = vld [vmem:[%s1 + $0xa70] sm:$0xff]
  %v381 = vld [vmem:[%s1 + $0xa78] sm:$0xff]
  %v382 = vld [vmem:[%s1 + $0xa80] sm:$0xff]
  %v383 = vld [vmem:[%s1 + $0xa88] sm:$0xff]
  %v384 = vld [vmem:[%s1 + $0xa90] sm:$0xff]
  %v385 = vld [vmem:[%s1 + $0xa98] sm:$0xff]
  %v386 = vld [vmem:[%s1 + $0xaa0] sm:$0xff]
  %v387 = vld [vmem:[%s1 + $0xaa8] sm:$0xff]
  %v388 = vld [vmem:[%s1 + $0xab0] sm:$0xff]
  %v389 = vld [vmem:[%s1 + $0xab8] sm:$0xff]
  %v390 = vld [vmem:[%s1 + $0xac0] sm:$0xff]
  %v391 = vld [vmem:[%s1 + $0xac8] sm:$0xff]
  %v392 = vld [vmem:[%s1 + $0xad0] sm:$0xff]
  %v393 = vld [vmem:[%s1 + $0xad8] sm:$0xff]
  %v394 = vld [vmem:[%s1 + $0xae0] sm:$0xff]
  %v395 = vld [vmem:[%s1 + $0xae8] sm:$0xff]
  %v396 = vld [vmem:[%s1 + $0xaf0] sm:$0xff]
  %v397 = vld [vmem:[%s1 + $0xaf8] sm:$0xff]
  %v398 = vld [vmem:[%s1 + $0xb00] sm:$0xff]
  %v399 = vld [vmem:[%s1 + $0xb08] sm:$0xff]
  %v400 = vld [vmem:[%s1 + $0xb10] sm:$0xff]
  %v401 = vld [vmem:[%s1 + $0xb18] sm:$0xff]
  %v402 = vld [vmem:[%s1 + $0xb20] sm:$0xff]
  %v403 = vld [vmem:[%s1 + $0xb28] sm:$0xff]
  %v404 = vld [vmem:[%s1 + $0xb30] sm:$0xff]
  %v405 = vld [vmem:[%s1 + $0xb38] sm:$0xff]
  %v406 = vld [vmem:[%s1 + $0xb40] sm:$0xff]
  %v407 = vld [vmem:[%s1 + $0xb48] sm:$0xff]
  %v408 = vld [vmem:[%s1 + $0xb50] sm:$0xff]
  %v409 = vld [vmem:[%s1 + $0xb58] sm:$0xff]
  %v410 = vld [vmem:[%s1 + $0xb60] sm:$0xff]
  %v411 = vld [vmem:[%s1 + $0xb68] sm:$0xff]
  %v412 = vld [vmem:[%s1 + $0xb70] sm:$0xff]
  %v413 = vld [vmem:[%s1 + $0xb78] sm:$0xff]
  %v414 = vld [vmem:[%s1 + $0xb80] sm:$0xff]
  %v415 = vld [vmem:[%s1 + $0xb88] sm:$0xff]
  %v416 = vld [vmem:[%s1 + $0xb90] sm:$0xff]
  %v417 = vld [vmem:[%s1 + $0xb98] sm:$0xff]
  %v418 = vld [vmem:[%s1 + $0xba0] sm:$0xff]
  %v419 = vld [vmem:[%s1 + $0xba8] sm:$0xff]
  %v420 = vld [vmem:[%s1 + $0xbb0] sm:$0xff]
  %v421 = vld [vmem:[%s1 + $0xbb8] sm:$0xff]
  %v422 = vld [vmem:[%s1 + $0xbc0] sm:$0xff]
  %v423 = vld [vmem:[%s1 + $0xbc8] sm:$0xff]
  %v424 = vld [vmem:[%s1 + $0xbd0] sm:$0xff]
  %v425 = vld [vmem:[%s1 + $0xbd8] sm:$0xff]
  %v426 = vld [vmem:[%s1 + $0xbe0] sm:$0xff]
  %v427 = vld [vmem:[%s1 + $0xbe8] sm:$0xff]
  %v428 = vld [vmem:[%s1 + $0xbf0] sm:$0xff]
  %v429 = vld [vmem:[%s1 + $0xbf8] sm:$0xff]
  %v814 = vunpack.c.l.b16 %v46
  %v815 = vunpack.c.h.b16 %v46
  %v816 = vunpack.c.l.b16 %v47
  %v817 = vunpack.c.h.b16 %v47
  %v818 = vunpack.c.l.b16 %v48
  %v819 = vunpack.c.h.b16 %v48
  %v820 = vunpack.c.l.b16 %v49
  %v821 = vunpack.c.h.b16 %v49
  %v822 = vunpack.c.l.b16 %v50
  %v823 = vunpack.c.h.b16 %v50
  %v824 = vunpack.c.l.b16 %v51
  %v825 = vunpack.c.h.b16 %v51
  %v826 = vunpack.c.l.b16 %v52
  %v827 = vunpack.c.h.b16 %v52
  %v828 = vunpack.c.l.b16 %v53
  %v829 = vunpack.c.h.b16 %v53
  %v830 = vunpack.c.l.b16 %v54
  %v831 = vunpack.c.h.b16 %v54
  %v832 = vunpack.c.l.b16 %v55
  %v833 = vunpack.c.h.b16 %v55
  %v834 = vunpack.c.l.b16 %v56
  %v835 = vunpack.c.h.b16 %v56
  %v836 = vunpack.c.l.b16 %v57
  %v837 = vunpack.c.h.b16 %v57
  %v838 = vunpack.c.l.b16 %v58
  %v839 = vunpack.c.h.b16 %v58
  %v840 = vunpack.c.l.b16 %v59
  %v841 = vunpack.c.h.b16 %v59
  %v842 = vunpack.c.l.b16 %v60
  %v843 = vunpack.c.h.b16 %v60
  %v844 = vunpack.c.l.b16 %v61
  %v845 = vunpack.c.h.b16 %v61
  %v846 = vunpack.c.l.b16 %v62
  %v847 = vunpack.c.h.b16 %v62
  %v848 = vunpack.c.l.b16 %v63
  %v849 = vunpack.c.h.b16 %v63
  %v850 = vunpack.c.l.b16 %v64
  %v851 = vunpack.c.h.b16 %v64
  %v852 = vunpack.c.l.b16 %v65
  %v853 = vunpack.c.h.b16 %v65
  %v854 = vunpack.c.l.b16 %v66
  %v855 = vunpack.c.h.b16 %v66
  %v856 = vunpack.c.l.b16 %v67
  %v857 = vunpack.c.h.b16 %v67
  %v858 = vunpack.c.l.b16 %v68
  %v859 = vunpack.c.h.b16 %v68
  %v860 = vunpack.c.l.b16 %v69
  %v861 = vunpack.c.h.b16 %v69
  %v862 = vunpack.c.l.b16 %v70
  %v863 = vunpack.c.h.b16 %v70
  %v864 = vunpack.c.l.b16 %v71
  %v865 = vunpack.c.h.b16 %v71
  %v866 = vunpack.c.l.b16 %v72
  %v867 = vunpack.c.h.b16 %v72
  %v868 = vunpack.c.l.b16 %v73
  %v869 = vunpack.c.h.b16 %v73
  %v870 = vunpack.c.l.b16 %v74
  %v871 = vunpack.c.h.b16 %v74
  %v872 = vunpack.c.l.b16 %v75
  %v873 = vunpack.c.h.b16 %v75
  %v874 = vunpack.c.l.b16 %v76
  %v875 = vunpack.c.h.b16 %v76
  %v876 = vunpack.c.l.b16 %v77
  %v877 = vunpack.c.h.b16 %v77
  %v878 = vunpack.c.l.b16 %v78
  %v879 = vunpack.c.h.b16 %v78
  %v880 = vunpack.c.l.b16 %v79
  %v881 = vunpack.c.h.b16 %v79
  %v882 = vunpack.c.l.b16 %v80
  %v883 = vunpack.c.h.b16 %v80
  %v884 = vunpack.c.l.b16 %v81
  %v885 = vunpack.c.h.b16 %v81
  %v886 = vunpack.c.l.b16 %v82
  %v887 = vunpack.c.h.b16 %v82
  %v888 = vunpack.c.l.b16 %v83
  %v889 = vunpack.c.h.b16 %v83
  %v890 = vunpack.c.l.b16 %v84
  %v891 = vunpack.c.h.b16 %v84
  %v892 = vunpack.c.l.b16 %v85
  %v893 = vunpack.c.h.b16 %v85
  %v894 = vunpack.c.l.b16 %v86
  %v895 = vunpack.c.h.b16 %v86
  %v896 = vunpack.c.l.b16 %v87
  %v897 = vunpack.c.h.b16 %v87
  %v898 = vunpack.c.l.b16 %v88
  %v899 = vunpack.c.h.b16 %v88
  %v900 = vunpack.c.l.b16 %v89
  %v901 = vunpack.c.h.b16 %v89
  %v902 = vunpack.c.l.b16 %v90
  %v903 = vunpack.c.h.b16 %v90
  %v904 = vunpack.c.l.b16 %v91
  %v905 = vunpack.c.h.b16 %v91
  %v906 = vunpack.c.l.b16 %v92
  %v907 = vunpack.c.h.b16 %v92
  %v908 = vunpack.c.l.b16 %v93
  %v909 = vunpack.c.h.b16 %v93
  %v910 = vunpack.c.l.b16 %v94
  %v911 = vunpack.c.h.b16 %v94
  %v912 = vunpack.c.l.b16 %v95
  %v913 = vunpack.c.h.b16 %v95
  %v914 = vunpack.c.l.b16 %v96
  %v915 = vunpack.c.h.b16 %v96
  %v916 = vunpack.c.l.b16 %v97
  %v917 = vunpack.c.h.b16 %v97
  %v918 = vunpack.c.l.b16 %v98
  %v919 = vunpack.c.h.b16 %v98
  %v920 = vunpack.c.l.b16 %v99
  %v921 = vunpack.c.h.b16 %v99
  %v922 = vunpack.c.l.b16 %v100
  %v923 = vunpack.c.h.b16 %v100
  %v924 = vunpack.c.l.b16 %v101
  %v925 = vunpack.c.h.b16 %v101
  %v926 = vunpack.c.l.b16 %v102
  %v927 = vunpack.c.h.b16 %v102
  %v928 = vunpack.c.l.b16 %v103
  %v929 = vunpack.c.h.b16 %v103
  %v930 = vunpack.c.l.b16 %v104
  %v931 = vunpack.c.h.b16 %v104
  %v932 = vunpack.c.l.b16 %v105
  %v933 = vunpack.c.h.b16 %v105
  %v934 = vunpack.c.l.b16 %v106
  %v935 = vunpack.c.h.b16 %v106
  %v936 = vunpack.c.l.b16 %v107
  %v937 = vunpack.c.h.b16 %v107
  %v938 = vunpack.c.l.b16 %v108
  %v939 = vunpack.c.h.b16 %v108
  %v940 = vunpack.c.l.b16 %v109
  %v941 = vunpack.c.h.b16 %v109
  %v942 = vunpack.c.l.b16 %v110
  %v943 = vunpack.c.h.b16 %v110
  %v944 = vunpack.c.l.b16 %v111
  %v945 = vunpack.c.h.b16 %v111
  %v946 = vunpack.c.l.b16 %v112
  %v947 = vunpack.c.h.b16 %v112
  %v948 = vunpack.c.l.b16 %v113
  %v949 = vunpack.c.h.b16 %v113
  %v950 = vunpack.c.l.b16 %v114
  %v951 = vunpack.c.h.b16 %v114
  %v952 = vunpack.c.l.b16 %v115
  %v953 = vunpack.c.h.b16 %v115
  %v954 = vunpack.c.l.b16 %v116
  %v955 = vunpack.c.h.b16 %v116
  %v956 = vunpack.c.l.b16 %v117
  %v957 = vunpack.c.h.b16 %v117
  %v958 = vunpack.c.l.b16 %v118
  %v959 = vunpack.c.h.b16 %v118
  %v960 = vunpack.c.l.b16 %v119
  %v961 = vunpack.c.h.b16 %v119
  %v962 = vunpack.c.l.b16 %v120
  %v963 = vunpack.c.h.b16 %v120
  %v964 = vunpack.c.l.b16 %v121
  %v965 = vunpack.c.h.b16 %v121
  %v966 = vunpack.c.l.b16 %v122
  %v967 = vunpack.c.h.b16 %v122
  %v968 = vunpack.c.l.b16 %v123
  %v969 = vunpack.c.h.b16 %v123
  %v970 = vunpack.c.l.b16 %v124
  %v971 = vunpack.c.h.b16 %v124
  %v972 = vunpack.c.l.b16 %v125
  %v973 = vunpack.c.h.b16 %v125
  %v974 = vunpack.c.l.b16 %v126
  %v975 = vunpack.c.h.b16 %v126
  %v976 = vunpack.c.l.b16 %v127
  %v977 = vunpack.c.h.b16 %v127
  %v978 = vunpack.c.l.b16 %v128
  %v979 = vunpack.c.h.b16 %v128
  %v980 = vunpack.c.l.b16 %v129
  %v981 = vunpack.c.h.b16 %v129
  %v982 = vunpack.c.l.b16 %v130
  %v983 = vunpack.c.h.b16 %v130
  %v984 = vunpack.c.l.b16 %v131
  %v985 = vunpack.c.h.b16 %v131
  %v986 = vunpack.c.l.b16 %v132
  %v987 = vunpack.c.h.b16 %v132
  %v988 = vunpack.c.l.b16 %v133
  %v989 = vunpack.c.h.b16 %v133
  %v990 = vunpack.c.l.b16 %v134
  %v991 = vunpack.c.h.b16 %v134
  %v992 = vunpack.c.l.b16 %v135
  %v993 = vunpack.c.h.b16 %v135
  %v994 = vunpack.c.l.b16 %v136
  %v995 = vunpack.c.h.b16 %v136
  %v996 = vunpack.c.l.b16 %v137
  %v997 = vunpack.c.h.b16 %v137
  %v998 = vunpack.c.l.b16 %v138
  %v999 = vunpack.c.h.b16 %v138
  %v1000 = vunpack.c.l.b16 %v139
  %v1001 = vunpack.c.h.b16 %v139
  %v1002 = vunpack.c.l.b16 %v140
  %v1003 = vunpack.c.h.b16 %v140
  %v1004 = vunpack.c.l.b16 %v141
  %v1005 = vunpack.c.h.b16 %v141
  %v1006 = vunpack.c.l.b16 %v142
  %v1007 = vunpack.c.h.b16 %v142
  %v1008 = vunpack.c.l.b16 %v143
  %v1009 = vunpack.c.h.b16 %v143
  %v1010 = vunpack.c.l.b16 %v144
  %v1011 = vunpack.c.h.b16 %v144
  %v1012 = vunpack.c.l.b16 %v145
  %v1013 = vunpack.c.h.b16 %v145
  %v1014 = vunpack.c.l.b16 %v146
  %v1015 = vunpack.c.h.b16 %v146
  %v1016 = vunpack.c.l.b16 %v147
  %v1017 = vunpack.c.h.b16 %v147
  %v1018 = vunpack.c.l.b16 %v148
  %v1019 = vunpack.c.h.b16 %v148
  %v1020 = vunpack.c.l.b16 %v149
  %v1021 = vunpack.c.h.b16 %v149
  %v1022 = vunpack.c.l.b16 %v150
  %v1023 = vunpack.c.h.b16 %v150
  %v1024 = vunpack.c.l.b16 %v151
  %v1025 = vunpack.c.h.b16 %v151
  %v1026 = vunpack.c.l.b16 %v152
  %v1027 = vunpack.c.h.b16 %v152
  %v1028 = vunpack.c.l.b16 %v153
  %v1029 = vunpack.c.h.b16 %v153
  %v1030 = vunpack.c.l.b16 %v154
  %v1031 = vunpack.c.h.b16 %v154
  %v1032 = vunpack.c.l.b16 %v155
  %v1033 = vunpack.c.h.b16 %v155
  %v1034 = vunpack.c.l.b16 %v156
  %v1035 = vunpack.c.h.b16 %v156
  %v1036 = vunpack.c.l.b16 %v157
  %v1037 = vunpack.c.h.b16 %v157
  %v1038 = vunpack.c.l.b16 %v158
  %v1039 = vunpack.c.h.b16 %v158
  %v1040 = vunpack.c.l.b16 %v159
  %v1041 = vunpack.c.h.b16 %v159
  %v1042 = vunpack.c.l.b16 %v160
  %v1043 = vunpack.c.h.b16 %v160
  %v1044 = vunpack.c.l.b16 %v161
  %v1045 = vunpack.c.h.b16 %v161
  %v1046 = vunpack.c.l.b16 %v162
  %v1047 = vunpack.c.h.b16 %v162
  %v1048 = vunpack.c.l.b16 %v163
  %v1049 = vunpack.c.h.b16 %v163
  %v1050 = vunpack.c.l.b16 %v164
  %v1051 = vunpack.c.h.b16 %v164
  %v1052 = vunpack.c.l.b16 %v165
  %v1053 = vunpack.c.h.b16 %v165
  %v1054 = vunpack.c.l.b16 %v166
  %v1055 = vunpack.c.h.b16 %v166
  %v1056 = vunpack.c.l.b16 %v167
  %v1057 = vunpack.c.h.b16 %v167
  %v1058 = vunpack.c.l.b16 %v168
  %v1059 = vunpack.c.h.b16 %v168
  %v1060 = vunpack.c.l.b16 %v169
  %v1061 = vunpack.c.h.b16 %v169
  %v1062 = vunpack.c.l.b16 %v170
  %v1063 = vunpack.c.h.b16 %v170
  %v1064 = vunpack.c.l.b16 %v171
  %v1065 = vunpack.c.h.b16 %v171
  %v1066 = vunpack.c.l.b16 %v172
  %v1067 = vunpack.c.h.b16 %v172
  %v1068 = vunpack.c.l.b16 %v173
  %v1069 = vunpack.c.h.b16 %v173
  %v1070 = vunpack.c.l.b16 %v174
  %v1071 = vunpack.c.h.b16 %v174
  %v1072 = vunpack.c.l.b16 %v175
  %v1073 = vunpack.c.h.b16 %v175
  %v1074 = vunpack.c.l.b16 %v176
  %v1075 = vunpack.c.h.b16 %v176
  %v1076 = vunpack.c.l.b16 %v177
  %v1077 = vunpack.c.h.b16 %v177
  %v1078 = vunpack.c.l.b16 %v178
  %v1079 = vunpack.c.h.b16 %v178
  %v1080 = vunpack.c.l.b16 %v179
  %v1081 = vunpack.c.h.b16 %v179
  %v1082 = vunpack.c.l.b16 %v180
  %v1083 = vunpack.c.h.b16 %v180
  %v1084 = vunpack.c.l.b16 %v181
  %v1085 = vunpack.c.h.b16 %v181
  %v1086 = vunpack.c.l.b16 %v182
  %v1087 = vunpack.c.h.b16 %v182
  %v1088 = vunpack.c.l.b16 %v183
  %v1089 = vunpack.c.h.b16 %v183
  %v1090 = vunpack.c.l.b16 %v184
  %v1091 = vunpack.c.h.b16 %v184
  %v1092 = vunpack.c.l.b16 %v185
  %v1093 = vunpack.c.h.b16 %v185
  %v1094 = vunpack.c.l.b16 %v186
  %v1095 = vunpack.c.h.b16 %v186
  %v1096 = vunpack.c.l.b16 %v187
  %v1097 = vunpack.c.h.b16 %v187
  %v1098 = vunpack.c.l.b16 %v188
  %v1099 = vunpack.c.h.b16 %v188
  %v1100 = vunpack.c.l.b16 %v189
  %v1101 = vunpack.c.h.b16 %v189
  %v1102 = vunpack.c.l.b16 %v190
  %v1103 = vunpack.c.h.b16 %v190
  %v1104 = vunpack.c.l.b16 %v191
  %v1105 = vunpack.c.h.b16 %v191
  %v1106 = vunpack.c.l.b16 %v192
  %v1107 = vunpack.c.h.b16 %v192
  %v1108 = vunpack.c.l.b16 %v193
  %v1109 = vunpack.c.h.b16 %v193
  %v1110 = vunpack.c.l.b16 %v194
  %v1111 = vunpack.c.h.b16 %v194
  %v1112 = vunpack.c.l.b16 %v195
  %v1113 = vunpack.c.h.b16 %v195
  %v1114 = vunpack.c.l.b16 %v196
  %v1115 = vunpack.c.h.b16 %v196
  %v1116 = vunpack.c.l.b16 %v197
  %v1117 = vunpack.c.h.b16 %v197
  %v1118 = vunpack.c.l.b16 %v198
  %v1119 = vunpack.c.h.b16 %v198
  %v1120 = vunpack.c.l.b16 %v199
  %v1121 = vunpack.c.h.b16 %v199
  %v1122 = vunpack.c.l.b16 %v200
  %v1123 = vunpack.c.h.b16 %v200
  %v1124 = vunpack.c.l.b16 %v201
  %v1125 = vunpack.c.h.b16 %v201
  %v1126 = vunpack.c.l.b16 %v202
  %v1127 = vunpack.c.h.b16 %v202
  %v1128 = vunpack.c.l.b16 %v203
  %v1129 = vunpack.c.h.b16 %v203
  %v1130 = vunpack.c.l.b16 %v204
  %v1131 = vunpack.c.h.b16 %v204
  %v1132 = vunpack.c.l.b16 %v205
  %v1133 = vunpack.c.h.b16 %v205
  %v1134 = vunpack.c.l.b16 %v206
  %v1135 = vunpack.c.h.b16 %v206
  %v1136 = vunpack.c.l.b16 %v207
  %v1137 = vunpack.c.h.b16 %v207
  %v1138 = vunpack.c.l.b16 %v208
  %v1139 = vunpack.c.h.b16 %v208
  %v1140 = vunpack.c.l.b16 %v209
  %v1141 = vunpack.c.h.b16 %v209
  %v1142 = vunpack.c.l.b16 %v210
  %v1143 = vunpack.c.h.b16 %v210
  %v1144 = vunpack.c.l.b16 %v211
  %v1145 = vunpack.c.h.b16 %v211
  %v1146 = vunpack.c.l.b16 %v212
  %v1147 = vunpack.c.h.b16 %v212
  %v1148 = vunpack.c.l.b16 %v213
  %v1149 = vunpack.c.h.b16 %v213
  %v1150 = vunpack.c.l.b16 %v214
  %v1151 = vunpack.c.h.b16 %v214
  %v1152 = vunpack.c.l.b16 %v215
  %v1153 = vunpack.c.h.b16 %v215
  %v1154 = vunpack.c.l.b16 %v216
  %v1155 = vunpack.c.h.b16 %v216
  %v1156 = vunpack.c.l.b16 %v217
  %v1157 = vunpack.c.h.b16 %v217
  %v1158 = vunpack.c.l.b16 %v218
  %v1159 = vunpack.c.h.b16 %v218
  %v1160 = vunpack.c.l.b16 %v219
  %v1161 = vunpack.c.h.b16 %v219
  %v1162 = vunpack.c.l.b16 %v220
  %v1163 = vunpack.c.h.b16 %v220
  %v1164 = vunpack.c.l.b16 %v221
  %v1165 = vunpack.c.h.b16 %v221
  %v1166 = vunpack.c.l.b16 %v222
  %v1167 = vunpack.c.h.b16 %v222
  %v1168 = vunpack.c.l.b16 %v223
  %v1169 = vunpack.c.h.b16 %v223
  %v1170 = vunpack.c.l.b16 %v224
  %v1171 = vunpack.c.h.b16 %v224
  %v1172 = vunpack.c.l.b16 %v225
  %v1173 = vunpack.c.h.b16 %v225
  %v1174 = vunpack.c.l.b16 %v226
  %v1175 = vunpack.c.h.b16 %v226
  %v1176 = vunpack.c.l.b16 %v227
  %v1177 = vunpack.c.h.b16 %v227
  %v1178 = vunpack.c.l.b16 %v228
  %v1179 = vunpack.c.h.b16 %v228
  %v1180 = vunpack.c.l.b16 %v229
  %v1181 = vunpack.c.h.b16 %v229
  %v1182 = vunpack.c.l.b16 %v230
  %v1183 = vunpack.c.h.b16 %v230
  %v1184 = vunpack.c.l.b16 %v231
  %v1185 = vunpack.c.h.b16 %v231
  %v1186 = vunpack.c.l.b16 %v232
  %v1187 = vunpack.c.h.b16 %v232
  %v1188 = vunpack.c.l.b16 %v233
  %v1189 = vunpack.c.h.b16 %v233
  %v1190 = vunpack.c.l.b16 %v234
  %v1191 = vunpack.c.h.b16 %v234
  %v1192 = vunpack.c.l.b16 %v235
  %v1193 = vunpack.c.h.b16 %v235
  %v1194 = vunpack.c.l.b16 %v236
  %v1195 = vunpack.c.h.b16 %v236
  %v1196 = vunpack.c.l.b16 %v237
  %v1197 = vunpack.c.h.b16 %v237
  %v1198 = vunpack.c.l.b16 %v238
  %v1199 = vunpack.c.h.b16 %v238
  %v1200 = vunpack.c.l.b16 %v239
  %v1201 = vunpack.c.h.b16 %v239
  %v1202 = vunpack.c.l.b16 %v240
  %v1203 = vunpack.c.h.b16 %v240
  %v1204 = vunpack.c.l.b16 %v241
  %v1205 = vunpack.c.h.b16 %v241
  %v1206 = vunpack.c.l.b16 %v242
  %v1207 = vunpack.c.h.b16 %v242
  %v1208 = vunpack.c.l.b16 %v243
  %v1209 = vunpack.c.h.b16 %v243
  %v1210 = vunpack.c.l.b16 %v244
  %v1211 = vunpack.c.h.b16 %v244
  %v1212 = vunpack.c.l.b16 %v245
  %v1213 = vunpack.c.h.b16 %v245
  %v1214 = vunpack.c.l.b16 %v246
  %v1215 = vunpack.c.h.b16 %v246
  %v1216 = vunpack.c.l.b16 %v247
  %v1217 = vunpack.c.h.b16 %v247
  %v1218 = vunpack.c.l.b16 %v248
  %v1219 = vunpack.c.h.b16 %v248
  %v1220 = vunpack.c.l.b16 %v249
  %v1221 = vunpack.c.h.b16 %v249
  %v1222 = vunpack.c.l.b16 %v250
  %v1223 = vunpack.c.h.b16 %v250
  %v1224 = vunpack.c.l.b16 %v251
  %v1225 = vunpack.c.h.b16 %v251
  %v1226 = vunpack.c.l.b16 %v252
  %v1227 = vunpack.c.h.b16 %v252
  %v1228 = vunpack.c.l.b16 %v253
  %v1229 = vunpack.c.h.b16 %v253
  %v1230 = vunpack.c.l.b16 %v254
  %v1231 = vunpack.c.h.b16 %v254
  %v1232 = vunpack.c.l.b16 %v255
  %v1233 = vunpack.c.h.b16 %v255
  %v1234 = vunpack.c.l.b16 %v256
  %v1235 = vunpack.c.h.b16 %v256
  %v1236 = vunpack.c.l.b16 %v257
  %v1237 = vunpack.c.h.b16 %v257
  %v1238 = vunpack.c.l.b16 %v258
  %v1239 = vunpack.c.h.b16 %v258
  %v1240 = vunpack.c.l.b16 %v259
  %v1241 = vunpack.c.h.b16 %v259
  %v1242 = vunpack.c.l.b16 %v260
  %v1243 = vunpack.c.h.b16 %v260
  %v1244 = vunpack.c.l.b16 %v261
  %v1245 = vunpack.c.h.b16 %v261
  %v1246 = vunpack.c.l.b16 %v262
  %v1247 = vunpack.c.h.b16 %v262
  %v1248 = vunpack.c.l.b16 %v263
  %v1249 = vunpack.c.h.b16 %v263
  %v1250 = vunpack.c.l.b16 %v264
  %v1251 = vunpack.c.h.b16 %v264
  %v1252 = vunpack.c.l.b16 %v265
  %v1253 = vunpack.c.h.b16 %v265
  %v1254 = vunpack.c.l.b16 %v266
  %v1255 = vunpack.c.h.b16 %v266
  %v1256 = vunpack.c.l.b16 %v267
  %v1257 = vunpack.c.h.b16 %v267
  %v1258 = vunpack.c.l.b16 %v268
  %v1259 = vunpack.c.h.b16 %v268
  %v1260 = vunpack.c.l.b16 %v269
  %v1261 = vunpack.c.h.b16 %v269
  %v1262 = vunpack.c.l.b16 %v270
  %v1263 = vunpack.c.h.b16 %v270
  %v1264 = vunpack.c.l.b16 %v271
  %v1265 = vunpack.c.h.b16 %v271
  %v1266 = vunpack.c.l.b16 %v272
  %v1267 = vunpack.c.h.b16 %v272
  %v1268 = vunpack.c.l.b16 %v273
  %v1269 = vunpack.c.h.b16 %v273
  %v1270 = vunpack.c.l.b16 %v274
  %v1271 = vunpack.c.h.b16 %v274
  %v1272 = vunpack.c.l.b16 %v275
  %v1273 = vunpack.c.h.b16 %v275
  %v1274 = vunpack.c.l.b16 %v276
  %v1275 = vunpack.c.h.b16 %v276
  %v1276 = vunpack.c.l.b16 %v277
  %v1277 = vunpack.c.h.b16 %v277
  %v1278 = vunpack.c.l.b16 %v278
  %v1279 = vunpack.c.h.b16 %v278
  %v1280 = vunpack.c.l.b16 %v279
  %v1281 = vunpack.c.h.b16 %v279
  %v1282 = vunpack.c.l.b16 %v280
  %v1283 = vunpack.c.h.b16 %v280
  %v1284 = vunpack.c.l.b16 %v281
  %v1285 = vunpack.c.h.b16 %v281
  %v1286 = vunpack.c.l.b16 %v282
  %v1287 = vunpack.c.h.b16 %v282
  %v1288 = vunpack.c.l.b16 %v283
  %v1289 = vunpack.c.h.b16 %v283
  %v1290 = vunpack.c.l.b16 %v284
  %v1291 = vunpack.c.h.b16 %v284
  %v1292 = vunpack.c.l.b16 %v285
  %v1293 = vunpack.c.h.b16 %v285
  %v1294 = vunpack.c.l.b16 %v286
  %v1295 = vunpack.c.h.b16 %v286
  %v1296 = vunpack.c.l.b16 %v287
  %v1297 = vunpack.c.h.b16 %v287
  %v1298 = vunpack.c.l.b16 %v288
  %v1299 = vunpack.c.h.b16 %v288
  %v1300 = vunpack.c.l.b16 %v289
  %v1301 = vunpack.c.h.b16 %v289
  %v1302 = vunpack.c.l.b16 %v290
  %v1303 = vunpack.c.h.b16 %v290
  %v1304 = vunpack.c.l.b16 %v291
  %v1305 = vunpack.c.h.b16 %v291
  %v1306 = vunpack.c.l.b16 %v292
  %v1307 = vunpack.c.h.b16 %v292
  %v1308 = vunpack.c.l.b16 %v293
  %v1309 = vunpack.c.h.b16 %v293
  %v1310 = vunpack.c.l.b16 %v294
  %v1311 = vunpack.c.h.b16 %v294
  %v1312 = vunpack.c.l.b16 %v295
  %v1313 = vunpack.c.h.b16 %v295
  %v1314 = vunpack.c.l.b16 %v296
  %v1315 = vunpack.c.h.b16 %v296
  %v1316 = vunpack.c.l.b16 %v297
  %v1317 = vunpack.c.h.b16 %v297
  %v1318 = vunpack.c.l.b16 %v298
  %v1319 = vunpack.c.h.b16 %v298
  %v1320 = vunpack.c.l.b16 %v299
  %v1321 = vunpack.c.h.b16 %v299
  %v1322 = vunpack.c.l.b16 %v300
  %v1323 = vunpack.c.h.b16 %v300
  %v1324 = vunpack.c.l.b16 %v301
  %v1325 = vunpack.c.h.b16 %v301
  %v1326 = vunpack.c.l.b16 %v302
  %v1327 = vunpack.c.h.b16 %v302
  %v1328 = vunpack.c.l.b16 %v303
  %v1329 = vunpack.c.h.b16 %v303
  %v1330 = vunpack.c.l.b16 %v304
  %v1331 = vunpack.c.h.b16 %v304
  %v1332 = vunpack.c.l.b16 %v305
  %v1333 = vunpack.c.h.b16 %v305
  %v1334 = vunpack.c.l.b16 %v306
  %v1335 = vunpack.c.h.b16 %v306
  %v1336 = vunpack.c.l.b16 %v307
  %v1337 = vunpack.c.h.b16 %v307
  %v1338 = vunpack.c.l.b16 %v308
  %v1339 = vunpack.c.h.b16 %v308
  %v1340 = vunpack.c.l.b16 %v309
  %v1341 = vunpack.c.h.b16 %v309
  %v1342 = vunpack.c.l.b16 %v310
  %v1343 = vunpack.c.h.b16 %v310
  %v1344 = vunpack.c.l.b16 %v311
  %v1345 = vunpack.c.h.b16 %v311
  %v1346 = vunpack.c.l.b16 %v312
  %v1347 = vunpack.c.h.b16 %v312
  %v1348 = vunpack.c.l.b16 %v313
  %v1349 = vunpack.c.h.b16 %v313
  %v1350 = vunpack.c.l.b16 %v314
  %v1351 = vunpack.c.h.b16 %v314
  %v1352 = vunpack.c.l.b16 %v315
  %v1353 = vunpack.c.h.b16 %v315
  %v1354 = vunpack.c.l.b16 %v316
  %v1355 = vunpack.c.h.b16 %v316
  %v1356 = vunpack.c.l.b16 %v317
  %v1357 = vunpack.c.h.b16 %v317
  %v1358 = vunpack.c.l.b16 %v318
  %v1359 = vunpack.c.h.b16 %v318
  %v1360 = vunpack.c.l.b16 %v319
  %v1361 = vunpack.c.h.b16 %v319
  %v1362 = vunpack.c.l.b16 %v320
  %v1363 = vunpack.c.h.b16 %v320
  %v1364 = vunpack.c.l.b16 %v321
  %v1365 = vunpack.c.h.b16 %v321
  %v1366 = vunpack.c.l.b16 %v322
  %v1367 = vunpack.c.h.b16 %v322
  %v1368 = vunpack.c.l.b16 %v323
  %v1369 = vunpack.c.h.b16 %v323
  %v1370 = vunpack.c.l.b16 %v324
  %v1371 = vunpack.c.h.b16 %v324
  %v1372 = vunpack.c.l.b16 %v325
  %v1373 = vunpack.c.h.b16 %v325
  %v1374 = vunpack.c.l.b16 %v326
  %v1375 = vunpack.c.h.b16 %v326
  %v1376 = vunpack.c.l.b16 %v327
  %v1377 = vunpack.c.h.b16 %v327
  %v1378 = vunpack.c.l.b16 %v328
  %v1379 = vunpack.c.h.b16 %v328
  %v1380 = vunpack.c.l.b16 %v329
  %v1381 = vunpack.c.h.b16 %v329
  %v1382 = vunpack.c.l.b16 %v330
  %v1383 = vunpack.c.h.b16 %v330
  %v1384 = vunpack.c.l.b16 %v331
  %v1385 = vunpack.c.h.b16 %v331
  %v1386 = vunpack.c.l.b16 %v332
  %v1387 = vunpack.c.h.b16 %v332
  %v1388 = vunpack.c.l.b16 %v333
  %v1389 = vunpack.c.h.b16 %v333
  %v1390 = vunpack.c.l.b16 %v334
  %v1391 = vunpack.c.h.b16 %v334
  %v1392 = vunpack.c.l.b16 %v335
  %v1393 = vunpack.c.h.b16 %v335
  %v1394 = vunpack.c.l.b16 %v336
  %v1395 = vunpack.c.h.b16 %v336
  %v1396 = vunpack.c.l.b16 %v337
  %v1397 = vunpack.c.h.b16 %v337
  %v1398 = vunpack.c.l.b16 %v338
  %v1399 = vunpack.c.h.b16 %v338
  %v1400 = vunpack.c.l.b16 %v339
  %v1401 = vunpack.c.h.b16 %v339
  %v1402 = vunpack.c.l.b16 %v340
  %v1403 = vunpack.c.h.b16 %v340
  %v1404 = vunpack.c.l.b16 %v341
  %v1405 = vunpack.c.h.b16 %v341
  %v1406 = vunpack.c.l.b16 %v342
  %v1407 = vunpack.c.h.b16 %v342
  %v1408 = vunpack.c.l.b16 %v343
  %v1409 = vunpack.c.h.b16 %v343
  %v1410 = vunpack.c.l.b16 %v344
  %v1411 = vunpack.c.h.b16 %v344
  %v1412 = vunpack.c.l.b16 %v345
  %v1413 = vunpack.c.h.b16 %v345
  %v1414 = vunpack.c.l.b16 %v346
  %v1415 = vunpack.c.h.b16 %v346
  %v1416 = vunpack.c.l.b16 %v347
  %v1417 = vunpack.c.h.b16 %v347
  %v1418 = vunpack.c.l.b16 %v348
  %v1419 = vunpack.c.h.b16 %v348
  %v1420 = vunpack.c.l.b16 %v349
  %v1421 = vunpack.c.h.b16 %v349
  %v1422 = vunpack.c.l.b16 %v350
  %v1423 = vunpack.c.h.b16 %v350
  %v1424 = vunpack.c.l.b16 %v351
  %v1425 = vunpack.c.h.b16 %v351
  %v1426 = vunpack.c.l.b16 %v352
  %v1427 = vunpack.c.h.b16 %v352
  %v1428 = vunpack.c.l.b16 %v353
  %v1429 = vunpack.c.h.b16 %v353
  %v1430 = vunpack.c.l.b16 %v354
  %v1431 = vunpack.c.h.b16 %v354
  %v1432 = vunpack.c.l.b16 %v355
  %v1433 = vunpack.c.h.b16 %v355
  %v1434 = vunpack.c.l.b16 %v356
  %v1435 = vunpack.c.h.b16 %v356
  %v1436 = vunpack.c.l.b16 %v357
  %v1437 = vunpack.c.h.b16 %v357
  %v1438 = vunpack.c.l.b16 %v358
  %v1439 = vunpack.c.h.b16 %v358
  %v1440 = vunpack.c.l.b16 %v359
  %v1441 = vunpack.c.h.b16 %v359
  %v1442 = vunpack.c.l.b16 %v360
  %v1443 = vunpack.c.h.b16 %v360
  %v1444 = vunpack.c.l.b16 %v361
  %v1445 = vunpack.c.h.b16 %v361
  %v1446 = vunpack.c.l.b16 %v362
  %v1447 = vunpack.c.h.b16 %v362
  %v1448 = vunpack.c.l.b16 %v363
  %v1449 = vunpack.c.h.b16 %v363
  %v1450 = vunpack.c.l.b16 %v364
  %v1451 = vunpack.c.h.b16 %v364
  %v1452 = vunpack.c.l.b16 %v365
  %v1453 = vunpack.c.h.b16 %v365
  %v1454 = vunpack.c.l.b16 %v366
  %v1455 = vunpack.c.h.b16 %v366
  %v1456 = vunpack.c.l.b16 %v367
  %v1457 = vunpack.c.h.b16 %v367
  %v1458 = vunpack.c.l.b16 %v368
  %v1459 = vunpack.c.h.b16 %v368
  %v1460 = vunpack.c.l.b16 %v369
  %v1461 = vunpack.c.h.b16 %v369
  %v1462 = vunpack.c.l.b16 %v370
  %v1463 = vunpack.c.h.b16 %v370
  %v1464 = vunpack.c.l.b16 %v371
  %v1465 = vunpack.c.h.b16 %v371
  %v1466 = vunpack.c.l.b16 %v372
  %v1467 = vunpack.c.h.b16 %v372
  %v1468 = vunpack.c.l.b16 %v373
  %v1469 = vunpack.c.h.b16 %v373
  %v1470 = vunpack.c.l.b16 %v374
  %v1471 = vunpack.c.h.b16 %v374
  %v1472 = vunpack.c.l.b16 %v375
  %v1473 = vunpack.c.h.b16 %v375
  %v1474 = vunpack.c.l.b16 %v376
  %v1475 = vunpack.c.h.b16 %v376
  %v1476 = vunpack.c.l.b16 %v377
  %v1477 = vunpack.c.h.b16 %v377
  %v1478 = vunpack.c.l.b16 %v378
  %v1479 = vunpack.c.h.b16 %v378
  %v1480 = vunpack.c.l.b16 %v379
  %v1481 = vunpack.c.h.b16 %v379
  %v1482 = vunpack.c.l.b16 %v380
  %v1483 = vunpack.c.h.b16 %v380
  %v1484 = vunpack.c.l.b16 %v381
  %v1485 = vunpack.c.h.b16 %v381
  %v1486 = vunpack.c.l.b16 %v382
  %v1487 = vunpack.c.h.b16 %v382
  %v1488 = vunpack.c.l.b16 %v383
  %v1489 = vunpack.c.h.b16 %v383
  %v1490 = vunpack.c.l.b16 %v384
  %v1491 = vunpack.c.h.b16 %v384
  %v1492 = vunpack.c.l.b16 %v385
  %v1493 = vunpack.c.h.b16 %v385
  %v1494 = vunpack.c.l.b16 %v386
  %v1495 = vunpack.c.h.b16 %v386
  %v1496 = vunpack.c.l.b16 %v387
  %v1497 = vunpack.c.h.b16 %v387
  %v1498 = vunpack.c.l.b16 %v388
  %v1499 = vunpack.c.h.b16 %v388
  %v1500 = vunpack.c.l.b16 %v389
  %v1501 = vunpack.c.h.b16 %v389
  %v1502 = vunpack.c.l.b16 %v390
  %v1503 = vunpack.c.h.b16 %v390
  %v1504 = vunpack.c.l.b16 %v391
  %v1505 = vunpack.c.h.b16 %v391
  %v1506 = vunpack.c.l.b16 %v392
  %v1507 = vunpack.c.h.b16 %v392
  %v1508 = vunpack.c.l.b16 %v393
  %v1509 = vunpack.c.h.b16 %v393
  %v1510 = vunpack.c.l.b16 %v394
  %v1511 = vunpack.c.h.b16 %v394
  %v1512 = vunpack.c.l.b16 %v395
  %v1513 = vunpack.c.h.b16 %v395
  %v1514 = vunpack.c.l.b16 %v396
  %v1515 = vunpack.c.h.b16 %v396
  %v1516 = vunpack.c.l.b16 %v397
  %v1517 = vunpack.c.h.b16 %v397
  %v1518 = vunpack.c.l.b16 %v398
  %v1519 = vunpack.c.h.b16 %v398
  %v1520 = vunpack.c.l.b16 %v399
  %v1521 = vunpack.c.h.b16 %v399
  %v1522 = vunpack.c.l.b16 %v400
  %v1523 = vunpack.c.h.b16 %v400
  %v1524 = vunpack.c.l.b16 %v401
  %v1525 = vunpack.c.h.b16 %v401
  %v1526 = vunpack.c.l.b16 %v402
  %v1527 = vunpack.c.h.b16 %v402
  %v1528 = vunpack.c.l.b16 %v403
  %v1529 = vunpack.c.h.b16 %v403
  %v1530 = vunpack.c.l.b16 %v404
  %v1531 = vunpack.c.h.b16 %v404
  %v1532 = vunpack.c.l.b16 %v405
  %v1533 = vunpack.c.h.b16 %v405
  %v1534 = vunpack.c.l.b16 %v406
  %v1535 = vunpack.c.h.b16 %v406
  %v1536 = vunpack.c.l.b16 %v407
  %v1537 = vunpack.c.h.b16 %v407
  %v1538 = vunpack.c.l.b16 %v408
  %v1539 = vunpack.c.h.b16 %v408
  %v1540 = vunpack.c.l.b16 %v409
  %v1541 = vunpack.c.h.b16 %v409
  %v1542 = vunpack.c.l.b16 %v410
  %v1543 = vunpack.c.h.b16 %v410
  %v1544 = vunpack.c.l.b16 %v411
  %v1545 = vunpack.c.h.b16 %v411
  %v1546 = vunpack.c.l.b16 %v412
  %v1547 = vunpack.c.h.b16 %v412
  %v1548 = vunpack.c.l.b16 %v413
  %v1549 = vunpack.c.h.b16 %v413
  %v1550 = vunpack.c.l.b16 %v414
  %v1551 = vunpack.c.h.b16 %v414
  %v1552 = vunpack.c.l.b16 %v415
  %v1553 = vunpack.c.h.b16 %v415
  %v1554 = vunpack.c.l.b16 %v416
  %v1555 = vunpack.c.h.b16 %v416
  %v1556 = vunpack.c.l.b16 %v417
  %v1557 = vunpack.c.h.b16 %v417
  %v1558 = vunpack.c.l.b16 %v418
  %v1559 = vunpack.c.h.b16 %v418
  %v1560 = vunpack.c.l.b16 %v419
  %v1561 = vunpack.c.h.b16 %v419
  %v1562 = vunpack.c.l.b16 %v420
  %v1563 = vunpack.c.h.b16 %v420
  %v1564 = vunpack.c.l.b16 %v421
  %v1565 = vunpack.c.h.b16 %v421
  %v1566 = vunpack.c.l.b16 %v422
  %v1567 = vunpack.c.h.b16 %v422
  %v1568 = vunpack.c.l.b16 %v423
  %v1569 = vunpack.c.h.b16 %v423
  %v1570 = vunpack.c.l.b16 %v424
  %v1571 = vunpack.c.h.b16 %v424
  %v1572 = vunpack.c.l.b16 %v425
  %v1573 = vunpack.c.h.b16 %v425
  %v1574 = vunpack.c.l.b16 %v426
  %v1575 = vunpack.c.h.b16 %v426
  %v1576 = vunpack.c.l.b16 %v427
  %v1577 = vunpack.c.h.b16 %v427
  %v1578 = vunpack.c.l.b16 %v428
  %v1579 = vunpack.c.h.b16 %v428
  %v1580 = vunpack.c.l.b16 %v429
  %v1581 = vunpack.c.h.b16 %v429
  %v1582 = vpack.c.b16 %v826, %v814
  %v1583 = vpack.c.b16 %v827, %v815
  %v1584 = vpack.c.b16 %v828, %v816
  %v1585 = vpack.c.b16 %v829, %v817
  %v1586 = vpack.c.b16 %v830, %v818
  %v1587 = vpack.c.b16 %v831, %v819
  %v1588 = vpack.c.b16 %v832, %v820
  %v1589 = vpack.c.b16 %v833, %v821
  %v1590 = vpack.c.b16 %v834, %v822
  %v1591 = vpack.c.b16 %v835, %v823
  %v1592 = vpack.c.b16 %v836, %v824
  %v1593 = vpack.c.b16 %v837, %v825
  %v1594 = vpack.c.b16 %v850, %v838
  %v1595 = vpack.c.b16 %v851, %v839
  %v1596 = vpack.c.b16 %v852, %v840
  %v1597 = vpack.c.b16 %v853, %v841
  %v1598 = vpack.c.b16 %v854, %v842
  %v1599 = vpack.c.b16 %v855, %v843
  %v1600 = vpack.c.b16 %v856, %v844
  %v1601 = vpack.c.b16 %v857, %v845
  %v1602 = vpack.c.b16 %v858, %v846
  %v1603 = vpack.c.b16 %v859, %v847
  %v1604 = vpack.c.b16 %v860, %v848
  %v1605 = vpack.c.b16 %v861, %v849
  %v1606 = vpack.c.b16 %v874, %v862
  %v1607 = vpack.c.b16 %v875, %v863
  %v1608 = vpack.c.b16 %v876, %v864
  %v1609 = vpack.c.b16 %v877, %v865
  %v1610 = vpack.c.b16 %v878, %v866
  %v1611 = vpack.c.b16 %v879, %v867
  %v1612 = vpack.c.b16 %v880, %v868
  %v1613 = vpack.c.b16 %v881, %v869
  %v1614 = vpack.c.b16 %v882, %v870
  %v1615 = vpack.c.b16 %v883, %v871
  %v1616 = vpack.c.b16 %v884, %v872
  %v1617 = vpack.c.b16 %v885, %v873
  %v1618 = vpack.c.b16 %v898, %v886
  %v1619 = vpack.c.b16 %v899, %v887
  %v1620 = vpack.c.b16 %v900, %v888
  %v1621 = vpack.c.b16 %v901, %v889
  %v1622 = vpack.c.b16 %v902, %v890
  %v1623 = vpack.c.b16 %v903, %v891
  %v1624 = vpack.c.b16 %v904, %v892
  %v1625 = vpack.c.b16 %v905, %v893
  %v1626 = vpack.c.b16 %v906, %v894
  %v1627 = vpack.c.b16 %v907, %v895
  %v1628 = vpack.c.b16 %v908, %v896
  %v1629 = vpack.c.b16 %v909, %v897
  %v1630 = vpack.c.b16 %v922, %v910
  %v1631 = vpack.c.b16 %v923, %v911
  %v1632 = vpack.c.b16 %v924, %v912
  %v1633 = vpack.c.b16 %v925, %v913
  %v1634 = vpack.c.b16 %v926, %v914
  %v1635 = vpack.c.b16 %v927, %v915
  %v1636 = vpack.c.b16 %v928, %v916
  %v1637 = vpack.c.b16 %v929, %v917
  %v1638 = vpack.c.b16 %v930, %v918
  %v1639 = vpack.c.b16 %v931, %v919
  %v1640 = vpack.c.b16 %v932, %v920
  %v1641 = vpack.c.b16 %v933, %v921
  %v1642 = vpack.c.b16 %v946, %v934
  %v1643 = vpack.c.b16 %v947, %v935
  %v1644 = vpack.c.b16 %v948, %v936
  %v1645 = vpack.c.b16 %v949, %v937
  %v1646 = vpack.c.b16 %v950, %v938
  %v1647 = vpack.c.b16 %v951, %v939
  %v1648 = vpack.c.b16 %v952, %v940
  %v1649 = vpack.c.b16 %v953, %v941
  %v1650 = vpack.c.b16 %v954, %v942
  %v1651 = vpack.c.b16 %v955, %v943
  %v1652 = vpack.c.b16 %v956, %v944
  %v1653 = vpack.c.b16 %v957, %v945
  %v1654 = vpack.c.b16 %v970, %v958
  %v1655 = vpack.c.b16 %v971, %v959
  %v1656 = vpack.c.b16 %v972, %v960
  %v1657 = vpack.c.b16 %v973, %v961
  %v1658 = vpack.c.b16 %v974, %v962
  %v1659 = vpack.c.b16 %v975, %v963
  %v1660 = vpack.c.b16 %v976, %v964
  %v1661 = vpack.c.b16 %v977, %v965
  %v1662 = vpack.c.b16 %v978, %v966
  %v1663 = vpack.c.b16 %v979, %v967
  %v1664 = vpack.c.b16 %v980, %v968
  %v1665 = vpack.c.b16 %v981, %v969
  %v1666 = vpack.c.b16 %v994, %v982
  %v1667 = vpack.c.b16 %v995, %v983
  %v1668 = vpack.c.b16 %v996, %v984
  %v1669 = vpack.c.b16 %v997, %v985
  %v1670 = vpack.c.b16 %v998, %v986
  %v1671 = vpack.c.b16 %v999, %v987
  %v1672 = vpack.c.b16 %v1000, %v988
  %v1673 = vpack.c.b16 %v1001, %v989
  %v1674 = vpack.c.b16 %v1002, %v990
  %v1675 = vpack.c.b16 %v1003, %v991
  %v1676 = vpack.c.b16 %v1004, %v992
  %v1677 = vpack.c.b16 %v1005, %v993
  %v1678 = vpack.c.b16 %v1018, %v1006
  %v1679 = vpack.c.b16 %v1019, %v1007
  %v1680 = vpack.c.b16 %v1020, %v1008
  %v1681 = vpack.c.b16 %v1021, %v1009
  %v1682 = vpack.c.b16 %v1022, %v1010
  %v1683 = vpack.c.b16 %v1023, %v1011
  %v1684 = vpack.c.b16 %v1024, %v1012
  %v1685 = vpack.c.b16 %v1025, %v1013
  %v1686 = vpack.c.b16 %v1026, %v1014
  %v1687 = vpack.c.b16 %v1027, %v1015
  %v1688 = vpack.c.b16 %v1028, %v1016
  %v1689 = vpack.c.b16 %v1029, %v1017
  %v1690 = vpack.c.b16 %v1042, %v1030
  %v1691 = vpack.c.b16 %v1043, %v1031
  %v1692 = vpack.c.b16 %v1044, %v1032
  %v1693 = vpack.c.b16 %v1045, %v1033
  %v1694 = vpack.c.b16 %v1046, %v1034
  %v1695 = vpack.c.b16 %v1047, %v1035
  %v1696 = vpack.c.b16 %v1048, %v1036
  %v1697 = vpack.c.b16 %v1049, %v1037
  %v1698 = vpack.c.b16 %v1050, %v1038
  %v1699 = vpack.c.b16 %v1051, %v1039
  %v1700 = vpack.c.b16 %v1052, %v1040
  %v1701 = vpack.c.b16 %v1053, %v1041
  %v1702 = vpack.c.b16 %v1066, %v1054
  %v1703 = vpack.c.b16 %v1067, %v1055
  %v1704 = vpack.c.b16 %v1068, %v1056
  %v1705 = vpack.c.b16 %v1069, %v1057
  %v1706 = vpack.c.b16 %v1070, %v1058
  %v1707 = vpack.c.b16 %v1071, %v1059
  %v1708 = vpack.c.b16 %v1072, %v1060
  %v1709 = vpack.c.b16 %v1073, %v1061
  %v1710 = vpack.c.b16 %v1074, %v1062
  %v1711 = vpack.c.b16 %v1075, %v1063
  %v1712 = vpack.c.b16 %v1076, %v1064
  %v1713 = vpack.c.b16 %v1077, %v1065
  %v1714 = vpack.c.b16 %v1090, %v1078
  %v1715 = vpack.c.b16 %v1091, %v1079
  %v1716 = vpack.c.b16 %v1092, %v1080
  %v1717 = vpack.c.b16 %v1093, %v1081
  %v1718 = vpack.c.b16 %v1094, %v1082
  %v1719 = vpack.c.b16 %v1095, %v1083
  %v1720 = vpack.c.b16 %v1096, %v1084
  %v1721 = vpack.c.b16 %v1097, %v1085
  %v1722 = vpack.c.b16 %v1098, %v1086
  %v1723 = vpack.c.b16 %v1099, %v1087
  %v1724 = vpack.c.b16 %v1100, %v1088
  %v1725 = vpack.c.b16 %v1101, %v1089
  %v1726 = vpack.c.b16 %v1114, %v1102
  %v1727 = vpack.c.b16 %v1115, %v1103
  %v1728 = vpack.c.b16 %v1116, %v1104
  %v1729 = vpack.c.b16 %v1117, %v1105
  %v1730 = vpack.c.b16 %v1118, %v1106
  %v1731 = vpack.c.b16 %v1119, %v1107
  %v1732 = vpack.c.b16 %v1120, %v1108
  %v1733 = vpack.c.b16 %v1121, %v1109
  %v1734 = vpack.c.b16 %v1122, %v1110
  %v1735 = vpack.c.b16 %v1123, %v1111
  %v1736 = vpack.c.b16 %v1124, %v1112
  %v1737 = vpack.c.b16 %v1125, %v1113
  %v1738 = vpack.c.b16 %v1138, %v1126
  %v1739 = vpack.c.b16 %v1139, %v1127
  %v1740 = vpack.c.b16 %v1140, %v1128
  %v1741 = vpack.c.b16 %v1141, %v1129
  %v1742 = vpack.c.b16 %v1142, %v1130
  %v1743 = vpack.c.b16 %v1143, %v1131
  %v1744 = vpack.c.b16 %v1144, %v1132
  %v1745 = vpack.c.b16 %v1145, %v1133
  %v1746 = vpack.c.b16 %v1146, %v1134
  %v1747 = vpack.c.b16 %v1147, %v1135
  %v1748 = vpack.c.b16 %v1148, %v1136
  %v1749 = vpack.c.b16 %v1149, %v1137
  %v1750 = vpack.c.b16 %v1162, %v1150
  %v1751 = vpack.c.b16 %v1163, %v1151
  %v1752 = vpack.c.b16 %v1164, %v1152
  %v1753 = vpack.c.b16 %v1165, %v1153
  %v1754 = vpack.c.b16 %v1166, %v1154
  %v1755 = vpack.c.b16 %v1167, %v1155
  %v1756 = vpack.c.b16 %v1168, %v1156
  %v1757 = vpack.c.b16 %v1169, %v1157
  %v1758 = vpack.c.b16 %v1170, %v1158
  %v1759 = vpack.c.b16 %v1171, %v1159
  %v1760 = vpack.c.b16 %v1172, %v1160
  %v1761 = vpack.c.b16 %v1173, %v1161
  %v1762 = vpack.c.b16 %v1186, %v1174
  %v1763 = vpack.c.b16 %v1187, %v1175
  %v1764 = vpack.c.b16 %v1188, %v1176
  %v1765 = vpack.c.b16 %v1189, %v1177
  %v1766 = vpack.c.b16 %v1190, %v1178
  %v1767 = vpack.c.b16 %v1191, %v1179
  %v1768 = vpack.c.b16 %v1192, %v1180
  %v1769 = vpack.c.b16 %v1193, %v1181
  %v1770 = vpack.c.b16 %v1194, %v1182
  %v1771 = vpack.c.b16 %v1195, %v1183
  %v1772 = vpack.c.b16 %v1196, %v1184
  %v1773 = vpack.c.b16 %v1197, %v1185
  %v1774 = vpack.c.b16 %v1210, %v1198
  %v1775 = vpack.c.b16 %v1211, %v1199
  %v1776 = vpack.c.b16 %v1212, %v1200
  %v1777 = vpack.c.b16 %v1213, %v1201
  %v1778 = vpack.c.b16 %v1214, %v1202
  %v1779 = vpack.c.b16 %v1215, %v1203
  %v1780 = vpack.c.b16 %v1216, %v1204
  %v1781 = vpack.c.b16 %v1217, %v1205
  %v1782 = vpack.c.b16 %v1218, %v1206
  %v1783 = vpack.c.b16 %v1219, %v1207
  %v1784 = vpack.c.b16 %v1220, %v1208
  %v1785 = vpack.c.b16 %v1221, %v1209
  %v1786 = vpack.c.b16 %v1234, %v1222
  %v1787 = vpack.c.b16 %v1235, %v1223
  %v1788 = vpack.c.b16 %v1236, %v1224
  %v1789 = vpack.c.b16 %v1237, %v1225
  %v1790 = vpack.c.b16 %v1238, %v1226
  %v1791 = vpack.c.b16 %v1239, %v1227
  %v1792 = vpack.c.b16 %v1240, %v1228
  %v1793 = vpack.c.b16 %v1241, %v1229
  %v1794 = vpack.c.b16 %v1242, %v1230
  %v1795 = vpack.c.b16 %v1243, %v1231
  %v1796 = vpack.c.b16 %v1244, %v1232
  %v1797 = vpack.c.b16 %v1245, %v1233
  %v1798 = vpack.c.b16 %v1258, %v1246
  %v1799 = vpack.c.b16 %v1259, %v1247
  %v1800 = vpack.c.b16 %v1260, %v1248
  %v1801 = vpack.c.b16 %v1261, %v1249
  %v1802 = vpack.c.b16 %v1262, %v1250
  %v1803 = vpack.c.b16 %v1263, %v1251
  %v1804 = vpack.c.b16 %v1264, %v1252
  %v1805 = vpack.c.b16 %v1265, %v1253
  %v1806 = vpack.c.b16 %v1266, %v1254
  %v1807 = vpack.c.b16 %v1267, %v1255
  %v1808 = vpack.c.b16 %v1268, %v1256
  %v1809 = vpack.c.b16 %v1269, %v1257
  %v1810 = vpack.c.b16 %v1282, %v1270
  %v1811 = vpack.c.b16 %v1283, %v1271
  %v1812 = vpack.c.b16 %v1284, %v1272
  %v1813 = vpack.c.b16 %v1285, %v1273
  %v1814 = vpack.c.b16 %v1286, %v1274
  %v1815 = vpack.c.b16 %v1287, %v1275
  %v1816 = vpack.c.b16 %v1288, %v1276
  %v1817 = vpack.c.b16 %v1289, %v1277
  %v1818 = vpack.c.b16 %v1290, %v1278
  %v1819 = vpack.c.b16 %v1291, %v1279
  %v1820 = vpack.c.b16 %v1292, %v1280
  %v1821 = vpack.c.b16 %v1293, %v1281
  %v1822 = vpack.c.b16 %v1306, %v1294
  %v1823 = vpack.c.b16 %v1307, %v1295
  %v1824 = vpack.c.b16 %v1308, %v1296
  %v1825 = vpack.c.b16 %v1309, %v1297
  %v1826 = vpack.c.b16 %v1310, %v1298
  %v1827 = vpack.c.b16 %v1311, %v1299
  %v1828 = vpack.c.b16 %v1312, %v1300
  %v1829 = vpack.c.b16 %v1313, %v1301
  %v1830 = vpack.c.b16 %v1314, %v1302
  %v1831 = vpack.c.b16 %v1315, %v1303
  %v1832 = vpack.c.b16 %v1316, %v1304
  %v1833 = vpack.c.b16 %v1317, %v1305
  %v1834 = vpack.c.b16 %v1330, %v1318
  %v1835 = vpack.c.b16 %v1331, %v1319
  %v1836 = vpack.c.b16 %v1332, %v1320
  %v1837 = vpack.c.b16 %v1333, %v1321
  %v1838 = vpack.c.b16 %v1334, %v1322
  %v1839 = vpack.c.b16 %v1335, %v1323
  %v1840 = vpack.c.b16 %v1336, %v1324
  %v1841 = vpack.c.b16 %v1337, %v1325
  %v1842 = vpack.c.b16 %v1338, %v1326
  %v1843 = vpack.c.b16 %v1339, %v1327
  %v1844 = vpack.c.b16 %v1340, %v1328
  %v1845 = vpack.c.b16 %v1341, %v1329
  %v1846 = vpack.c.b16 %v1354, %v1342
  %v1847 = vpack.c.b16 %v1355, %v1343
  %v1848 = vpack.c.b16 %v1356, %v1344
  %v1849 = vpack.c.b16 %v1357, %v1345
  %v1850 = vpack.c.b16 %v1358, %v1346
  %v1851 = vpack.c.b16 %v1359, %v1347
  %v1852 = vpack.c.b16 %v1360, %v1348
  %v1853 = vpack.c.b16 %v1361, %v1349
  %v1854 = vpack.c.b16 %v1362, %v1350
  %v1855 = vpack.c.b16 %v1363, %v1351
  %v1856 = vpack.c.b16 %v1364, %v1352
  %v1857 = vpack.c.b16 %v1365, %v1353
  %v1858 = vpack.c.b16 %v1378, %v1366
  %v1859 = vpack.c.b16 %v1379, %v1367
  %v1860 = vpack.c.b16 %v1380, %v1368
  %v1861 = vpack.c.b16 %v1381, %v1369
  %v1862 = vpack.c.b16 %v1382, %v1370
  %v1863 = vpack.c.b16 %v1383, %v1371
  %v1864 = vpack.c.b16 %v1384, %v1372
  %v1865 = vpack.c.b16 %v1385, %v1373
  %v1866 = vpack.c.b16 %v1386, %v1374
  %v1867 = vpack.c.b16 %v1387, %v1375
  %v1868 = vpack.c.b16 %v1388, %v1376
  %v1869 = vpack.c.b16 %v1389, %v1377
  %v1870 = vpack.c.b16 %v1402, %v1390
  %v1871 = vpack.c.b16 %v1403, %v1391
  %v1872 = vpack.c.b16 %v1404, %v1392
  %v1873 = vpack.c.b16 %v1405, %v1393
  %v1874 = vpack.c.b16 %v1406, %v1394
  %v1875 = vpack.c.b16 %v1407, %v1395
  %v1876 = vpack.c.b16 %v1408, %v1396
  %v1877 = vpack.c.b16 %v1409, %v1397
  %v1878 = vpack.c.b16 %v1410, %v1398
  %v1879 = vpack.c.b16 %v1411, %v1399
  %v1880 = vpack.c.b16 %v1412, %v1400
  %v1881 = vpack.c.b16 %v1413, %v1401
  %v1882 = vpack.c.b16 %v1426, %v1414
  %v1883 = vpack.c.b16 %v1427, %v1415
  %v1884 = vpack.c.b16 %v1428, %v1416
  %v1885 = vpack.c.b16 %v1429, %v1417
  %v1886 = vpack.c.b16 %v1430, %v1418
  %v1887 = vpack.c.b16 %v1431, %v1419
  %v1888 = vpack.c.b16 %v1432, %v1420
  %v1889 = vpack.c.b16 %v1433, %v1421
  %v1890 = vpack.c.b16 %v1434, %v1422
  %v1891 = vpack.c.b16 %v1435, %v1423
  %v1892 = vpack.c.b16 %v1436, %v1424
  %v1893 = vpack.c.b16 %v1437, %v1425
  %v1894 = vpack.c.b16 %v1450, %v1438
  %v1895 = vpack.c.b16 %v1451, %v1439
  %v1896 = vpack.c.b16 %v1452, %v1440
  %v1897 = vpack.c.b16 %v1453, %v1441
  %v1898 = vpack.c.b16 %v1454, %v1442
  %v1899 = vpack.c.b16 %v1455, %v1443
  %v1900 = vpack.c.b16 %v1456, %v1444
  %v1901 = vpack.c.b16 %v1457, %v1445
  %v1902 = vpack.c.b16 %v1458, %v1446
  %v1903 = vpack.c.b16 %v1459, %v1447
  %v1904 = vpack.c.b16 %v1460, %v1448
  %v1905 = vpack.c.b16 %v1461, %v1449
  %v1906 = vpack.c.b16 %v1474, %v1462
  %v1907 = vpack.c.b16 %v1475, %v1463
  %v1908 = vpack.c.b16 %v1476, %v1464
  %v1909 = vpack.c.b16 %v1477, %v1465
  %v1910 = vpack.c.b16 %v1478, %v1466
  %v1911 = vpack.c.b16 %v1479, %v1467
  %v1912 = vpack.c.b16 %v1480, %v1468
  %v1913 = vpack.c.b16 %v1481, %v1469
  %v1914 = vpack.c.b16 %v1482, %v1470
  %v1915 = vpack.c.b16 %v1483, %v1471
  %v1916 = vpack.c.b16 %v1484, %v1472
  %v1917 = vpack.c.b16 %v1485, %v1473
  %v1918 = vpack.c.b16 %v1498, %v1486
  %v1919 = vpack.c.b16 %v1499, %v1487
  %v1920 = vpack.c.b16 %v1500, %v1488
  %v1921 = vpack.c.b16 %v1501, %v1489
  %v1922 = vpack.c.b16 %v1502, %v1490
  %v1923 = vpack.c.b16 %v1503, %v1491
  %v1924 = vpack.c.b16 %v1504, %v1492
  %v1925 = vpack.c.b16 %v1505, %v1493
  %v1926 = vpack.c.b16 %v1506, %v1494
  %v1927 = vpack.c.b16 %v1507, %v1495
  %v1928 = vpack.c.b16 %v1508, %v1496
  %v1929 = vpack.c.b16 %v1509, %v1497
  %v1930 = vpack.c.b16 %v1522, %v1510
  %v1931 = vpack.c.b16 %v1523, %v1511
  %v1932 = vpack.c.b16 %v1524, %v1512
  %v1933 = vpack.c.b16 %v1525, %v1513
  %v1934 = vpack.c.b16 %v1526, %v1514
  %v1935 = vpack.c.b16 %v1527, %v1515
  %v1936 = vpack.c.b16 %v1528, %v1516
  %v1937 = vpack.c.b16 %v1529, %v1517
  %v1938 = vpack.c.b16 %v1530, %v1518
  %v1939 = vpack.c.b16 %v1531, %v1519
  %v1940 = vpack.c.b16 %v1532, %v1520
  %v1941 = vpack.c.b16 %v1533, %v1521
  %v1942 = vpack.c.b16 %v1546, %v1534
  %v1943 = vpack.c.b16 %v1547, %v1535
  %v1944 = vpack.c.b16 %v1548, %v1536
  %v1945 = vpack.c.b16 %v1549, %v1537
  %v1946 = vpack.c.b16 %v1550, %v1538
  %v1947 = vpack.c.b16 %v1551, %v1539
  %v1948 = vpack.c.b16 %v1552, %v1540
  %v1949 = vpack.c.b16 %v1553, %v1541
  %v1950 = vpack.c.b16 %v1554, %v1542
  %v1951 = vpack.c.b16 %v1555, %v1543
  %v1952 = vpack.c.b16 %v1556, %v1544
  %v1953 = vpack.c.b16 %v1557, %v1545
  %v1954 = vpack.c.b16 %v1570, %v1558
  %v1955 = vpack.c.b16 %v1571, %v1559
  %v1956 = vpack.c.b16 %v1572, %v1560
  %v1957 = vpack.c.b16 %v1573, %v1561
  %v1958 = vpack.c.b16 %v1574, %v1562
  %v1959 = vpack.c.b16 %v1575, %v1563
  %v1960 = vpack.c.b16 %v1576, %v1564
  %v1961 = vpack.c.b16 %v1577, %v1565
  %v1962 = vpack.c.b16 %v1578, %v1566
  %v1963 = vpack.c.b16 %v1579, %v1567
  %v1964 = vpack.c.b16 %v1580, %v1568
  %v1965 = vpack.c.b16 %v1581, %v1569
  %2350 = vmatprep.subr.bf16.mxu0 %v1583
  %2351 = vmatpush1.bf16.msra.mxu0 %v1582
  %2352 = vmatprep.subr.bf16.mxu0 %v1595
  %2353 = vmatpush1.bf16.msra.mxu0 %v1594
  %2354 = vmatprep.subr.bf16.mxu0 %v1607
  %2355 = vmatpush1.bf16.msra.mxu0 %v1606
  %2356 = vmatprep.subr.bf16.mxu0 %v1619
  %2357 = vmatpush1.bf16.msra.mxu0 %v1618
  %2358 = vmatprep.subr.bf16.mxu0 %v1631
  %2359 = vmatpush1.bf16.msra.mxu0 %v1630
  %2360 = vmatprep.subr.bf16.mxu0 %v1643
  %2361 = vmatpush1.bf16.msra.mxu0 %v1642
  %2362 = vmatprep.subr.bf16.mxu0 %v1655
  %2363 = vmatpush1.bf16.msra.mxu0 %v1654
  %2364 = vmatprep.subr.bf16.mxu0 %v1667
  %2365 = vmatpush1.bf16.msra.mxu0 %v1666
  %2366 = vmatprep.subr.bf16.mxu0 %v1679
  %2367 = vmatpush1.bf16.msra.mxu0 %v1678
  %2368 = vmatprep.subr.bf16.mxu0 %v1691
  %2369 = vmatpush1.bf16.msra.mxu0 %v1690
  %2370 = vmatprep.subr.bf16.mxu0 %v1703
  %2371 = vmatpush1.bf16.msra.mxu0 %v1702
  %2372 = vmatprep.subr.bf16.mxu0 %v1715
  %2373 = vmatpush1.bf16.msra.mxu0 %v1714
  %2374 = vmatprep.subr.bf16.mxu0 %v1727
  %2375 = vmatpush1.bf16.msra.mxu0 %v1726
  %2376 = vmatprep.subr.bf16.mxu0 %v1739
  %2377 = vmatpush1.bf16.msra.mxu0 %v1738
  %2378 = vmatprep.subr.bf16.mxu0 %v1751
  %2379 = vmatpush1.bf16.msra.mxu0 %v1750
  %2380 = vmatprep.subr.bf16.mxu0 %v1763
  %2381 = vmatpush1.bf16.msra.mxu0 %v1762
  %2382 = vmatprep.mubr.bf16.mxu0 %v39
  %2383 = vmatmul.mubr.bf16.gmra.mrb[0].mxu0 %v38
  %v2384 = vpop.f32.mrb[0].mxu0
  %v2385 = vadd.f32 0.0, %v2384
  %v2386 = vpop.f32.mrb[0].mxu0
  %v2387 = vadd.f32 0.0, %v2386
  %v2388 = vpop.f32.mrb[0].mxu0
  %v2389 = vadd.f32 0.0, %v2388
  %v2390 = vpop.f32.mrb[0].mxu0
  %v2391 = vadd.f32 0.0, %v2390
  %2392 = vmatprep.mubr.bf16.mxu0 %v43
  %2393 = vmatmul.mubr.bf16.gmra.mrb[0].mxu0 %v42
  %v2394 = vpop.f32.mrb[0].mxu0
  %v2395 = vadd.f32 0.0, %v2394
  %v2396 = vpop.f32.mrb[0].mxu0
  %v2397 = vadd.f32 0.0, %v2396
  %v2398 = vpop.f32.mrb[0].mxu0
  %v2399 = vadd.f32 0.0, %v2398
  %v2400 = vpop.f32.mrb[0].mxu0
  %v2401 = vadd.f32 0.0, %v2400
  %2402 = vdwg.mxu0
  %2403 = vmatprep.subr.bf16.mxu0 %v1775
  %2404 = vmatpush1.bf16.msra.mxu0 %v1774
  %2405 = vmatprep.subr.bf16.mxu0 %v1787
  %2406 = vmatpush1.bf16.msra.mxu0 %v1786
  %2407 = vmatprep.subr.bf16.mxu0 %v1799
  %2408 = vmatpush1.bf16.msra.mxu0 %v1798
  %2409 = vmatprep.subr.bf16.mxu0 %v1811
  %2410 = vmatpush1.bf16.msra.mxu0 %v1810
  %2411 = vmatprep.subr.bf16.mxu0 %v1823
  %2412 = vmatpush1.bf16.msra.mxu0 %v1822
  %2413 = vmatprep.subr.bf16.mxu0 %v1835
  %2414 = vmatpush1.bf16.msra.mxu0 %v1834
  %2415 = vmatprep.subr.bf16.mxu0 %v1847
  %2416 = vmatpush1.bf16.msra.mxu0 %v1846
  %2417 = vmatprep.subr.bf16.mxu0 %v1859
  %2418 = vmatpush1.bf16.msra.mxu0 %v1858
  %2419 = vmatprep.subr.bf16.mxu0 %v1871
  %2420 = vmatpush1.bf16.msra.mxu0 %v1870
  %2421 = vmatprep.subr.bf16.mxu0 %v1883
  %2422 = vmatpush1.bf16.msra.mxu0 %v1882
  %2423 = vmatprep.subr.bf16.mxu0 %v1895
  %2424 = vmatpush1.bf16.msra.mxu0 %v1894
  %2425 = vmatprep.subr.bf16.mxu0 %v1907
  %2426 = vmatpush1.bf16.msra.mxu0 %v1906
  %2427 = vmatprep.subr.bf16.mxu0 %v1919
  %2428 = vmatpush1.bf16.msra.mxu0 %v1918
  %2429 = vmatprep.subr.bf16.mxu0 %v1931
  %2430 = vmatpush1.bf16.msra.mxu0 %v1930
  %2431 = vmatprep.subr.bf16.mxu0 %v1943
  %2432 = vmatpush1.bf16.msra.mxu0 %v1942
  %2433 = vmatprep.subr.bf16.mxu0 %v1955
  %2434 = vmatpush1.bf16.msra.mxu0 %v1954
  %2435 = vmatprep.mubr.bf16.mxu0 %v41
  %2436 = vmatmul.mubr.bf16.gmra.mrb[0].mxu0 %v40
  %v2437 = vpop.f32.mrb[0].mxu0
  %v2438 = vadd.f32 %v2385, %v2437
  %v2439 = vpop.f32.mrb[0].mxu0
  %v2440 = vadd.f32 %v2387, %v2439
  %v2441 = vpop.f32.mrb[0].mxu0
  %v2442 = vadd.f32 %v2389, %v2441
  %v2443 = vpop.f32.mrb[0].mxu0
  %v2444 = vadd.f32 %v2391, %v2443
  %2445 = vmatprep.mubr.bf16.mxu0 %v45
  %2446 = vmatmul.mubr.bf16.gmra.mrb[0].mxu0 %v44
  %v2447 = vpop.f32.mrb[0].mxu0
  %v2448 = vadd.f32 %v2395, %v2447
  %v2449 = vpop.f32.mrb[0].mxu0
  %v2450 = vadd.f32 %v2397, %v2449
  %v2451 = vpop.f32.mrb[0].mxu0
  %v2452 = vadd.f32 %v2399, %v2451
  %v2453 = vpop.f32.mrb[0].mxu0
  %v2454 = vadd.f32 %v2401, %v2453
  %2455 = vdwg.mxu0
  %2456 = vmatprep.subr.bf16.mxu0 %v1585
  %2457 = vmatpush1.bf16.msra.mxu0 %v1584
  %2458 = vmatprep.subr.bf16.mxu0 %v1597
  %2459 = vmatpush1.bf16.msra.mxu0 %v1596
  %2460 = vmatprep.subr.bf16.mxu0 %v1609
  %2461 = vmatpush1.bf16.msra.mxu0 %v1608
  %2462 = vmatprep.subr.bf16.mxu0 %v1621
  %2463 = vmatpush1.bf16.msra.mxu0 %v1620
  %2464 = vmatprep.subr.bf16.mxu0 %v1633
  %2465 = vmatpush1.bf16.msra.mxu0 %v1632
  %2466 = vmatprep.subr.bf16.mxu0 %v1645
  %2467 = vmatpush1.bf16.msra.mxu0 %v1644
  %2468 = vmatprep.subr.bf16.mxu0 %v1657
  %2469 = vmatpush1.bf16.msra.mxu0 %v1656
  %2470 = vmatprep.subr.bf16.mxu0 %v1669
  %2471 = vmatpush1.bf16.msra.mxu0 %v1668
  %2472 = vmatprep.subr.bf16.mxu0 %v1681
  %2473 = vmatpush1.bf16.msra.mxu0 %v1680
  %2474 = vmatprep.subr.bf16.mxu0 %v1693
  %2475 = vmatpush1.bf16.msra.mxu0 %v1692
  %2476 = vmatprep.subr.bf16.mxu0 %v1705
  %2477 = vmatpush1.bf16.msra.mxu0 %v1704
  %2478 = vmatprep.subr.bf16.mxu0 %v1717
  %2479 = vmatpush1.bf16.msra.mxu0 %v1716
  %2480 = vmatprep.subr.bf16.mxu0 %v1729
  %2481 = vmatpush1.bf16.msra.mxu0 %v1728
  %2482 = vmatprep.subr.bf16.mxu0 %v1741
  %2483 = vmatpush1.bf16.msra.mxu0 %v1740
  %2484 = vmatprep.subr.bf16.mxu0 %v1753
  %2485 = vmatpush1.bf16.msra.mxu0 %v1752
  %2486 = vmatprep.subr.bf16.mxu0 %v1765
  %2487 = vmatpush1.bf16.msra.mxu0 %v1764
  %2488 = vmatprep.mubr.bf16.mxu0 %v39
  %2489 = vmatmul.mubr.bf16.gmra.mrb[0].mxu0 %v38
  %v2490 = vpop.f32.mrb[0].mxu0
  %v2491 = vadd.f32 0.0, %v2490
  %v2492 = vpop.f32.mrb[0].mxu0
  %v2493 = vadd.f32 0.0, %v2492
  %v2494 = vpop.f32.mrb[0].mxu0
  %v2495 = vadd.f32 0.0, %v2494
  %v2496 = vpop.f32.mrb[0].mxu0
  %v2497 = vadd.f32 0.0, %v2496
  %2498 = vmatprep.mubr.bf16.mxu0 %v43
  %2499 = vmatmul.mubr.bf16.gmra.mrb[0].mxu0 %v42
  %v2500 = vpop.f32.mrb[0].mxu0
  %v2501 = vadd.f32 0.0, %v2500
  %v2502 = vpop.f32.mrb[0].mxu0
  %v2503 = vadd.f32 0.0, %v2502
  %v2504 = vpop.f32.mrb[0].mxu0
  %v2505 = vadd.f32 0.0, %v2504
  %v2506 = vpop.f32.mrb[0].mxu0
  %v2507 = vadd.f32 0.0, %v2506
  %2508 = vdwg.mxu0
  %2509 = vmatprep.subr.bf16.mxu0 %v1777
  %2510 = vmatpush1.bf16.msra.mxu0 %v1776
  %2511 = vmatprep.subr.bf16.mxu0 %v1789
  %2512 = vmatpush1.bf16.msra.mxu0 %v1788
  %2513 = vmatprep.subr.bf16.mxu0 %v1801
  %2514 = vmatpush1.bf16.msra.mxu0 %v1800
  %2515 = vmatprep.subr.bf16.mxu0 %v1813
  %2516 = vmatpush1.bf16.msra.mxu0 %v1812
  %2517 = vmatprep.subr.bf16.mxu0 %v1825
  %2518 = vmatpush1.bf16.msra.mxu0 %v1824
  %2519 = vmatprep.subr.bf16.mxu0 %v1837
  %2520 = vmatpush1.bf16.msra.mxu0 %v1836
  %2521 = vmatprep.subr.bf16.mxu0 %v1849
  %2522 = vmatpush1.bf16.msra.mxu0 %v1848
  %2523 = vmatprep.subr.bf16.mxu0 %v1861
  %2524 = vmatpush1.bf16.msra.mxu0 %v1860
  %2525 = vmatprep.subr.bf16.mxu0 %v1873
  %2526 = vmatpush1.bf16.msra.mxu0 %v1872
  %2527 = vmatprep.subr.bf16.mxu0 %v1885
  %2528 = vmatpush1.bf16.msra.mxu0 %v1884
  %2529 = vmatprep.subr.bf16.mxu0 %v1897
  %2530 = vmatpush1.bf16.msra.mxu0 %v1896
  %2531 = vmatprep.subr.bf16.mxu0 %v1909
  %2532 = vmatpush1.bf16.msra.mxu0 %v1908
  %2533 = vmatprep.subr.bf16.mxu0 %v1921
  %2534 = vmatpush1.bf16.msra.mxu0 %v1920
  %2535 = vmatprep.subr.bf16.mxu0 %v1933
  %2536 = vmatpush1.bf16.msra.mxu0 %v1932
  %2537 = vmatprep.subr.bf16.mxu0 %v1945
  %2538 = vmatpush1.bf16.msra.mxu0 %v1944
  %2539 = vmatprep.subr.bf16.mxu0 %v1957
  %2540 = vmatpush1.bf16.msra.mxu0 %v1956
  %2541 = vmatprep.mubr.bf16.mxu0 %v41
  %2542 = vmatmul.mubr.bf16.gmra.mrb[0].mxu0 %v40
  %v2543 = vpop.f32.mrb[0].mxu0
  %v2544 = vadd.f32 %v2491, %v2543
  %v2545 = vpop.f32.mrb[0].mxu0
  %v2546 = vadd.f32 %v2493, %v2545
  %v2547 = vpop.f32.mrb[0].mxu0
  %v2548 = vadd.f32 %v2495, %v2547
  %v2549 = vpop.f32.mrb[0].mxu0
  %v2550 = vadd.f32 %v2497, %v2549
  %2551 = vmatprep.mubr.bf16.mxu0 %v45
  %2552 = vmatmul.mubr.bf16.gmra.mrb[0].mxu0 %v44
  %v2553 = vpop.f32.mrb[0].mxu0
  %v2554 = vadd.f32 %v2501, %v2553
  %v2555 = vpop.f32.mrb[0].mxu0
  %v2556 = vadd.f32 %v2503, %v2555
  %v2557 = vpop.f32.mrb[0].mxu0
  %v2558 = vadd.f32 %v2505, %v2557
  %v2559 = vpop.f32.mrb[0].mxu0
  %v2560 = vadd.f32 %v2507, %v2559
  %2561 = vdwg.mxu0
  %2562 = vmatprep.subr.bf16.mxu0 %v1587
  %2563 = vmatpush1.bf16.msra.mxu0 %v1586
  %2564 = vmatprep.subr.bf16.mxu0 %v1599
  %2565 = vmatpush1.bf16.msra.mxu0 %v1598
  %2566 = vmatprep.subr.bf16.mxu0 %v1611
  %2567 = vmatpush1.bf16.msra.mxu0 %v1610
  %2568 = vmatprep.subr.bf16.mxu0 %v1623
  %2569 = vmatpush1.bf16.msra.mxu0 %v1622
  %2570 = vmatprep.subr.bf16.mxu0 %v1635
  %2571 = vmatpush1.bf16.msra.mxu0 %v1634
  %2572 = vmatprep.subr.bf16.mxu0 %v1647
  %2573 = vmatpush1.bf16.msra.mxu0 %v1646
  %2574 = vmatprep.subr.bf16.mxu0 %v1659
  %2575 = vmatpush1.bf16.msra.mxu0 %v1658
  %2576 = vmatprep.subr.bf16.mxu0 %v1671
  %2577 = vmatpush1.bf16.msra.mxu0 %v1670
  %2578 = vmatprep.subr.bf16.mxu0 %v1683
  %2579 = vmatpush1.bf16.msra.mxu0 %v1682
  %2580 = vmatprep.subr.bf16.mxu0 %v1695
  %2581 = vmatpush1.bf16.msra.mxu0 %v1694
  %2582 = vmatprep.subr.bf16.mxu0 %v1707
  %2583 = vmatpush1.bf16.msra.mxu0 %v1706
  %2584 = vmatprep.subr.bf16.mxu0 %v1719
  %2585 = vmatpush1.bf16.msra.mxu0 %v1718
  %2586 = vmatprep.subr.bf16.mxu0 %v1731
  %2587 = vmatpush1.bf16.msra.mxu0 %v1730
  %2588 = vmatprep.subr.bf16.mxu0 %v1743
  %2589 = vmatpush1.bf16.msra.mxu0 %v1742
  %2590 = vmatprep.subr.bf16.mxu0 %v1755
  %2591 = vmatpush1.bf16.msra.mxu0 %v1754
  %2592 = vmatprep.subr.bf16.mxu0 %v1767
  %2593 = vmatpush1.bf16.msra.mxu0 %v1766
  %2594 = vmatprep.mubr.bf16.mxu0 %v39
  %2595 = vmatmul.mubr.bf16.gmra.mrb[0].mxu0 %v38
  %v2596 = vpop.f32.mrb[0].mxu0
  %v2597 = vadd.f32 0.0, %v2596
  %v2598 = vpop.f32.mrb[0].mxu0
  %v2599 = vadd.f32 0.0, %v2598
  %v2600 = vpop.f32.mrb[0].mxu0
  %v2601 = vadd.f32 0.0, %v2600
  %v2602 = vpop.f32.mrb[0].mxu0
  %v2603 = vadd.f32 0.0, %v2602
  %2604 = vmatprep.mubr.bf16.mxu0 %v43
  %2605 = vmatmul.mubr.bf16.gmra.mrb[0].mxu0 %v42
  %v2606 = vpop.f32.mrb[0].mxu0
  %v2607 = vadd.f32 0.0, %v2606
  %v2608 = vpop.f32.mrb[0].mxu0
  %v2609 = vadd.f32 0.0, %v2608
  %v2610 = vpop.f32.mrb[0].mxu0
  %v2611 = vadd.f32 0.0, %v2610
  %v2612 = vpop.f32.mrb[0].mxu0
  %v2613 = vadd.f32 0.0, %v2612
  %2614 = vdwg.mxu0
  %2615 = vmatprep.subr.bf16.mxu0 %v1779
  %2616 = vmatpush1.bf16.msra.mxu0 %v1778
  %2617 = vmatprep.subr.bf16.mxu0 %v1791
  %2618 = vmatpush1.bf16.msra.mxu0 %v1790
  %2619 = vmatprep.subr.bf16.mxu0 %v1803
  %2620 = vmatpush1.bf16.msra.mxu0 %v1802
  %2621 = vmatprep.subr.bf16.mxu0 %v1815
  %2622 = vmatpush1.bf16.msra.mxu0 %v1814
  %2623 = vmatprep.subr.bf16.mxu0 %v1827
  %2624 = vmatpush1.bf16.msra.mxu0 %v1826
  %2625 = vmatprep.subr.bf16.mxu0 %v1839
  %2626 = vmatpush1.bf16.msra.mxu0 %v1838
  %2627 = vmatprep.subr.bf16.mxu0 %v1851
  %2628 = vmatpush1.bf16.msra.mxu0 %v1850
  %2629 = vmatprep.subr.bf16.mxu0 %v1863
  %2630 = vmatpush1.bf16.msra.mxu0 %v1862
  %2631 = vmatprep.subr.bf16.mxu0 %v1875
  %2632 = vmatpush1.bf16.msra.mxu0 %v1874
  %2633 = vmatprep.subr.bf16.mxu0 %v1887
  %2634 = vmatpush1.bf16.msra.mxu0 %v1886
  %2635 = vmatprep.subr.bf16.mxu0 %v1899
  %2636 = vmatpush1.bf16.msra.mxu0 %v1898
  %2637 = vmatprep.subr.bf16.mxu0 %v1911
  %2638 = vmatpush1.bf16.msra.mxu0 %v1910
  %2639 = vmatprep.subr.bf16.mxu0 %v1923
  %2640 = vmatpush1.bf16.msra.mxu0 %v1922
  %2641 = vmatprep.subr.bf16.mxu0 %v1935
  %2642 = vmatpush1.bf16.msra.mxu0 %v1934
  %2643 = vmatprep.subr.bf16.mxu0 %v1947
  %2644 = vmatpush1.bf16.msra.mxu0 %v1946
  %2645 = vmatprep.subr.bf16.mxu0 %v1959
  %2646 = vmatpush1.bf16.msra.mxu0 %v1958
  %2647 = vmatprep.mubr.bf16.mxu0 %v41
  %2648 = vmatmul.mubr.bf16.gmra.mrb[0].mxu0 %v40
  %v2649 = vpop.f32.mrb[0].mxu0
  %v2650 = vadd.f32 %v2597, %v2649
  %v2651 = vpop.f32.mrb[0].mxu0
  %v2652 = vadd.f32 %v2599, %v2651
  %v2653 = vpop.f32.mrb[0].mxu0
  %v2654 = vadd.f32 %v2601, %v2653
  %v2655 = vpop.f32.mrb[0].mxu0
  %v2656 = vadd.f32 %v2603, %v2655
  %2657 = vmatprep.mubr.bf16.mxu0 %v45
  %2658 = vmatmul.mubr.bf16.gmra.mrb[0].mxu0 %v44
  %v2659 = vpop.f32.mrb[0].mxu0
  %v2660 = vadd.f32 %v2607, %v2659
  %v2661 = vpop.f32.mrb[0].mxu0
  %v2662 = vadd.f32 %v2609, %v2661
  %v2663 = vpop.f32.mrb[0].mxu0
  %v2664 = vadd.f32 %v2611, %v2663
  %v2665 = vpop.f32.mrb[0].mxu0
  %v2666 = vadd.f32 %v2613, %v2665
  %2667 = vdwg.mxu0
  %2668 = vmatprep.subr.bf16.mxu0 %v1589
  %2669 = vmatpush1.bf16.msra.mxu0 %v1588
  %2670 = vmatprep.subr.bf16.mxu0 %v1601
  %2671 = vmatpush1.bf16.msra.mxu0 %v1600
  %2672 = vmatprep.subr.bf16.mxu0 %v1613
  %2673 = vmatpush1.bf16.msra.mxu0 %v1612
  %2674 = vmatprep.subr.bf16.mxu0 %v1625
  %2675 = vmatpush1.bf16.msra.mxu0 %v1624
  %2676 = vmatprep.subr.bf16.mxu0 %v1637
  %2677 = vmatpush1.bf16.msra.mxu0 %v1636
  %2678 = vmatprep.subr.bf16.mxu0 %v1649
  %2679 = vmatpush1.bf16.msra.mxu0 %v1648
  %2680 = vmatprep.subr.bf16.mxu0 %v1661
  %2681 = vmatpush1.bf16.msra.mxu0 %v1660
  %2682 = vmatprep.subr.bf16.mxu0 %v1673
  %2683 = vmatpush1.bf16.msra.mxu0 %v1672
  %2684 = vmatprep.subr.bf16.mxu0 %v1685
  %2685 = vmatpush1.bf16.msra.mxu0 %v1684
  %2686 = vmatprep.subr.bf16.mxu0 %v1697
  %2687 = vmatpush1.bf16.msra.mxu0 %v1696
  %2688 = vmatprep.subr.bf16.mxu0 %v1709
  %2689 = vmatpush1.bf16.msra.mxu0 %v1708
  %2690 = vmatprep.subr.bf16.mxu0 %v1721
  %2691 = vmatpush1.bf16.msra.mxu0 %v1720
  %2692 = vmatprep.subr.bf16.mxu0 %v1733
  %2693 = vmatpush1.bf16.msra.mxu0 %v1732
  %2694 = vmatprep.subr.bf16.mxu0 %v1745
  %2695 = vmatpush1.bf16.msra.mxu0 %v1744
  %2696 = vmatprep.subr.bf16.mxu0 %v1757
  %2697 = vmatpush1.bf16.msra.mxu0 %v1756
  %2698 = vmatprep.subr.bf16.mxu0 %v1769
  %2699 = vmatpush1.bf16.msra.mxu0 %v1768
  %2700 = vmatprep.mubr.bf16.mxu0 %v39
  %2701 = vmatmul.mubr.bf16.gmra.mrb[0].mxu0 %v38
  %v2702 = vpop.f32.mrb[0].mxu0
  %v2703 = vadd.f32 0.0, %v2702
  %v2704 = vpop.f32.mrb[0].mxu0
  %v2705 = vadd.f32 0.0, %v2704
  %v2706 = vpop.f32.mrb[0].mxu0
  %v2707 = vadd.f32 0.0, %v2706
  %v2708 = vpop.f32.mrb[0].mxu0
  %v2709 = vadd.f32 0.0, %v2708
  %2710 = vmatprep.mubr.bf16.mxu0 %v43
  %2711 = vmatmul.mubr.bf16.gmra.mrb[0].mxu0 %v42
  %v2712 = vpop.f32.mrb[0].mxu0
  %v2713 = vadd.f32 0.0, %v2712
  %v2714 = vpop.f32.mrb[0].mxu0
  %v2715 = vadd.f32 0.0, %v2714
  %v2716 = vpop.f32.mrb[0].mxu0
  %v2717 = vadd.f32 0.0, %v2716
  %v2718 = vpop.f32.mrb[0].mxu0
  %v2719 = vadd.f32 0.0, %v2718
  %2720 = vdwg.mxu0
  %2721 = vmatprep.subr.bf16.mxu0 %v1781
  %2722 = vmatpush1.bf16.msra.mxu0 %v1780
  %2723 = vmatprep.subr.bf16.mxu0 %v1793
  %2724 = vmatpush1.bf16.msra.mxu0 %v1792
  %2725 = vmatprep.subr.bf16.mxu0 %v1805
  %2726 = vmatpush1.bf16.msra.mxu0 %v1804
  %2727 = vmatprep.subr.bf16.mxu0 %v1817
  %2728 = vmatpush1.bf16.msra.mxu0 %v1816
  %2729 = vmatprep.subr.bf16.mxu0 %v1829
  %2730 = vmatpush1.bf16.msra.mxu0 %v1828
  %2731 = vmatprep.subr.bf16.mxu0 %v1841
  %2732 = vmatpush1.bf16.msra.mxu0 %v1840
  %2733 = vmatprep.subr.bf16.mxu0 %v1853
  %2734 = vmatpush1.bf16.msra.mxu0 %v1852
  %2735 = vmatprep.subr.bf16.mxu0 %v1865
  %2736 = vmatpush1.bf16.msra.mxu0 %v1864
  %2737 = vmatprep.subr.bf16.mxu0 %v1877
  %2738 = vmatpush1.bf16.msra.mxu0 %v1876
  %2739 = vmatprep.subr.bf16.mxu0 %v1889
  %2740 = vmatpush1.bf16.msra.mxu0 %v1888
  %2741 = vmatprep.subr.bf16.mxu0 %v1901
  %2742 = vmatpush1.bf16.msra.mxu0 %v1900
  %2743 = vmatprep.subr.bf16.mxu0 %v1913
  %2744 = vmatpush1.bf16.msra.mxu0 %v1912
  %2745 = vmatprep.subr.bf16.mxu0 %v1925
  %2746 = vmatpush1.bf16.msra.mxu0 %v1924
  %2747 = vmatprep.subr.bf16.mxu0 %v1937
  %2748 = vmatpush1.bf16.msra.mxu0 %v1936
  %2749 = vmatprep.subr.bf16.mxu0 %v1949
  %2750 = vmatpush1.bf16.msra.mxu0 %v1948
  %2751 = vmatprep.subr.bf16.mxu0 %v1961
  %2752 = vmatpush1.bf16.msra.mxu0 %v1960
  %2753 = vmatprep.mubr.bf16.mxu0 %v41
  %2754 = vmatmul.mubr.bf16.gmra.mrb[0].mxu0 %v40
  %v2755 = vpop.f32.mrb[0].mxu0
  %v2756 = vadd.f32 %v2703, %v2755
  %v2757 = vpop.f32.mrb[0].mxu0
  %v2758 = vadd.f32 %v2705, %v2757
  %v2759 = vpop.f32.mrb[0].mxu0
  %v2760 = vadd.f32 %v2707, %v2759
  %v2761 = vpop.f32.mrb[0].mxu0
  %v2762 = vadd.f32 %v2709, %v2761
  %2763 = vmatprep.mubr.bf16.mxu0 %v45
  %2764 = vmatmul.mubr.bf16.gmra.mrb[0].mxu0 %v44
  %v2765 = vpop.f32.mrb[0].mxu0
  %v2766 = vadd.f32 %v2713, %v2765
  %v2767 = vpop.f32.mrb[0].mxu0
  %v2768 = vadd.f32 %v2715, %v2767
  %v2769 = vpop.f32.mrb[0].mxu0
  %v2770 = vadd.f32 %v2717, %v2769
  %v2771 = vpop.f32.mrb[0].mxu0
  %v2772 = vadd.f32 %v2719, %v2771
  %2773 = vdwg.mxu0
  %2774 = vmatprep.subr.bf16.mxu0 %v1591
  %2775 = vmatpush1.bf16.msra.mxu0 %v1590
  %2776 = vmatprep.subr.bf16.mxu0 %v1603
  %2777 = vmatpush1.bf16.msra.mxu0 %v1602
  %2778 = vmatprep.subr.bf16.mxu0 %v1615
  %2779 = vmatpush1.bf16.msra.mxu0 %v1614
  %2780 = vmatprep.subr.bf16.mxu0 %v1627
  %2781 = vmatpush1.bf16.msra.mxu0 %v1626
  %2782 = vmatprep.subr.bf16.mxu0 %v1639
  %2783 = vmatpush1.bf16.msra.mxu0 %v1638
  %2784 = vmatprep.subr.bf16.mxu0 %v1651
  %2785 = vmatpush1.bf16.msra.mxu0 %v1650
  %2786 = vmatprep.subr.bf16.mxu0 %v1663
  %2787 = vmatpush1.bf16.msra.mxu0 %v1662
  %2788 = vmatprep.subr.bf16.mxu0 %v1675
  %2789 = vmatpush1.bf16.msra.mxu0 %v1674
  %2790 = vmatprep.subr.bf16.mxu0 %v1687
  %2791 = vmatpush1.bf16.msra.mxu0 %v1686
  %2792 = vmatprep.subr.bf16.mxu0 %v1699
  %2793 = vmatpush1.bf16.msra.mxu0 %v1698
  %2794 = vmatprep.subr.bf16.mxu0 %v1711
  %2795 = vmatpush1.bf16.msra.mxu0 %v1710
  %2796 = vmatprep.subr.bf16.mxu0 %v1723
  %2797 = vmatpush1.bf16.msra.mxu0 %v1722
  %2798 = vmatprep.subr.bf16.mxu0 %v1735
  %2799 = vmatpush1.bf16.msra.mxu0 %v1734
  %2800 = vmatprep.subr.bf16.mxu0 %v1747
  %2801 = vmatpush1.bf16.msra.mxu0 %v1746
  %2802 = vmatprep.subr.bf16.mxu0 %v1759
  %2803 = vmatpush1.bf16.msra.mxu0 %v1758
  %2804 = vmatprep.subr.bf16.mxu0 %v1771
  %2805 = vmatpush1.bf16.msra.mxu0 %v1770
  %2806 = vmatprep.mubr.bf16.mxu0 %v39
  %2807 = vmatmul.mubr.bf16.gmra.mrb[0].mxu0 %v38
  %v2808 = vpop.f32.mrb[0].mxu0
  %v2809 = vadd.f32 0.0, %v2808
  %v2810 = vpop.f32.mrb[0].mxu0
  %v2811 = vadd.f32 0.0, %v2810
  %v2812 = vpop.f32.mrb[0].mxu0
  %v2813 = vadd.f32 0.0, %v2812
  %v2814 = vpop.f32.mrb[0].mxu0
  %v2815 = vadd.f32 0.0, %v2814
  %2816 = vmatprep.mubr.bf16.mxu0 %v43
  %2817 = vmatmul.mubr.bf16.gmra.mrb[0].mxu0 %v42
  %v2818 = vpop.f32.mrb[0].mxu0
  %v2819 = vadd.f32 0.0, %v2818
  %v2820 = vpop.f32.mrb[0].mxu0
  %v2821 = vadd.f32 0.0, %v2820
  %v2822 = vpop.f32.mrb[0].mxu0
  %v2823 = vadd.f32 0.0, %v2822
  %v2824 = vpop.f32.mrb[0].mxu0
  %v2825 = vadd.f32 0.0, %v2824
  %2826 = vdwg.mxu0
  %2827 = vmatprep.subr.bf16.mxu0 %v1783
  %2828 = vmatpush1.bf16.msra.mxu0 %v1782
  %2829 = vmatprep.subr.bf16.mxu0 %v1795
  %2830 = vmatpush1.bf16.msra.mxu0 %v1794
  %2831 = vmatprep.subr.bf16.mxu0 %v1807
  %2832 = vmatpush1.bf16.msra.mxu0 %v1806
  %2833 = vmatprep.subr.bf16.mxu0 %v1819
  %2834 = vmatpush1.bf16.msra.mxu0 %v1818
  %2835 = vmatprep.subr.bf16.mxu0 %v1831
  %2836 = vmatpush1.bf16.msra.mxu0 %v1830
  %2837 = vmatprep.subr.bf16.mxu0 %v1843
  %2838 = vmatpush1.bf16.msra.mxu0 %v1842
  %2839 = vmatprep.subr.bf16.mxu0 %v1855
  %2840 = vmatpush1.bf16.msra.mxu0 %v1854
  %2841 = vmatprep.subr.bf16.mxu0 %v1867
  %2842 = vmatpush1.bf16.msra.mxu0 %v1866
  %2843 = vmatprep.subr.bf16.mxu0 %v1879
  %2844 = vmatpush1.bf16.msra.mxu0 %v1878
  %2845 = vmatprep.subr.bf16.mxu0 %v1891
  %2846 = vmatpush1.bf16.msra.mxu0 %v1890
  %2847 = vmatprep.subr.bf16.mxu0 %v1903
  %2848 = vmatpush1.bf16.msra.mxu0 %v1902
  %2849 = vmatprep.subr.bf16.mxu0 %v1915
  %2850 = vmatpush1.bf16.msra.mxu0 %v1914
  %2851 = vmatprep.subr.bf16.mxu0 %v1927
  %2852 = vmatpush1.bf16.msra.mxu0 %v1926
  %2853 = vmatprep.subr.bf16.mxu0 %v1939
  %2854 = vmatpush1.bf16.msra.mxu0 %v1938
  %2855 = vmatprep.subr.bf16.mxu0 %v1951
  %2856 = vmatpush1.bf16.msra.mxu0 %v1950
  %2857 = vmatprep.subr.bf16.mxu0 %v1963
  %2858 = vmatpush1.bf16.msra.mxu0 %v1962
  %2859 = vmatprep.mubr.bf16.mxu0 %v41
  %2860 = vmatmul.mubr.bf16.gmra.mrb[0].mxu0 %v40
  %v2861 = vpop.f32.mrb[0].mxu0
  %v2862 = vadd.f32 %v2809, %v2861
  %v2863 = vpop.f32.mrb[0].mxu0
  %v2864 = vadd.f32 %v2811, %v2863
  %v2865 = vpop.f32.mrb[0].mxu0
  %v2866 = vadd.f32 %v2813, %v2865
  %v2867 = vpop.f32.mrb[0].mxu0
  %v2868 = vadd.f32 %v2815, %v2867
  %2869 = vmatprep.mubr.bf16.mxu0 %v45
  %2870 = vmatmul.mubr.bf16.gmra.mrb[0].mxu0 %v44
  %v2871 = vpop.f32.mrb[0].mxu0
  %v2872 = vadd.f32 %v2819, %v2871
  %v2873 = vpop.f32.mrb[0].mxu0
  %v2874 = vadd.f32 %v2821, %v2873
  %v2875 = vpop.f32.mrb[0].mxu0
  %v2876 = vadd.f32 %v2823, %v2875
  %v2877 = vpop.f32.mrb[0].mxu0
  %v2878 = vadd.f32 %v2825, %v2877
  %2879 = vdwg.mxu0
  %2880 = vmatprep.subr.bf16.mxu0 %v1593
  %2881 = vmatpush1.bf16.msra.mxu0 %v1592
  %2882 = vmatprep.subr.bf16.mxu0 %v1605
  %2883 = vmatpush1.bf16.msra.mxu0 %v1604
  %2884 = vmatprep.subr.bf16.mxu0 %v1617
  %2885 = vmatpush1.bf16.msra.mxu0 %v1616
  %2886 = vmatprep.subr.bf16.mxu0 %v1629
  %2887 = vmatpush1.bf16.msra.mxu0 %v1628
  %2888 = vmatprep.subr.bf16.mxu0 %v1641
  %2889 = vmatpush1.bf16.msra.mxu0 %v1640
  %2890 = vmatprep.subr.bf16.mxu0 %v1653
  %2891 = vmatpush1.bf16.msra.mxu0 %v1652
  %2892 = vmatprep.subr.bf16.mxu0 %v1665
  %2893 = vmatpush1.bf16.msra.mxu0 %v1664
  %2894 = vmatprep.subr.bf16.mxu0 %v1677
  %2895 = vmatpush1.bf16.msra.mxu0 %v1676
  %2896 = vmatprep.subr.bf16.mxu0 %v1689
  %2897 = vmatpush1.bf16.msra.mxu0 %v1688
  %2898 = vmatprep.subr.bf16.mxu0 %v1701
  %2899 = vmatpush1.bf16.msra.mxu0 %v1700
  %2900 = vmatprep.subr.bf16.mxu0 %v1713
  %2901 = vmatpush1.bf16.msra.mxu0 %v1712
  %2902 = vmatprep.subr.bf16.mxu0 %v1725
  %2903 = vmatpush1.bf16.msra.mxu0 %v1724
  %2904 = vmatprep.subr.bf16.mxu0 %v1737
  %2905 = vmatpush1.bf16.msra.mxu0 %v1736
  %2906 = vmatprep.subr.bf16.mxu0 %v1749
  %2907 = vmatpush1.bf16.msra.mxu0 %v1748
  %2908 = vmatprep.subr.bf16.mxu0 %v1761
  %2909 = vmatpush1.bf16.msra.mxu0 %v1760
  %2910 = vmatprep.subr.bf16.mxu0 %v1773
  %2911 = vmatpush1.bf16.msra.mxu0 %v1772
  %2912 = vmatprep.mubr.bf16.mxu0 %v39
  %2913 = vmatmul.mubr.bf16.gmra.mrb[0].mxu0 %v38
  %v2914 = vpop.f32.mrb[0].mxu0
  %v2915 = vadd.f32 0.0, %v2914
  %v2916 = vpop.f32.mrb[0].mxu0
  %v2917 = vadd.f32 0.0, %v2916
  %v2918 = vpop.f32.mrb[0].mxu0
  %v2919 = vadd.f32 0.0, %v2918
  %v2920 = vpop.f32.mrb[0].mxu0
  %v2921 = vadd.f32 0.0, %v2920
  %2922 = vmatprep.mubr.bf16.mxu0 %v43
  %2923 = vmatmul.mubr.bf16.gmra.mrb[0].mxu0 %v42
  %v2924 = vpop.f32.mrb[0].mxu0
  %v2925 = vadd.f32 0.0, %v2924
  %v2926 = vpop.f32.mrb[0].mxu0
  %v2927 = vadd.f32 0.0, %v2926
  %v2928 = vpop.f32.mrb[0].mxu0
  %v2929 = vadd.f32 0.0, %v2928
  %v2930 = vpop.f32.mrb[0].mxu0
  %v2931 = vadd.f32 0.0, %v2930
  %2932 = vdwg.mxu0
  %2933 = vmatprep.subr.bf16.mxu0 %v1785
  %2934 = vmatpush1.bf16.msra.mxu0 %v1784
  %2935 = vmatprep.subr.bf16.mxu0 %v1797
  %2936 = vmatpush1.bf16.msra.mxu0 %v1796
  %2937 = vmatprep.subr.bf16.mxu0 %v1809
  %2938 = vmatpush1.bf16.msra.mxu0 %v1808
  %2939 = vmatprep.subr.bf16.mxu0 %v1821
  %2940 = vmatpush1.bf16.msra.mxu0 %v1820
  %2941 = vmatprep.subr.bf16.mxu0 %v1833
  %2942 = vmatpush1.bf16.msra.mxu0 %v1832
  %2943 = vmatprep.subr.bf16.mxu0 %v1845
  %2944 = vmatpush1.bf16.msra.mxu0 %v1844
  %2945 = vmatprep.subr.bf16.mxu0 %v1857
  %2946 = vmatpush1.bf16.msra.mxu0 %v1856
  %2947 = vmatprep.subr.bf16.mxu0 %v1869
  %2948 = vmatpush1.bf16.msra.mxu0 %v1868
  %2949 = vmatprep.subr.bf16.mxu0 %v1881
  %2950 = vmatpush1.bf16.msra.mxu0 %v1880
  %2951 = vmatprep.subr.bf16.mxu0 %v1893
  %2952 = vmatpush1.bf16.msra.mxu0 %v1892
  %2953 = vmatprep.subr.bf16.mxu0 %v1905
  %2954 = vmatpush1.bf16.msra.mxu0 %v1904
  %2955 = vmatprep.subr.bf16.mxu0 %v1917
  %2956 = vmatpush1.bf16.msra.mxu0 %v1916
  %2957 = vmatprep.subr.bf16.mxu0 %v1929
  %2958 = vmatpush1.bf16.msra.mxu0 %v1928
  %2959 = vmatprep.subr.bf16.mxu0 %v1941
  %2960 = vmatpush1.bf16.msra.mxu0 %v1940
  %2961 = vmatprep.subr.bf16.mxu0 %v1953
  %2962 = vmatpush1.bf16.msra.mxu0 %v1952
  %2963 = vmatprep.subr.bf16.mxu0 %v1965
  %2964 = vmatpush1.bf16.msra.mxu0 %v1964
  %2965 = vmatprep.mubr.bf16.mxu0 %v41
  %2966 = vmatmul.mubr.bf16.gmra.mrb[0].mxu0 %v40
  %v2967 = vpop.f32.mrb[0].mxu0
  %v2968 = vadd.f32 %v2915, %v2967
  %v2969 = vpop.f32.mrb[0].mxu0
  %v2970 = vadd.f32 %v2917, %v2969
  %v2971 = vpop.f32.mrb[0].mxu0
  %v2972 = vadd.f32 %v2919, %v2971
  %v2973 = vpop.f32.mrb[0].mxu0
  %v2974 = vadd.f32 %v2921, %v2973
  %2975 = vmatprep.mubr.bf16.mxu0 %v45
  %2976 = vmatmul.mubr.bf16.gmra.mrb[0].mxu0 %v44
  %v2977 = vpop.f32.mrb[0].mxu0
  %v2978 = vadd.f32 %v2925, %v2977
  %v2979 = vpop.f32.mrb[0].mxu0
  %v2980 = vadd.f32 %v2927, %v2979
  %v2981 = vpop.f32.mrb[0].mxu0
  %v2982 = vadd.f32 %v2929, %v2981
  %v2983 = vpop.f32.mrb[0].mxu0
  %v2984 = vadd.f32 %v2931, %v2983
  %2985 = vdwg.mxu0
  %v2986 = vpack.c.bf16 %v2442, %v2438
  %v2987 = vpack.c.bf16 %v2444, %v2440
  %v2988 = vpack.c.bf16 %v2548, %v2544
  %v2989 = vpack.c.bf16 %v2550, %v2546
  %v2990 = vpack.c.bf16 %v2654, %v2650
  %v2991 = vpack.c.bf16 %v2656, %v2652
  %v2992 = vpack.c.bf16 %v2760, %v2756
  %v2993 = vpack.c.bf16 %v2762, %v2758
  %v2994 = vpack.c.bf16 %v2866, %v2862
  %v2995 = vpack.c.bf16 %v2868, %v2864
  %v2996 = vpack.c.bf16 %v2972, %v2968
  %v2997 = vpack.c.bf16 %v2974, %v2970
  %v2998 = vpack.c.bf16 %v2452, %v2448
  %v2999 = vpack.c.bf16 %v2454, %v2450
  %v3000 = vpack.c.bf16 %v2558, %v2554
  %v3001 = vpack.c.bf16 %v2560, %v2556
  %v3002 = vpack.c.bf16 %v2664, %v2660
  %v3003 = vpack.c.bf16 %v2666, %v2662
  %v3004 = vpack.c.bf16 %v2770, %v2766
  %v3005 = vpack.c.bf16 %v2772, %v2768
  %v3006 = vpack.c.bf16 %v2876, %v2872
  %v3007 = vpack.c.bf16 %v2878, %v2874
  %v3008 = vpack.c.bf16 %v2982, %v2978
  %v3009 = vpack.c.bf16 %v2984, %v2980
  %3010 = vmatprep.subr.bf16.mxu0 0
  %3011 = vmatpush1.bf16.xpose.msra.mxu0 %v2990
  %3012 = vmatprep.subr.bf16.mxu0 0
  %3013 = vmatpush1.bf16.xpose.msra.mxu0 0
  %3014 = vmatprep.subr.bf16.mxu0 0
  %3015 = vmatpush1.bf16.xpose.msra.mxu0 0
  %3016 = vmatprep.subr.bf16.mxu0 0
  %3017 = vmatpush1.bf16.xpose.msra.mxu0 0
  %3018 = vmatprep.subr.bf16.mxu0 0
  %3019 = vmatpush1.bf16.xpose.msra.mxu0 0
  %3020 = vmatprep.subr.bf16.mxu0 0
  %3021 = vmatpush1.bf16.xpose.msra.mxu0 0
  %3022 = vmatprep.subr.bf16.mxu0 0
  %3023 = vmatpush1.bf16.xpose.msra.mxu0 0
  %3024 = vmatprep.subr.bf16.mxu0 0
  %3025 = vmatpush1.bf16.xpose.msra.mxu0 0
  %3026 = vmatprep.subr.bf16.mxu0 0
  %3027 = vmatpush1.bf16.xpose.msra.mxu0 0
  %3028 = vmatprep.subr.bf16.mxu0 0
  %3029 = vmatpush1.bf16.xpose.msra.mxu0 0
  %3030 = vmatprep.subr.bf16.mxu0 0
  %3031 = vmatpush1.bf16.xpose.msra.mxu0 0
  %3032 = vmatprep.subr.bf16.mxu0 0
  %3033 = vmatpush1.bf16.xpose.msra.mxu0 0
  %3034 = vmatprep.subr.bf16.mxu0 0
  %3035 = vmatpush1.bf16.xpose.msra.mxu0 0
  %3036 = vmatprep.subr.bf16.mxu0 0
  %3037 = vmatpush1.bf16.xpose.msra.mxu0 0
  %3038 = vmatprep.subr.bf16.mxu0 0
  %3039 = vmatpush1.bf16.xpose.msra.mxu0 0
  %3040 = vmatprep.subr.bf16.mxu0 0
  %3041 = vmatpush1.bf16.xpose.msra.mxu0 0
  %3042 = vmatprep.mubr.bf16.mxu0 0
  %3043 = vmatmul.mubr.bf16.gmra.mrb[0].mxu0 %v2986
  %v3044 = vpop.f32.mrb[0].mxu0
  %v3045 = vadd.f32 0.0, %v3044
  %v3046 = vpop.f32.mrb[0].mxu0
  %v3047 = vpop.f32.mrb[0].mxu0
  %v3048 = vadd.f32 0.0, %v3047
  %v3049 = vpop.f32.mrb[0].mxu0
  %3050 = vdwg.mxu0
  %vm3051 = vcmask 130048
  %v3052 = vsel %vm3051, %v3045, -inf
  %3053 = vmax.xlane.f32.xlu0 %v3052
  %v3054 = vpop.xlane.xlu0 %3053
  %v3055 = vsel %vm3051, %v3048, -inf
  %3056 = vmax.xlane.f32.xlu0 %v3055
  %v3057 = vpop.xlane.xlu0 %3056
  %v3058 = vsub.f32 %v3045, %v3054
  %v3059 = vsub.f32 %v3048, %v3057
  %v3060 = vmul.f32 %v3058, 1.442695
  %v3061 = vpow.pop %v3060
  %v3062 = vmul.f32 %v3059, 1.442695
  %v3063 = vpow.pop %v3062
  %v3064 = vsel %vm3051, %v3061, 0.0
  %3065 = vadd.xlane.f32.xlu0 %v3064
  %v3066 = vpop.xlane.xlu0 %3065
  %v3067 = vsel %vm3051, %v3063, 0.0
  %3068 = vadd.xlane.f32.xlu0 %v3067
  %v3069 = vpop.xlane.xlu0 %3068
  %v3070 = vrcp.pop %v3066
  %v3071 = vrcp.pop %v3069
  %v3072 = vmul.f32 %v3061, %v3070
  %v3073 = vmul.f32 %v3063, %v3071
  %v3074 = vpack.c.bf16 %v3073, %v3072
  %v3076 = vsel %vm3051, %v3074, 0
  %3078 = vmatprep.subr.bf16.mxu0 0
  %3079 = vmatpush1.bf16.msra.mxu0 %v2994
  %3080 = vmatprep.subr.bf16.mxu0 0
  %3081 = vmatpush1.bf16.msra.mxu0 0
  %3082 = vmatprep.subr.bf16.mxu0 0
  %3083 = vmatpush1.bf16.msra.mxu0 0
  %3084 = vmatprep.subr.bf16.mxu0 0
  %3085 = vmatpush1.bf16.msra.mxu0 0
  %3086 = vmatprep.subr.bf16.mxu0 0
  %3087 = vmatpush1.bf16.msra.mxu0 0
  %3088 = vmatprep.subr.bf16.mxu0 0
  %3089 = vmatpush1.bf16.msra.mxu0 0
  %3090 = vmatprep.subr.bf16.mxu0 0
  %3091 = vmatpush1.bf16.msra.mxu0 0
  %3092 = vmatprep.subr.bf16.mxu0 0
  %3093 = vmatpush1.bf16.msra.mxu0 0
  %3094 = vmatprep.subr.bf16.mxu0 0
  %3095 = vmatpush1.bf16.msra.mxu0 0
  %3096 = vmatprep.subr.bf16.mxu0 0
  %3097 = vmatpush1.bf16.msra.mxu0 0
  %3098 = vmatprep.subr.bf16.mxu0 0
  %3099 = vmatpush1.bf16.msra.mxu0 0
  %3100 = vmatprep.subr.bf16.mxu0 0
  %3101 = vmatpush1.bf16.msra.mxu0 0
  %3102 = vmatprep.subr.bf16.mxu0 0
  %3103 = vmatpush1.bf16.msra.mxu0 0
  %3104 = vmatprep.subr.bf16.mxu0 0
  %3105 = vmatpush1.bf16.msra.mxu0 0
  %3106 = vmatprep.subr.bf16.mxu0 0
  %3107 = vmatpush1.bf16.msra.mxu0 0
  %3108 = vmatprep.subr.bf16.mxu0 0
  %3109 = vmatpush1.bf16.msra.mxu0 0
  %3110 = vmatprep.mubr.bf16.mxu0 0
  %3111 = vmatmul.mubr.bf16.gmra.mrb[0].mxu0 %v3076
  %v3112 = vpop.f32.mrb[0].mxu0
  %v3113 = vadd.f32 0.0, %v3112
  %v3114 = vpop.f32.mrb[0].mxu0
  %v3115 = vpop.f32.mrb[0].mxu0
  %v3116 = vadd.f32 0.0, %v3115
  %v3117 = vpop.f32.mrb[0].mxu0
  %3118 = vdwg.mxu0
  %3119 = vst [vmem:[#allocation2] sm:$0xff] %v3113
  %3120 = vst [vmem:[#allocation2 + $0x20] sm:$0xff] %v3116
  %3121 = vmatprep.subr.bf16.mxu0 0
  %3122 = vmatpush1.bf16.xpose.msra.mxu0 %v2991
  %3123 = vmatprep.subr.bf16.mxu0 0
  %3124 = vmatpush1.bf16.xpose.msra.mxu0 0
  %3125 = vmatprep.subr.bf16.mxu0 0
  %3126 = vmatpush1.bf16.xpose.msra.mxu0 0
  %3127 = vmatprep.subr.bf16.mxu0 0
  %3128 = vmatpush1.bf16.xpose.msra.mxu0 0
  %3129 = vmatprep.subr.bf16.mxu0 0
  %3130 = vmatpush1.bf16.xpose.msra.mxu0 0
  %3131 = vmatprep.subr.bf16.mxu0 0
  %3132 = vmatpush1.bf16.xpose.msra.mxu0 0
  %3133 = vmatprep.subr.bf16.mxu0 0
  %3134 = vmatpush1.bf16.xpose.msra.mxu0 0
  %3135 = vmatprep.subr.bf16.mxu0 0
  %3136 = vmatpush1.bf16.xpose.msra.mxu0 0
  %3137 = vmatprep.subr.bf16.mxu0 0
  %3138 = vmatpush1.bf16.xpose.msra.mxu0 0
  %3139 = vmatprep.subr.bf16.mxu0 0
  %3140 = vmatpush1.bf16.xpose.msra.mxu0 0
  %3141 = vmatprep.subr.bf16.mxu0 0
  %3142 = vmatpush1.bf16.xpose.msra.mxu0 0
  %3143 = vmatprep.subr.bf16.mxu0 0
  %3144 = vmatpush1.bf16.xpose.msra.mxu0 0
  %3145 = vmatprep.subr.bf16.mxu0 0
  %3146 = vmatpush1.bf16.xpose.msra.mxu0 0
  %3147 = vmatprep.subr.bf16.mxu0 0
  %3148 = vmatpush1.bf16.xpose.msra.mxu0 0
  %3149 = vmatprep.subr.bf16.mxu0 0
  %3150 = vmatpush1.bf16.xpose.msra.mxu0 0
  %3151 = vmatprep.subr.bf16.mxu0 0
  %3152 = vmatpush1.bf16.xpose.msra.mxu0 0
  %3153 = vmatprep.mubr.bf16.mxu0 0
  %3154 = vmatmul.mubr.bf16.gmra.mrb[0].mxu0 %v2987
  %v3155 = vpop.f32.mrb[0].mxu0
  %v3156 = vadd.f32 0.0, %v3155
  %v3157 = vpop.f32.mrb[0].mxu0
  %v3158 = vpop.f32.mrb[0].mxu0
  %v3159 = vadd.f32 0.0, %v3158
  %v3160 = vpop.f32.mrb[0].mxu0
  %3161 = vdwg.mxu0
  %v3162 = vsel %vm3051, %v3156, -inf
  %3163 = vmax.xlane.f32.xlu0 %v3162
  %v3164 = vpop.xlane.xlu0 %3163
  %v3165 = vsel %vm3051, %v3159, -inf
  %3166 = vmax.xlane.f32.xlu0 %v3165
  %v3167 = vpop.xlane.xlu0 %3166
  %v3168 = vsub.f32 %v3156, %v3164
  %v3169 = vsub.f32 %v3159, %v3167
  %v3170 = vmul.f32 %v3168, 1.442695
  %v3171 = vpow.pop %v3170
  %v3172 = vmul.f32 %v3169, 1.442695
  %v3173 = vpow.pop %v3172
  %v3174 = vsel %vm3051, %v3171, 0.0
  %3175 = vadd.xlane.f32.xlu0 %v3174
  %v3176 = vpop.xlane.xlu0 %3175
  %v3177 = vsel %vm3051, %v3173, 0.0
  %3178 = vadd.xlane.f32.xlu0 %v3177
  %v3179 = vpop.xlane.xlu0 %3178
  %v3180 = vrcp.pop %v3176
  %v3181 = vrcp.pop %v3179
  %v3182 = vmul.f32 %v3171, %v3180
  %v3183 = vmul.f32 %v3173, %v3181
  %v3184 = vpack.c.bf16 %v3183, %v3182
  %v3186 = vsel %vm3051, %v3184, 0
  %3188 = vmatprep.subr.bf16.mxu0 0
  %3189 = vmatpush1.bf16.msra.mxu0 %v2995
  %3190 = vmatprep.subr.bf16.mxu0 0
  %3191 = vmatpush1.bf16.msra.mxu0 0
  %3192 = vmatprep.subr.bf16.mxu0 0
  %3193 = vmatpush1.bf16.msra.mxu0 0
  %3194 = vmatprep.subr.bf16.mxu0 0
  %3195 = vmatpush1.bf16.msra.mxu0 0
  %3196 = vmatprep.subr.bf16.mxu0 0
  %3197 = vmatpush1.bf16.msra.mxu0 0
  %3198 = vmatprep.subr.bf16.mxu0 0
  %3199 = vmatpush1.bf16.msra.mxu0 0
  %3200 = vmatprep.subr.bf16.mxu0 0
  %3201 = vmatpush1.bf16.msra.mxu0 0
  %3202 = vmatprep.subr.bf16.mxu0 0
  %3203 = vmatpush1.bf16.msra.mxu0 0
  %3204 = vmatprep.subr.bf16.mxu0 0
  %3205 = vmatpush1.bf16.msra.mxu0 0
  %3206 = vmatprep.subr.bf16.mxu0 0
  %3207 = vmatpush1.bf16.msra.mxu0 0
  %3208 = vmatprep.subr.bf16.mxu0 0
  %3209 = vmatpush1.bf16.msra.mxu0 0
  %3210 = vmatprep.subr.bf16.mxu0 0
  %3211 = vmatpush1.bf16.msra.mxu0 0
  %3212 = vmatprep.subr.bf16.mxu0 0
  %3213 = vmatpush1.bf16.msra.mxu0 0
  %3214 = vmatprep.subr.bf16.mxu0 0
  %3215 = vmatpush1.bf16.msra.mxu0 0
  %3216 = vmatprep.subr.bf16.mxu0 0
  %3217 = vmatpush1.bf16.msra.mxu0 0
  %3218 = vmatprep.subr.bf16.mxu0 0
  %3219 = vmatpush1.bf16.msra.mxu0 0
  %3220 = vmatprep.mubr.bf16.mxu0 0
  %3221 = vmatmul.mubr.bf16.gmra.mrb[0].mxu0 %v3186
  %v3222 = vpop.f32.mrb[0].mxu0
  %v3223 = vadd.f32 0.0, %v3222
  %v3224 = vpop.f32.mrb[0].mxu0
  %v3225 = vpop.f32.mrb[0].mxu0
  %v3226 = vadd.f32 0.0, %v3225
  %v3227 = vpop.f32.mrb[0].mxu0
  %3228 = vdwg.mxu0
  %3229 = vst [vmem:[#allocation2 + $0x8] sm:$0xff] %v3223
  %3230 = vst [vmem:[#allocation2 + $0x28] sm:$0xff] %v3226
  %3231 = vmatprep.subr.bf16.mxu0 0
  %3232 = vmatpush1.bf16.xpose.msra.mxu0 %v2992
  %3233 = vmatprep.subr.bf16.mxu0 0
  %3234 = vmatpush1.bf16.xpose.msra.mxu0 0
  %3235 = vmatprep.subr.bf16.mxu0 0
  %3236 = vmatpush1.bf16.xpose.msra.mxu0 0
  %3237 = vmatprep.subr.bf16.mxu0 0
  %3238 = vmatpush1.bf16.xpose.msra.mxu0 0
  %3239 = vmatprep.subr.bf16.mxu0 0
  %3240 = vmatpush1.bf16.xpose.msra.mxu0 0
  %3241 = vmatprep.subr.bf16.mxu0 0
  %3242 = vmatpush1.bf16.xpose.msra.mxu0 0
  %3243 = vmatprep.subr.bf16.mxu0 0
  %3244 = vmatpush1.bf16.xpose.msra.mxu0 0
  %3245 = vmatprep.subr.bf16.mxu0 0
  %3246 = vmatpush1.bf16.xpose.msra.mxu0 0
  %3247 = vmatprep.subr.bf16.mxu0 0
  %3248 = vmatpush1.bf16.xpose.msra.mxu0 0
  %3249 = vmatprep.subr.bf16.mxu0 0
  %3250 = vmatpush1.bf16.xpose.msra.mxu0 0
  %3251 = vmatprep.subr.bf16.mxu0 0
  %3252 = vmatpush1.bf16.xpose.msra.mxu0 0
  %3253 = vmatprep.subr.bf16.mxu0 0
  %3254 = vmatpush1.bf16.xpose.msra.mxu0 0
  %3255 = vmatprep.subr.bf16.mxu0 0
  %3256 = vmatpush1.bf16.xpose.msra.mxu0 0
  %3257 = vmatprep.subr.bf16.mxu0 0
  %3258 = vmatpush1.bf16.xpose.msra.mxu0 0
  %3259 = vmatprep.subr.bf16.mxu0 0
  %3260 = vmatpush1.bf16.xpose.msra.mxu0 0
  %3261 = vmatprep.subr.bf16.mxu0 0
  %3262 = vmatpush1.bf16.xpose.msra.mxu0 0
  %3263 = vmatprep.mubr.bf16.mxu0 0
  %3264 = vmatmul.mubr.bf16.gmra.mrb[0].mxu0 %v2988
  %v3265 = vpop.f32.mrb[0].mxu0
  %v3266 = vadd.f32 0.0, %v3265
  %v3267 = vpop.f32.mrb[0].mxu0
  %v3268 = vpop.f32.mrb[0].mxu0
  %v3269 = vadd.f32 0.0, %v3268
  %v3270 = vpop.f32.mrb[0].mxu0
  %3271 = vdwg.mxu0
  %v3272 = vsel %vm3051, %v3266, -inf
  %3273 = vmax.xlane.f32.xlu0 %v3272
  %v3274 = vpop.xlane.xlu0 %3273
  %v3275 = vsel %vm3051, %v3269, -inf
  %3276 = vmax.xlane.f32.xlu0 %v3275
  %v3277 = vpop.xlane.xlu0 %3276
  %v3278 = vsub.f32 %v3266, %v3274
  %v3279 = vsub.f32 %v3269, %v3277
  %v3280 = vmul.f32 %v3278, 1.442695
  %v3281 = vpow.pop %v3280
  %v3282 = vmul.f32 %v3279, 1.442695
  %v3283 = vpow.pop %v3282
  %v3284 = vsel %vm3051, %v3281, 0.0
  %3285 = vadd.xlane.f32.xlu0 %v3284
  %v3286 = vpop.xlane.xlu0 %3285
  %v3287 = vsel %vm3051, %v3283, 0.0
  %3288 = vadd.xlane.f32.xlu0 %v3287
  %v3289 = vpop.xlane.xlu0 %3288
  %v3290 = vrcp.pop %v3286
  %v3291 = vrcp.pop %v3289
  %v3292 = vmul.f32 %v3281, %v3290
  %v3293 = vmul.f32 %v3283, %v3291
  %v3294 = vpack.c.bf16 %v3293, %v3292
  %v3296 = vsel %vm3051, %v3294, 0
  %3298 = vmatprep.subr.bf16.mxu0 0
  %3299 = vmatpush1.bf16.msra.mxu0 %v2996
  %3300 = vmatprep.subr.bf16.mxu0 0
  %3301 = vmatpush1.bf16.msra.mxu0 0
  %3302 = vmatprep.subr.bf16.mxu0 0
  %3303 = vmatpush1.bf16.msra.mxu0 0
  %3304 = vmatprep.subr.bf16.mxu0 0
  %3305 = vmatpush1.bf16.msra.mxu0 0
  %3306 = vmatprep.subr.bf16.mxu0 0
  %3307 = vmatpush1.bf16.msra.mxu0 0
  %3308 = vmatprep.subr.bf16.mxu0 0
  %3309 = vmatpush1.bf16.msra.mxu0 0
  %3310 = vmatprep.subr.bf16.mxu0 0
  %3311 = vmatpush1.bf16.msra.mxu0 0
  %3312 = vmatprep.subr.bf16.mxu0 0
  %3313 = vmatpush1.bf16.msra.mxu0 0
  %3314 = vmatprep.subr.bf16.mxu0 0
  %3315 = vmatpush1.bf16.msra.mxu0 0
  %3316 = vmatprep.subr.bf16.mxu0 0
  %3317 = vmatpush1.bf16.msra.mxu0 0
  %3318 = vmatprep.subr.bf16.mxu0 0
  %3319 = vmatpush1.bf16.msra.mxu0 0
  %3320 = vmatprep.subr.bf16.mxu0 0
  %3321 = vmatpush1.bf16.msra.mxu0 0
  %3322 = vmatprep.subr.bf16.mxu0 0
  %3323 = vmatpush1.bf16.msra.mxu0 0
  %3324 = vmatprep.subr.bf16.mxu0 0
  %3325 = vmatpush1.bf16.msra.mxu0 0
  %3326 = vmatprep.subr.bf16.mxu0 0
  %3327 = vmatpush1.bf16.msra.mxu0 0
  %3328 = vmatprep.subr.bf16.mxu0 0
  %3329 = vmatpush1.bf16.msra.mxu0 0
  %3330 = vmatprep.mubr.bf16.mxu0 0
  %3331 = vmatmul.mubr.bf16.gmra.mrb[0].mxu0 %v3296
  %v3332 = vpop.f32.mrb[0].mxu0
  %v3333 = vadd.f32 0.0, %v3332
  %v3334 = vpop.f32.mrb[0].mxu0
  %v3335 = vpop.f32.mrb[0].mxu0
  %v3336 = vadd.f32 0.0, %v3335
  %v3337 = vpop.f32.mrb[0].mxu0
  %3338 = vdwg.mxu0
  %3339 = vst [vmem:[#allocation2 + $0x10] sm:$0xff] %v3333
  %3340 = vst [vmem:[#allocation2 + $0x30] sm:$0xff] %v3336
  %3341 = vmatprep.subr.bf16.mxu0 0
  %3342 = vmatpush1.bf16.xpose.msra.mxu0 %v2993
  %3343 = vmatprep.subr.bf16.mxu0 0
  %3344 = vmatpush1.bf16.xpose.msra.mxu0 0
  %3345 = vmatprep.subr.bf16.mxu0 0
  %3346 = vmatpush1.bf16.xpose.msra.mxu0 0
  %3347 = vmatprep.subr.bf16.mxu0 0
  %3348 = vmatpush1.bf16.xpose.msra.mxu0 0
  %3349 = vmatprep.subr.bf16.mxu0 0
  %3350 = vmatpush1.bf16.xpose.msra.mxu0 0
  %3351 = vmatprep.subr.bf16.mxu0 0
  %3352 = vmatpush1.bf16.xpose.msra.mxu0 0
  %3353 = vmatprep.subr.bf16.mxu0 0
  %3354 = vmatpush1.bf16.xpose.msra.mxu0 0
  %3355 = vmatprep.subr.bf16.mxu0 0
  %3356 = vmatpush1.bf16.xpose.msra.mxu0 0
  %3357 = vmatprep.subr.bf16.mxu0 0
  %3358 = vmatpush1.bf16.xpose.msra.mxu0 0
  %3359 = vmatprep.subr.bf16.mxu0 0
  %3360 = vmatpush1.bf16.xpose.msra.mxu0 0
  %3361 = vmatprep.subr.bf16.mxu0 0
  %3362 = vmatpush1.bf16.xpose.msra.mxu0 0
  %3363 = vmatprep.subr.bf16.mxu0 0
  %3364 = vmatpush1.bf16.xpose.msra.mxu0 0
  %3365 = vmatprep.subr.bf16.mxu0 0
  %3366 = vmatpush1.bf16.xpose.msra.mxu0 0
  %3367 = vmatprep.subr.bf16.mxu0 0
  %3368 = vmatpush1.bf16.xpose.msra.mxu0 0
  %3369 = vmatprep.subr.bf16.mxu0 0
  %3370 = vmatpush1.bf16.xpose.msra.mxu0 0
  %3371 = vmatprep.subr.bf16.mxu0 0
  %3372 = vmatpush1.bf16.xpose.msra.mxu0 0
  %3373 = vmatprep.mubr.bf16.mxu0 0
  %3374 = vmatmul.mubr.bf16.gmra.mrb[0].mxu0 %v2989
  %v3375 = vpop.f32.mrb[0].mxu0
  %v3376 = vadd.f32 0.0, %v3375
  %v3377 = vpop.f32.mrb[0].mxu0
  %v3378 = vpop.f32.mrb[0].mxu0
  %v3379 = vadd.f32 0.0, %v3378
  %v3380 = vpop.f32.mrb[0].mxu0
  %3381 = vdwg.mxu0
  %v3382 = vsel %vm3051, %v3376, -inf
  %3383 = vmax.xlane.f32.xlu0 %v3382
  %v3384 = vpop.xlane.xlu0 %3383
  %v3385 = vsel %vm3051, %v3379, -inf
  %3386 = vmax.xlane.f32.xlu0 %v3385
  %v3387 = vpop.xlane.xlu0 %3386
  %v3388 = vsub.f32 %v3376, %v3384
  %v3389 = vsub.f32 %v3379, %v3387
  %v3390 = vmul.f32 %v3388, 1.442695
  %v3391 = vpow.pop %v3390
  %v3392 = vmul.f32 %v3389, 1.442695
  %v3393 = vpow.pop %v3392
  %v3394 = vsel %vm3051, %v3391, 0.0
  %3395 = vadd.xlane.f32.xlu0 %v3394
  %v3396 = vpop.xlane.xlu0 %3395
  %v3397 = vsel %vm3051, %v3393, 0.0
  %3398 = vadd.xlane.f32.xlu0 %v3397
  %v3399 = vpop.xlane.xlu0 %3398
  %v3400 = vrcp.pop %v3396
  %v3401 = vrcp.pop %v3399
  %v3402 = vmul.f32 %v3391, %v3400
  %v3403 = vmul.f32 %v3393, %v3401
  %v3404 = vpack.c.bf16 %v3403, %v3402
  %v3406 = vsel %vm3051, %v3404, 0
  %3408 = vmatprep.subr.bf16.mxu0 0
  %3409 = vmatpush1.bf16.msra.mxu0 %v2997
  %3410 = vmatprep.subr.bf16.mxu0 0
  %3411 = vmatpush1.bf16.msra.mxu0 0
  %3412 = vmatprep.subr.bf16.mxu0 0
  %3413 = vmatpush1.bf16.msra.mxu0 0
  %3414 = vmatprep.subr.bf16.mxu0 0
  %3415 = vmatpush1.bf16.msra.mxu0 0
  %3416 = vmatprep.subr.bf16.mxu0 0
  %3417 = vmatpush1.bf16.msra.mxu0 0
  %3418 = vmatprep.subr.bf16.mxu0 0
  %3419 = vmatpush1.bf16.msra.mxu0 0
  %3420 = vmatprep.subr.bf16.mxu0 0
  %3421 = vmatpush1.bf16.msra.mxu0 0
  %3422 = vmatprep.subr.bf16.mxu0 0
  %3423 = vmatpush1.bf16.msra.mxu0 0
  %3424 = vmatprep.subr.bf16.mxu0 0
  %3425 = vmatpush1.bf16.msra.mxu0 0
  %3426 = vmatprep.subr.bf16.mxu0 0
  %3427 = vmatpush1.bf16.msra.mxu0 0
  %3428 = vmatprep.subr.bf16.mxu0 0
  %3429 = vmatpush1.bf16.msra.mxu0 0
  %3430 = vmatprep.subr.bf16.mxu0 0
  %3431 = vmatpush1.bf16.msra.mxu0 0
  %3432 = vmatprep.subr.bf16.mxu0 0
  %3433 = vmatpush1.bf16.msra.mxu0 0
  %3434 = vmatprep.subr.bf16.mxu0 0
  %3435 = vmatpush1.bf16.msra.mxu0 0
  %3436 = vmatprep.subr.bf16.mxu0 0
  %3437 = vmatpush1.bf16.msra.mxu0 0
  %3438 = vmatprep.subr.bf16.mxu0 0
  %3439 = vmatpush1.bf16.msra.mxu0 0
  %3440 = vmatprep.mubr.bf16.mxu0 0
  %3441 = vmatmul.mubr.bf16.gmra.mrb[0].mxu0 %v3406
  %v3442 = vpop.f32.mrb[0].mxu0
  %v3443 = vadd.f32 0.0, %v3442
  %v3444 = vpop.f32.mrb[0].mxu0
  %v3445 = vpop.f32.mrb[0].mxu0
  %v3446 = vadd.f32 0.0, %v3445
  %v3447 = vpop.f32.mrb[0].mxu0
  %3448 = vdwg.mxu0
  %3449 = vst [vmem:[#allocation2 + $0x18] sm:$0xff] %v3443
  %3450 = vst [vmem:[#allocation2 + $0x38] sm:$0xff] %v3446
  %3451 = vmatprep.subr.bf16.mxu0 0
  %3452 = vmatpush1.bf16.xpose.msra.mxu0 %v3002
  %3453 = vmatprep.subr.bf16.mxu0 0
  %3454 = vmatpush1.bf16.xpose.msra.mxu0 0
  %3455 = vmatprep.subr.bf16.mxu0 0
  %3456 = vmatpush1.bf16.xpose.msra.mxu0 0
  %3457 = vmatprep.subr.bf16.mxu0 0
  %3458 = vmatpush1.bf16.xpose.msra.mxu0 0
  %3459 = vmatprep.subr.bf16.mxu0 0
  %3460 = vmatpush1.bf16.xpose.msra.mxu0 0
  %3461 = vmatprep.subr.bf16.mxu0 0
  %3462 = vmatpush1.bf16.xpose.msra.mxu0 0
  %3463 = vmatprep.subr.bf16.mxu0 0
  %3464 = vmatpush1.bf16.xpose.msra.mxu0 0
  %3465 = vmatprep.subr.bf16.mxu0 0
  %3466 = vmatpush1.bf16.xpose.msra.mxu0 0
  %3467 = vmatprep.subr.bf16.mxu0 0
  %3468 = vmatpush1.bf16.xpose.msra.mxu0 0
  %3469 = vmatprep.subr.bf16.mxu0 0
  %3470 = vmatpush1.bf16.xpose.msra.mxu0 0
  %3471 = vmatprep.subr.bf16.mxu0 0
  %3472 = vmatpush1.bf16.xpose.msra.mxu0 0
  %3473 = vmatprep.subr.bf16.mxu0 0
  %3474 = vmatpush1.bf16.xpose.msra.mxu0 0
  %3475 = vmatprep.subr.bf16.mxu0 0
  %3476 = vmatpush1.bf16.xpose.msra.mxu0 0
  %3477 = vmatprep.subr.bf16.mxu0 0
  %3478 = vmatpush1.bf16.xpose.msra.mxu0 0
  %3479 = vmatprep.subr.bf16.mxu0 0
  %3480 = vmatpush1.bf16.xpose.msra.mxu0 0
  %3481 = vmatprep.subr.bf16.mxu0 0
  %3482 = vmatpush1.bf16.xpose.msra.mxu0 0
  %3483 = vmatprep.mubr.bf16.mxu0 0
  %3484 = vmatmul.mubr.bf16.gmra.mrb[0].mxu0 %v2998
  %v3485 = vpop.f32.mrb[0].mxu0
  %v3486 = vadd.f32 0.0, %v3485
  %v3487 = vpop.f32.mrb[0].mxu0
  %v3488 = vpop.f32.mrb[0].mxu0
  %v3489 = vadd.f32 0.0, %v3488
  %v3490 = vpop.f32.mrb[0].mxu0
  %3491 = vdwg.mxu0
  %v3492 = vsel %vm3051, %v3486, -inf
  %3493 = vmax.xlane.f32.xlu0 %v3492
  %v3494 = vpop.xlane.xlu0 %3493
  %v3495 = vsel %vm3051, %v3489, -inf
  %3496 = vmax.xlane.f32.xlu0 %v3495
  %v3497 = vpop.xlane.xlu0 %3496
  %v3498 = vsub.f32 %v3486, %v3494
  %v3499 = vsub.f32 %v3489, %v3497
  %v3500 = vmul.f32 %v3498, 1.442695
  %v3501 = vpow.pop %v3500
  %v3502 = vmul.f32 %v3499, 1.442695
  %v3503 = vpow.pop %v3502
  %v3504 = vsel %vm3051, %v3501, 0.0
  %3505 = vadd.xlane.f32.xlu0 %v3504
  %v3506 = vpop.xlane.xlu0 %3505
  %v3507 = vsel %vm3051, %v3503, 0.0
  %3508 = vadd.xlane.f32.xlu0 %v3507
  %v3509 = vpop.xlane.xlu0 %3508
  %v3510 = vrcp.pop %v3506
  %v3511 = vrcp.pop %v3509
  %v3512 = vmul.f32 %v3501, %v3510
  %v3513 = vmul.f32 %v3503, %v3511
  %v3514 = vpack.c.bf16 %v3513, %v3512
  %v3516 = vsel %vm3051, %v3514, 0
  %3518 = vmatprep.subr.bf16.mxu0 0
  %3519 = vmatpush1.bf16.msra.mxu0 %v3006
  %3520 = vmatprep.subr.bf16.mxu0 0
  %3521 = vmatpush1.bf16.msra.mxu0 0
  %3522 = vmatprep.subr.bf16.mxu0 0
  %3523 = vmatpush1.bf16.msra.mxu0 0
  %3524 = vmatprep.subr.bf16.mxu0 0
  %3525 = vmatpush1.bf16.msra.mxu0 0
  %3526 = vmatprep.subr.bf16.mxu0 0
  %3527 = vmatpush1.bf16.msra.mxu0 0
  %3528 = vmatprep.subr.bf16.mxu0 0
  %3529 = vmatpush1.bf16.msra.mxu0 0
  %3530 = vmatprep.subr.bf16.mxu0 0
  %3531 = vmatpush1.bf16.msra.mxu0 0
  %3532 = vmatprep.subr.bf16.mxu0 0
  %3533 = vmatpush1.bf16.msra.mxu0 0
  %3534 = vmatprep.subr.bf16.mxu0 0
  %3535 = vmatpush1.bf16.msra.mxu0 0
  %3536 = vmatprep.subr.bf16.mxu0 0
  %3537 = vmatpush1.bf16.msra.mxu0 0
  %3538 = vmatprep.subr.bf16.mxu0 0
  %3539 = vmatpush1.bf16.msra.mxu0 0
  %3540 = vmatprep.subr.bf16.mxu0 0
  %3541 = vmatpush1.bf16.msra.mxu0 0
  %3542 = vmatprep.subr.bf16.mxu0 0
  %3543 = vmatpush1.bf16.msra.mxu0 0
  %3544 = vmatprep.subr.bf16.mxu0 0
  %3545 = vmatpush1.bf16.msra.mxu0 0
  %3546 = vmatprep.subr.bf16.mxu0 0
  %3547 = vmatpush1.bf16.msra.mxu0 0
  %3548 = vmatprep.subr.bf16.mxu0 0
  %3549 = vmatpush1.bf16.msra.mxu0 0
  %3550 = vmatprep.mubr.bf16.mxu0 0
  %3551 = vmatmul.mubr.bf16.gmra.mrb[0].mxu0 %v3516
  %v3552 = vpop.f32.mrb[0].mxu0
  %v3553 = vadd.f32 0.0, %v3552
  %v3554 = vpop.f32.mrb[0].mxu0
  %v3555 = vpop.f32.mrb[0].mxu0
  %v3556 = vadd.f32 0.0, %v3555
  %v3557 = vpop.f32.mrb[0].mxu0
  %3558 = vdwg.mxu0
  %3559 = vst [vmem:[#allocation2 + $0x40] sm:$0xff] %v3553
  %3560 = vst [vmem:[#allocation2 + $0x60] sm:$0xff] %v3556
  %3561 = vmatprep.subr.bf16.mxu0 0
  %3562 = vmatpush1.bf16.xpose.msra.mxu0 %v3003
  %3563 = vmatprep.subr.bf16.mxu0 0
  %3564 = vmatpush1.bf16.xpose.msra.mxu0 0
  %3565 = vmatprep.subr.bf16.mxu0 0
  %3566 = vmatpush1.bf16.xpose.msra.mxu0 0
  %3567 = vmatprep.subr.bf16.mxu0 0
  %3568 = vmatpush1.bf16.xpose.msra.mxu0 0
  %3569 = vmatprep.subr.bf16.mxu0 0
  %3570 = vmatpush1.bf16.xpose.msra.mxu0 0
  %3571 = vmatprep.subr.bf16.mxu0 0
  %3572 = vmatpush1.bf16.xpose.msra.mxu0 0
  %3573 = vmatprep.subr.bf16.mxu0 0
  %3574 = vmatpush1.bf16.xpose.msra.mxu0 0
  %3575 = vmatprep.subr.bf16.mxu0 0
  %3576 = vmatpush1.bf16.xpose.msra.mxu0 0
  %3577 = vmatprep.subr.bf16.mxu0 0
  %3578 = vmatpush1.bf16.xpose.msra.mxu0 0
  %3579 = vmatprep.subr.bf16.mxu0 0
  %3580 = vmatpush1.bf16.xpose.msra.mxu0 0
  %3581 = vmatprep.subr.bf16.mxu0 0
  %3582 = vmatpush1.bf16.xpose.msra.mxu0 0
  %3583 = vmatprep.subr.bf16.mxu0 0
  %3584 = vmatpush1.bf16.xpose.msra.mxu0 0
  %3585 = vmatprep.subr.bf16.mxu0 0
  %3586 = vmatpush1.bf16.xpose.msra.mxu0 0
  %3587 = vmatprep.subr.bf16.mxu0 0
  %3588 = vmatpush1.bf16.xpose.msra.mxu0 0
  %3589 = vmatprep.subr.bf16.mxu0 0
  %3590 = vmatpush1.bf16.xpose.msra.mxu0 0
  %3591 = vmatprep.subr.bf16.mxu0 0
  %3592 = vmatpush1.bf16.xpose.msra.mxu0 0
  %3593 = vmatprep.mubr.bf16.mxu0 0
  %3594 = vmatmul.mubr.bf16.gmra.mrb[0].mxu0 %v2999
  %v3595 = vpop.f32.mrb[0].mxu0
  %v3596 = vadd.f32 0.0, %v3595
  %v3597 = vpop.f32.mrb[0].mxu0
  %v3598 = vpop.f32.mrb[0].mxu0
  %v3599 = vadd.f32 0.0, %v3598
  %v3600 = vpop.f32.mrb[0].mxu0
  %3601 = vdwg.mxu0
  %v3602 = vsel %vm3051, %v3596, -inf
  %3603 = vmax.xlane.f32.xlu0 %v3602
  %v3604 = vpop.xlane.xlu0 %3603
  %v3605 = vsel %vm3051, %v3599, -inf
  %3606 = vmax.xlane.f32.xlu0 %v3605
  %v3607 = vpop.xlane.xlu0 %3606
  %v3608 = vsub.f32 %v3596, %v3604
  %v3609 = vsub.f32 %v3599, %v3607
  %v3610 = vmul.f32 %v3608, 1.442695
  %v3611 = vpow.pop %v3610
  %v3612 = vmul.f32 %v3609, 1.442695
  %v3613 = vpow.pop %v3612
  %v3614 = vsel %vm3051, %v3611, 0.0
  %3615 = vadd.xlane.f32.xlu0 %v3614
  %v3616 = vpop.xlane.xlu0 %3615
  %v3617 = vsel %vm3051, %v3613, 0.0
  %3618 = vadd.xlane.f32.xlu0 %v3617
  %v3619 = vpop.xlane.xlu0 %3618
  %v3620 = vrcp.pop %v3616
  %v3621 = vrcp.pop %v3619
  %v3622 = vmul.f32 %v3611, %v3620
  %v3623 = vmul.f32 %v3613, %v3621
  %v3624 = vpack.c.bf16 %v3623, %v3622
  %v3626 = vsel %vm3051, %v3624, 0
  %3628 = vmatprep.subr.bf16.mxu0 0
  %3629 = vmatpush1.bf16.msra.mxu0 %v3007
  %3630 = vmatprep.subr.bf16.mxu0 0
  %3631 = vmatpush1.bf16.msra.mxu0 0
  %3632 = vmatprep.subr.bf16.mxu0 0
  %3633 = vmatpush1.bf16.msra.mxu0 0
  %3634 = vmatprep.subr.bf16.mxu0 0
  %3635 = vmatpush1.bf16.msra.mxu0 0
  %3636 = vmatprep.subr.bf16.mxu0 0
  %3637 = vmatpush1.bf16.msra.mxu0 0
  %3638 = vmatprep.subr.bf16.mxu0 0
  %3639 = vmatpush1.bf16.msra.mxu0 0
  %3640 = vmatprep.subr.bf16.mxu0 0
  %3641 = vmatpush1.bf16.msra.mxu0 0
  %3642 = vmatprep.subr.bf16.mxu0 0
  %3643 = vmatpush1.bf16.msra.mxu0 0
  %3644 = vmatprep.subr.bf16.mxu0 0
  %3645 = vmatpush1.bf16.msra.mxu0 0
  %3646 = vmatprep.subr.bf16.mxu0 0
  %3647 = vmatpush1.bf16.msra.mxu0 0
  %3648 = vmatprep.subr.bf16.mxu0 0
  %3649 = vmatpush1.bf16.msra.mxu0 0
  %3650 = vmatprep.subr.bf16.mxu0 0
  %3651 = vmatpush1.bf16.msra.mxu0 0
  %3652 = vmatprep.subr.bf16.mxu0 0
  %3653 = vmatpush1.bf16.msra.mxu0 0
  %3654 = vmatprep.subr.bf16.mxu0 0
  %3655 = vmatpush1.bf16.msra.mxu0 0
  %3656 = vmatprep.subr.bf16.mxu0 0
  %3657 = vmatpush1.bf16.msra.mxu0 0
  %3658 = vmatprep.subr.bf16.mxu0 0
  %3659 = vmatpush1.bf16.msra.mxu0 0
  %3660 = vmatprep.mubr.bf16.mxu0 0
  %3661 = vmatmul.mubr.bf16.gmra.mrb[0].mxu0 %v3626
  %v3662 = vpop.f32.mrb[0].mxu0
  %v3663 = vadd.f32 0.0, %v3662
  %v3664 = vpop.f32.mrb[0].mxu0
  %v3665 = vpop.f32.mrb[0].mxu0
  %v3666 = vadd.f32 0.0, %v3665
  %v3667 = vpop.f32.mrb[0].mxu0
  %3668 = vdwg.mxu0
  %3669 = vst [vmem:[#allocation2 + $0x48] sm:$0xff] %v3663
  %3670 = vst [vmem:[#allocation2 + $0x68] sm:$0xff] %v3666
  %3671 = vmatprep.subr.bf16.mxu0 0
  %3672 = vmatpush1.bf16.xpose.msra.mxu0 %v3004
  %3673 = vmatprep.subr.bf16.mxu0 0
  %3674 = vmatpush1.bf16.xpose.msra.mxu0 0
  %3675 = vmatprep.subr.bf16.mxu0 0
  %3676 = vmatpush1.bf16.xpose.msra.mxu0 0
  %3677 = vmatprep.subr.bf16.mxu0 0
  %3678 = vmatpush1.bf16.xpose.msra.mxu0 0
  %3679 = vmatprep.subr.bf16.mxu0 0
  %3680 = vmatpush1.bf16.xpose.msra.mxu0 0
  %3681 = vmatprep.subr.bf16.mxu0 0
  %3682 = vmatpush1.bf16.xpose.msra.mxu0 0
  %3683 = vmatprep.subr.bf16.mxu0 0
  %3684 = vmatpush1.bf16.xpose.msra.mxu0 0
  %3685 = vmatprep.subr.bf16.mxu0 0
  %3686 = vmatpush1.bf16.xpose.msra.mxu0 0
  %3687 = vmatprep.subr.bf16.mxu0 0
  %3688 = vmatpush1.bf16.xpose.msra.mxu0 0
  %3689 = vmatprep.subr.bf16.mxu0 0
  %3690 = vmatpush1.bf16.xpose.msra.mxu0 0
  %3691 = vmatprep.subr.bf16.mxu0 0
  %3692 = vmatpush1.bf16.xpose.msra.mxu0 0
  %3693 = vmatprep.subr.bf16.mxu0 0
  %3694 = vmatpush1.bf16.xpose.msra.mxu0 0
  %3695 = vmatprep.subr.bf16.mxu0 0
  %3696 = vmatpush1.bf16.xpose.msra.mxu0 0
  %3697 = vmatprep.subr.bf16.mxu0 0
  %3698 = vmatpush1.bf16.xpose.msra.mxu0 0
  %3699 = vmatprep.subr.bf16.mxu0 0
  %3700 = vmatpush1.bf16.xpose.msra.mxu0 0
  %3701 = vmatprep.subr.bf16.mxu0 0
  %3702 = vmatpush1.bf16.xpose.msra.mxu0 0
  %3703 = vmatprep.mubr.bf16.mxu0 0
  %3704 = vmatmul.mubr.bf16.gmra.mrb[0].mxu0 %v3000
  %v3705 = vpop.f32.mrb[0].mxu0
  %v3706 = vadd.f32 0.0, %v3705
  %v3707 = vpop.f32.mrb[0].mxu0
  %v3708 = vpop.f32.mrb[0].mxu0
  %v3709 = vadd.f32 0.0, %v3708
  %v3710 = vpop.f32.mrb[0].mxu0
  %3711 = vdwg.mxu0
  %v3712 = vsel %vm3051, %v3706, -inf
  %3713 = vmax.xlane.f32.xlu0 %v3712
  %v3714 = vpop.xlane.xlu0 %3713
  %v3715 = vsel %vm3051, %v3709, -inf
  %3716 = vmax.xlane.f32.xlu0 %v3715
  %v3717 = vpop.xlane.xlu0 %3716
  %v3718 = vsub.f32 %v3706, %v3714
  %v3719 = vsub.f32 %v3709, %v3717
  %v3720 = vmul.f32 %v3718, 1.442695
  %v3721 = vpow.pop %v3720
  %v3722 = vmul.f32 %v3719, 1.442695
  %v3723 = vpow.pop %v3722
  %v3724 = vsel %vm3051, %v3721, 0.0
  %3725 = vadd.xlane.f32.xlu0 %v3724
  %v3726 = vpop.xlane.xlu0 %3725
  %v3727 = vsel %vm3051, %v3723, 0.0
  %3728 = vadd.xlane.f32.xlu0 %v3727
  %v3729 = vpop.xlane.xlu0 %3728
  %v3730 = vrcp.pop %v3726
  %v3731 = vrcp.pop %v3729
  %v3732 = vmul.f32 %v3721, %v3730
  %v3733 = vmul.f32 %v3723, %v3731
  %v3734 = vpack.c.bf16 %v3733, %v3732
  %v3736 = vsel %vm3051, %v3734, 0
  %3738 = vmatprep.subr.bf16.mxu0 0
  %3739 = vmatpush1.bf16.msra.mxu0 %v3008
  %3740 = vmatprep.subr.bf16.mxu0 0
  %3741 = vmatpush1.bf16.msra.mxu0 0
  %3742 = vmatprep.subr.bf16.mxu0 0
  %3743 = vmatpush1.bf16.msra.mxu0 0
  %3744 = vmatprep.subr.bf16.mxu0 0
  %3745 = vmatpush1.bf16.msra.mxu0 0
  %3746 = vmatprep.subr.bf16.mxu0 0
  %3747 = vmatpush1.bf16.msra.mxu0 0
  %3748 = vmatprep.subr.bf16.mxu0 0
  %3749 = vmatpush1.bf16.msra.mxu0 0
  %3750 = vmatprep.subr.bf16.mxu0 0
  %3751 = vmatpush1.bf16.msra.mxu0 0
  %3752 = vmatprep.subr.bf16.mxu0 0
  %3753 = vmatpush1.bf16.msra.mxu0 0
  %3754 = vmatprep.subr.bf16.mxu0 0
  %3755 = vmatpush1.bf16.msra.mxu0 0
  %3756 = vmatprep.subr.bf16.mxu0 0
  %3757 = vmatpush1.bf16.msra.mxu0 0
  %3758 = vmatprep.subr.bf16.mxu0 0
  %3759 = vmatpush1.bf16.msra.mxu0 0
  %3760 = vmatprep.subr.bf16.mxu0 0
  %3761 = vmatpush1.bf16.msra.mxu0 0
  %3762 = vmatprep.subr.bf16.mxu0 0
  %3763 = vmatpush1.bf16.msra.mxu0 0
  %3764 = vmatprep.subr.bf16.mxu0 0
  %3765 = vmatpush1.bf16.msra.mxu0 0
  %3766 = vmatprep.subr.bf16.mxu0 0
  %3767 = vmatpush1.bf16.msra.mxu0 0
  %3768 = vmatprep.subr.bf16.mxu0 0
  %3769 = vmatpush1.bf16.msra.mxu0 0
  %3770 = vmatprep.mubr.bf16.mxu0 0
  %3771 = vmatmul.mubr.bf16.gmra.mrb[0].mxu0 %v3736
  %v3772 = vpop.f32.mrb[0].mxu0
  %v3773 = vadd.f32 0.0, %v3772
  %v3774 = vpop.f32.mrb[0].mxu0
  %v3775 = vpop.f32.mrb[0].mxu0
  %v3776 = vadd.f32 0.0, %v3775
  %v3777 = vpop.f32.mrb[0].mxu0
  %3778 = vdwg.mxu0
  %3779 = vst [vmem:[#allocation2 + $0x50] sm:$0xff] %v3773
  %3780 = vst [vmem:[#allocation2 + $0x70] sm:$0xff] %v3776
  %3781 = vmatprep.subr.bf16.mxu0 0
  %3782 = vmatpush1.bf16.xpose.msra.mxu0 %v3005
  %3783 = vmatprep.subr.bf16.mxu0 0
  %3784 = vmatpush1.bf16.xpose.msra.mxu0 0
  %3785 = vmatprep.subr.bf16.mxu0 0
  %3786 = vmatpush1.bf16.xpose.msra.mxu0 0
  %3787 = vmatprep.subr.bf16.mxu0 0
  %3788 = vmatpush1.bf16.xpose.msra.mxu0 0
  %3789 = vmatprep.subr.bf16.mxu0 0
  %3790 = vmatpush1.bf16.xpose.msra.mxu0 0
  %3791 = vmatprep.subr.bf16.mxu0 0
  %3792 = vmatpush1.bf16.xpose.msra.mxu0 0
  %3793 = vmatprep.subr.bf16.mxu0 0
  %3794 = vmatpush1.bf16.xpose.msra.mxu0 0
  %3795 = vmatprep.subr.bf16.mxu0 0
  %3796 = vmatpush1.bf16.xpose.msra.mxu0 0
  %3797 = vmatprep.subr.bf16.mxu0 0
  %3798 = vmatpush1.bf16.xpose.msra.mxu0 0
  %3799 = vmatprep.subr.bf16.mxu0 0
  %3800 = vmatpush1.bf16.xpose.msra.mxu0 0
  %3801 = vmatprep.subr.bf16.mxu0 0
  %3802 = vmatpush1.bf16.xpose.msra.mxu0 0
  %3803 = vmatprep.subr.bf16.mxu0 0
  %3804 = vmatpush1.bf16.xpose.msra.mxu0 0
  %3805 = vmatprep.subr.bf16.mxu0 0
  %3806 = vmatpush1.bf16.xpose.msra.mxu0 0
  %3807 = vmatprep.subr.bf16.mxu0 0
  %3808 = vmatpush1.bf16.xpose.msra.mxu0 0
  %3809 = vmatprep.subr.bf16.mxu0 0
  %3810 = vmatpush1.bf16.xpose.msra.mxu0 0
  %3811 = vmatprep.subr.bf16.mxu0 0
  %3812 = vmatpush1.bf16.xpose.msra.mxu0 0
  %3813 = vmatprep.mubr.bf16.mxu0 0
  %3814 = vmatmul.mubr.bf16.gmra.mrb[0].mxu0 %v3001
  %v3815 = vpop.f32.mrb[0].mxu0
  %v3816 = vadd.f32 0.0, %v3815
  %v3817 = vpop.f32.mrb[0].mxu0
  %v3818 = vpop.f32.mrb[0].mxu0
  %v3819 = vadd.f32 0.0, %v3818
  %v3820 = vpop.f32.mrb[0].mxu0
  %3821 = vdwg.mxu0
  %v3822 = vsel %vm3051, %v3816, -inf
  %3823 = vmax.xlane.f32.xlu0 %v3822
  %v3824 = vpop.xlane.xlu0 %3823
  %v3825 = vsel %vm3051, %v3819, -inf
  %3826 = vmax.xlane.f32.xlu0 %v3825
  %v3827 = vpop.xlane.xlu0 %3826
  %v3828 = vsub.f32 %v3816, %v3824
  %v3829 = vsub.f32 %v3819, %v3827
  %v3830 = vmul.f32 %v3828, 1.442695
  %v3831 = vpow.pop %v3830
  %v3832 = vmul.f32 %v3829, 1.442695
  %v3833 = vpow.pop %v3832
  %v3834 = vsel %vm3051, %v3831, 0.0
  %3835 = vadd.xlane.f32.xlu0 %v3834
  %v3836 = vpop.xlane.xlu0 %3835
  %v3837 = vsel %vm3051, %v3833, 0.0
  %3838 = vadd.xlane.f32.xlu0 %v3837
  %v3839 = vpop.xlane.xlu0 %3838
  %v3840 = vrcp.pop %v3836
  %v3841 = vrcp.pop %v3839
  %v3842 = vmul.f32 %v3831, %v3840
  %v3843 = vmul.f32 %v3833, %v3841
  %v3844 = vpack.c.bf16 %v3843, %v3842
  %v3846 = vsel %vm3051, %v3844, 0
  %3848 = vmatprep.subr.bf16.mxu0 0
  %3849 = vmatpush1.bf16.msra.mxu0 %v3009
  %3850 = vmatprep.subr.bf16.mxu0 0
  %3851 = vmatpush1.bf16.msra.mxu0 0
  %3852 = vmatprep.subr.bf16.mxu0 0
  %3853 = vmatpush1.bf16.msra.mxu0 0
  %3854 = vmatprep.subr.bf16.mxu0 0
  %3855 = vmatpush1.bf16.msra.mxu0 0
  %3856 = vmatprep.subr.bf16.mxu0 0
  %3857 = vmatpush1.bf16.msra.mxu0 0
  %3858 = vmatprep.subr.bf16.mxu0 0
  %3859 = vmatpush1.bf16.msra.mxu0 0
  %3860 = vmatprep.subr.bf16.mxu0 0
  %3861 = vmatpush1.bf16.msra.mxu0 0
  %3862 = vmatprep.subr.bf16.mxu0 0
  %3863 = vmatpush1.bf16.msra.mxu0 0
  %3864 = vmatprep.subr.bf16.mxu0 0
  %3865 = vmatpush1.bf16.msra.mxu0 0
  %3866 = vmatprep.subr.bf16.mxu0 0
  %3867 = vmatpush1.bf16.msra.mxu0 0
  %3868 = vmatprep.subr.bf16.mxu0 0
  %3869 = vmatpush1.bf16.msra.mxu0 0
  %3870 = vmatprep.subr.bf16.mxu0 0
  %3871 = vmatpush1.bf16.msra.mxu0 0
  %3872 = vmatprep.subr.bf16.mxu0 0
  %3873 = vmatpush1.bf16.msra.mxu0 0
  %3874 = vmatprep.subr.bf16.mxu0 0
  %3875 = vmatpush1.bf16.msra.mxu0 0
  %3876 = vmatprep.subr.bf16.mxu0 0
  %3877 = vmatpush1.bf16.msra.mxu0 0
  %3878 = vmatprep.subr.bf16.mxu0 0
  %3879 = vmatpush1.bf16.msra.mxu0 0
  %3880 = vmatprep.mubr.bf16.mxu0 0
  %3881 = vmatmul.mubr.bf16.gmra.mrb[0].mxu0 %v3846
  %v3882 = vpop.f32.mrb[0].mxu0
  %v3883 = vadd.f32 0.0, %v3882
  %v3884 = vpop.f32.mrb[0].mxu0
  %v3885 = vpop.f32.mrb[0].mxu0
  %v3886 = vadd.f32 0.0, %v3885
  %v3887 = vpop.f32.mrb[0].mxu0
  %3888 = vdwg.mxu0
  %3889 = vst [vmem:[#allocation2 + $0x58] sm:$0xff] %v3883
  %3890 = vst [vmem:[#allocation2 + $0x78] sm:$0xff] %v3886
  %v3891 = vld [vmem:[#allocation2] sm:$0xff]
  %v3892 = vld [vmem:[#allocation2 + $0x8] sm:$0xff]
  %v3893 = vld [vmem:[#allocation2 + $0x10] sm:$0xff]
  %v3894 = vld [vmem:[#allocation2 + $0x18] sm:$0xff]
  %v3895 = vld [vmem:[#allocation2 + $0x20] sm:$0xff]
  %v3896 = vld [vmem:[#allocation2 + $0x28] sm:$0xff]
  %v3897 = vld [vmem:[#allocation2 + $0x30] sm:$0xff]
  %v3898 = vld [vmem:[#allocation2 + $0x38] sm:$0xff]
  %v3899 = vld [vmem:[#allocation2 + $0x40] sm:$0xff]
  %v3900 = vld [vmem:[#allocation2 + $0x48] sm:$0xff]
  %v3901 = vld [vmem:[#allocation2 + $0x50] sm:$0xff]
  %v3902 = vld [vmem:[#allocation2 + $0x58] sm:$0xff]
  %v3903 = vld [vmem:[#allocation2 + $0x60] sm:$0xff]
  %v3904 = vld [vmem:[#allocation2 + $0x68] sm:$0xff]
  %v3905 = vld [vmem:[#allocation2 + $0x70] sm:$0xff]
  %v3906 = vld [vmem:[#allocation2 + $0x78] sm:$0xff]
  %v3907 = vadd.f32 %v3891, %v22
  %v3908 = vadd.f32 %v3892, %v23
  %v3909 = vadd.f32 %v3893, %v24
  %v3910 = vadd.f32 %v3894, %v25
  %v3911 = vadd.f32 %v3895, %v26
  %v3912 = vadd.f32 %v3896, %v27
  %v3913 = vadd.f32 %v3897, %v28
  %v3914 = vadd.f32 %v3898, %v29
  %v3915 = vadd.f32 %v3899, %v30
  %v3916 = vadd.f32 %v3900, %v31
  %v3917 = vadd.f32 %v3901, %v32
  %v3918 = vadd.f32 %v3902, %v33
  %v3919 = vadd.f32 %v3903, %v34
  %v3920 = vadd.f32 %v3904, %v35
  %v3921 = vadd.f32 %v3905, %v36
  %v3922 = vadd.f32 %v3906, %v37
  %v3923 = vadd.f32 %v3907, %v3908
  %v3924 = vadd.f32 %v3923, %v3909
  %v3925 = vadd.f32 %v3924, %v3910
  %3926 = vadd.xlane.f32.xlu0 %v3925
  %v3927 = vpop.xlane.xlu0 %3926
  %v3928 = vadd.f32 %v3911, %v3912
  %v3929 = vadd.f32 %v3928, %v3913
  %v3930 = vadd.f32 %v3929, %v3914
  %3931 = vadd.xlane.f32.xlu0 %v3930
  %v3932 = vpop.xlane.xlu0 %3931
  %v3933 = vadd.f32 %v3915, %v3916
  %v3934 = vadd.f32 %v3933, %v3917
  %v3935 = vadd.f32 %v3934, %v3918
  %3936 = vadd.xlane.f32.xlu0 %v3935
  %v3937 = vpop.xlane.xlu0 %3936
  %v3938 = vadd.f32 %v3919, %v3920
  %v3939 = vadd.f32 %v3938, %v3921
  %v3940 = vadd.f32 %v3939, %v3922
  %3941 = vadd.xlane.f32.xlu0 %v3940
  %v3942 = vpop.xlane.xlu0 %3941
  %v3943 = vrcp.pop 512.0
  %v3944 = vmul.f32 %v3927, %v3943
  %v3945 = vmul.f32 %v3932, %v3943
  %v3946 = vmul.f32 %v3937, %v3943
  %v3947 = vmul.f32 %v3942, %v3943
  %v3948 = vsub.f32 %v3907, %v3944
  %v3949 = vsub.f32 %v3908, %v3944
  %v3950 = vsub.f32 %v3909, %v3944
  %v3951 = vsub.f32 %v3910, %v3944
  %v3952 = vsub.f32 %v3911, %v3945
  %v3953 = vsub.f32 %v3912, %v3945
  %v3954 = vsub.f32 %v3913, %v3945
  %v3955 = vsub.f32 %v3914, %v3945
  %v3956 = vsub.f32 %v3915, %v3946
  %v3957 = vsub.f32 %v3916, %v3946
  %v3958 = vsub.f32 %v3917, %v3946
  %v3959 = vsub.f32 %v3918, %v3946
  %v3960 = vsub.f32 %v3919, %v3947
  %v3961 = vsub.f32 %v3920, %v3947
  %v3962 = vsub.f32 %v3921, %v3947
  %v3963 = vsub.f32 %v3922, %v3947
  %v3964 = vmul.f32 %v3948, %v3948
  %v3965 = vmul.f32 %v3949, %v3949
  %v3966 = vmul.f32 %v3950, %v3950
  %v3967 = vmul.f32 %v3951, %v3951
  %v3968 = vmul.f32 %v3952, %v3952
  %v3969 = vmul.f32 %v3953, %v3953
  %v3970 = vmul.f32 %v3954, %v3954
  %v3971 = vmul.f32 %v3955, %v3955
  %v3972 = vmul.f32 %v3956, %v3956
  %v3973 = vmul.f32 %v3957, %v3957
  %v3974 = vmul.f32 %v3958, %v3958
  %v3975 = vmul.f32 %v3959, %v3959
  %v3976 = vmul.f32 %v3960, %v3960
  %v3977 = vmul.f32 %v3961, %v3961
  %v3978 = vmul.f32 %v3962, %v3962
  %v3979 = vmul.f32 %v3963, %v3963
  %v3980 = vadd.f32 %v3964, %v3965
  %v3981 = vadd.f32 %v3980, %v3966
  %v3982 = vadd.f32 %v3981, %v3967
  %3983 = vadd.xlane.f32.xlu0 %v3982
  %v3984 = vpop.xlane.xlu0 %3983
  %v3985 = vadd.f32 %v3968, %v3969
  %v3986 = vadd.f32 %v3985, %v3970
  %v3987 = vadd.f32 %v3986, %v3971
  %3988 = vadd.xlane.f32.xlu0 %v3987
  %v3989 = vpop.xlane.xlu0 %3988
  %v3990 = vadd.f32 %v3972, %v3973
  %v3991 = vadd.f32 %v3990, %v3974
  %v3992 = vadd.f32 %v3991, %v3975
  %3993 = vadd.xlane.f32.xlu0 %v3992
  %v3994 = vpop.xlane.xlu0 %3993
  %v3995 = vadd.f32 %v3976, %v3977
  %v3996 = vadd.f32 %v3995, %v3978
  %v3997 = vadd.f32 %v3996, %v3979
  %3998 = vadd.xlane.f32.xlu0 %v3997
  %v3999 = vpop.xlane.xlu0 %3998
  %v4000 = vmul.f32 %v3984, %v3943
  %v4001 = vmul.f32 %v3989, %v3943
  %v4002 = vmul.f32 %v3994, %v3943
  %v4003 = vmul.f32 %v3999, %v3943
  %v4004 = vadd.f32 %v4000, 1e-05
  %v4005 = vadd.f32 %v4001, 1e-05
  %v4006 = vadd.f32 %v4002, 1e-05
  %v4007 = vadd.f32 %v4003, 1e-05
  %v4008 = vrsqrt.pop %v4004
  %v4009 = vrsqrt.pop %v4005
  %v4010 = vrsqrt.pop %v4006
  %v4011 = vrsqrt.pop %v4007
  %v4012 = vmul.f32 %v3948, %v4008
  %v4013 = vmul.f32 %v3949, %v4008
  %v4014 = vmul.f32 %v3950, %v4008
  %v4015 = vmul.f32 %v3951, %v4008
  %v4016 = vmul.f32 %v3952, %v4009
  %v4017 = vmul.f32 %v3953, %v4009
  %v4018 = vmul.f32 %v3954, %v4009
  %v4019 = vmul.f32 %v3955, %v4009
  %v4020 = vmul.f32 %v3956, %v4010
  %v4021 = vmul.f32 %v3957, %v4010
  %v4022 = vmul.f32 %v3958, %v4010
  %v4023 = vmul.f32 %v3959, %v4010
  %v4024 = vmul.f32 %v3960, %v4011
  %v4025 = vmul.f32 %v3961, %v4011
  %v4026 = vmul.f32 %v3962, %v4011
  %v4027 = vmul.f32 %v3963, %v4011
  %v4028 = vlaneseq
  %v4029 = vshrl.u32 %v4028, 7
  %v4030 = vsub.s32 1, %v4029
  %v4031 = vrot.slane %v18, %v4030
  %v4032 = vlaneseq
  %v4033 = vshrl.u32 %v4032, 7
  %v4034 = vsub.s32 1, %v4033
  %v4035 = vrot.slane %v19, %v4034
  %v4036 = vlaneseq
  %v4037 = vshrl.u32 %v4036, 7
  %v4038 = vsub.s32 1, %v4037
  %v4039 = vrot.slane %v20, %v4038
  %v4040 = vlaneseq
  %v4041 = vshrl.u32 %v4040, 7
  %v4042 = vsub.s32 1, %v4041
  %v4043 = vrot.slane %v21, %v4042
  %v4044 = vmul.f32 %v4012, %v4031
  %v4045 = vmul.f32 %v4013, %v4035
  %v4046 = vmul.f32 %v4014, %v4039
  %v4047 = vmul.f32 %v4015, %v4043
  %v4048 = vmul.f32 %v4016, %v4031
  %v4049 = vmul.f32 %v4017, %v4035
  %v4050 = vmul.f32 %v4018, %v4039
  %v4051 = vmul.f32 %v4019, %v4043
  %v4052 = vmul.f32 %v4020, %v4031
  %v4053 = vmul.f32 %v4021, %v4035
  %v4054 = vmul.f32 %v4022, %v4039
  %v4055 = vmul.f32 %v4023, %v4043
  %v4056 = vmul.f32 %v4024, %v4031
  %v4057 = vmul.f32 %v4025, %v4035
  %v4058 = vmul.f32 %v4026, %v4039
  %v4059 = vmul.f32 %v4027, %v4043
  %v4060 = vlaneseq
  %v4061 = vshrl.u32 %v4060, 7
  %v4062 = vsub.s32 2, %v4061
  %v4063 = vrot.slane %v18, %v4062
  %v4064 = vlaneseq
  %v4065 = vshrl.u32 %v4064, 7
  %v4066 = vsub.s32 2, %v4065
  %v4067 = vrot.slane %v19, %v4066
  %v4068 = vlaneseq
  %v4069 = vshrl.u32 %v4068, 7
  %v4070 = vsub.s32 2, %v4069
  %v4071 = vrot.slane %v20, %v4070
  %v4072 = vlaneseq
  %v4073 = vshrl.u32 %v4072, 7
  %v4074 = vsub.s32 2, %v4073
  %v4075 = vrot.slane %v21, %v4074
  %v4076 = vadd.f32 %v4044, %v4063
  %v4077 = vadd.f32 %v4045, %v4067
  %v4078 = vadd.f32 %v4046, %v4071
  %v4079 = vadd.f32 %v4047, %v4075
  %v4080 = vadd.f32 %v4048, %v4063
  %v4081 = vadd.f32 %v4049, %v4067
  %v4082 = vadd.f32 %v4050, %v4071
  %v4083 = vadd.f32 %v4051, %v4075
  %v4084 = vadd.f32 %v4052, %v4063
  %v4085 = vadd.f32 %v4053, %v4067
  %v4086 = vadd.f32 %v4054, %v4071
  %v4087 = vadd.f32 %v4055, %v4075
  %v4088 = vadd.f32 %v4056, %v4063
  %v4089 = vadd.f32 %v4057, %v4067
  %v4090 = vadd.f32 %v4058, %v4071
  %v4091 = vadd.f32 %v4059, %v4075
  %v4092 = vpack.c.bf16 %v4080, %v4076
  %v4093 = vpack.c.bf16 %v4081, %v4077
  %v4094 = vpack.c.bf16 %v4082, %v4078
  %v4095 = vpack.c.bf16 %v4083, %v4079
  %v4096 = vpack.c.bf16 %v4088, %v4084
  %v4097 = vpack.c.bf16 %v4089, %v4085
  %v4098 = vpack.c.bf16 %v4090, %v4086
  %v4099 = vpack.c.bf16 %v4091, %v4087
  %v4100 = vld [vmem:[%s2] sm:$0xff]
  %v4101 = vld [vmem:[%s2 + $0x8] sm:$0xff]
  %v4102 = vld [vmem:[%s2 + $0x10] sm:$0xff]
  %v4103 = vld [vmem:[%s2 + $0x18] sm:$0xff]
  %v4104 = vld [vmem:[%s2 + $0x20] sm:$0xff]
  %v4105 = vld [vmem:[%s2 + $0x28] sm:$0xff]
  %v4106 = vld [vmem:[%s2 + $0x30] sm:$0xff]
  %v4107 = vld [vmem:[%s2 + $0x38] sm:$0xff]
  %v4108 = vld [vmem:[%s2 + $0x40] sm:$0xff]
  %v4109 = vld [vmem:[%s2 + $0x48] sm:$0xff]
  %v4110 = vld [vmem:[%s2 + $0x50] sm:$0xff]
  %v4111 = vld [vmem:[%s2 + $0x58] sm:$0xff]
  %v4112 = vld [vmem:[%s2 + $0x60] sm:$0xff]
  %v4113 = vld [vmem:[%s2 + $0x68] sm:$0xff]
  %v4114 = vld [vmem:[%s2 + $0x70] sm:$0xff]
  %v4115 = vld [vmem:[%s2 + $0x78] sm:$0xff]
  %v4116 = vld [vmem:[%s2 + $0x80] sm:$0xff]
  %v4117 = vld [vmem:[%s2 + $0x88] sm:$0xff]
  %v4118 = vld [vmem:[%s2 + $0x90] sm:$0xff]
  %v4119 = vld [vmem:[%s2 + $0x98] sm:$0xff]
  %v4120 = vld [vmem:[%s2 + $0xa0] sm:$0xff]
  %v4121 = vld [vmem:[%s2 + $0xa8] sm:$0xff]
  %v4122 = vld [vmem:[%s2 + $0xb0] sm:$0xff]
  %v4123 = vld [vmem:[%s2 + $0xb8] sm:$0xff]
  %v4124 = vld [vmem:[%s2 + $0xc0] sm:$0xff]
  %v4125 = vld [vmem:[%s2 + $0xc8] sm:$0xff]
  %v4126 = vld [vmem:[%s2 + $0xd0] sm:$0xff]
  %v4127 = vld [vmem:[%s2 + $0xd8] sm:$0xff]
  %v4128 = vld [vmem:[%s2 + $0xe0] sm:$0xff]
  %v4129 = vld [vmem:[%s2 + $0xe8] sm:$0xff]
  %v4130 = vld [vmem:[%s2 + $0xf0] sm:$0xff]
  %v4131 = vld [vmem:[%s2 + $0xf8] sm:$0xff]
  %v4132 = vld [vmem:[%s2 + $0x100] sm:$0xff]
  %v4133 = vld [vmem:[%s2 + $0x108] sm:$0xff]
  %v4134 = vld [vmem:[%s2 + $0x110] sm:$0xff]
  %v4135 = vld [vmem:[%s2 + $0x118] sm:$0xff]
  %v4136 = vld [vmem:[%s2 + $0x120] sm:$0xff]
  %v4137 = vld [vmem:[%s2 + $0x128] sm:$0xff]
  %v4138 = vld [vmem:[%s2 + $0x130] sm:$0xff]
  %v4139 = vld [vmem:[%s2 + $0x138] sm:$0xff]
  %v4140 = vld [vmem:[%s2 + $0x140] sm:$0xff]
  %v4141 = vld [vmem:[%s2 + $0x148] sm:$0xff]
  %v4142 = vld [vmem:[%s2 + $0x150] sm:$0xff]
  %v4143 = vld [vmem:[%s2 + $0x158] sm:$0xff]
  %v4144 = vld [vmem:[%s2 + $0x160] sm:$0xff]
  %v4145 = vld [vmem:[%s2 + $0x168] sm:$0xff]
  %v4146 = vld [vmem:[%s2 + $0x170] sm:$0xff]
  %v4147 = vld [vmem:[%s2 + $0x178] sm:$0xff]
  %v4148 = vld [vmem:[%s2 + $0x180] sm:$0xff]
  %v4149 = vld [vmem:[%s2 + $0x188] sm:$0xff]
  %v4150 = vld [vmem:[%s2 + $0x190] sm:$0xff]
  %v4151 = vld [vmem:[%s2 + $0x198] sm:$0xff]
  %v4152 = vld [vmem:[%s2 + $0x1a0] sm:$0xff]
  %v4153 = vld [vmem:[%s2 + $0x1a8] sm:$0xff]
  %v4154 = vld [vmem:[%s2 + $0x1b0] sm:$0xff]
  %v4155 = vld [vmem:[%s2 + $0x1b8] sm:$0xff]
  %v4156 = vld [vmem:[%s2 + $0x1c0] sm:$0xff]
  %v4157 = vld [vmem:[%s2 + $0x1c8] sm:$0xff]
  %v4158 = vld [vmem:[%s2 + $0x1d0] sm:$0xff]
  %v4159 = vld [vmem:[%s2 + $0x1d8] sm:$0xff]
  %v4160 = vld [vmem:[%s2 + $0x1e0] sm:$0xff]
  %v4161 = vld [vmem:[%s2 + $0x1e8] sm:$0xff]
  %v4162 = vld [vmem:[%s2 + $0x1f0] sm:$0xff]
  %v4163 = vld [vmem:[%s2 + $0x1f8] sm:$0xff]
  %v4164 = vld [vmem:[%s2 + $0x200] sm:$0xff]
  %v4165 = vld [vmem:[%s2 + $0x208] sm:$0xff]
  %v4166 = vld [vmem:[%s2 + $0x210] sm:$0xff]
  %v4167 = vld [vmem:[%s2 + $0x218] sm:$0xff]
  %v4168 = vld [vmem:[%s2 + $0x220] sm:$0xff]
  %v4169 = vld [vmem:[%s2 + $0x228] sm:$0xff]
  %v4170 = vld [vmem:[%s2 + $0x230] sm:$0xff]
  %v4171 = vld [vmem:[%s2 + $0x238] sm:$0xff]
  %v4172 = vld [vmem:[%s2 + $0x240] sm:$0xff]
  %v4173 = vld [vmem:[%s2 + $0x248] sm:$0xff]
  %v4174 = vld [vmem:[%s2 + $0x250] sm:$0xff]
  %v4175 = vld [vmem:[%s2 + $0x258] sm:$0xff]
  %v4176 = vld [vmem:[%s2 + $0x260] sm:$0xff]
  %v4177 = vld [vmem:[%s2 + $0x268] sm:$0xff]
  %v4178 = vld [vmem:[%s2 + $0x270] sm:$0xff]
  %v4179 = vld [vmem:[%s2 + $0x278] sm:$0xff]
  %v4180 = vld [vmem:[%s2 + $0x280] sm:$0xff]
  %v4181 = vld [vmem:[%s2 + $0x288] sm:$0xff]
  %v4182 = vld [vmem:[%s2 + $0x290] sm:$0xff]
  %v4183 = vld [vmem:[%s2 + $0x298] sm:$0xff]
  %v4184 = vld [vmem:[%s2 + $0x2a0] sm:$0xff]
  %v4185 = vld [vmem:[%s2 + $0x2a8] sm:$0xff]
  %v4186 = vld [vmem:[%s2 + $0x2b0] sm:$0xff]
  %v4187 = vld [vmem:[%s2 + $0x2b8] sm:$0xff]
  %v4188 = vld [vmem:[%s2 + $0x2c0] sm:$0xff]
  %v4189 = vld [vmem:[%s2 + $0x2c8] sm:$0xff]
  %v4190 = vld [vmem:[%s2 + $0x2d0] sm:$0xff]
  %v4191 = vld [vmem:[%s2 + $0x2d8] sm:$0xff]
  %v4192 = vld [vmem:[%s2 + $0x2e0] sm:$0xff]
  %v4193 = vld [vmem:[%s2 + $0x2e8] sm:$0xff]
  %v4194 = vld [vmem:[%s2 + $0x2f0] sm:$0xff]
  %v4195 = vld [vmem:[%s2 + $0x2f8] sm:$0xff]
  %v4196 = vld [vmem:[%s2 + $0x300] sm:$0xff]
  %v4197 = vld [vmem:[%s2 + $0x308] sm:$0xff]
  %v4198 = vld [vmem:[%s2 + $0x310] sm:$0xff]
  %v4199 = vld [vmem:[%s2 + $0x318] sm:$0xff]
  %v4200 = vld [vmem:[%s2 + $0x320] sm:$0xff]
  %v4201 = vld [vmem:[%s2 + $0x328] sm:$0xff]
  %v4202 = vld [vmem:[%s2 + $0x330] sm:$0xff]
  %v4203 = vld [vmem:[%s2 + $0x338] sm:$0xff]
  %v4204 = vld [vmem:[%s2 + $0x340] sm:$0xff]
  %v4205 = vld [vmem:[%s2 + $0x348] sm:$0xff]
  %v4206 = vld [vmem:[%s2 + $0x350] sm:$0xff]
  %v4207 = vld [vmem:[%s2 + $0x358] sm:$0xff]
  %v4208 = vld [vmem:[%s2 + $0x360] sm:$0xff]
  %v4209 = vld [vmem:[%s2 + $0x368] sm:$0xff]
  %v4210 = vld [vmem:[%s2 + $0x370] sm:$0xff]
  %v4211 = vld [vmem:[%s2 + $0x378] sm:$0xff]
  %v4212 = vld [vmem:[%s2 + $0x380] sm:$0xff]
  %v4213 = vld [vmem:[%s2 + $0x388] sm:$0xff]
  %v4214 = vld [vmem:[%s2 + $0x390] sm:$0xff]
  %v4215 = vld [vmem:[%s2 + $0x398] sm:$0xff]
  %v4216 = vld [vmem:[%s2 + $0x3a0] sm:$0xff]
  %v4217 = vld [vmem:[%s2 + $0x3a8] sm:$0xff]
  %v4218 = vld [vmem:[%s2 + $0x3b0] sm:$0xff]
  %v4219 = vld [vmem:[%s2 + $0x3b8] sm:$0xff]
  %v4220 = vld [vmem:[%s2 + $0x3c0] sm:$0xff]
  %v4221 = vld [vmem:[%s2 + $0x3c8] sm:$0xff]
  %v4222 = vld [vmem:[%s2 + $0x3d0] sm:$0xff]
  %v4223 = vld [vmem:[%s2 + $0x3d8] sm:$0xff]
  %v4224 = vld [vmem:[%s2 + $0x3e0] sm:$0xff]
  %v4225 = vld [vmem:[%s2 + $0x3e8] sm:$0xff]
  %v4226 = vld [vmem:[%s2 + $0x3f0] sm:$0xff]
  %v4227 = vld [vmem:[%s2 + $0x3f8] sm:$0xff]
  %v4228 = vlaneseq
  %v4229 = vshrl.u32 %v4228, 7
  %v4230 = vsub.s32 0, %v4229
  %v4231 = vrot.slane %v18, %v4230
  %v4232 = vlaneseq
  %v4233 = vshrl.u32 %v4232, 7
  %v4234 = vsub.s32 0, %v4233
  %v4235 = vrot.slane %v19, %v4234
  %v4236 = vlaneseq
  %v4237 = vshrl.u32 %v4236, 7
  %v4238 = vsub.s32 0, %v4237
  %v4239 = vrot.slane %v20, %v4238
  %v4240 = vlaneseq
  %v4241 = vshrl.u32 %v4240, 7
  %v4242 = vsub.s32 0, %v4241
  %v4243 = vrot.slane %v21, %v4242
  %v4372 = vunpack.c.l.b16 %v4100
  %v4373 = vunpack.c.h.b16 %v4100
  %v4374 = vunpack.c.l.b16 %v4101
  %v4375 = vunpack.c.h.b16 %v4101
  %v4376 = vunpack.c.l.b16 %v4102
  %v4377 = vunpack.c.h.b16 %v4102
  %v4378 = vunpack.c.l.b16 %v4103
  %v4379 = vunpack.c.h.b16 %v4103
  %v4380 = vunpack.c.l.b16 %v4104
  %v4381 = vunpack.c.h.b16 %v4104
  %v4382 = vunpack.c.l.b16 %v4105
  %v4383 = vunpack.c.h.b16 %v4105
  %v4384 = vunpack.c.l.b16 %v4106
  %v4385 = vunpack.c.h.b16 %v4106
  %v4386 = vunpack.c.l.b16 %v4107
  %v4387 = vunpack.c.h.b16 %v4107
  %v4388 = vunpack.c.l.b16 %v4108
  %v4389 = vunpack.c.h.b16 %v4108
  %v4390 = vunpack.c.l.b16 %v4109
  %v4391 = vunpack.c.h.b16 %v4109
  %v4392 = vunpack.c.l.b16 %v4110
  %v4393 = vunpack.c.h.b16 %v4110
  %v4394 = vunpack.c.l.b16 %v4111
  %v4395 = vunpack.c.h.b16 %v4111
  %v4396 = vunpack.c.l.b16 %v4112
  %v4397 = vunpack.c.h.b16 %v4112
  %v4398 = vunpack.c.l.b16 %v4113
  %v4399 = vunpack.c.h.b16 %v4113
  %v4400 = vunpack.c.l.b16 %v4114
  %v4401 = vunpack.c.h.b16 %v4114
  %v4402 = vunpack.c.l.b16 %v4115
  %v4403 = vunpack.c.h.b16 %v4115
  %v4404 = vunpack.c.l.b16 %v4116
  %v4405 = vunpack.c.h.b16 %v4116
  %v4406 = vunpack.c.l.b16 %v4117
  %v4407 = vunpack.c.h.b16 %v4117
  %v4408 = vunpack.c.l.b16 %v4118
  %v4409 = vunpack.c.h.b16 %v4118
  %v4410 = vunpack.c.l.b16 %v4119
  %v4411 = vunpack.c.h.b16 %v4119
  %v4412 = vunpack.c.l.b16 %v4120
  %v4413 = vunpack.c.h.b16 %v4120
  %v4414 = vunpack.c.l.b16 %v4121
  %v4415 = vunpack.c.h.b16 %v4121
  %v4416 = vunpack.c.l.b16 %v4122
  %v4417 = vunpack.c.h.b16 %v4122
  %v4418 = vunpack.c.l.b16 %v4123
  %v4419 = vunpack.c.h.b16 %v4123
  %v4420 = vunpack.c.l.b16 %v4124
  %v4421 = vunpack.c.h.b16 %v4124
  %v4422 = vunpack.c.l.b16 %v4125
  %v4423 = vunpack.c.h.b16 %v4125
  %v4424 = vunpack.c.l.b16 %v4126
  %v4425 = vunpack.c.h.b16 %v4126
  %v4426 = vunpack.c.l.b16 %v4127
  %v4427 = vunpack.c.h.b16 %v4127
  %v4428 = vunpack.c.l.b16 %v4128
  %v4429 = vunpack.c.h.b16 %v4128
  %v4430 = vunpack.c.l.b16 %v4129
  %v4431 = vunpack.c.h.b16 %v4129
  %v4432 = vunpack.c.l.b16 %v4130
  %v4433 = vunpack.c.h.b16 %v4130
  %v4434 = vunpack.c.l.b16 %v4131
  %v4435 = vunpack.c.h.b16 %v4131
  %v4436 = vunpack.c.l.b16 %v4132
  %v4437 = vunpack.c.h.b16 %v4132
  %v4438 = vunpack.c.l.b16 %v4133
  %v4439 = vunpack.c.h.b16 %v4133
  %v4440 = vunpack.c.l.b16 %v4134
  %v4441 = vunpack.c.h.b16 %v4134
  %v4442 = vunpack.c.l.b16 %v4135
  %v4443 = vunpack.c.h.b16 %v4135
  %v4444 = vunpack.c.l.b16 %v4136
  %v4445 = vunpack.c.h.b16 %v4136
  %v4446 = vunpack.c.l.b16 %v4137
  %v4447 = vunpack.c.h.b16 %v4137
  %v4448 = vunpack.c.l.b16 %v4138
  %v4449 = vunpack.c.h.b16 %v4138
  %v4450 = vunpack.c.l.b16 %v4139
  %v4451 = vunpack.c.h.b16 %v4139
  %v4452 = vunpack.c.l.b16 %v4140
  %v4453 = vunpack.c.h.b16 %v4140
  %v4454 = vunpack.c.l.b16 %v4141
  %v4455 = vunpack.c.h.b16 %v4141
  %v4456 = vunpack.c.l.b16 %v4142
  %v4457 = vunpack.c.h.b16 %v4142
  %v4458 = vunpack.c.l.b16 %v4143
  %v4459 = vunpack.c.h.b16 %v4143
  %v4460 = vunpack.c.l.b16 %v4144
  %v4461 = vunpack.c.h.b16 %v4144
  %v4462 = vunpack.c.l.b16 %v4145
  %v4463 = vunpack.c.h.b16 %v4145
  %v4464 = vunpack.c.l.b16 %v4146
  %v4465 = vunpack.c.h.b16 %v4146
  %v4466 = vunpack.c.l.b16 %v4147
  %v4467 = vunpack.c.h.b16 %v4147
  %v4468 = vunpack.c.l.b16 %v4148
  %v4469 = vunpack.c.h.b16 %v4148
  %v4470 = vunpack.c.l.b16 %v4149
  %v4471 = vunpack.c.h.b16 %v4149
  %v4472 = vunpack.c.l.b16 %v4150
  %v4473 = vunpack.c.h.b16 %v4150
  %v4474 = vunpack.c.l.b16 %v4151
  %v4475 = vunpack.c.h.b16 %v4151
  %v4476 = vunpack.c.l.b16 %v4152
  %v4477 = vunpack.c.h.b16 %v4152
  %v4478 = vunpack.c.l.b16 %v4153
  %v4479 = vunpack.c.h.b16 %v4153
  %v4480 = vunpack.c.l.b16 %v4154
  %v4481 = vunpack.c.h.b16 %v4154
  %v4482 = vunpack.c.l.b16 %v4155
  %v4483 = vunpack.c.h.b16 %v4155
  %v4484 = vunpack.c.l.b16 %v4156
  %v4485 = vunpack.c.h.b16 %v4156
  %v4486 = vunpack.c.l.b16 %v4157
  %v4487 = vunpack.c.h.b16 %v4157
  %v4488 = vunpack.c.l.b16 %v4158
  %v4489 = vunpack.c.h.b16 %v4158
  %v4490 = vunpack.c.l.b16 %v4159
  %v4491 = vunpack.c.h.b16 %v4159
  %v4492 = vunpack.c.l.b16 %v4160
  %v4493 = vunpack.c.h.b16 %v4160
  %v4494 = vunpack.c.l.b16 %v4161
  %v4495 = vunpack.c.h.b16 %v4161
  %v4496 = vunpack.c.l.b16 %v4162
  %v4497 = vunpack.c.h.b16 %v4162
  %v4498 = vunpack.c.l.b16 %v4163
  %v4499 = vunpack.c.h.b16 %v4163
  %v4500 = vunpack.c.l.b16 %v4164
  %v4501 = vunpack.c.h.b16 %v4164
  %v4502 = vunpack.c.l.b16 %v4165
  %v4503 = vunpack.c.h.b16 %v4165
  %v4504 = vunpack.c.l.b16 %v4166
  %v4505 = vunpack.c.h.b16 %v4166
  %v4506 = vunpack.c.l.b16 %v4167
  %v4507 = vunpack.c.h.b16 %v4167
  %v4508 = vunpack.c.l.b16 %v4168
  %v4509 = vunpack.c.h.b16 %v4168
  %v4510 = vunpack.c.l.b16 %v4169
  %v4511 = vunpack.c.h.b16 %v4169
  %v4512 = vunpack.c.l.b16 %v4170
  %v4513 = vunpack.c.h.b16 %v4170
  %v4514 = vunpack.c.l.b16 %v4171
  %v4515 = vunpack.c.h.b16 %v4171
  %v4516 = vunpack.c.l.b16 %v4172
  %v4517 = vunpack.c.h.b16 %v4172
  %v4518 = vunpack.c.l.b16 %v4173
  %v4519 = vunpack.c.h.b16 %v4173
  %v4520 = vunpack.c.l.b16 %v4174
  %v4521 = vunpack.c.h.b16 %v4174
  %v4522 = vunpack.c.l.b16 %v4175
  %v4523 = vunpack.c.h.b16 %v4175
  %v4524 = vunpack.c.l.b16 %v4176
  %v4525 = vunpack.c.h.b16 %v4176
  %v4526 = vunpack.c.l.b16 %v4177
  %v4527 = vunpack.c.h.b16 %v4177
  %v4528 = vunpack.c.l.b16 %v4178
  %v4529 = vunpack.c.h.b16 %v4178
  %v4530 = vunpack.c.l.b16 %v4179
  %v4531 = vunpack.c.h.b16 %v4179
  %v4532 = vunpack.c.l.b16 %v4180
  %v4533 = vunpack.c.h.b16 %v4180
  %v4534 = vunpack.c.l.b16 %v4181
  %v4535 = vunpack.c.h.b16 %v4181
  %v4536 = vunpack.c.l.b16 %v4182
  %v4537 = vunpack.c.h.b16 %v4182
  %v4538 = vunpack.c.l.b16 %v4183
  %v4539 = vunpack.c.h.b16 %v4183
  %v4540 = vunpack.c.l.b16 %v4184
  %v4541 = vunpack.c.h.b16 %v4184
  %v4542 = vunpack.c.l.b16 %v4185
  %v4543 = vunpack.c.h.b16 %v4185
  %v4544 = vunpack.c.l.b16 %v4186
  %v4545 = vunpack.c.h.b16 %v4186
  %v4546 = vunpack.c.l.b16 %v4187
  %v4547 = vunpack.c.h.b16 %v4187
  %v4548 = vunpack.c.l.b16 %v4188
  %v4549 = vunpack.c.h.b16 %v4188
  %v4550 = vunpack.c.l.b16 %v4189
  %v4551 = vunpack.c.h.b16 %v4189
  %v4552 = vunpack.c.l.b16 %v4190
  %v4553 = vunpack.c.h.b16 %v4190
  %v4554 = vunpack.c.l.b16 %v4191
  %v4555 = vunpack.c.h.b16 %v4191
  %v4556 = vunpack.c.l.b16 %v4192
  %v4557 = vunpack.c.h.b16 %v4192
  %v4558 = vunpack.c.l.b16 %v4193
  %v4559 = vunpack.c.h.b16 %v4193
  %v4560 = vunpack.c.l.b16 %v4194
  %v4561 = vunpack.c.h.b16 %v4194
  %v4562 = vunpack.c.l.b16 %v4195
  %v4563 = vunpack.c.h.b16 %v4195
  %v4564 = vunpack.c.l.b16 %v4196
  %v4565 = vunpack.c.h.b16 %v4196
  %v4566 = vunpack.c.l.b16 %v4197
  %v4567 = vunpack.c.h.b16 %v4197
  %v4568 = vunpack.c.l.b16 %v4198
  %v4569 = vunpack.c.h.b16 %v4198
  %v4570 = vunpack.c.l.b16 %v4199
  %v4571 = vunpack.c.h.b16 %v4199
  %v4572 = vunpack.c.l.b16 %v4200
  %v4573 = vunpack.c.h.b16 %v4200
  %v4574 = vunpack.c.l.b16 %v4201
  %v4575 = vunpack.c.h.b16 %v4201
  %v4576 = vunpack.c.l.b16 %v4202
  %v4577 = vunpack.c.h.b16 %v4202
  %v4578 = vunpack.c.l.b16 %v4203
  %v4579 = vunpack.c.h.b16 %v4203
  %v4580 = vunpack.c.l.b16 %v4204
  %v4581 = vunpack.c.h.b16 %v4204
  %v4582 = vunpack.c.l.b16 %v4205
  %v4583 = vunpack.c.h.b16 %v4205
  %v4584 = vunpack.c.l.b16 %v4206
  %v4585 = vunpack.c.h.b16 %v4206
  %v4586 = vunpack.c.l.b16 %v4207
  %v4587 = vunpack.c.h.b16 %v4207
  %v4588 = vunpack.c.l.b16 %v4208
  %v4589 = vunpack.c.h.b16 %v4208
  %v4590 = vunpack.c.l.b16 %v4209
  %v4591 = vunpack.c.h.b16 %v4209
  %v4592 = vunpack.c.l.b16 %v4210
  %v4593 = vunpack.c.h.b16 %v4210
  %v4594 = vunpack.c.l.b16 %v4211
  %v4595 = vunpack.c.h.b16 %v4211
  %v4596 = vunpack.c.l.b16 %v4212
  %v4597 = vunpack.c.h.b16 %v4212
  %v4598 = vunpack.c.l.b16 %v4213
  %v4599 = vunpack.c.h.b16 %v4213
  %v4600 = vunpack.c.l.b16 %v4214
  %v4601 = vunpack.c.h.b16 %v4214
  %v4602 = vunpack.c.l.b16 %v4215
  %v4603 = vunpack.c.h.b16 %v4215
  %v4604 = vunpack.c.l.b16 %v4216
  %v4605 = vunpack.c.h.b16 %v4216
  %v4606 = vunpack.c.l.b16 %v4217
  %v4607 = vunpack.c.h.b16 %v4217
  %v4608 = vunpack.c.l.b16 %v4218
  %v4609 = vunpack.c.h.b16 %v4218
  %v4610 = vunpack.c.l.b16 %v4219
  %v4611 = vunpack.c.h.b16 %v4219
  %v4612 = vunpack.c.l.b16 %v4220
  %v4613 = vunpack.c.h.b16 %v4220
  %v4614 = vunpack.c.l.b16 %v4221
  %v4615 = vunpack.c.h.b16 %v4221
  %v4616 = vunpack.c.l.b16 %v4222
  %v4617 = vunpack.c.h.b16 %v4222
  %v4618 = vunpack.c.l.b16 %v4223
  %v4619 = vunpack.c.h.b16 %v4223
  %v4620 = vunpack.c.l.b16 %v4224
  %v4621 = vunpack.c.h.b16 %v4224
  %v4622 = vunpack.c.l.b16 %v4225
  %v4623 = vunpack.c.h.b16 %v4225
  %v4624 = vunpack.c.l.b16 %v4226
  %v4625 = vunpack.c.h.b16 %v4226
  %v4626 = vunpack.c.l.b16 %v4227
  %v4627 = vunpack.c.h.b16 %v4227
  %v4628 = vpack.c.b16 %v4376, %v4372
  %v4629 = vpack.c.b16 %v4377, %v4373
  %v4630 = vpack.c.b16 %v4378, %v4374
  %v4631 = vpack.c.b16 %v4379, %v4375
  %v4632 = vpack.c.b16 %v4384, %v4380
  %v4633 = vpack.c.b16 %v4385, %v4381
  %v4634 = vpack.c.b16 %v4386, %v4382
  %v4635 = vpack.c.b16 %v4387, %v4383
  %v4636 = vpack.c.b16 %v4392, %v4388
  %v4637 = vpack.c.b16 %v4393, %v4389
  %v4638 = vpack.c.b16 %v4394, %v4390
  %v4639 = vpack.c.b16 %v4395, %v4391
  %v4640 = vpack.c.b16 %v4400, %v4396
  %v4641 = vpack.c.b16 %v4401, %v4397
  %v4642 = vpack.c.b16 %v4402, %v4398
  %v4643 = vpack.c.b16 %v4403, %v4399
  %v4644 = vpack.c.b16 %v4408, %v4404
  %v4645 = vpack.c.b16 %v4409, %v4405
  %v4646 = vpack.c.b16 %v4410, %v4406
  %v4647 = vpack.c.b16 %v4411, %v4407
  %v4648 = vpack.c.b16 %v4416, %v4412
  %v4649 = vpack.c.b16 %v4417, %v4413
  %v4650 = vpack.c.b16 %v4418, %v4414
  %v4651 = vpack.c.b16 %v4419, %v4415
  %v4652 = vpack.c.b16 %v4424, %v4420
  %v4653 = vpack.c.b16 %v4425, %v4421
  %v4654 = vpack.c.b16 %v4426, %v4422
  %v4655 = vpack.c.b16 %v4427, %v4423
  %v4656 = vpack.c.b16 %v4432, %v4428
  %v4657 = vpack.c.b16 %v4433, %v4429
  %v4658 = vpack.c.b16 %v4434, %v4430
  %v4659 = vpack.c.b16 %v4435, %v4431
  %v4660 = vpack.c.b16 %v4440, %v4436
  %v4661 = vpack.c.b16 %v4441, %v4437
  %v4662 = vpack.c.b16 %v4442, %v4438
  %v4663 = vpack.c.b16 %v4443, %v4439
  %v4664 = vpack.c.b16 %v4448, %v4444
  %v4665 = vpack.c.b16 %v4449, %v4445
  %v4666 = vpack.c.b16 %v4450, %v4446
  %v4667 = vpack.c.b16 %v4451, %v4447
  %v4668 = vpack.c.b16 %v4456, %v4452
  %v4669 = vpack.c.b16 %v4457, %v4453
  %v4670 = vpack.c.b16 %v4458, %v4454
  %v4671 = vpack.c.b16 %v4459, %v4455
  %v4672 = vpack.c.b16 %v4464, %v4460
  %v4673 = vpack.c.b16 %v4465, %v4461
  %v4674 = vpack.c.b16 %v4466, %v4462
  %v4675 = vpack.c.b16 %v4467, %v4463
  %v4676 = vpack.c.b16 %v4472, %v4468
  %v4677 = vpack.c.b16 %v4473, %v4469
  %v4678 = vpack.c.b16 %v4474, %v4470
  %v4679 = vpack.c.b16 %v4475, %v4471
  %v4680 = vpack.c.b16 %v4480, %v4476
  %v4681 = vpack.c.b16 %v4481, %v4477
  %v4682 = vpack.c.b16 %v4482, %v4478
  %v4683 = vpack.c.b16 %v4483, %v4479
  %v4684 = vpack.c.b16 %v4488, %v4484
  %v4685 = vpack.c.b16 %v4489, %v4485
  %v4686 = vpack.c.b16 %v4490, %v4486
  %v4687 = vpack.c.b16 %v4491, %v4487
  %v4688 = vpack.c.b16 %v4496, %v4492
  %v4689 = vpack.c.b16 %v4497, %v4493
  %v4690 = vpack.c.b16 %v4498, %v4494
  %v4691 = vpack.c.b16 %v4499, %v4495
  %v4692 = vpack.c.b16 %v4504, %v4500
  %v4693 = vpack.c.b16 %v4505, %v4501
  %v4694 = vpack.c.b16 %v4506, %v4502
  %v4695 = vpack.c.b16 %v4507, %v4503
  %v4696 = vpack.c.b16 %v4512, %v4508
  %v4697 = vpack.c.b16 %v4513, %v4509
  %v4698 = vpack.c.b16 %v4514, %v4510
  %v4699 = vpack.c.b16 %v4515, %v4511
  %v4700 = vpack.c.b16 %v4520, %v4516
  %v4701 = vpack.c.b16 %v4521, %v4517
  %v4702 = vpack.c.b16 %v4522, %v4518
  %v4703 = vpack.c.b16 %v4523, %v4519
  %v4704 = vpack.c.b16 %v4528, %v4524
  %v4705 = vpack.c.b16 %v4529, %v4525
  %v4706 = vpack.c.b16 %v4530, %v4526
  %v4707 = vpack.c.b16 %v4531, %v4527
  %v4708 = vpack.c.b16 %v4536, %v4532
  %v4709 = vpack.c.b16 %v4537, %v4533
  %v4710 = vpack.c.b16 %v4538, %v4534
  %v4711 = vpack.c.b16 %v4539, %v4535
  %v4712 = vpack.c.b16 %v4544, %v4540
  %v4713 = vpack.c.b16 %v4545, %v4541
  %v4714 = vpack.c.b16 %v4546, %v4542
  %v4715 = vpack.c.b16 %v4547, %v4543
  %v4716 = vpack.c.b16 %v4552, %v4548
  %v4717 = vpack.c.b16 %v4553, %v4549
  %v4718 = vpack.c.b16 %v4554, %v4550
  %v4719 = vpack.c.b16 %v4555, %v4551
  %v4720 = vpack.c.b16 %v4560, %v4556
  %v4721 = vpack.c.b16 %v4561, %v4557
  %v4722 = vpack.c.b16 %v4562, %v4558
  %v4723 = vpack.c.b16 %v4563, %v4559
  %v4724 = vpack.c.b16 %v4568, %v4564
  %v4725 = vpack.c.b16 %v4569, %v4565
  %v4726 = vpack.c.b16 %v4570, %v4566
  %v4727 = vpack.c.b16 %v4571, %v4567
  %v4728 = vpack.c.b16 %v4576, %v4572
  %v4729 = vpack.c.b16 %v4577, %v4573
  %v4730 = vpack.c.b16 %v4578, %v4574
  %v4731 = vpack.c.b16 %v4579, %v4575
  %v4732 = vpack.c.b16 %v4584, %v4580
  %v4733 = vpack.c.b16 %v4585, %v4581
  %v4734 = vpack.c.b16 %v4586, %v4582
  %v4735 = vpack.c.b16 %v4587, %v4583
  %v4736 = vpack.c.b16 %v4592, %v4588
  %v4737 = vpack.c.b16 %v4593, %v4589
  %v4738 = vpack.c.b16 %v4594, %v4590
  %v4739 = vpack.c.b16 %v4595, %v4591
  %v4740 = vpack.c.b16 %v4600, %v4596
  %v4741 = vpack.c.b16 %v4601, %v4597
  %v4742 = vpack.c.b16 %v4602, %v4598
  %v4743 = vpack.c.b16 %v4603, %v4599
  %v4744 = vpack.c.b16 %v4608, %v4604
  %v4745 = vpack.c.b16 %v4609, %v4605
  %v4746 = vpack.c.b16 %v4610, %v4606
  %v4747 = vpack.c.b16 %v4611, %v4607
  %v4748 = vpack.c.b16 %v4616, %v4612
  %v4749 = vpack.c.b16 %v4617, %v4613
  %v4750 = vpack.c.b16 %v4618, %v4614
  %v4751 = vpack.c.b16 %v4619, %v4615
  %v4752 = vpack.c.b16 %v4624, %v4620
  %v4753 = vpack.c.b16 %v4625, %v4621
  %v4754 = vpack.c.b16 %v4626, %v4622
  %v4755 = vpack.c.b16 %v4627, %v4623
  %4884 = vmatprep.subr.bf16.mxu0 %v4629
  %4885 = vmatpush1.bf16.msra.mxu0 %v4628
  %4886 = vmatprep.subr.bf16.mxu0 %v4633
  %4887 = vmatpush1.bf16.msra.mxu0 %v4632
  %4888 = vmatprep.subr.bf16.mxu0 %v4637
  %4889 = vmatpush1.bf16.msra.mxu0 %v4636
  %4890 = vmatprep.subr.bf16.mxu0 %v4641
  %4891 = vmatpush1.bf16.msra.mxu0 %v4640
  %4892 = vmatprep.subr.bf16.mxu0 %v4645
  %4893 = vmatpush1.bf16.msra.mxu0 %v4644
  %4894 = vmatprep.subr.bf16.mxu0 %v4649
  %4895 = vmatpush1.bf16.msra.mxu0 %v4648
  %4896 = vmatprep.subr.bf16.mxu0 %v4653
  %4897 = vmatpush1.bf16.msra.mxu0 %v4652
  %4898 = vmatprep.subr.bf16.mxu0 %v4657
  %4899 = vmatpush1.bf16.msra.mxu0 %v4656
  %4900 = vmatprep.subr.bf16.mxu0 %v4661
  %4901 = vmatpush1.bf16.msra.mxu0 %v4660
  %4902 = vmatprep.subr.bf16.mxu0 %v4665
  %4903 = vmatpush1.bf16.msra.mxu0 %v4664
  %4904 = vmatprep.subr.bf16.mxu0 %v4669
  %4905 = vmatpush1.bf16.msra.mxu0 %v4668
  %4906 = vmatprep.subr.bf16.mxu0 %v4673
  %4907 = vmatpush1.bf16.msra.mxu0 %v4672
  %4908 = vmatprep.subr.bf16.mxu0 %v4677
  %4909 = vmatpush1.bf16.msra.mxu0 %v4676
  %4910 = vmatprep.subr.bf16.mxu0 %v4681
  %4911 = vmatpush1.bf16.msra.mxu0 %v4680
  %4912 = vmatprep.subr.bf16.mxu0 %v4685
  %4913 = vmatpush1.bf16.msra.mxu0 %v4684
  %4914 = vmatprep.subr.bf16.mxu0 %v4689
  %4915 = vmatpush1.bf16.msra.mxu0 %v4688
  %4916 = vmatprep.mubr.bf16.mxu0 %v4093
  %4917 = vmatmul.mubr.bf16.gmra.mrb[0].mxu0 %v4092
  %v4918 = vpop.f32.mrb[0].mxu0
  %v4919 = vadd.f32 %v4231, %v4918
  %v4920 = vpop.f32.mrb[0].mxu0
  %v4921 = vadd.f32 %v4235, %v4920
  %v4922 = vpop.f32.mrb[0].mxu0
  %v4923 = vadd.f32 %v4231, %v4922
  %v4924 = vpop.f32.mrb[0].mxu0
  %v4925 = vadd.f32 %v4235, %v4924
  %4926 = vmatprep.mubr.bf16.mxu0 %v4097
  %4927 = vmatmul.mubr.bf16.gmra.mrb[0].mxu0 %v4096
  %v4928 = vpop.f32.mrb[0].mxu0
  %v4929 = vadd.f32 %v4231, %v4928
  %v4930 = vpop.f32.mrb[0].mxu0
  %v4931 = vadd.f32 %v4235, %v4930
  %v4932 = vpop.f32.mrb[0].mxu0
  %v4933 = vadd.f32 %v4231, %v4932
  %v4934 = vpop.f32.mrb[0].mxu0
  %v4935 = vadd.f32 %v4235, %v4934
  %4936 = vdwg.mxu0
  %4937 = vmatprep.subr.bf16.mxu0 %v4693
  %4938 = vmatpush1.bf16.msra.mxu0 %v4692
  %4939 = vmatprep.subr.bf16.mxu0 %v4697
  %4940 = vmatpush1.bf16.msra.mxu0 %v4696
  %4941 = vmatprep.subr.bf16.mxu0 %v4701
  %4942 = vmatpush1.bf16.msra.mxu0 %v4700
  %4943 = vmatprep.subr.bf16.mxu0 %v4705
  %4944 = vmatpush1.bf16.msra.mxu0 %v4704
  %4945 = vmatprep.subr.bf16.mxu0 %v4709
  %4946 = vmatpush1.bf16.msra.mxu0 %v4708
  %4947 = vmatprep.subr.bf16.mxu0 %v4713
  %4948 = vmatpush1.bf16.msra.mxu0 %v4712
  %4949 = vmatprep.subr.bf16.mxu0 %v4717
  %4950 = vmatpush1.bf16.msra.mxu0 %v4716
  %4951 = vmatprep.subr.bf16.mxu0 %v4721
  %4952 = vmatpush1.bf16.msra.mxu0 %v4720
  %4953 = vmatprep.subr.bf16.mxu0 %v4725
  %4954 = vmatpush1.bf16.msra.mxu0 %v4724
  %4955 = vmatprep.subr.bf16.mxu0 %v4729
  %4956 = vmatpush1.bf16.msra.mxu0 %v4728
  %4957 = vmatprep.subr.bf16.mxu0 %v4733
  %4958 = vmatpush1.bf16.msra.mxu0 %v4732
  %4959 = vmatprep.subr.bf16.mxu0 %v4737
  %4960 = vmatpush1.bf16.msra.mxu0 %v4736
  %4961 = vmatprep.subr.bf16.mxu0 %v4741
  %4962 = vmatpush1.bf16.msra.mxu0 %v4740
  %4963 = vmatprep.subr.bf16.mxu0 %v4745
  %4964 = vmatpush1.bf16.msra.mxu0 %v4744
  %4965 = vmatprep.subr.bf16.mxu0 %v4749
  %4966 = vmatpush1.bf16.msra.mxu0 %v4748
  %4967 = vmatprep.subr.bf16.mxu0 %v4753
  %4968 = vmatpush1.bf16.msra.mxu0 %v4752
  %4969 = vmatprep.mubr.bf16.mxu0 %v4095
  %4970 = vmatmul.mubr.bf16.gmra.mrb[0].mxu0 %v4094
  %v4971 = vpop.f32.mrb[0].mxu0
  %v4972 = vadd.f32 %v4919, %v4971
  %v4973 = vpop.f32.mrb[0].mxu0
  %v4974 = vadd.f32 %v4921, %v4973
  %v4975 = vpop.f32.mrb[0].mxu0
  %v4976 = vadd.f32 %v4923, %v4975
  %v4977 = vpop.f32.mrb[0].mxu0
  %v4978 = vadd.f32 %v4925, %v4977
  %4979 = vmatprep.mubr.bf16.mxu0 %v4099
  %4980 = vmatmul.mubr.bf16.gmra.mrb[0].mxu0 %v4098
  %v4981 = vpop.f32.mrb[0].mxu0
  %v4982 = vadd.f32 %v4929, %v4981
  %v4983 = vpop.f32.mrb[0].mxu0
  %v4984 = vadd.f32 %v4931, %v4983
  %v4985 = vpop.f32.mrb[0].mxu0
  %v4986 = vadd.f32 %v4933, %v4985
  %v4987 = vpop.f32.mrb[0].mxu0
  %v4988 = vadd.f32 %v4935, %v4987
  %4989 = vdwg.mxu0
  %4990 = vmatprep.subr.bf16.mxu0 %v4631
  %4991 = vmatpush1.bf16.msra.mxu0 %v4630
  %4992 = vmatprep.subr.bf16.mxu0 %v4635
  %4993 = vmatpush1.bf16.msra.mxu0 %v4634
  %4994 = vmatprep.subr.bf16.mxu0 %v4639
  %4995 = vmatpush1.bf16.msra.mxu0 %v4638
  %4996 = vmatprep.subr.bf16.mxu0 %v4643
  %4997 = vmatpush1.bf16.msra.mxu0 %v4642
  %4998 = vmatprep.subr.bf16.mxu0 %v4647
  %4999 = vmatpush1.bf16.msra.mxu0 %v4646
  %5000 = vmatprep.subr.bf16.mxu0 %v4651
  %5001 = vmatpush1.bf16.msra.mxu0 %v4650
  %5002 = vmatprep.subr.bf16.mxu0 %v4655
  %5003 = vmatpush1.bf16.msra.mxu0 %v4654
  %5004 = vmatprep.subr.bf16.mxu0 %v4659
  %5005 = vmatpush1.bf16.msra.mxu0 %v4658
  %5006 = vmatprep.subr.bf16.mxu0 %v4663
  %5007 = vmatpush1.bf16.msra.mxu0 %v4662
  %5008 = vmatprep.subr.bf16.mxu0 %v4667
  %5009 = vmatpush1.bf16.msra.mxu0 %v4666
  %5010 = vmatprep.subr.bf16.mxu0 %v4671
  %5011 = vmatpush1.bf16.msra.mxu0 %v4670
  %5012 = vmatprep.subr.bf16.mxu0 %v4675
  %5013 = vmatpush1.bf16.msra.mxu0 %v4674
  %5014 = vmatprep.subr.bf16.mxu0 %v4679
  %5015 = vmatpush1.bf16.msra.mxu0 %v4678
  %5016 = vmatprep.subr.bf16.mxu0 %v4683
  %5017 = vmatpush1.bf16.msra.mxu0 %v4682
  %5018 = vmatprep.subr.bf16.mxu0 %v4687
  %5019 = vmatpush1.bf16.msra.mxu0 %v4686
  %5020 = vmatprep.subr.bf16.mxu0 %v4691
  %5021 = vmatpush1.bf16.msra.mxu0 %v4690
  %5022 = vmatprep.mubr.bf16.mxu0 %v4093
  %5023 = vmatmul.mubr.bf16.gmra.mrb[0].mxu0 %v4092
  %v5024 = vpop.f32.mrb[0].mxu0
  %v5025 = vadd.f32 %v4239, %v5024
  %v5026 = vpop.f32.mrb[0].mxu0
  %v5027 = vadd.f32 %v4243, %v5026
  %v5028 = vpop.f32.mrb[0].mxu0
  %v5029 = vadd.f32 %v4239, %v5028
  %v5030 = vpop.f32.mrb[0].mxu0
  %v5031 = vadd.f32 %v4243, %v5030
  %5032 = vmatprep.mubr.bf16.mxu0 %v4097
  %5033 = vmatmul.mubr.bf16.gmra.mrb[0].mxu0 %v4096
  %v5034 = vpop.f32.mrb[0].mxu0
  %v5035 = vadd.f32 %v4239, %v5034
  %v5036 = vpop.f32.mrb[0].mxu0
  %v5037 = vadd.f32 %v4243, %v5036
  %v5038 = vpop.f32.mrb[0].mxu0
  %v5039 = vadd.f32 %v4239, %v5038
  %v5040 = vpop.f32.mrb[0].mxu0
  %v5041 = vadd.f32 %v4243, %v5040
  %5042 = vdwg.mxu0
  %5043 = vmatprep.subr.bf16.mxu0 %v4695
  %5044 = vmatpush1.bf16.msra.mxu0 %v4694
  %5045 = vmatprep.subr.bf16.mxu0 %v4699
  %5046 = vmatpush1.bf16.msra.mxu0 %v4698
  %5047 = vmatprep.subr.bf16.mxu0 %v4703
  %5048 = vmatpush1.bf16.msra.mxu0 %v4702
  %5049 = vmatprep.subr.bf16.mxu0 %v4707
  %5050 = vmatpush1.bf16.msra.mxu0 %v4706
  %5051 = vmatprep.subr.bf16.mxu0 %v4711
  %5052 = vmatpush1.bf16.msra.mxu0 %v4710
  %5053 = vmatprep.subr.bf16.mxu0 %v4715
  %5054 = vmatpush1.bf16.msra.mxu0 %v4714
  %5055 = vmatprep.subr.bf16.mxu0 %v4719
  %5056 = vmatpush1.bf16.msra.mxu0 %v4718
  %5057 = vmatprep.subr.bf16.mxu0 %v4723
  %5058 = vmatpush1.bf16.msra.mxu0 %v4722
  %5059 = vmatprep.subr.bf16.mxu0 %v4727
  %5060 = vmatpush1.bf16.msra.mxu0 %v4726
  %5061 = vmatprep.subr.bf16.mxu0 %v4731
  %5062 = vmatpush1.bf16.msra.mxu0 %v4730
  %5063 = vmatprep.subr.bf16.mxu0 %v4735
  %5064 = vmatpush1.bf16.msra.mxu0 %v4734
  %5065 = vmatprep.subr.bf16.mxu0 %v4739
  %5066 = vmatpush1.bf16.msra.mxu0 %v4738
  %5067 = vmatprep.subr.bf16.mxu0 %v4743
  %5068 = vmatpush1.bf16.msra.mxu0 %v4742
  %5069 = vmatprep.subr.bf16.mxu0 %v4747
  %5070 = vmatpush1.bf16.msra.mxu0 %v4746
  %5071 = vmatprep.subr.bf16.mxu0 %v4751
  %5072 = vmatpush1.bf16.msra.mxu0 %v4750
  %5073 = vmatprep.subr.bf16.mxu0 %v4755
  %5074 = vmatpush1.bf16.msra.mxu0 %v4754
  %5075 = vmatprep.mubr.bf16.mxu0 %v4095
  %5076 = vmatmul.mubr.bf16.gmra.mrb[0].mxu0 %v4094
  %v5077 = vpop.f32.mrb[0].mxu0
  %v5078 = vadd.f32 %v5025, %v5077
  %v5079 = vpop.f32.mrb[0].mxu0
  %v5080 = vadd.f32 %v5027, %v5079
  %v5081 = vpop.f32.mrb[0].mxu0
  %v5082 = vadd.f32 %v5029, %v5081
  %v5083 = vpop.f32.mrb[0].mxu0
  %v5084 = vadd.f32 %v5031, %v5083
  %5085 = vmatprep.mubr.bf16.mxu0 %v4099
  %5086 = vmatmul.mubr.bf16.gmra.mrb[0].mxu0 %v4098
  %v5087 = vpop.f32.mrb[0].mxu0
  %v5088 = vadd.f32 %v5035, %v5087
  %v5089 = vpop.f32.mrb[0].mxu0
  %v5090 = vadd.f32 %v5037, %v5089
  %v5091 = vpop.f32.mrb[0].mxu0
  %v5092 = vadd.f32 %v5039, %v5091
  %v5093 = vpop.f32.mrb[0].mxu0
  %v5094 = vadd.f32 %v5041, %v5093
  %5095 = vdwg.mxu0
  %v5096 = vadd.f32 %v4972, %v4076
  %v5097 = vadd.f32 %v4974, %v4077
  %v5098 = vadd.f32 %v5078, %v4078
  %v5099 = vadd.f32 %v5080, %v4079
  %v5100 = vadd.f32 %v4976, %v4080
  %v5101 = vadd.f32 %v4978, %v4081
  %v5102 = vadd.f32 %v5082, %v4082
  %v5103 = vadd.f32 %v5084, %v4083
  %v5104 = vadd.f32 %v4982, %v4084
  %v5105 = vadd.f32 %v4984, %v4085
  %v5106 = vadd.f32 %v5088, %v4086
  %v5107 = vadd.f32 %v5090, %v4087
  %v5108 = vadd.f32 %v4986, %v4088
  %v5109 = vadd.f32 %v4988, %v4089
  %v5110 = vadd.f32 %v5092, %v4090
  %v5111 = vadd.f32 %v5094, %v4091
  %v5112 = vadd.f32 %v5096, %v5097
  %v5113 = vadd.f32 %v5112, %v5098
  %v5114 = vadd.f32 %v5113, %v5099
  %5115 = vadd.xlane.f32.xlu0 %v5114
  %v5116 = vpop.xlane.xlu0 %5115
  %v5117 = vadd.f32 %v5100, %v5101
  %v5118 = vadd.f32 %v5117, %v5102
  %v5119 = vadd.f32 %v5118, %v5103
  %5120 = vadd.xlane.f32.xlu0 %v5119
  %v5121 = vpop.xlane.xlu0 %5120
  %v5122 = vadd.f32 %v5104, %v5105
  %v5123 = vadd.f32 %v5122, %v5106
  %v5124 = vadd.f32 %v5123, %v5107
  %5125 = vadd.xlane.f32.xlu0 %v5124
  %v5126 = vpop.xlane.xlu0 %5125
  %v5127 = vadd.f32 %v5108, %v5109
  %v5128 = vadd.f32 %v5127, %v5110
  %v5129 = vadd.f32 %v5128, %v5111
  %5130 = vadd.xlane.f32.xlu0 %v5129
  %v5131 = vpop.xlane.xlu0 %5130
  %v5132 = vmul.f32 %v5116, %v3943
  %v5133 = vmul.f32 %v5121, %v3943
  %v5134 = vmul.f32 %v5126, %v3943
  %v5135 = vmul.f32 %v5131, %v3943
  %v5136 = vsub.f32 %v5096, %v5132
  %v5137 = vsub.f32 %v5097, %v5132
  %v5138 = vsub.f32 %v5098, %v5132
  %v5139 = vsub.f32 %v5099, %v5132
  %v5140 = vsub.f32 %v5100, %v5133
  %v5141 = vsub.f32 %v5101, %v5133
  %v5142 = vsub.f32 %v5102, %v5133
  %v5143 = vsub.f32 %v5103, %v5133
  %v5144 = vsub.f32 %v5104, %v5134
  %v5145 = vsub.f32 %v5105, %v5134
  %v5146 = vsub.f32 %v5106, %v5134
  %v5147 = vsub.f32 %v5107, %v5134
  %v5148 = vsub.f32 %v5108, %v5135
  %v5149 = vsub.f32 %v5109, %v5135
  %v5150 = vsub.f32 %v5110, %v5135
  %v5151 = vsub.f32 %v5111, %v5135
  %v5152 = vmul.f32 %v5136, %v5136
  %v5153 = vmul.f32 %v5137, %v5137
  %v5154 = vmul.f32 %v5138, %v5138
  %v5155 = vmul.f32 %v5139, %v5139
  %v5156 = vmul.f32 %v5140, %v5140
  %v5157 = vmul.f32 %v5141, %v5141
  %v5158 = vmul.f32 %v5142, %v5142
  %v5159 = vmul.f32 %v5143, %v5143
  %v5160 = vmul.f32 %v5144, %v5144
  %v5161 = vmul.f32 %v5145, %v5145
  %v5162 = vmul.f32 %v5146, %v5146
  %v5163 = vmul.f32 %v5147, %v5147
  %v5164 = vmul.f32 %v5148, %v5148
  %v5165 = vmul.f32 %v5149, %v5149
  %v5166 = vmul.f32 %v5150, %v5150
  %v5167 = vmul.f32 %v5151, %v5151
  %v5168 = vadd.f32 %v5152, %v5153
  %v5169 = vadd.f32 %v5168, %v5154
  %v5170 = vadd.f32 %v5169, %v5155
  %5171 = vadd.xlane.f32.xlu0 %v5170
  %v5172 = vpop.xlane.xlu0 %5171
  %v5173 = vadd.f32 %v5156, %v5157
  %v5174 = vadd.f32 %v5173, %v5158
  %v5175 = vadd.f32 %v5174, %v5159
  %5176 = vadd.xlane.f32.xlu0 %v5175
  %v5177 = vpop.xlane.xlu0 %5176
  %v5178 = vadd.f32 %v5160, %v5161
  %v5179 = vadd.f32 %v5178, %v5162
  %v5180 = vadd.f32 %v5179, %v5163
  %5181 = vadd.xlane.f32.xlu0 %v5180
  %v5182 = vpop.xlane.xlu0 %5181
  %v5183 = vadd.f32 %v5164, %v5165
  %v5184 = vadd.f32 %v5183, %v5166
  %v5185 = vadd.f32 %v5184, %v5167
  %5186 = vadd.xlane.f32.xlu0 %v5185
  %v5187 = vpop.xlane.xlu0 %5186
  %v5188 = vmul.f32 %v5172, %v3943
  %v5189 = vmul.f32 %v5177, %v3943
  %v5190 = vmul.f32 %v5182, %v3943
  %v5191 = vmul.f32 %v5187, %v3943
  %v5192 = vadd.f32 %v5188, 1e-05
  %v5193 = vadd.f32 %v5189, 1e-05
  %v5194 = vadd.f32 %v5190, 1e-05
  %v5195 = vadd.f32 %v5191, 1e-05
  %v5196 = vrsqrt.pop %v5192
  %v5197 = vrsqrt.pop %v5193
  %v5198 = vrsqrt.pop %v5194
  %v5199 = vrsqrt.pop %v5195
  %v5200 = vmul.f32 %v5136, %v5196
  %v5201 = vmul.f32 %v5137, %v5196
  %v5202 = vmul.f32 %v5138, %v5196
  %v5203 = vmul.f32 %v5139, %v5196
  %v5204 = vmul.f32 %v5140, %v5197
  %v5205 = vmul.f32 %v5141, %v5197
  %v5206 = vmul.f32 %v5142, %v5197
  %v5207 = vmul.f32 %v5143, %v5197
  %v5208 = vmul.f32 %v5144, %v5198
  %v5209 = vmul.f32 %v5145, %v5198
  %v5210 = vmul.f32 %v5146, %v5198
  %v5211 = vmul.f32 %v5147, %v5198
  %v5212 = vmul.f32 %v5148, %v5199
  %v5213 = vmul.f32 %v5149, %v5199
  %v5214 = vmul.f32 %v5150, %v5199
  %v5215 = vmul.f32 %v5151, %v5199
  %v5216 = vlaneseq
  %v5217 = vshrl.u32 %v5216, 7
  %v5218 = vsub.s32 3, %v5217
  %v5219 = vrot.slane %v18, %v5218
  %v5220 = vlaneseq
  %v5221 = vshrl.u32 %v5220, 7
  %v5222 = vsub.s32 3, %v5221
  %v5223 = vrot.slane %v19, %v5222
  %v5224 = vlaneseq
  %v5225 = vshrl.u32 %v5224, 7
  %v5226 = vsub.s32 3, %v5225
  %v5227 = vrot.slane %v20, %v5226
  %v5228 = vlaneseq
  %v5229 = vshrl.u32 %v5228, 7
  %v5230 = vsub.s32 3, %v5229
  %v5231 = vrot.slane %v21, %v5230
  %v5232 = vmul.f32 %v5200, %v5219
  %v5233 = vmul.f32 %v5201, %v5223
  %v5234 = vmul.f32 %v5202, %v5227
  %v5235 = vmul.f32 %v5203, %v5231
  %v5236 = vmul.f32 %v5204, %v5219
  %v5237 = vmul.f32 %v5205, %v5223
  %v5238 = vmul.f32 %v5206, %v5227
  %v5239 = vmul.f32 %v5207, %v5231
  %v5240 = vmul.f32 %v5208, %v5219
  %v5241 = vmul.f32 %v5209, %v5223
  %v5242 = vmul.f32 %v5210, %v5227
  %v5243 = vmul.f32 %v5211, %v5231
  %v5244 = vmul.f32 %v5212, %v5219
  %v5245 = vmul.f32 %v5213, %v5223
  %v5246 = vmul.f32 %v5214, %v5227
  %v5247 = vmul.f32 %v5215, %v5231
  %v5248 = vlaneseq
  %v5249 = vshrl.u32 %v5248, 7
  %v5250 = vsub.s32 4, %v5249
  %v5251 = vrot.slane %v18, %v5250
  %v5252 = vlaneseq
  %v5253 = vshrl.u32 %v5252, 7
  %v5254 = vsub.s32 4, %v5253
  %v5255 = vrot.slane %v19, %v5254
  %v5256 = vlaneseq
  %v5257 = vshrl.u32 %v5256, 7
  %v5258 = vsub.s32 4, %v5257
  %v5259 = vrot.slane %v20, %v5258
  %v5260 = vlaneseq
  %v5261 = vshrl.u32 %v5260, 7
  %v5262 = vsub.s32 4, %v5261
  %v5263 = vrot.slane %v21, %v5262
  %v5264 = vadd.f32 %v5232, %v5251
  %v5265 = vadd.f32 %v5233, %v5255
  %v5266 = vadd.f32 %v5234, %v5259
  %v5267 = vadd.f32 %v5235, %v5263
  %v5268 = vadd.f32 %v5236, %v5251
  %v5269 = vadd.f32 %v5237, %v5255
  %v5270 = vadd.f32 %v5238, %v5259
  %v5271 = vadd.f32 %v5239, %v5263
  %v5272 = vadd.f32 %v5240, %v5251
  %v5273 = vadd.f32 %v5241, %v5255
  %v5274 = vadd.f32 %v5242, %v5259
  %v5275 = vadd.f32 %v5243, %v5263
  %v5276 = vadd.f32 %v5244, %v5251
  %v5277 = vadd.f32 %v5245, %v5255
  %v5278 = vadd.f32 %v5246, %v5259
  %v5279 = vadd.f32 %v5247, %v5263
  %5280 = vst [vmem:[%s4] sm:$0xff] %v5264
  %5281 = vst [vmem:[%s4 + $0x8] sm:$0xff] %v5265
  %5282 = vst [vmem:[%s4 + $0x10] sm:$0xff] %v5266
  %5283 = vst [vmem:[%s4 + $0x18] sm:$0xff] %v5267
  %5284 = vst [vmem:[%s4 + $0x20] sm:$0xff] %v5268
  %5285 = vst [vmem:[%s4 + $0x28] sm:$0xff] %v5269
  %5286 = vst [vmem:[%s4 + $0x30] sm:$0xff] %v5270
  %5287 = vst [vmem:[%s4 + $0x38] sm:$0xff] %v5271
  %5288 = vst [vmem:[%s4 + $0x40] sm:$0xff] %v5272
  %5289 = vst [vmem:[%s4 + $0x48] sm:$0xff] %v5273
  %5290 = vst [vmem:[%s4 + $0x50] sm:$0xff] %v5274
  %5291 = vst [vmem:[%s4 + $0x58] sm:$0xff] %v5275
  %5292 = vst [vmem:[%s4 + $0x60] sm:$0xff] %v5276
  %5293 = vst [vmem:[%s4 + $0x68] sm:$0xff] %v5277
  %5294 = vst [vmem:[%s4 + $0x70] sm:$0xff] %v5278
  %5295 = vst [vmem:[%s4 + $0x78] sm:$0xff] %v5279
  // Predicated region
  $region18: #{transformer_encoder_forward.2} parent=0 // pred_check
    _
  $region19: #{transformer_encoder_forward.2} parent=0 // pred_check_branch
    %5297 = sbr.rel (0) target = $region21
  $region20: #{transformer_encoder_forward.2} parent=0 // pred_region
    _
  $region21: #{transformer_encoder_forward.2} parent=0 // pred_fallthru
    _
  // Predicated region
  $region22: #{transformer_encoder_forward.2} parent=0 // pred_check
    _
  $region23: #{transformer_encoder_forward.2} parent=0 // pred_check_branch
    %5299 = sbr.rel (0) target = $region25
  $region24: #{transformer_encoder_forward.2} parent=0 // pred_region
    _
  $region25: #{transformer_encoder_forward.2} parent=0 // pred_fallthru
    _

// kernel: transformer_encoder_forward.3
$region0: #{transformer_encoder_forward.3}
  #allocation0 [shape = 'u32[]', space=smem, size = 0x4, offset = 0x4, fixed_abs, tag = 'smem constant byte address 0x4 - core index']
  #allocation1 [shape = 'u32[144,128]{1,0:T(1,128)}', space=vmem, size = 0x12000, scoped, tag = 'internal scratch']
  #allocation2 [shape = 'f32[32,512]{1,0:T(8,128)}', space=vmem, size = 0x10000, scoped, tag = 'scratch operand']
  %s0 = inlined_call_operand.vmem [shape: f32[2,16,512], index: 0, kind: input, shape index: {}]
  %s1 = inlined_call_operand.vmem [shape: bf16[512,1536], index: 1, kind: input, shape index: {}]
  %s2 = inlined_call_operand.vmem [shape: bf16[512,512], index: 2, kind: input, shape index: {}]
  %s3 = inlined_call_operand.vmem [shape: f32[8,512], index: 3, kind: input, shape index: {}]
  %s4 = inlined_call_operand.hbm [shape: f32[2,16,512], index: 4, kind: output, shape index: {}]
  %s5 = sld [smem:[#allocation0]]
  $region26: #{transformer_encoder_forward.3} parent=0
    _
  %s7 = ssub.s32 1, %s5
  %s8 = scalar_select 0, %s7, %s5
  $region1: #{transformer_encoder_forward.3} parent=0
    #allocation3 [shape = 'u8[65536]{0}', space=vmem, size = 0x10000, scoped, tag = 'output window, operand 0, single buffered']
    #allocation4 [shape = 's32[1]{0}', space=sflag, size = 0x4, scoped, tag = 'scoped memory for transformer_encoder_forward.3']
    %9 = vsyncpa [#allocation4], 0
    // Predicated region
    $region2: #{transformer_encoder_forward.3} parent=1 // pred_check
      _
    $region3: #{transformer_encoder_forward.3} parent=1 // pred_check_branch
      %11 = sbr.rel (0) target = $region5
    $region4: #{transformer_encoder_forward.3} parent=1 // pred_region
      _
    $region5: #{transformer_encoder_forward.3} parent=1 // pred_fallthru
      _
    // Predicated region
    $region6: #{transformer_encoder_forward.3} parent=1 // pred_check
      _
    $region7: #{transformer_encoder_forward.3} parent=1 // pred_check_branch
      %13 = sbr.rel (0) target = $region9
    $region8: #{transformer_encoder_forward.3} parent=1 // pred_region
      _
    $region9: #{transformer_encoder_forward.3} parent=1 // pred_fallthru
      _
    // Predicated region
    $region10: #{transformer_encoder_forward.3} parent=1 // pred_check
      _
    $region11: #{transformer_encoder_forward.3} parent=1 // pred_check_branch
      %15 = sbr.rel (0) target = $region13
    $region12: #{transformer_encoder_forward.3} parent=1 // pred_region
      _
    $region13: #{transformer_encoder_forward.3} parent=1 // pred_fallthru
      _
    // Predicated region
    $region14: #{transformer_encoder_forward.3} parent=1 // pred_check
      _
    $region15: #{transformer_encoder_forward.3} parent=1 // pred_check_branch
      %17 = sbr.rel (0) target = $region17
    $region16: #{transformer_encoder_forward.3} parent=1 // pred_region
      _
    $region17: #{transformer_encoder_forward.3} parent=1 // pred_fallthru
      _
    %v19 = vld [vmem:[%s3] sm:$0xff]
    %v20 = vld [vmem:[%s3 + $0x8] sm:$0xff]
    %v21 = vld [vmem:[%s3 + $0x10] sm:$0xff]
    %v22 = vld [vmem:[%s3 + $0x18] sm:$0xff]
    %v23 = vld [vmem:[%s0] sm:$0xff]
    %v24 = vld [vmem:[%s0 + $0x8] sm:$0xff]
    %v25 = vld [vmem:[%s0 + $0x10] sm:$0xff]
    %v26 = vld [vmem:[%s0 + $0x18] sm:$0xff]
    %v27 = vld [vmem:[%s0 + $0x20] sm:$0xff]
    %v28 = vld [vmem:[%s0 + $0x28] sm:$0xff]
    %v29 = vld [vmem:[%s0 + $0x30] sm:$0xff]
    %v30 = vld [vmem:[%s0 + $0x38] sm:$0xff]
    %v31 = vld [vmem:[%s0 + $0x40] sm:$0xff]
    %v32 = vld [vmem:[%s0 + $0x48] sm:$0xff]
    %v33 = vld [vmem:[%s0 + $0x50] sm:$0xff]
    %v34 = vld [vmem:[%s0 + $0x58] sm:$0xff]
    %v35 = vld [vmem:[%s0 + $0x60] sm:$0xff]
    %v36 = vld [vmem:[%s0 + $0x68] sm:$0xff]
    %v37 = vld [vmem:[%s0 + $0x70] sm:$0xff]
    %v38 = vld [vmem:[%s0 + $0x78] sm:$0xff]
    %v39 = vpack.c.bf16 %v27, %v23
    %v40 = vpack.c.bf16 %v28, %v24
    %v41 = vpack.c.bf16 %v29, %v25
    %v42 = vpack.c.bf16 %v30, %v26
    %v43 = vpack.c.bf16 %v35, %v31
    %v44 = vpack.c.bf16 %v36, %v32
    %v45 = vpack.c.bf16 %v37, %v33
    %v46 = vpack.c.bf16 %v38, %v34
    %v47 = vld [vmem:[%s1] sm:$0xff]
    %v48 = vld [vmem:[%s1 + $0x8] sm:$0xff]
    %v49 = vld [vmem:[%s1 + $0x10] sm:$0xff]
    %v50 = vld [vmem:[%s1 + $0x18] sm:$0xff]
    %v51 = vld [vmem:[%s1 + $0x20] sm:$0xff]
    %v52 = vld [vmem:[%s1 + $0x28] sm:$0xff]
    %v53 = vld [vmem:[%s1 + $0x30] sm:$0xff]
    %v54 = vld [vmem:[%s1 + $0x38] sm:$0xff]
    %v55 = vld [vmem:[%s1 + $0x40] sm:$0xff]
    %v56 = vld [vmem:[%s1 + $0x48] sm:$0xff]
    %v57 = vld [vmem:[%s1 + $0x50] sm:$0xff]
    %v58 = vld [vmem:[%s1 + $0x58] sm:$0xff]
    %v59 = vld [vmem:[%s1 + $0x60] sm:$0xff]
    %v60 = vld [vmem:[%s1 + $0x68] sm:$0xff]
    %v61 = vld [vmem:[%s1 + $0x70] sm:$0xff]
    %v62 = vld [vmem:[%s1 + $0x78] sm:$0xff]
    %v63 = vld [vmem:[%s1 + $0x80] sm:$0xff]
    %v64 = vld [vmem:[%s1 + $0x88] sm:$0xff]
    %v65 = vld [vmem:[%s1 + $0x90] sm:$0xff]
    %v66 = vld [vmem:[%s1 + $0x98] sm:$0xff]
    %v67 = vld [vmem:[%s1 + $0xa0] sm:$0xff]
    %v68 = vld [vmem:[%s1 + $0xa8] sm:$0xff]
    %v69 = vld [vmem:[%s1 + $0xb0] sm:$0xff]
    %v70 = vld [vmem:[%s1 + $0xb8] sm:$0xff]
    %v71 = vld [vmem:[%s1 + $0xc0] sm:$0xff]
    %v72 = vld [vmem:[%s1 + $0xc8] sm:$0xff]
    %v73 = vld [vmem:[%s1 + $0xd0] sm:$0xff]
    %v74 = vld [vmem:[%s1 + $0xd8] sm:$0xff]
    %v75 = vld [vmem:[%s1 + $0xe0] sm:$0xff]
    %v76 = vld [vmem:[%s1 + $0xe8] sm:$0xff]
    %v77 = vld [vmem:[%s1 + $0xf0] sm:$0xff]
    %v78 = vld [vmem:[%s1 + $0xf8] sm:$0xff]
    %v79 = vld [vmem:[%s1 + $0x100] sm:$0xff]
    %v80 = vld [vmem:[%s1 + $0x108] sm:$0xff]
    %v81 = vld [vmem:[%s1 + $0x110] sm:$0xff]
    %v82 = vld [vmem:[%s1 + $0x118] sm:$0xff]
    %v83 = vld [vmem:[%s1 + $0x120] sm:$0xff]
    %v84 = vld [vmem:[%s1 + $0x128] sm:$0xff]
    %v85 = vld [vmem:[%s1 + $0x130] sm:$0xff]
    %v86 = vld [vmem:[%s1 + $0x138] sm:$0xff]
    %v87 = vld [vmem:[%s1 + $0x140] sm:$0xff]
    %v88 = vld [vmem:[%s1 + $0x148] sm:$0xff]
    %v89 = vld [vmem:[%s1 + $0x150] sm:$0xff]
    %v90 = vld [vmem:[%s1 + $0x158] sm:$0xff]
    %v91 = vld [vmem:[%s1 + $0x160] sm:$0xff]
    %v92 = vld [vmem:[%s1 + $0x168] sm:$0xff]
    %v93 = vld [vmem:[%s1 + $0x170] sm:$0xff]
    %v94 = vld [vmem:[%s1 + $0x178] sm:$0xff]
    %v95 = vld [vmem:[%s1 + $0x180] sm:$0xff]
    %v96 = vld [vmem:[%s1 + $0x188] sm:$0xff]
    %v97 = vld [vmem:[%s1 + $0x190] sm:$0xff]
    %v98 = vld [vmem:[%s1 + $0x198] sm:$0xff]
    %v99 = vld [vmem:[%s1 + $0x1a0] sm:$0xff]
    %v100 = vld [vmem:[%s1 + $0x1a8] sm:$0xff]
    %v101 = vld [vmem:[%s1 + $0x1b0] sm:$0xff]
    %v102 = vld [vmem:[%s1 + $0x1b8] sm:$0xff]
    %v103 = vld [vmem:[%s1 + $0x1c0] sm:$0xff]
    %v104 = vld [vmem:[%s1 + $0x1c8] sm:$0xff]
    %v105 = vld [vmem:[%s1 + $0x1d0] sm:$0xff]
    %v106 = vld [vmem:[%s1 + $0x1d8] sm:$0xff]
    %v107 = vld [vmem:[%s1 + $0x1e0] sm:$0xff]
    %v108 = vld [vmem:[%s1 + $0x1e8] sm:$0xff]
    %v109 = vld [vmem:[%s1 + $0x1f0] sm:$0xff]
    %v110 = vld [vmem:[%s1 + $0x1f8] sm:$0xff]
    %v111 = vld [vmem:[%s1 + $0x200] sm:$0xff]
    %v112 = vld [vmem:[%s1 + $0x208] sm:$0xff]
    %v113 = vld [vmem:[%s1 + $0x210] sm:$0xff]
    %v114 = vld [vmem:[%s1 + $0x218] sm:$0xff]
    %v115 = vld [vmem:[%s1 + $0x220] sm:$0xff]
    %v116 = vld [vmem:[%s1 + $0x228] sm:$0xff]
    %v117 = vld [vmem:[%s1 + $0x230] sm:$0xff]
    %v118 = vld [vmem:[%s1 + $0x238] sm:$0xff]
    %v119 = vld [vmem:[%s1 + $0x240] sm:$0xff]
    %v120 = vld [vmem:[%s1 + $0x248] sm:$0xff]
    %v121 = vld [vmem:[%s1 + $0x250] sm:$0xff]
    %v122 = vld [vmem:[%s1 + $0x258] sm:$0xff]
    %v123 = vld [vmem:[%s1 + $0x260] sm:$0xff]
    %v124 = vld [vmem:[%s1 + $0x268] sm:$0xff]
    %v125 = vld [vmem:[%s1 + $0x270] sm:$0xff]
    %v126 = vld [vmem:[%s1 + $0x278] sm:$0xff]
    %v127 = vld [vmem:[%s1 + $0x280] sm:$0xff]
    %v128 = vld [vmem:[%s1 + $0x288] sm:$0xff]
    %v129 = vld [vmem:[%s1 + $0x290] sm:$0xff]
    %v130 = vld [vmem:[%s1 + $0x298] sm:$0xff]
    %v131 = vld [vmem:[%s1 + $0x2a0] sm:$0xff]
    %v132 = vld [vmem:[%s1 + $0x2a8] sm:$0xff]
    %v133 = vld [vmem:[%s1 + $0x2b0] sm:$0xff]
    %v134 = vld [vmem:[%s1 + $0x2b8] sm:$0xff]
    %v135 = vld [vmem:[%s1 + $0x2c0] sm:$0xff]
    %v136 = vld [vmem:[%s1 + $0x2c8] sm:$0xff]
    %v137 = vld [vmem:[%s1 + $0x2d0] sm:$0xff]
    %v138 = vld [vmem:[%s1 + $0x2d8] sm:$0xff]
    %v139 = vld [vmem:[%s1 + $0x2e0] sm:$0xff]
    %v140 = vld [vmem:[%s1 + $0x2e8] sm:$0xff]
    %v141 = vld [vmem:[%s1 + $0x2f0] sm:$0xff]
    %v142 = vld [vmem:[%s1 + $0x2f8] sm:$0xff]
    %v143 = vld [vmem:[%s1 + $0x300] sm:$0xff]
    %v144 = vld [vmem:[%s1 + $0x308] sm:$0xff]
    %v145 = vld [vmem:[%s1 + $0x310] sm:$0xff]
    %v146 = vld [vmem:[%s1 + $0x318] sm:$0xff]
    %v147 = vld [vmem:[%s1 + $0x320] sm:$0xff]
    %v148 = vld [vmem:[%s1 + $0x328] sm:$0xff]
    %v149 = vld [vmem:[%s1 + $0x330] sm:$0xff]
    %v150 = vld [vmem:[%s1 + $0x338] sm:$0xff]
    %v151 = vld [vmem:[%s1 + $0x340] sm:$0xff]
    %v152 = vld [vmem:[%s1 + $0x348] sm:$0xff]
    %v153 = vld [vmem:[%s1 + $0x350] sm:$0xff]
    %v154 = vld [vmem:[%s1 + $0x358] sm:$0xff]
    %v155 = vld [vmem:[%s1 + $0x360] sm:$0xff]
    %v156 = vld [vmem:[%s1 + $0x368] sm:$0xff]
    %v157 = vld [vmem:[%s1 + $0x370] sm:$0xff]
    %v158 = vld [vmem:[%s1 + $0x378] sm:$0xff]
    %v159 = vld [vmem:[%s1 + $0x380] sm:$0xff]
    %v160 = vld [vmem:[%s1 + $0x388] sm:$0xff]
    %v161 = vld [vmem:[%s1 + $0x390] sm:$0xff]
    %v162 = vld [vmem:[%s1 + $0x398] sm:$0xff]
    %v163 = vld [vmem:[%s1 + $0x3a0] sm:$0xff]
    %v164 = vld [vmem:[%s1 + $0x3a8] sm:$0xff]
    %v165 = vld [vmem:[%s1 + $0x3b0] sm:$0xff]
    %v166 = vld [vmem:[%s1 + $0x3b8] sm:$0xff]
    %v167 = vld [vmem:[%s1 + $0x3c0] sm:$0xff]
    %v168 = vld [vmem:[%s1 + $0x3c8] sm:$0xff]
    %v169 = vld [vmem:[%s1 + $0x3d0] sm:$0xff]
    %v170 = vld [vmem:[%s1 + $0x3d8] sm:$0xff]
    %v171 = vld [vmem:[%s1 + $0x3e0] sm:$0xff]
    %v172 = vld [vmem:[%s1 + $0x3e8] sm:$0xff]
    %v173 = vld [vmem:[%s1 + $0x3f0] sm:$0xff]
    %v174 = vld [vmem:[%s1 + $0x3f8] sm:$0xff]
    %v175 = vld [vmem:[%s1 + $0x400] sm:$0xff]
    %v176 = vld [vmem:[%s1 + $0x408] sm:$0xff]
    %v177 = vld [vmem:[%s1 + $0x410] sm:$0xff]
    %v178 = vld [vmem:[%s1 + $0x418] sm:$0xff]
    %v179 = vld [vmem:[%s1 + $0x420] sm:$0xff]
    %v180 = vld [vmem:[%s1 + $0x428] sm:$0xff]
    %v181 = vld [vmem:[%s1 + $0x430] sm:$0xff]
    %v182 = vld [vmem:[%s1 + $0x438] sm:$0xff]
    %v183 = vld [vmem:[%s1 + $0x440] sm:$0xff]
    %v184 = vld [vmem:[%s1 + $0x448] sm:$0xff]
    %v185 = vld [vmem:[%s1 + $0x450] sm:$0xff]
    %v186 = vld [vmem:[%s1 + $0x458] sm:$0xff]
    %v187 = vld [vmem:[%s1 + $0x460] sm:$0xff]
    %v188 = vld [vmem:[%s1 + $0x468] sm:$0xff]
    %v189 = vld [vmem:[%s1 + $0x470] sm:$0xff]
    %v190 = vld [vmem:[%s1 + $0x478] sm:$0xff]
    %v191 = vld [vmem:[%s1 + $0x480] sm:$0xff]
    %v192 = vld [vmem:[%s1 + $0x488] sm:$0xff]
    %v193 = vld [vmem:[%s1 + $0x490] sm:$0xff]
    %v194 = vld [vmem:[%s1 + $0x498] sm:$0xff]
    %v195 = vld [vmem:[%s1 + $0x4a0] sm:$0xff]
    %v196 = vld [vmem:[%s1 + $0x4a8] sm:$0xff]
    %v197 = vld [vmem:[%s1 + $0x4b0] sm:$0xff]
    %v198 = vld [vmem:[%s1 + $0x4b8] sm:$0xff]
    %v199 = vld [vmem:[%s1 + $0x4c0] sm:$0xff]
    %v200 = vld [vmem:[%s1 + $0x4c8] sm:$0xff]
    %v201 = vld [vmem:[%s1 + $0x4d0] sm:$0xff]
    %v202 = vld [vmem:[%s1 + $0x4d8] sm:$0xff]
    %v203 = vld [vmem:[%s1 + $0x4e0] sm:$0xff]
    %v204 = vld [vmem:[%s1 + $0x4e8] sm:$0xff]
    %v205 = vld [vmem:[%s1 + $0x4f0] sm:$0xff]
    %v206 = vld [vmem:[%s1 + $0x4f8] sm:$0xff]
    %v207 = vld [vmem:[%s1 + $0x500] sm:$0xff]
    %v208 = vld [vmem:[%s1 + $0x508] sm:$0xff]
    %v209 = vld [vmem:[%s1 + $0x510] sm:$0xff]
    %v210 = vld [vmem:[%s1 + $0x518] sm:$0xff]
    %v211 = vld [vmem:[%s1 + $0x520] sm:$0xff]
    %v212 = vld [vmem:[%s1 + $0x528] sm:$0xff]
    %v213 = vld [vmem:[%s1 + $0x530] sm:$0xff]
    %v214 = vld [vmem:[%s1 + $0x538] sm:$0xff]
    %v215 = vld [vmem:[%s1 + $0x540] sm:$0xff]
    %v216 = vld [vmem:[%s1 + $0x548] sm:$0xff]
    %v217 = vld [vmem:[%s1 + $0x550] sm:$0xff]
    %v218 = vld [vmem:[%s1 + $0x558] sm:$0xff]
    %v219 = vld [vmem:[%s1 + $0x560] sm:$0xff]
    %v220 = vld [vmem:[%s1 + $0x568] sm:$0xff]
    %v221 = vld [vmem:[%s1 + $0x570] sm:$0xff]
    %v222 = vld [vmem:[%s1 + $0x578] sm:$0xff]
    %v223 = vld [vmem:[%s1 + $0x580] sm:$0xff]
    %v224 = vld [vmem:[%s1 + $0x588] sm:$0xff]
    %v225 = vld [vmem:[%s1 + $0x590] sm:$0xff]
    %v226 = vld [vmem:[%s1 + $0x598] sm:$0xff]
    %v227 = vld [vmem:[%s1 + $0x5a0] sm:$0xff]
    %v228 = vld [vmem:[%s1 + $0x5a8] sm:$0xff]
    %v229 = vld [vmem:[%s1 + $0x5b0] sm:$0xff]
    %v230 = vld [vmem:[%s1 + $0x5b8] sm:$0xff]
    %v231 = vld [vmem:[%s1 + $0x5c0] sm:$0xff]
    %v232 = vld [vmem:[%s1 + $0x5c8] sm:$0xff]
    %v233 = vld [vmem:[%s1 + $0x5d0] sm:$0xff]
    %v234 = vld [vmem:[%s1 + $0x5d8] sm:$0xff]
    %v235 = vld [vmem:[%s1 + $0x5e0] sm:$0xff]
    %v236 = vld [vmem:[%s1 + $0x5e8] sm:$0xff]
    %v237 = vld [vmem:[%s1 + $0x5f0] sm:$0xff]
    %v238 = vld [vmem:[%s1 + $0x5f8] sm:$0xff]
    %v239 = vld [vmem:[%s1 + $0x600] sm:$0xff]
    %v240 = vld [vmem:[%s1 + $0x608] sm:$0xff]
    %v241 = vld [vmem:[%s1 + $0x610] sm:$0xff]
    %v242 = vld [vmem:[%s1 + $0x618] sm:$0xff]
    %v243 = vld [vmem:[%s1 + $0x620] sm:$0xff]
    %v244 = vld [vmem:[%s1 + $0x628] sm:$0xff]
    %v245 = vld [vmem:[%s1 + $0x630] sm:$0xff]
    %v246 = vld [vmem:[%s1 + $0x638] sm:$0xff]
    %v247 = vld [vmem:[%s1 + $0x640] sm:$0xff]
    %v248 = vld [vmem:[%s1 + $0x648] sm:$0xff]
    %v249 = vld [vmem:[%s1 + $0x650] sm:$0xff]
    %v250 = vld [vmem:[%s1 + $0x658] sm:$0xff]
    %v251 = vld [vmem:[%s1 + $0x660] sm:$0xff]
    %v252 = vld [vmem:[%s1 + $0x668] sm:$0xff]
    %v253 = vld [vmem:[%s1 + $0x670] sm:$0xff]
    %v254 = vld [vmem:[%s1 + $0x678] sm:$0xff]
    %v255 = vld [vmem:[%s1 + $0x680] sm:$0xff]
    %v256 = vld [vmem:[%s1 + $0x688] sm:$0xff]
    %v257 = vld [vmem:[%s1 + $0x690] sm:$0xff]
    %v258 = vld [vmem:[%s1 + $0x698] sm:$0xff]
    %v259 = vld [vmem:[%s1 + $0x6a0] sm:$0xff]
    %v260 = vld [vmem:[%s1 + $0x6a8] sm:$0xff]
    %v261 = vld [vmem:[%s1 + $0x6b0] sm:$0xff]
    %v262 = vld [vmem:[%s1 + $0x6b8] sm:$0xff]
    %v263 = vld [vmem:[%s1 + $0x6c0] sm:$0xff]
    %v264 = vld [vmem:[%s1 + $0x6c8] sm:$0xff]
    %v265 = vld [vmem:[%s1 + $0x6d0] sm:$0xff]
    %v266 = vld [vmem:[%s1 + $0x6d8] sm:$0xff]
    %v267 = vld [vmem:[%s1 + $0x6e0] sm:$0xff]
    %v268 = vld [vmem:[%s1 + $0x6e8] sm:$0xff]
    %v269 = vld [vmem:[%s1 + $0x6f0] sm:$0xff]
    %v270 = vld [vmem:[%s1 + $0x6f8] sm:$0xff]
    %v271 = vld [vmem:[%s1 + $0x700] sm:$0xff]
    %v272 = vld [vmem:[%s1 + $0x708] sm:$0xff]
    %v273 = vld [vmem:[%s1 + $0x710] sm:$0xff]
    %v274 = vld [vmem:[%s1 + $0x718] sm:$0xff]
    %v275 = vld [vmem:[%s1 + $0x720] sm:$0xff]
    %v276 = vld [vmem:[%s1 + $0x728] sm:$0xff]
    %v277 = vld [vmem:[%s1 + $0x730] sm:$0xff]
    %v278 = vld [vmem:[%s1 + $0x738] sm:$0xff]
    %v279 = vld [vmem:[%s1 + $0x740] sm:$0xff]
    %v280 = vld [vmem:[%s1 + $0x748] sm:$0xff]
    %v281 = vld [vmem:[%s1 + $0x750] sm:$0xff]
    %v282 = vld [vmem:[%s1 + $0x758] sm:$0xff]
    %v283 = vld [vmem:[%s1 + $0x760] sm:$0xff]
    %v284 = vld [vmem:[%s1 + $0x768] sm:$0xff]
    %v285 = vld [vmem:[%s1 + $0x770] sm:$0xff]
    %v286 = vld [vmem:[%s1 + $0x778] sm:$0xff]
    %v287 = vld [vmem:[%s1 + $0x780] sm:$0xff]
    %v288 = vld [vmem:[%s1 + $0x788] sm:$0xff]
    %v289 = vld [vmem:[%s1 + $0x790] sm:$0xff]
    %v290 = vld [vmem:[%s1 + $0x798] sm:$0xff]
    %v291 = vld [vmem:[%s1 + $0x7a0] sm:$0xff]
    %v292 = vld [vmem:[%s1 + $0x7a8] sm:$0xff]
    %v293 = vld [vmem:[%s1 + $0x7b0] sm:$0xff]
    %v294 = vld [vmem:[%s1 + $0x7b8] sm:$0xff]
    %v295 = vld [vmem:[%s1 + $0x7c0] sm:$0xff]
    %v296 = vld [vmem:[%s1 + $0x7c8] sm:$0xff]
    %v297 = vld [vmem:[%s1 + $0x7d0] sm:$0xff]
    %v298 = vld [vmem:[%s1 + $0x7d8] sm:$0xff]
    %v299 = vld [vmem:[%s1 + $0x7e0] sm:$0xff]
    %v300 = vld [vmem:[%s1 + $0x7e8] sm:$0xff]
    %v301 = vld [vmem:[%s1 + $0x7f0] sm:$0xff]
    %v302 = vld [vmem:[%s1 + $0x7f8] sm:$0xff]
    %v303 = vld [vmem:[%s1 + $0x800] sm:$0xff]
    %v304 = vld [vmem:[%s1 + $0x808] sm:$0xff]
    %v305 = vld [vmem:[%s1 + $0x810] sm:$0xff]
    %v306 = vld [vmem:[%s1 + $0x818] sm:$0xff]
    %v307 = vld [vmem:[%s1 + $0x820] sm:$0xff]
    %v308 = vld [vmem:[%s1 + $0x828] sm:$0xff]
    %v309 = vld [vmem:[%s1 + $0x830] sm:$0xff]
    %v310 = vld [vmem:[%s1 + $0x838] sm:$0xff]
    %v311 = vld [vmem:[%s1 + $0x840] sm:$0xff]
    %v312 = vld [vmem:[%s1 + $0x848] sm:$0xff]
    %v313 = vld [vmem:[%s1 + $0x850] sm:$0xff]
    %v314 = vld [vmem:[%s1 + $0x858] sm:$0xff]
    %v315 = vld [vmem:[%s1 + $0x860] sm:$0xff]
    %v316 = vld [vmem:[%s1 + $0x868] sm:$0xff]
    %v317 = vld [vmem:[%s1 + $0x870] sm:$0xff]
    %v318 = vld [vmem:[%s1 + $0x878] sm:$0xff]
    %v319 = vld [vmem:[%s1 + $0x880] sm:$0xff]
    %v320 = vld [vmem:[%s1 + $0x888] sm:$0xff]
    %v321 = vld [vmem:[%s1 + $0x890] sm:$0xff]
    %v322 = vld [vmem:[%s1 + $0x898] sm:$0xff]
    %v323 = vld [vmem:[%s1 + $0x8a0] sm:$0xff]
    %v324 = vld [vmem:[%s1 + $0x8a8] sm:$0xff]
    %v325 = vld [vmem:[%s1 + $0x8b0] sm:$0xff]
    %v326 = vld [vmem:[%s1 + $0x8b8] sm:$0xff]
    %v327 = vld [vmem:[%s1 + $0x8c0] sm:$0xff]
    %v328 = vld [vmem:[%s1 + $0x8c8] sm:$0xff]
    %v329 = vld [vmem:[%s1 + $0x8d0] sm:$0xff]
    %v330 = vld [vmem:[%s1 + $0x8d8] sm:$0xff]
    %v331 = vld [vmem:[%s1 + $0x8e0] sm:$0xff]
    %v332 = vld [vmem:[%s1 + $0x8e8] sm:$0xff]
    %v333 = vld [vmem:[%s1 + $0x8f0] sm:$0xff]
    %v334 = vld [vmem:[%s1 + $0x8f8] sm:$0xff]
    %v335 = vld [vmem:[%s1 + $0x900] sm:$0xff]
    %v336 = vld [vmem:[%s1 + $0x908] sm:$0xff]
    %v337 = vld [vmem:[%s1 + $0x910] sm:$0xff]
    %v338 = vld [vmem:[%s1 + $0x918] sm:$0xff]
    %v339 = vld [vmem:[%s1 + $0x920] sm:$0xff]
    %v340 = vld [vmem:[%s1 + $0x928] sm:$0xff]
    %v341 = vld [vmem:[%s1 + $0x930] sm:$0xff]
    %v342 = vld [vmem:[%s1 + $0x938] sm:$0xff]
    %v343 = vld [vmem:[%s1 + $0x940] sm:$0xff]
    %v344 = vld [vmem:[%s1 + $0x948] sm:$0xff]
    %v345 = vld [vmem:[%s1 + $0x950] sm:$0xff]
    %v346 = vld [vmem:[%s1 + $0x958] sm:$0xff]
    %v347 = vld [vmem:[%s1 + $0x960] sm:$0xff]
    %v348 = vld [vmem:[%s1 + $0x968] sm:$0xff]
    %v349 = vld [vmem:[%s1 + $0x970] sm:$0xff]
    %v350 = vld [vmem:[%s1 + $0x978] sm:$0xff]
    %v351 = vld [vmem:[%s1 + $0x980] sm:$0xff]
    %v352 = vld [vmem:[%s1 + $0x988] sm:$0xff]
    %v353 = vld [vmem:[%s1 + $0x990] sm:$0xff]
    %v354 = vld [vmem:[%s1 + $0x998] sm:$0xff]
    %v355 = vld [vmem:[%s1 + $0x9a0] sm:$0xff]
    %v356 = vld [vmem:[%s1 + $0x9a8] sm:$0xff]
    %v357 = vld [vmem:[%s1 + $0x9b0] sm:$0xff]
    %v358 = vld [vmem:[%s1 + $0x9b8] sm:$0xff]
    %v359 = vld [vmem:[%s1 + $0x9c0] sm:$0xff]
    %v360 = vld [vmem:[%s1 + $0x9c8] sm:$0xff]
    %v361 = vld [vmem:[%s1 + $0x9d0] sm:$0xff]
    %v362 = vld [vmem:[%s1 + $0x9d8] sm:$0xff]
    %v363 = vld [vmem:[%s1 + $0x9e0] sm:$0xff]
    %v364 = vld [vmem:[%s1 + $0x9e8] sm:$0xff]
    %v365 = vld [vmem:[%s1 + $0x9f0] sm:$0xff]
    %v366 = vld [vmem:[%s1 + $0x9f8] sm:$0xff]
    %v367 = vld [vmem:[%s1 + $0xa00] sm:$0xff]
    %v368 = vld [vmem:[%s1 + $0xa08] sm:$0xff]
    %v369 = vld [vmem:[%s1 + $0xa10] sm:$0xff]
    %v370 = vld [vmem:[%s1 + $0xa18] sm:$0xff]
    %v371 = vld [vmem:[%s1 + $0xa20] sm:$0xff]
    %v372 = vld [vmem:[%s1 + $0xa28] sm:$0xff]
    %v373 = vld [vmem:[%s1 + $0xa30] sm:$0xff]
    %v374 = vld [vmem:[%s1 + $0xa38] sm:$0xff]
    %v375 = vld [vmem:[%s1 + $0xa40] sm:$0xff]
    %v376 = vld [vmem:[%s1 + $0xa48] sm:$0xff]
    %v377 = vld [vmem:[%s1 + $0xa50] sm:$0xff]
    %v378 = vld [vmem:[%s1 + $0xa58] sm:$0xff]
    %v379 = vld [vmem:[%s1 + $0xa60] sm:$0xff]
    %v380 = vld [vmem:[%s1 + $0xa68] sm:$0xff]
    %v381 = vld [vmem:[%s1 + $0xa70] sm:$0xff]
    %v382 = vld [vmem:[%s1 + $0xa78] sm:$0xff]
    %v383 = vld [vmem:[%s1 + $0xa80] sm:$0xff]
    %v384 = vld [vmem:[%s1 + $0xa88] sm:$0xff]
    %v385 = vld [vmem:[%s1 + $0xa90] sm:$0xff]
    %v386 = vld [vmem:[%s1 + $0xa98] sm:$0xff]
    %v387 = vld [vmem:[%s1 + $0xaa0] sm:$0xff]
    %v388 = vld [vmem:[%s1 + $0xaa8] sm:$0xff]
    %v389 = vld [vmem:[%s1 + $0xab0] sm:$0xff]
    %v390 = vld [vmem:[%s1 + $0xab8] sm:$0xff]
    %v391 = vld [vmem:[%s1 + $0xac0] sm:$0xff]
    %v392 = vld [vmem:[%s1 + $0xac8] sm:$0xff]
    %v393 = vld [vmem:[%s1 + $0xad0] sm:$0xff]
    %v394 = vld [vmem:[%s1 + $0xad8] sm:$0xff]
    %v395 = vld [vmem:[%s1 + $0xae0] sm:$0xff]
    %v396 = vld [vmem:[%s1 + $0xae8] sm:$0xff]
    %v397 = vld [vmem:[%s1 + $0xaf0] sm:$0xff]
    %v398 = vld [vmem:[%s1 + $0xaf8] sm:$0xff]
    %v399 = vld [vmem:[%s1 + $0xb00] sm:$0xff]
    %v400 = vld [vmem:[%s1 + $0xb08] sm:$0xff]
    %v401 = vld [vmem:[%s1 + $0xb10] sm:$0xff]
    %v402 = vld [vmem:[%s1 + $0xb18] sm:$0xff]
    %v403 = vld [vmem:[%s1 + $0xb20] sm:$0xff]
    %v404 = vld [vmem:[%s1 + $0xb28] sm:$0xff]
    %v405 = vld [vmem:[%s1 + $0xb30] sm:$0xff]
    %v406 = vld [vmem:[%s1 + $0xb38] sm:$0xff]
    %v407 = vld [vmem:[%s1 + $0xb40] sm:$0xff]
    %v408 = vld [vmem:[%s1 + $0xb48] sm:$0xff]
    %v409 = vld [vmem:[%s1 + $0xb50] sm:$0xff]
    %v410 = vld [vmem:[%s1 + $0xb58] sm:$0xff]
    %v411 = vld [vmem:[%s1 + $0xb60] sm:$0xff]
    %v412 = vld [vmem:[%s1 + $0xb68] sm:$0xff]
    %v413 = vld [vmem:[%s1 + $0xb70] sm:$0xff]
    %v414 = vld [vmem:[%s1 + $0xb78] sm:$0xff]
    %v415 = vld [vmem:[%s1 + $0xb80] sm:$0xff]
    %v416 = vld [vmem:[%s1 + $0xb88] sm:$0xff]
    %v417 = vld [vmem:[%s1 + $0xb90] sm:$0xff]
    %v418 = vld [vmem:[%s1 + $0xb98] sm:$0xff]
    %v419 = vld [vmem:[%s1 + $0xba0] sm:$0xff]
    %v420 = vld [vmem:[%s1 + $0xba8] sm:$0xff]
    %v421 = vld [vmem:[%s1 + $0xbb0] sm:$0xff]
    %v422 = vld [vmem:[%s1 + $0xbb8] sm:$0xff]
    %v423 = vld [vmem:[%s1 + $0xbc0] sm:$0xff]
    %v424 = vld [vmem:[%s1 + $0xbc8] sm:$0xff]
    %v425 = vld [vmem:[%s1 + $0xbd0] sm:$0xff]
    %v426 = vld [vmem:[%s1 + $0xbd8] sm:$0xff]
    %v427 = vld [vmem:[%s1 + $0xbe0] sm:$0xff]
    %v428 = vld [vmem:[%s1 + $0xbe8] sm:$0xff]
    %v429 = vld [vmem:[%s1 + $0xbf0] sm:$0xff]
    %v430 = vld [vmem:[%s1 + $0xbf8] sm:$0xff]
    %v815 = vunpack.c.l.b16 %v47
    %v816 = vunpack.c.h.b16 %v47
    %v817 = vunpack.c.l.b16 %v48
    %v818 = vunpack.c.h.b16 %v48
    %v819 = vunpack.c.l.b16 %v49
    %v820 = vunpack.c.h.b16 %v49
    %v821 = vunpack.c.l.b16 %v50
    %v822 = vunpack.c.h.b16 %v50
    %v823 = vunpack.c.l.b16 %v51
    %v824 = vunpack.c.h.b16 %v51
    %v825 = vunpack.c.l.b16 %v52
    %v826 = vunpack.c.h.b16 %v52
    %v827 = vunpack.c.l.b16 %v53
    %v828 = vunpack.c.h.b16 %v53
    %v829 = vunpack.c.l.b16 %v54
    %v830 = vunpack.c.h.b16 %v54
    %v831 = vunpack.c.l.b16 %v55
    %v832 = vunpack.c.h.b16 %v55
    %v833 = vunpack.c.l.b16 %v56
    %v834 = vunpack.c.h.b16 %v56
    %v835 = vunpack.c.l.b16 %v57
    %v836 = vunpack.c.h.b16 %v57
    %v837 = vunpack.c.l.b16 %v58
    %v838 = vunpack.c.h.b16 %v58
    %v839 = vunpack.c.l.b16 %v59
    %v840 = vunpack.c.h.b16 %v59
    %v841 = vunpack.c.l.b16 %v60
    %v842 = vunpack.c.h.b16 %v60
    %v843 = vunpack.c.l.b16 %v61
    %v844 = vunpack.c.h.b16 %v61
    %v845 = vunpack.c.l.b16 %v62
    %v846 = vunpack.c.h.b16 %v62
    %v847 = vunpack.c.l.b16 %v63
    %v848 = vunpack.c.h.b16 %v63
    %v849 = vunpack.c.l.b16 %v64
    %v850 = vunpack.c.h.b16 %v64
    %v851 = vunpack.c.l.b16 %v65
    %v852 = vunpack.c.h.b16 %v65
    %v853 = vunpack.c.l.b16 %v66
    %v854 = vunpack.c.h.b16 %v66
    %v855 = vunpack.c.l.b16 %v67
    %v856 = vunpack.c.h.b16 %v67
    %v857 = vunpack.c.l.b16 %v68
    %v858 = vunpack.c.h.b16 %v68
    %v859 = vunpack.c.l.b16 %v69
    %v860 = vunpack.c.h.b16 %v69
    %v861 = vunpack.c.l.b16 %v70
    %v862 = vunpack.c.h.b16 %v70
    %v863 = vunpack.c.l.b16 %v71
    %v864 = vunpack.c.h.b16 %v71
    %v865 = vunpack.c.l.b16 %v72
    %v866 = vunpack.c.h.b16 %v72
    %v867 = vunpack.c.l.b16 %v73
    %v868 = vunpack.c.h.b16 %v73
    %v869 = vunpack.c.l.b16 %v74
    %v870 = vunpack.c.h.b16 %v74
    %v871 = vunpack.c.l.b16 %v75
    %v872 = vunpack.c.h.b16 %v75
    %v873 = vunpack.c.l.b16 %v76
    %v874 = vunpack.c.h.b16 %v76
    %v875 = vunpack.c.l.b16 %v77
    %v876 = vunpack.c.h.b16 %v77
    %v877 = vunpack.c.l.b16 %v78
    %v878 = vunpack.c.h.b16 %v78
    %v879 = vunpack.c.l.b16 %v79
    %v880 = vunpack.c.h.b16 %v79
    %v881 = vunpack.c.l.b16 %v80
    %v882 = vunpack.c.h.b16 %v80
    %v883 = vunpack.c.l.b16 %v81
    %v884 = vunpack.c.h.b16 %v81
    %v885 = vunpack.c.l.b16 %v82
    %v886 = vunpack.c.h.b16 %v82
    %v887 = vunpack.c.l.b16 %v83
    %v888 = vunpack.c.h.b16 %v83
    %v889 = vunpack.c.l.b16 %v84
    %v890 = vunpack.c.h.b16 %v84
    %v891 = vunpack.c.l.b16 %v85
    %v892 = vunpack.c.h.b16 %v85
    %v893 = vunpack.c.l.b16 %v86
    %v894 = vunpack.c.h.b16 %v86
    %v895 = vunpack.c.l.b16 %v87
    %v896 = vunpack.c.h.b16 %v87
    %v897 = vunpack.c.l.b16 %v88
    %v898 = vunpack.c.h.b16 %v88
    %v899 = vunpack.c.l.b16 %v89
    %v900 = vunpack.c.h.b16 %v89
    %v901 = vunpack.c.l.b16 %v90
    %v902 = vunpack.c.h.b16 %v90
    %v903 = vunpack.c.l.b16 %v91
    %v904 = vunpack.c.h.b16 %v91
    %v905 = vunpack.c.l.b16 %v92
    %v906 = vunpack.c.h.b16 %v92
    %v907 = vunpack.c.l.b16 %v93
    %v908 = vunpack.c.h.b16 %v93
    %v909 = vunpack.c.l.b16 %v94
    %v910 = vunpack.c.h.b16 %v94
    %v911 = vunpack.c.l.b16 %v95
    %v912 = vunpack.c.h.b16 %v95
    %v913 = vunpack.c.l.b16 %v96
    %v914 = vunpack.c.h.b16 %v96
    %v915 = vunpack.c.l.b16 %v97
    %v916 = vunpack.c.h.b16 %v97
    %v917 = vunpack.c.l.b16 %v98
    %v918 = vunpack.c.h.b16 %v98
    %v919 = vunpack.c.l.b16 %v99
    %v920 = vunpack.c.h.b16 %v99
    %v921 = vunpack.c.l.b16 %v100
    %v922 = vunpack.c.h.b16 %v100
    %v923 = vunpack.c.l.b16 %v101
    %v924 = vunpack.c.h.b16 %v101
    %v925 = vunpack.c.l.b16 %v102
    %v926 = vunpack.c.h.b16 %v102
    %v927 = vunpack.c.l.b16 %v103
    %v928 = vunpack.c.h.b16 %v103
    %v929 = vunpack.c.l.b16 %v104
    %v930 = vunpack.c.h.b16 %v104
    %v931 = vunpack.c.l.b16 %v105
    %v932 = vunpack.c.h.b16 %v105
    %v933 = vunpack.c.l.b16 %v106
    %v934 = vunpack.c.h.b16 %v106
    %v935 = vunpack.c.l.b16 %v107
    %v936 = vunpack.c.h.b16 %v107
    %v937 = vunpack.c.l.b16 %v108
    %v938 = vunpack.c.h.b16 %v108
    %v939 = vunpack.c.l.b16 %v109
    %v940 = vunpack.c.h.b16 %v109
    %v941 = vunpack.c.l.b16 %v110
    %v942 = vunpack.c.h.b16 %v110
    %v943 = vunpack.c.l.b16 %v111
    %v944 = vunpack.c.h.b16 %v111
    %v945 = vunpack.c.l.b16 %v112
    %v946 = vunpack.c.h.b16 %v112
    %v947 = vunpack.c.l.b16 %v113
    %v948 = vunpack.c.h.b16 %v113
    %v949 = vunpack.c.l.b16 %v114
    %v950 = vunpack.c.h.b16 %v114
    %v951 = vunpack.c.l.b16 %v115
    %v952 = vunpack.c.h.b16 %v115
    %v953 = vunpack.c.l.b16 %v116
    %v954 = vunpack.c.h.b16 %v116
    %v955 = vunpack.c.l.b16 %v117
    %v956 = vunpack.c.h.b16 %v117
    %v957 = vunpack.c.l.b16 %v118
    %v958 = vunpack.c.h.b16 %v118
    %v959 = vunpack.c.l.b16 %v119
    %v960 = vunpack.c.h.b16 %v119
    %v961 = vunpack.c.l.b16 %v120
    %v962 = vunpack.c.h.b16 %v120
    %v963 = vunpack.c.l.b16 %v121
    %v964 = vunpack.c.h.b16 %v121
    %v965 = vunpack.c.l.b16 %v122
    %v966 = vunpack.c.h.b16 %v122
    %v967 = vunpack.c.l.b16 %v123
    %v968 = vunpack.c.h.b16 %v123
    %v969 = vunpack.c.l.b16 %v124
    %v970 = vunpack.c.h.b16 %v124
    %v971 = vunpack.c.l.b16 %v125
    %v972 = vunpack.c.h.b16 %v125
    %v973 = vunpack.c.l.b16 %v126
    %v974 = vunpack.c.h.b16 %v126
    %v975 = vunpack.c.l.b16 %v127
    %v976 = vunpack.c.h.b16 %v127
    %v977 = vunpack.c.l.b16 %v128
    %v978 = vunpack.c.h.b16 %v128
    %v979 = vunpack.c.l.b16 %v129
    %v980 = vunpack.c.h.b16 %v129
    %v981 = vunpack.c.l.b16 %v130
    %v982 = vunpack.c.h.b16 %v130
    %v983 = vunpack.c.l.b16 %v131
    %v984 = vunpack.c.h.b16 %v131
    %v985 = vunpack.c.l.b16 %v132
    %v986 = vunpack.c.h.b16 %v132
    %v987 = vunpack.c.l.b16 %v133
    %v988 = vunpack.c.h.b16 %v133
    %v989 = vunpack.c.l.b16 %v134
    %v990 = vunpack.c.h.b16 %v134
    %v991 = vunpack.c.l.b16 %v135
    %v992 = vunpack.c.h.b16 %v135
    %v993 = vunpack.c.l.b16 %v136
    %v994 = vunpack.c.h.b16 %v136
    %v995 = vunpack.c.l.b16 %v137
    %v996 = vunpack.c.h.b16 %v137
    %v997 = vunpack.c.l.b16 %v138
    %v998 = vunpack.c.h.b16 %v138
    %v999 = vunpack.c.l.b16 %v139
    %v1000 = vunpack.c.h.b16 %v139
    %v1001 = vunpack.c.l.b16 %v140
    %v1002 = vunpack.c.h.b16 %v140
    %v1003 = vunpack.c.l.b16 %v141
    %v1004 = vunpack.c.h.b16 %v141
    %v1005 = vunpack.c.l.b16 %v142
    %v1006 = vunpack.c.h.b16 %v142
    %v1007 = vunpack.c.l.b16 %v143
    %v1008 = vunpack.c.h.b16 %v143
    %v1009 = vunpack.c.l.b16 %v144
    %v1010 = vunpack.c.h.b16 %v144
    %v1011 = vunpack.c.l.b16 %v145
    %v1012 = vunpack.c.h.b16 %v145
    %v1013 = vunpack.c.l.b16 %v146
    %v1014 = vunpack.c.h.b16 %v146
    %v1015 = vunpack.c.l.b16 %v147
    %v1016 = vunpack.c.h.b16 %v147
    %v1017 = vunpack.c.l.b16 %v148
    %v1018 = vunpack.c.h.b16 %v148
    %v1019 = vunpack.c.l.b16 %v149
    %v1020 = vunpack.c.h.b16 %v149
    %v1021 = vunpack.c.l.b16 %v150
    %v1022 = vunpack.c.h.b16 %v150
    %v1023 = vunpack.c.l.b16 %v151
    %v1024 = vunpack.c.h.b16 %v151
    %v1025 = vunpack.c.l.b16 %v152
    %v1026 = vunpack.c.h.b16 %v152
    %v1027 = vunpack.c.l.b16 %v153
    %v1028 = vunpack.c.h.b16 %v153
    %v1029 = vunpack.c.l.b16 %v154
    %v1030 = vunpack.c.h.b16 %v154
    %v1031 = vunpack.c.l.b16 %v155
    %v1032 = vunpack.c.h.b16 %v155
    %v1033 = vunpack.c.l.b16 %v156
    %v1034 = vunpack.c.h.b16 %v156
    %v1035 = vunpack.c.l.b16 %v157
    %v1036 = vunpack.c.h.b16 %v157
    %v1037 = vunpack.c.l.b16 %v158
    %v1038 = vunpack.c.h.b16 %v158
    %v1039 = vunpack.c.l.b16 %v159
    %v1040 = vunpack.c.h.b16 %v159
    %v1041 = vunpack.c.l.b16 %v160
    %v1042 = vunpack.c.h.b16 %v160
    %v1043 = vunpack.c.l.b16 %v161
    %v1044 = vunpack.c.h.b16 %v161
    %v1045 = vunpack.c.l.b16 %v162
    %v1046 = vunpack.c.h.b16 %v162
    %v1047 = vunpack.c.l.b16 %v163
    %v1048 = vunpack.c.h.b16 %v163
    %v1049 = vunpack.c.l.b16 %v164
    %v1050 = vunpack.c.h.b16 %v164
    %v1051 = vunpack.c.l.b16 %v165
    %v1052 = vunpack.c.h.b16 %v165
    %v1053 = vunpack.c.l.b16 %v166
    %v1054 = vunpack.c.h.b16 %v166
    %v1055 = vunpack.c.l.b16 %v167
    %v1056 = vunpack.c.h.b16 %v167
    %v1057 = vunpack.c.l.b16 %v168
    %v1058 = vunpack.c.h.b16 %v168
    %v1059 = vunpack.c.l.b16 %v169
    %v1060 = vunpack.c.h.b16 %v169
    %v1061 = vunpack.c.l.b16 %v170
    %v1062 = vunpack.c.h.b16 %v170
    %v1063 = vunpack.c.l.b16 %v171
    %v1064 = vunpack.c.h.b16 %v171
    %v1065 = vunpack.c.l.b16 %v172
    %v1066 = vunpack.c.h.b16 %v172
    %v1067 = vunpack.c.l.b16 %v173
    %v1068 = vunpack.c.h.b16 %v173
    %v1069 = vunpack.c.l.b16 %v174
    %v1070 = vunpack.c.h.b16 %v174
    %v1071 = vunpack.c.l.b16 %v175
    %v1072 = vunpack.c.h.b16 %v175
    %v1073 = vunpack.c.l.b16 %v176
    %v1074 = vunpack.c.h.b16 %v176
    %v1075 = vunpack.c.l.b16 %v177
    %v1076 = vunpack.c.h.b16 %v177
    %v1077 = vunpack.c.l.b16 %v178
    %v1078 = vunpack.c.h.b16 %v178
    %v1079 = vunpack.c.l.b16 %v179
    %v1080 = vunpack.c.h.b16 %v179
    %v1081 = vunpack.c.l.b16 %v180
    %v1082 = vunpack.c.h.b16 %v180
    %v1083 = vunpack.c.l.b16 %v181
    %v1084 = vunpack.c.h.b16 %v181
    %v1085 = vunpack.c.l.b16 %v182
    %v1086 = vunpack.c.h.b16 %v182
    %v1087 = vunpack.c.l.b16 %v183
    %v1088 = vunpack.c.h.b16 %v183
    %v1089 = vunpack.c.l.b16 %v184
    %v1090 = vunpack.c.h.b16 %v184
    %v1091 = vunpack.c.l.b16 %v185
    %v1092 = vunpack.c.h.b16 %v185
    %v1093 = vunpack.c.l.b16 %v186
    %v1094 = vunpack.c.h.b16 %v186
    %v1095 = vunpack.c.l.b16 %v187
    %v1096 = vunpack.c.h.b16 %v187
    %v1097 = vunpack.c.l.b16 %v188
    %v1098 = vunpack.c.h.b16 %v188
    %v1099 = vunpack.c.l.b16 %v189
    %v1100 = vunpack.c.h.b16 %v189
    %v1101 = vunpack.c.l.b16 %v190
    %v1102 = vunpack.c.h.b16 %v190
    %v1103 = vunpack.c.l.b16 %v191
    %v1104 = vunpack.c.h.b16 %v191
    %v1105 = vunpack.c.l.b16 %v192
    %v1106 = vunpack.c.h.b16 %v192
    %v1107 = vunpack.c.l.b16 %v193
    %v1108 = vunpack.c.h.b16 %v193
    %v1109 = vunpack.c.l.b16 %v194
    %v1110 = vunpack.c.h.b16 %v194
    %v1111 = vunpack.c.l.b16 %v195
    %v1112 = vunpack.c.h.b16 %v195
    %v1113 = vunpack.c.l.b16 %v196
    %v1114 = vunpack.c.h.b16 %v196
    %v1115 = vunpack.c.l.b16 %v197
    %v1116 = vunpack.c.h.b16 %v197
    %v1117 = vunpack.c.l.b16 %v198
    %v1118 = vunpack.c.h.b16 %v198
    %v1119 = vunpack.c.l.b16 %v199
    %v1120 = vunpack.c.h.b16 %v199
    %v1121 = vunpack.c.l.b16 %v200
    %v1122 = vunpack.c.h.b16 %v200
    %v1123 = vunpack.c.l.b16 %v201
    %v1124 = vunpack.c.h.b16 %v201
    %v1125 = vunpack.c.l.b16 %v202
    %v1126 = vunpack.c.h.b16 %v202
    %v1127 = vunpack.c.l.b16 %v203
    %v1128 = vunpack.c.h.b16 %v203
    %v1129 = vunpack.c.l.b16 %v204
    %v1130 = vunpack.c.h.b16 %v204
    %v1131 = vunpack.c.l.b16 %v205
    %v1132 = vunpack.c.h.b16 %v205
    %v1133 = vunpack.c.l.b16 %v206
    %v1134 = vunpack.c.h.b16 %v206
    %v1135 = vunpack.c.l.b16 %v207
    %v1136 = vunpack.c.h.b16 %v207
    %v1137 = vunpack.c.l.b16 %v208
    %v1138 = vunpack.c.h.b16 %v208
    %v1139 = vunpack.c.l.b16 %v209
    %v1140 = vunpack.c.h.b16 %v209
    %v1141 = vunpack.c.l.b16 %v210
    %v1142 = vunpack.c.h.b16 %v210
    %v1143 = vunpack.c.l.b16 %v211
    %v1144 = vunpack.c.h.b16 %v211
    %v1145 = vunpack.c.l.b16 %v212
    %v1146 = vunpack.c.h.b16 %v212
    %v1147 = vunpack.c.l.b16 %v213
    %v1148 = vunpack.c.h.b16 %v213
    %v1149 = vunpack.c.l.b16 %v214
    %v1150 = vunpack.c.h.b16 %v214
    %v1151 = vunpack.c.l.b16 %v215
    %v1152 = vunpack.c.h.b16 %v215
    %v1153 = vunpack.c.l.b16 %v216
    %v1154 = vunpack.c.h.b16 %v216
    %v1155 = vunpack.c.l.b16 %v217
    %v1156 = vunpack.c.h.b16 %v217
    %v1157 = vunpack.c.l.b16 %v218
    %v1158 = vunpack.c.h.b16 %v218
    %v1159 = vunpack.c.l.b16 %v219
    %v1160 = vunpack.c.h.b16 %v219
    %v1161 = vunpack.c.l.b16 %v220
    %v1162 = vunpack.c.h.b16 %v220
    %v1163 = vunpack.c.l.b16 %v221
    %v1164 = vunpack.c.h.b16 %v221
    %v1165 = vunpack.c.l.b16 %v222
    %v1166 = vunpack.c.h.b16 %v222
    %v1167 = vunpack.c.l.b16 %v223
    %v1168 = vunpack.c.h.b16 %v223
    %v1169 = vunpack.c.l.b16 %v224
    %v1170 = vunpack.c.h.b16 %v224
    %v1171 = vunpack.c.l.b16 %v225
    %v1172 = vunpack.c.h.b16 %v225
    %v1173 = vunpack.c.l.b16 %v226
    %v1174 = vunpack.c.h.b16 %v226
    %v1175 = vunpack.c.l.b16 %v227
    %v1176 = vunpack.c.h.b16 %v227
    %v1177 = vunpack.c.l.b16 %v228
    %v1178 = vunpack.c.h.b16 %v228
    %v1179 = vunpack.c.l.b16 %v229
    %v1180 = vunpack.c.h.b16 %v229
    %v1181 = vunpack.c.l.b16 %v230
    %v1182 = vunpack.c.h.b16 %v230
    %v1183 = vunpack.c.l.b16 %v231
    %v1184 = vunpack.c.h.b16 %v231
    %v1185 = vunpack.c.l.b16 %v232
    %v1186 = vunpack.c.h.b16 %v232
    %v1187 = vunpack.c.l.b16 %v233
    %v1188 = vunpack.c.h.b16 %v233
    %v1189 = vunpack.c.l.b16 %v234
    %v1190 = vunpack.c.h.b16 %v234
    %v1191 = vunpack.c.l.b16 %v235
    %v1192 = vunpack.c.h.b16 %v235
    %v1193 = vunpack.c.l.b16 %v236
    %v1194 = vunpack.c.h.b16 %v236
    %v1195 = vunpack.c.l.b16 %v237
    %v1196 = vunpack.c.h.b16 %v237
    %v1197 = vunpack.c.l.b16 %v238
    %v1198 = vunpack.c.h.b16 %v238
    %v1199 = vunpack.c.l.b16 %v239
    %v1200 = vunpack.c.h.b16 %v239
    %v1201 = vunpack.c.l.b16 %v240
    %v1202 = vunpack.c.h.b16 %v240
    %v1203 = vunpack.c.l.b16 %v241
    %v1204 = vunpack.c.h.b16 %v241
    %v1205 = vunpack.c.l.b16 %v242
    %v1206 = vunpack.c.h.b16 %v242
    %v1207 = vunpack.c.l.b16 %v243
    %v1208 = vunpack.c.h.b16 %v243
    %v1209 = vunpack.c.l.b16 %v244
    %v1210 = vunpack.c.h.b16 %v244
    %v1211 = vunpack.c.l.b16 %v245
    %v1212 = vunpack.c.h.b16 %v245
    %v1213 = vunpack.c.l.b16 %v246
    %v1214 = vunpack.c.h.b16 %v246
    %v1215 = vunpack.c.l.b16 %v247
    %v1216 = vunpack.c.h.b16 %v247
    %v1217 = vunpack.c.l.b16 %v248
    %v1218 = vunpack.c.h.b16 %v248
    %v1219 = vunpack.c.l.b16 %v249
    %v1220 = vunpack.c.h.b16 %v249
    %v1221 = vunpack.c.l.b16 %v250
    %v1222 = vunpack.c.h.b16 %v250
    %v1223 = vunpack.c.l.b16 %v251
    %v1224 = vunpack.c.h.b16 %v251
    %v1225 = vunpack.c.l.b16 %v252
    %v1226 = vunpack.c.h.b16 %v252
    %v1227 = vunpack.c.l.b16 %v253
    %v1228 = vunpack.c.h.b16 %v253
    %v1229 = vunpack.c.l.b16 %v254
    %v1230 = vunpack.c.h.b16 %v254
    %v1231 = vunpack.c.l.b16 %v255
    %v1232 = vunpack.c.h.b16 %v255
    %v1233 = vunpack.c.l.b16 %v256
    %v1234 = vunpack.c.h.b16 %v256
    %v1235 = vunpack.c.l.b16 %v257
    %v1236 = vunpack.c.h.b16 %v257
    %v1237 = vunpack.c.l.b16 %v258
    %v1238 = vunpack.c.h.b16 %v258
    %v1239 = vunpack.c.l.b16 %v259
    %v1240 = vunpack.c.h.b16 %v259
    %v1241 = vunpack.c.l.b16 %v260
    %v1242 = vunpack.c.h.b16 %v260
    %v1243 = vunpack.c.l.b16 %v261
    %v1244 = vunpack.c.h.b16 %v261
    %v1245 = vunpack.c.l.b16 %v262
    %v1246 = vunpack.c.h.b16 %v262
    %v1247 = vunpack.c.l.b16 %v263
    %v1248 = vunpack.c.h.b16 %v263
    %v1249 = vunpack.c.l.b16 %v264
    %v1250 = vunpack.c.h.b16 %v264
    %v1251 = vunpack.c.l.b16 %v265
    %v1252 = vunpack.c.h.b16 %v265
    %v1253 = vunpack.c.l.b16 %v266
    %v1254 = vunpack.c.h.b16 %v266
    %v1255 = vunpack.c.l.b16 %v267
    %v1256 = vunpack.c.h.b16 %v267
    %v1257 = vunpack.c.l.b16 %v268
    %v1258 = vunpack.c.h.b16 %v268
    %v1259 = vunpack.c.l.b16 %v269
    %v1260 = vunpack.c.h.b16 %v269
    %v1261 = vunpack.c.l.b16 %v270
    %v1262 = vunpack.c.h.b16 %v270
    %v1263 = vunpack.c.l.b16 %v271
    %v1264 = vunpack.c.h.b16 %v271
    %v1265 = vunpack.c.l.b16 %v272
    %v1266 = vunpack.c.h.b16 %v272
    %v1267 = vunpack.c.l.b16 %v273
    %v1268 = vunpack.c.h.b16 %v273
    %v1269 = vunpack.c.l.b16 %v274
    %v1270 = vunpack.c.h.b16 %v274
    %v1271 = vunpack.c.l.b16 %v275
    %v1272 = vunpack.c.h.b16 %v275
    %v1273 = vunpack.c.l.b16 %v276
    %v1274 = vunpack.c.h.b16 %v276
    %v1275 = vunpack.c.l.b16 %v277
    %v1276 = vunpack.c.h.b16 %v277
    %v1277 = vunpack.c.l.b16 %v278
    %v1278 = vunpack.c.h.b16 %v278
    %v1279 = vunpack.c.l.b16 %v279
    %v1280 = vunpack.c.h.b16 %v279
    %v1281 = vunpack.c.l.b16 %v280
    %v1282 = vunpack.c.h.b16 %v280
    %v1283 = vunpack.c.l.b16 %v281
    %v1284 = vunpack.c.h.b16 %v281
    %v1285 = vunpack.c.l.b16 %v282
    %v1286 = vunpack.c.h.b16 %v282
    %v1287 = vunpack.c.l.b16 %v283
    %v1288 = vunpack.c.h.b16 %v283
    %v1289 = vunpack.c.l.b16 %v284
    %v1290 = vunpack.c.h.b16 %v284
    %v1291 = vunpack.c.l.b16 %v285
    %v1292 = vunpack.c.h.b16 %v285
    %v1293 = vunpack.c.l.b16 %v286
    %v1294 = vunpack.c.h.b16 %v286
    %v1295 = vunpack.c.l.b16 %v287
    %v1296 = vunpack.c.h.b16 %v287
    %v1297 = vunpack.c.l.b16 %v288
    %v1298 = vunpack.c.h.b16 %v288
    %v1299 = vunpack.c.l.b16 %v289
    %v1300 = vunpack.c.h.b16 %v289
    %v1301 = vunpack.c.l.b16 %v290
    %v1302 = vunpack.c.h.b16 %v290
    %v1303 = vunpack.c.l.b16 %v291
    %v1304 = vunpack.c.h.b16 %v291
    %v1305 = vunpack.c.l.b16 %v292
    %v1306 = vunpack.c.h.b16 %v292
    %v1307 = vunpack.c.l.b16 %v293
    %v1308 = vunpack.c.h.b16 %v293
    %v1309 = vunpack.c.l.b16 %v294
    %v1310 = vunpack.c.h.b16 %v294
    %v1311 = vunpack.c.l.b16 %v295
    %v1312 = vunpack.c.h.b16 %v295
    %v1313 = vunpack.c.l.b16 %v296
    %v1314 = vunpack.c.h.b16 %v296
    %v1315 = vunpack.c.l.b16 %v297
    %v1316 = vunpack.c.h.b16 %v297
    %v1317 = vunpack.c.l.b16 %v298
    %v1318 = vunpack.c.h.b16 %v298
    %v1319 = vunpack.c.l.b16 %v299
    %v1320 = vunpack.c.h.b16 %v299
    %v1321 = vunpack.c.l.b16 %v300
    %v1322 = vunpack.c.h.b16 %v300
    %v1323 = vunpack.c.l.b16 %v301
    %v1324 = vunpack.c.h.b16 %v301
    %v1325 = vunpack.c.l.b16 %v302
    %v1326 = vunpack.c.h.b16 %v302
    %v1327 = vunpack.c.l.b16 %v303
    %v1328 = vunpack.c.h.b16 %v303
    %v1329 = vunpack.c.l.b16 %v304
    %v1330 = vunpack.c.h.b16 %v304
    %v1331 = vunpack.c.l.b16 %v305
    %v1332 = vunpack.c.h.b16 %v305
    %v1333 = vunpack.c.l.b16 %v306
    %v1334 = vunpack.c.h.b16 %v306
    %v1335 = vunpack.c.l.b16 %v307
    %v1336 = vunpack.c.h.b16 %v307
    %v1337 = vunpack.c.l.b16 %v308
    %v1338 = vunpack.c.h.b16 %v308
    %v1339 = vunpack.c.l.b16 %v309
    %v1340 = vunpack.c.h.b16 %v309
    %v1341 = vunpack.c.l.b16 %v310
    %v1342 = vunpack.c.h.b16 %v310
    %v1343 = vunpack.c.l.b16 %v311
    %v1344 = vunpack.c.h.b16 %v311
    %v1345 = vunpack.c.l.b16 %v312
    %v1346 = vunpack.c.h.b16 %v312
    %v1347 = vunpack.c.l.b16 %v313
    %v1348 = vunpack.c.h.b16 %v313
    %v1349 = vunpack.c.l.b16 %v314
    %v1350 = vunpack.c.h.b16 %v314
    %v1351 = vunpack.c.l.b16 %v315
    %v1352 = vunpack.c.h.b16 %v315
    %v1353 = vunpack.c.l.b16 %v316
    %v1354 = vunpack.c.h.b16 %v316
    %v1355 = vunpack.c.l.b16 %v317
    %v1356 = vunpack.c.h.b16 %v317
    %v1357 = vunpack.c.l.b16 %v318
    %v1358 = vunpack.c.h.b16 %v318
    %v1359 = vunpack.c.l.b16 %v319
    %v1360 = vunpack.c.h.b16 %v319
    %v1361 = vunpack.c.l.b16 %v320
    %v1362 = vunpack.c.h.b16 %v320
    %v1363 = vunpack.c.l.b16 %v321
    %v1364 = vunpack.c.h.b16 %v321
    %v1365 = vunpack.c.l.b16 %v322
    %v1366 = vunpack.c.h.b16 %v322
    %v1367 = vunpack.c.l.b16 %v323
    %v1368 = vunpack.c.h.b16 %v323
    %v1369 = vunpack.c.l.b16 %v324
    %v1370 = vunpack.c.h.b16 %v324
    %v1371 = vunpack.c.l.b16 %v325
    %v1372 = vunpack.c.h.b16 %v325
    %v1373 = vunpack.c.l.b16 %v326
    %v1374 = vunpack.c.h.b16 %v326
    %v1375 = vunpack.c.l.b16 %v327
    %v1376 = vunpack.c.h.b16 %v327
    %v1377 = vunpack.c.l.b16 %v328
    %v1378 = vunpack.c.h.b16 %v328
    %v1379 = vunpack.c.l.b16 %v329
    %v1380 = vunpack.c.h.b16 %v329
    %v1381 = vunpack.c.l.b16 %v330
    %v1382 = vunpack.c.h.b16 %v330
    %v1383 = vunpack.c.l.b16 %v331
    %v1384 = vunpack.c.h.b16 %v331
    %v1385 = vunpack.c.l.b16 %v332
    %v1386 = vunpack.c.h.b16 %v332
    %v1387 = vunpack.c.l.b16 %v333
    %v1388 = vunpack.c.h.b16 %v333
    %v1389 = vunpack.c.l.b16 %v334
    %v1390 = vunpack.c.h.b16 %v334
    %v1391 = vunpack.c.l.b16 %v335
    %v1392 = vunpack.c.h.b16 %v335
    %v1393 = vunpack.c.l.b16 %v336
    %v1394 = vunpack.c.h.b16 %v336
    %v1395 = vunpack.c.l.b16 %v337
    %v1396 = vunpack.c.h.b16 %v337
    %v1397 = vunpack.c.l.b16 %v338
    %v1398 = vunpack.c.h.b16 %v338
    %v1399 = vunpack.c.l.b16 %v339
    %v1400 = vunpack.c.h.b16 %v339
    %v1401 = vunpack.c.l.b16 %v340
    %v1402 = vunpack.c.h.b16 %v340
    %v1403 = vunpack.c.l.b16 %v341
    %v1404 = vunpack.c.h.b16 %v341
    %v1405 = vunpack.c.l.b16 %v342
    %v1406 = vunpack.c.h.b16 %v342
    %v1407 = vunpack.c.l.b16 %v343
    %v1408 = vunpack.c.h.b16 %v343
    %v1409 = vunpack.c.l.b16 %v344
    %v1410 = vunpack.c.h.b16 %v344
    %v1411 = vunpack.c.l.b16 %v345
    %v1412 = vunpack.c.h.b16 %v345
    %v1413 = vunpack.c.l.b16 %v346
    %v1414 = vunpack.c.h.b16 %v346
    %v1415 = vunpack.c.l.b16 %v347
    %v1416 = vunpack.c.h.b16 %v347
    %v1417 = vunpack.c.l.b16 %v348
    %v1418 = vunpack.c.h.b16 %v348
    %v1419 = vunpack.c.l.b16 %v349
    %v1420 = vunpack.c.h.b16 %v349
    %v1421 = vunpack.c.l.b16 %v350
    %v1422 = vunpack.c.h.b16 %v350
    %v1423 = vunpack.c.l.b16 %v351
    %v1424 = vunpack.c.h.b16 %v351
    %v1425 = vunpack.c.l.b16 %v352
    %v1426 = vunpack.c.h.b16 %v352
    %v1427 = vunpack.c.l.b16 %v353
    %v1428 = vunpack.c.h.b16 %v353
    %v1429 = vunpack.c.l.b16 %v354
    %v1430 = vunpack.c.h.b16 %v354
    %v1431 = vunpack.c.l.b16 %v355
    %v1432 = vunpack.c.h.b16 %v355
    %v1433 = vunpack.c.l.b16 %v356
    %v1434 = vunpack.c.h.b16 %v356
    %v1435 = vunpack.c.l.b16 %v357
    %v1436 = vunpack.c.h.b16 %v357
    %v1437 = vunpack.c.l.b16 %v358
    %v1438 = vunpack.c.h.b16 %v358
    %v1439 = vunpack.c.l.b16 %v359
    %v1440 = vunpack.c.h.b16 %v359
    %v1441 = vunpack.c.l.b16 %v360
    %v1442 = vunpack.c.h.b16 %v360
    %v1443 = vunpack.c.l.b16 %v361
    %v1444 = vunpack.c.h.b16 %v361
    %v1445 = vunpack.c.l.b16 %v362
    %v1446 = vunpack.c.h.b16 %v362
    %v1447 = vunpack.c.l.b16 %v363
    %v1448 = vunpack.c.h.b16 %v363
    %v1449 = vunpack.c.l.b16 %v364
    %v1450 = vunpack.c.h.b16 %v364
    %v1451 = vunpack.c.l.b16 %v365
    %v1452 = vunpack.c.h.b16 %v365
    %v1453 = vunpack.c.l.b16 %v366
    %v1454 = vunpack.c.h.b16 %v366
    %v1455 = vunpack.c.l.b16 %v367
    %v1456 = vunpack.c.h.b16 %v367
    %v1457 = vunpack.c.l.b16 %v368
    %v1458 = vunpack.c.h.b16 %v368
    %v1459 = vunpack.c.l.b16 %v369
    %v1460 = vunpack.c.h.b16 %v369
    %v1461 = vunpack.c.l.b16 %v370
    %v1462 = vunpack.c.h.b16 %v370
    %v1463 = vunpack.c.l.b16 %v371
    %v1464 = vunpack.c.h.b16 %v371
    %v1465 = vunpack.c.l.b16 %v372
    %v1466 = vunpack.c.h.b16 %v372
    %v1467 = vunpack.c.l.b16 %v373
    %v1468 = vunpack.c.h.b16 %v373
    %v1469 = vunpack.c.l.b16 %v374
    %v1470 = vunpack.c.h.b16 %v374
    %v1471 = vunpack.c.l.b16 %v375
    %v1472 = vunpack.c.h.b16 %v375
    %v1473 = vunpack.c.l.b16 %v376
    %v1474 = vunpack.c.h.b16 %v376
    %v1475 = vunpack.c.l.b16 %v377
    %v1476 = vunpack.c.h.b16 %v377
    %v1477 = vunpack.c.l.b16 %v378
    %v1478 = vunpack.c.h.b16 %v378
    %v1479 = vunpack.c.l.b16 %v379
    %v1480 = vunpack.c.h.b16 %v379
    %v1481 = vunpack.c.l.b16 %v380
    %v1482 = vunpack.c.h.b16 %v380
    %v1483 = vunpack.c.l.b16 %v381
    %v1484 = vunpack.c.h.b16 %v381
    %v1485 = vunpack.c.l.b16 %v382
    %v1486 = vunpack.c.h.b16 %v382
    %v1487 = vunpack.c.l.b16 %v383
    %v1488 = vunpack.c.h.b16 %v383
    %v1489 = vunpack.c.l.b16 %v384
    %v1490 = vunpack.c.h.b16 %v384
    %v1491 = vunpack.c.l.b16 %v385
    %v1492 = vunpack.c.h.b16 %v385
    %v1493 = vunpack.c.l.b16 %v386
    %v1494 = vunpack.c.h.b16 %v386
    %v1495 = vunpack.c.l.b16 %v387
    %v1496 = vunpack.c.h.b16 %v387
    %v1497 = vunpack.c.l.b16 %v388
    %v1498 = vunpack.c.h.b16 %v388
    %v1499 = vunpack.c.l.b16 %v389
    %v1500 = vunpack.c.h.b16 %v389
    %v1501 = vunpack.c.l.b16 %v390
    %v1502 = vunpack.c.h.b16 %v390
    %v1503 = vunpack.c.l.b16 %v391
    %v1504 = vunpack.c.h.b16 %v391
    %v1505 = vunpack.c.l.b16 %v392
    %v1506 = vunpack.c.h.b16 %v392
    %v1507 = vunpack.c.l.b16 %v393
    %v1508 = vunpack.c.h.b16 %v393
    %v1509 = vunpack.c.l.b16 %v394
    %v1510 = vunpack.c.h.b16 %v394
    %v1511 = vunpack.c.l.b16 %v395
    %v1512 = vunpack.c.h.b16 %v395
    %v1513 = vunpack.c.l.b16 %v396
    %v1514 = vunpack.c.h.b16 %v396
    %v1515 = vunpack.c.l.b16 %v397
    %v1516 = vunpack.c.h.b16 %v397
    %v1517 = vunpack.c.l.b16 %v398
    %v1518 = vunpack.c.h.b16 %v398
    %v1519 = vunpack.c.l.b16 %v399
    %v1520 = vunpack.c.h.b16 %v399
    %v1521 = vunpack.c.l.b16 %v400
    %v1522 = vunpack.c.h.b16 %v400
    %v1523 = vunpack.c.l.b16 %v401
    %v1524 = vunpack.c.h.b16 %v401
    %v1525 = vunpack.c.l.b16 %v402
    %v1526 = vunpack.c.h.b16 %v402
    %v1527 = vunpack.c.l.b16 %v403
    %v1528 = vunpack.c.h.b16 %v403
    %v1529 = vunpack.c.l.b16 %v404
    %v1530 = vunpack.c.h.b16 %v404
    %v1531 = vunpack.c.l.b16 %v405
    %v1532 = vunpack.c.h.b16 %v405
    %v1533 = vunpack.c.l.b16 %v406
    %v1534 = vunpack.c.h.b16 %v406
    %v1535 = vunpack.c.l.b16 %v407
    %v1536 = vunpack.c.h.b16 %v407
    %v1537 = vunpack.c.l.b16 %v408
    %v1538 = vunpack.c.h.b16 %v408
    %v1539 = vunpack.c.l.b16 %v409
    %v1540 = vunpack.c.h.b16 %v409
    %v1541 = vunpack.c.l.b16 %v410
    %v1542 = vunpack.c.h.b16 %v410
    %v1543 = vunpack.c.l.b16 %v411
    %v1544 = vunpack.c.h.b16 %v411
    %v1545 = vunpack.c.l.b16 %v412
    %v1546 = vunpack.c.h.b16 %v412
    %v1547 = vunpack.c.l.b16 %v413
    %v1548 = vunpack.c.h.b16 %v413
    %v1549 = vunpack.c.l.b16 %v414
    %v1550 = vunpack.c.h.b16 %v414
    %v1551 = vunpack.c.l.b16 %v415
    %v1552 = vunpack.c.h.b16 %v415
    %v1553 = vunpack.c.l.b16 %v416
    %v1554 = vunpack.c.h.b16 %v416
    %v1555 = vunpack.c.l.b16 %v417
    %v1556 = vunpack.c.h.b16 %v417
    %v1557 = vunpack.c.l.b16 %v418
    %v1558 = vunpack.c.h.b16 %v418
    %v1559 = vunpack.c.l.b16 %v419
    %v1560 = vunpack.c.h.b16 %v419
    %v1561 = vunpack.c.l.b16 %v420
    %v1562 = vunpack.c.h.b16 %v420
    %v1563 = vunpack.c.l.b16 %v421
    %v1564 = vunpack.c.h.b16 %v421
    %v1565 = vunpack.c.l.b16 %v422
    %v1566 = vunpack.c.h.b16 %v422
    %v1567 = vunpack.c.l.b16 %v423
    %v1568 = vunpack.c.h.b16 %v423
    %v1569 = vunpack.c.l.b16 %v424
    %v1570 = vunpack.c.h.b16 %v424
    %v1571 = vunpack.c.l.b16 %v425
    %v1572 = vunpack.c.h.b16 %v425
    %v1573 = vunpack.c.l.b16 %v426
    %v1574 = vunpack.c.h.b16 %v426
    %v1575 = vunpack.c.l.b16 %v427
    %v1576 = vunpack.c.h.b16 %v427
    %v1577 = vunpack.c.l.b16 %v428
    %v1578 = vunpack.c.h.b16 %v428
    %v1579 = vunpack.c.l.b16 %v429
    %v1580 = vunpack.c.h.b16 %v429
    %v1581 = vunpack.c.l.b16 %v430
    %v1582 = vunpack.c.h.b16 %v430
    %v1583 = vpack.c.b16 %v827, %v815
    %v1584 = vpack.c.b16 %v828, %v816
    %v1585 = vpack.c.b16 %v829, %v817
    %v1586 = vpack.c.b16 %v830, %v818
    %v1587 = vpack.c.b16 %v831, %v819
    %v1588 = vpack.c.b16 %v832, %v820
    %v1589 = vpack.c.b16 %v833, %v821
    %v1590 = vpack.c.b16 %v834, %v822
    %v1591 = vpack.c.b16 %v835, %v823
    %v1592 = vpack.c.b16 %v836, %v824
    %v1593 = vpack.c.b16 %v837, %v825
    %v1594 = vpack.c.b16 %v838, %v826
    %v1595 = vpack.c.b16 %v851, %v839
    %v1596 = vpack.c.b16 %v852, %v840
    %v1597 = vpack.c.b16 %v853, %v841
    %v1598 = vpack.c.b16 %v854, %v842
    %v1599 = vpack.c.b16 %v855, %v843
    %v1600 = vpack.c.b16 %v856, %v844
    %v1601 = vpack.c.b16 %v857, %v845
    %v1602 = vpack.c.b16 %v858, %v846
    %v1603 = vpack.c.b16 %v859, %v847
    %v1604 = vpack.c.b16 %v860, %v848
    %v1605 = vpack.c.b16 %v861, %v849
    %v1606 = vpack.c.b16 %v862, %v850
    %v1607 = vpack.c.b16 %v875, %v863
    %v1608 = vpack.c.b16 %v876, %v864
    %v1609 = vpack.c.b16 %v877, %v865
    %v1610 = vpack.c.b16 %v878, %v866
    %v1611 = vpack.c.b16 %v879, %v867
    %v1612 = vpack.c.b16 %v880, %v868
    %v1613 = vpack.c.b16 %v881, %v869
    %v1614 = vpack.c.b16 %v882, %v870
    %v1615 = vpack.c.b16 %v883, %v871
    %v1616 = vpack.c.b16 %v884, %v872
    %v1617 = vpack.c.b16 %v885, %v873
    %v1618 = vpack.c.b16 %v886, %v874
    %v1619 = vpack.c.b16 %v899, %v887
    %v1620 = vpack.c.b16 %v900, %v888
    %v1621 = vpack.c.b16 %v901, %v889
    %v1622 = vpack.c.b16 %v902, %v890
    %v1623 = vpack.c.b16 %v903, %v891
    %v1624 = vpack.c.b16 %v904, %v892
    %v1625 = vpack.c.b16 %v905, %v893
    %v1626 = vpack.c.b16 %v906, %v894
    %v1627 = vpack.c.b16 %v907, %v895
    %v1628 = vpack.c.b16 %v908, %v896
    %v1629 = vpack.c.b16 %v909, %v897
    %v1630 = vpack.c.b16 %v910, %v898
    %v1631 = vpack.c.b16 %v923, %v911
    %v1632 = vpack.c.b16 %v924, %v912
    %v1633 = vpack.c.b16 %v925, %v913
    %v1634 = vpack.c.b16 %v926, %v914
    %v1635 = vpack.c.b16 %v927, %v915
    %v1636 = vpack.c.b16 %v928, %v916
    %v1637 = vpack.c.b16 %v929, %v917
    %v1638 = vpack.c.b16 %v930, %v918
    %v1639 = vpack.c.b16 %v931, %v919
    %v1640 = vpack.c.b16 %v932, %v920
    %v1641 = vpack.c.b16 %v933, %v921
    %v1642 = vpack.c.b16 %v934, %v922
    %v1643 = vpack.c.b16 %v947, %v935
    %v1644 = vpack.c.b16 %v948, %v936
    %v1645 = vpack.c.b16 %v949, %v937
    %v1646 = vpack.c.b16 %v950, %v938
    %v1647 = vpack.c.b16 %v951, %v939
    %v1648 = vpack.c.b16 %v952, %v940
    %v1649 = vpack.c.b16 %v953, %v941
    %v1650 = vpack.c.b16 %v954, %v942
    %v1651 = vpack.c.b16 %v955, %v943
    %v1652 = vpack.c.b16 %v956, %v944
    %v1653 = vpack.c.b16 %v957, %v945
    %v1654 = vpack.c.b16 %v958, %v946
    %v1655 = vpack.c.b16 %v971, %v959
    %v1656 = vpack.c.b16 %v972, %v960
    %v1657 = vpack.c.b16 %v973, %v961
    %v1658 = vpack.c.b16 %v974, %v962
    %v1659 = vpack.c.b16 %v975, %v963
    %v1660 = vpack.c.b16 %v976, %v964
    %v1661 = vpack.c.b16 %v977, %v965
    %v1662 = vpack.c.b16 %v978, %v966
    %v1663 = vpack.c.b16 %v979, %v967
    %v1664 = vpack.c.b16 %v980, %v968
    %v1665 = vpack.c.b16 %v981, %v969
    %v1666 = vpack.c.b16 %v982, %v970
    %v1667 = vpack.c.b16 %v995, %v983
    %v1668 = vpack.c.b16 %v996, %v984
    %v1669 = vpack.c.b16 %v997, %v985
    %v1670 = vpack.c.b16 %v998, %v986
    %v1671 = vpack.c.b16 %v999, %v987
    %v1672 = vpack.c.b16 %v1000, %v988
    %v1673 = vpack.c.b16 %v1001, %v989
    %v1674 = vpack.c.b16 %v1002, %v990
    %v1675 = vpack.c.b16 %v1003, %v991
    %v1676 = vpack.c.b16 %v1004, %v992
    %v1677 = vpack.c.b16 %v1005, %v993
    %v1678 = vpack.c.b16 %v1006, %v994
    %v1679 = vpack.c.b16 %v1019, %v1007
    %v1680 = vpack.c.b16 %v1020, %v1008
    %v1681 = vpack.c.b16 %v1021, %v1009
    %v1682 = vpack.c.b16 %v1022, %v1010
    %v1683 = vpack.c.b16 %v1023, %v1011
    %v1684 = vpack.c.b16 %v1024, %v1012
    %v1685 = vpack.c.b16 %v1025, %v1013
    %v1686 = vpack.c.b16 %v1026, %v1014
    %v1687 = vpack.c.b16 %v1027, %v1015
    %v1688 = vpack.c.b16 %v1028, %v1016
    %v1689 = vpack.c.b16 %v1029, %v1017
    %v1690 = vpack.c.b16 %v1030, %v1018
    %v1691 = vpack.c.b16 %v1043, %v1031
    %v1692 = vpack.c.b16 %v1044, %v1032
    %v1693 = vpack.c.b16 %v1045, %v1033
    %v1694 = vpack.c.b16 %v1046, %v1034
    %v1695 = vpack.c.b16 %v1047, %v1035
    %v1696 = vpack.c.b16 %v1048, %v1036
    %v1697 = vpack.c.b16 %v1049, %v1037
    %v1698 = vpack.c.b16 %v1050, %v1038
    %v1699 = vpack.c.b16 %v1051, %v1039
    %v1700 = vpack.c.b16 %v1052, %v1040
    %v1701 = vpack.c.b16 %v1053, %v1041
    %v1702 = vpack.c.b16 %v1054, %v1042
    %v1703 = vpack.c.b16 %v1067, %v1055
    %v1704 = vpack.c.b16 %v1068, %v1056
    %v1705 = vpack.c.b16 %v1069, %v1057
    %v1706 = vpack.c.b16 %v1070, %v1058
    %v1707 = vpack.c.b16 %v1071, %v1059
    %v1708 = vpack.c.b16 %v1072, %v1060
    %v1709 = vpack.c.b16 %v1073, %v1061
    %v1710 = vpack.c.b16 %v1074, %v1062
    %v1711 = vpack.c.b16 %v1075, %v1063
    %v1712 = vpack.c.b16 %v1076, %v1064
    %v1713 = vpack.c.b16 %v1077, %v1065
    %v1714 = vpack.c.b16 %v1078, %v1066
    %v1715 = vpack.c.b16 %v1091, %v1079
    %v1716 = vpack.c.b16 %v1092, %v1080
    %v1717 = vpack.c.b16 %v1093, %v1081
    %v1718 = vpack.c.b16 %v1094, %v1082
    %v1719 = vpack.c.b16 %v1095, %v1083
    %v1720 = vpack.c.b16 %v1096, %v1084
    %v1721 = vpack.c.b16 %v1097, %v1085
    %v1722 = vpack.c.b16 %v1098, %v1086
    %v1723 = vpack.c.b16 %v1099, %v1087
    %v1724 = vpack.c.b16 %v1100, %v1088
    %v1725 = vpack.c.b16 %v1101, %v1089
    %v1726 = vpack.c.b16 %v1102, %v1090
    %v1727 = vpack.c.b16 %v1115, %v1103
    %v1728 = vpack.c.b16 %v1116, %v1104
    %v1729 = vpack.c.b16 %v1117, %v1105
    %v1730 = vpack.c.b16 %v1118, %v1106
    %v1731 = vpack.c.b16 %v1119, %v1107
    %v1732 = vpack.c.b16 %v1120, %v1108
    %v1733 = vpack.c.b16 %v1121, %v1109
    %v1734 = vpack.c.b16 %v1122, %v1110
    %v1735 = vpack.c.b16 %v1123, %v1111
    %v1736 = vpack.c.b16 %v1124, %v1112
    %v1737 = vpack.c.b16 %v1125, %v1113
    %v1738 = vpack.c.b16 %v1126, %v1114
    %v1739 = vpack.c.b16 %v1139, %v1127
    %v1740 = vpack.c.b16 %v1140, %v1128
    %v1741 = vpack.c.b16 %v1141, %v1129
    %v1742 = vpack.c.b16 %v1142, %v1130
    %v1743 = vpack.c.b16 %v1143, %v1131
    %v1744 = vpack.c.b16 %v1144, %v1132
    %v1745 = vpack.c.b16 %v1145, %v1133
    %v1746 = vpack.c.b16 %v1146, %v1134
    %v1747 = vpack.c.b16 %v1147, %v1135
    %v1748 = vpack.c.b16 %v1148, %v1136
    %v1749 = vpack.c.b16 %v1149, %v1137
    %v1750 = vpack.c.b16 %v1150, %v1138
    %v1751 = vpack.c.b16 %v1163, %v1151
    %v1752 = vpack.c.b16 %v1164, %v1152
    %v1753 = vpack.c.b16 %v1165, %v1153
    %v1754 = vpack.c.b16 %v1166, %v1154
    %v1755 = vpack.c.b16 %v1167, %v1155
    %v1756 = vpack.c.b16 %v1168, %v1156
    %v1757 = vpack.c.b16 %v1169, %v1157
    %v1758 = vpack.c.b16 %v1170, %v1158
    %v1759 = vpack.c.b16 %v1171, %v1159
    %v1760 = vpack.c.b16 %v1172, %v1160
    %v1761 = vpack.c.b16 %v1173, %v1161
    %v1762 = vpack.c.b16 %v1174, %v1162
    %v1763 = vpack.c.b16 %v1187, %v1175
    %v1764 = vpack.c.b16 %v1188, %v1176
    %v1765 = vpack.c.b16 %v1189, %v1177
    %v1766 = vpack.c.b16 %v1190, %v1178
    %v1767 = vpack.c.b16 %v1191, %v1179
    %v1768 = vpack.c.b16 %v1192, %v1180
    %v1769 = vpack.c.b16 %v1193, %v1181
    %v1770 = vpack.c.b16 %v1194, %v1182
    %v1771 = vpack.c.b16 %v1195, %v1183
    %v1772 = vpack.c.b16 %v1196, %v1184
    %v1773 = vpack.c.b16 %v1197, %v1185
    %v1774 = vpack.c.b16 %v1198, %v1186
    %v1775 = vpack.c.b16 %v1211, %v1199
    %v1776 = vpack.c.b16 %v1212, %v1200
    %v1777 = vpack.c.b16 %v1213, %v1201
    %v1778 = vpack.c.b16 %v1214, %v1202
    %v1779 = vpack.c.b16 %v1215, %v1203
    %v1780 = vpack.c.b16 %v1216, %v1204
    %v1781 = vpack.c.b16 %v1217, %v1205
    %v1782 = vpack.c.b16 %v1218, %v1206
    %v1783 = vpack.c.b16 %v1219, %v1207
    %v1784 = vpack.c.b16 %v1220, %v1208
    %v1785 = vpack.c.b16 %v1221, %v1209
    %v1786 = vpack.c.b16 %v1222, %v1210
    %v1787 = vpack.c.b16 %v1235, %v1223
    %v1788 = vpack.c.b16 %v1236, %v1224
    %v1789 = vpack.c.b16 %v1237, %v1225
    %v1790 = vpack.c.b16 %v1238, %v1226
    %v1791 = vpack.c.b16 %v1239, %v1227
    %v1792 = vpack.c.b16 %v1240, %v1228
    %v1793 = vpack.c.b16 %v1241, %v1229
    %v1794 = vpack.c.b16 %v1242, %v1230
    %v1795 = vpack.c.b16 %v1243, %v1231
    %v1796 = vpack.c.b16 %v1244, %v1232
    %v1797 = vpack.c.b16 %v1245, %v1233
    %v1798 = vpack.c.b16 %v1246, %v1234
    %v1799 = vpack.c.b16 %v1259, %v1247
    %v1800 = vpack.c.b16 %v1260, %v1248
    %v1801 = vpack.c.b16 %v1261, %v1249
    %v1802 = vpack.c.b16 %v1262, %v1250
    %v1803 = vpack.c.b16 %v1263, %v1251
    %v1804 = vpack.c.b16 %v1264, %v1252
    %v1805 = vpack.c.b16 %v1265, %v1253
    %v1806 = vpack.c.b16 %v1266, %v1254
    %v1807 = vpack.c.b16 %v1267, %v1255
    %v1808 = vpack.c.b16 %v1268, %v1256
    %v1809 = vpack.c.b16 %v1269, %v1257
    %v1810 = vpack.c.b16 %v1270, %v1258
    %v1811 = vpack.c.b16 %v1283, %v1271
    %v1812 = vpack.c.b16 %v1284, %v1272
    %v1813 = vpack.c.b16 %v1285, %v1273
    %v1814 = vpack.c.b16 %v1286, %v1274
    %v1815 = vpack.c.b16 %v1287, %v1275
    %v1816 = vpack.c.b16 %v1288, %v1276
    %v1817 = vpack.c.b16 %v1289, %v1277
    %v1818 = vpack.c.b16 %v1290, %v1278
    %v1819 = vpack.c.b16 %v1291, %v1279
    %v1820 = vpack.c.b16 %v1292, %v1280
    %v1821 = vpack.c.b16 %v1293, %v1281
    %v1822 = vpack.c.b16 %v1294, %v1282
    %v1823 = vpack.c.b16 %v1307, %v1295
    %v1824 = vpack.c.b16 %v1308, %v1296
    %v1825 = vpack.c.b16 %v1309, %v1297
    %v1826 = vpack.c.b16 %v1310, %v1298
    %v1827 = vpack.c.b16 %v1311, %v1299
    %v1828 = vpack.c.b16 %v1312, %v1300
    %v1829 = vpack.c.b16 %v1313, %v1301
    %v1830 = vpack.c.b16 %v1314, %v1302
    %v1831 = vpack.c.b16 %v1315, %v1303
    %v1832 = vpack.c.b16 %v1316, %v1304
    %v1833 = vpack.c.b16 %v1317, %v1305
    %v1834 = vpack.c.b16 %v1318, %v1306
    %v1835 = vpack.c.b16 %v1331, %v1319
    %v1836 = vpack.c.b16 %v1332, %v1320
    %v1837 = vpack.c.b16 %v1333, %v1321
    %v1838 = vpack.c.b16 %v1334, %v1322
    %v1839 = vpack.c.b16 %v1335, %v1323
    %v1840 = vpack.c.b16 %v1336, %v1324
    %v1841 = vpack.c.b16 %v1337, %v1325
    %v1842 = vpack.c.b16 %v1338, %v1326
    %v1843 = vpack.c.b16 %v1339, %v1327
    %v1844 = vpack.c.b16 %v1340, %v1328
    %v1845 = vpack.c.b16 %v1341, %v1329
    %v1846 = vpack.c.b16 %v1342, %v1330
    %v1847 = vpack.c.b16 %v1355, %v1343
    %v1848 = vpack.c.b16 %v1356, %v1344
    %v1849 = vpack.c.b16 %v1357, %v1345
    %v1850 = vpack.c.b16 %v1358, %v1346
    %v1851 = vpack.c.b16 %v1359, %v1347
    %v1852 = vpack.c.b16 %v1360, %v1348
    %v1853 = vpack.c.b16 %v1361, %v1349
    %v1854 = vpack.c.b16 %v1362, %v1350
    %v1855 = vpack.c.b16 %v1363, %v1351
    %v1856 = vpack.c.b16 %v1364, %v1352
    %v1857 = vpack.c.b16 %v1365, %v1353
    %v1858 = vpack.c.b16 %v1366, %v1354
    %v1859 = vpack.c.b16 %v1379, %v1367
    %v1860 = vpack.c.b16 %v1380, %v1368
    %v1861 = vpack.c.b16 %v1381, %v1369
    %v1862 = vpack.c.b16 %v1382, %v1370
    %v1863 = vpack.c.b16 %v1383, %v1371
    %v1864 = vpack.c.b16 %v1384, %v1372
    %v1865 = vpack.c.b16 %v1385, %v1373
    %v1866 = vpack.c.b16 %v1386, %v1374
    %v1867 = vpack.c.b16 %v1387, %v1375
    %v1868 = vpack.c.b16 %v1388, %v1376
    %v1869 = vpack.c.b16 %v1389, %v1377
    %v1870 = vpack.c.b16 %v1390, %v1378
    %v1871 = vpack.c.b16 %v1403, %v1391
    %v1872 = vpack.c.b16 %v1404, %v1392
    %v1873 = vpack.c.b16 %v1405, %v1393
    %v1874 = vpack.c.b16 %v1406, %v1394
    %v1875 = vpack.c.b16 %v1407, %v1395
    %v1876 = vpack.c.b16 %v1408, %v1396
    %v1877 = vpack.c.b16 %v1409, %v1397
    %v1878 = vpack.c.b16 %v1410, %v1398
    %v1879 = vpack.c.b16 %v1411, %v1399
    %v1880 = vpack.c.b16 %v1412, %v1400
    %v1881 = vpack.c.b16 %v1413, %v1401
    %v1882 = vpack.c.b16 %v1414, %v1402
    %v1883 = vpack.c.b16 %v1427, %v1415
    %v1884 = vpack.c.b16 %v1428, %v1416
    %v1885 = vpack.c.b16 %v1429, %v1417
    %v1886 = vpack.c.b16 %v1430, %v1418
    %v1887 = vpack.c.b16 %v1431, %v1419
    %v1888 = vpack.c.b16 %v1432, %v1420
    %v1889 = vpack.c.b16 %v1433, %v1421
    %v1890 = vpack.c.b16 %v1434, %v1422
    %v1891 = vpack.c.b16 %v1435, %v1423
    %v1892 = vpack.c.b16 %v1436, %v1424
    %v1893 = vpack.c.b16 %v1437, %v1425
    %v1894 = vpack.c.b16 %v1438, %v1426
    %v1895 = vpack.c.b16 %v1451, %v1439
    %v1896 = vpack.c.b16 %v1452, %v1440
    %v1897 = vpack.c.b16 %v1453, %v1441
    %v1898 = vpack.c.b16 %v1454, %v1442
    %v1899 = vpack.c.b16 %v1455, %v1443
    %v1900 = vpack.c.b16 %v1456, %v1444
    %v1901 = vpack.c.b16 %v1457, %v1445
    %v1902 = vpack.c.b16 %v1458, %v1446
    %v1903 = vpack.c.b16 %v1459, %v1447
    %v1904 = vpack.c.b16 %v1460, %v1448
    %v1905 = vpack.c.b16 %v1461, %v1449
    %v1906 = vpack.c.b16 %v1462, %v1450
    %v1907 = vpack.c.b16 %v1475, %v1463
    %v1908 = vpack.c.b16 %v1476, %v1464
    %v1909 = vpack.c.b16 %v1477, %v1465
    %v1910 = vpack.c.b16 %v1478, %v1466
    %v1911 = vpack.c.b16 %v1479, %v1467
    %v1912 = vpack.c.b16 %v1480, %v1468
    %v1913 = vpack.c.b16 %v1481, %v1469
    %v1914 = vpack.c.b16 %v1482, %v1470
    %v1915 = vpack.c.b16 %v1483, %v1471
    %v1916 = vpack.c.b16 %v1484, %v1472
    %v1917 = vpack.c.b16 %v1485, %v1473
    %v1918 = vpack.c.b16 %v1486, %v1474
    %v1919 = vpack.c.b16 %v1499, %v1487
    %v1920 = vpack.c.b16 %v1500, %v1488
    %v1921 = vpack.c.b16 %v1501, %v1489
    %v1922 = vpack.c.b16 %v1502, %v1490
    %v1923 = vpack.c.b16 %v1503, %v1491
    %v1924 = vpack.c.b16 %v1504, %v1492
    %v1925 = vpack.c.b16 %v1505, %v1493
    %v1926 = vpack.c.b16 %v1506, %v1494
    %v1927 = vpack.c.b16 %v1507, %v1495
    %v1928 = vpack.c.b16 %v1508, %v1496
    %v1929 = vpack.c.b16 %v1509, %v1497
    %v1930 = vpack.c.b16 %v1510, %v1498
    %v1931 = vpack.c.b16 %v1523, %v1511
    %v1932 = vpack.c.b16 %v1524, %v1512
    %v1933 = vpack.c.b16 %v1525, %v1513
    %v1934 = vpack.c.b16 %v1526, %v1514
    %v1935 = vpack.c.b16 %v1527, %v1515
    %v1936 = vpack.c.b16 %v1528, %v1516
    %v1937 = vpack.c.b16 %v1529, %v1517
    %v1938 = vpack.c.b16 %v1530, %v1518
    %v1939 = vpack.c.b16 %v1531, %v1519
    %v1940 = vpack.c.b16 %v1532, %v1520
    %v1941 = vpack.c.b16 %v1533, %v1521
    %v1942 = vpack.c.b16 %v1534, %v1522
    %v1943 = vpack.c.b16 %v1547, %v1535
    %v1944 = vpack.c.b16 %v1548, %v1536
    %v1945 = vpack.c.b16 %v1549, %v1537
    %v1946 = vpack.c.b16 %v1550, %v1538
    %v1947 = vpack.c.b16 %v1551, %v1539
    %v1948 = vpack.c.b16 %v1552, %v1540
    %v1949 = vpack.c.b16 %v1553, %v1541
    %v1950 = vpack.c.b16 %v1554, %v1542
    %v1951 = vpack.c.b16 %v1555, %v1543
    %v1952 = vpack.c.b16 %v1556, %v1544
    %v1953 = vpack.c.b16 %v1557, %v1545
    %v1954 = vpack.c.b16 %v1558, %v1546
    %v1955 = vpack.c.b16 %v1571, %v1559
    %v1956 = vpack.c.b16 %v1572, %v1560
    %v1957 = vpack.c.b16 %v1573, %v1561
    %v1958 = vpack.c.b16 %v1574, %v1562
    %v1959 = vpack.c.b16 %v1575, %v1563
    %v1960 = vpack.c.b16 %v1576, %v1564
    %v1961 = vpack.c.b16 %v1577, %v1565
    %v1962 = vpack.c.b16 %v1578, %v1566
    %v1963 = vpack.c.b16 %v1579, %v1567
    %v1964 = vpack.c.b16 %v1580, %v1568
    %v1965 = vpack.c.b16 %v1581, %v1569
    %v1966 = vpack.c.b16 %v1582, %v1570
    %2351 = vmatprep.subr.bf16.mxu0 %v1584
    %2352 = vmatpush1.bf16.msra.mxu0 %v1583
    %2353 = vmatprep.subr.bf16.mxu0 %v1596
    %2354 = vmatpush1.bf16.msra.mxu0 %v1595
    %2355 = vmatprep.subr.bf16.mxu0 %v1608
    %2356 = vmatpush1.bf16.msra.mxu0 %v1607
    %2357 = vmatprep.subr.bf16.mxu0 %v1620
    %2358 = vmatpush1.bf16.msra.mxu0 %v1619
    %2359 = vmatprep.subr.bf16.mxu0 %v1632
    %2360 = vmatpush1.bf16.msra.mxu0 %v1631
    %2361 = vmatprep.subr.bf16.mxu0 %v1644
    %2362 = vmatpush1.bf16.msra.mxu0 %v1643
    %2363 = vmatprep.subr.bf16.mxu0 %v1656
    %2364 = vmatpush1.bf16.msra.mxu0 %v1655
    %2365 = vmatprep.subr.bf16.mxu0 %v1668
    %2366 = vmatpush1.bf16.msra.mxu0 %v1667
    %2367 = vmatprep.subr.bf16.mxu0 %v1680
    %2368 = vmatpush1.bf16.msra.mxu0 %v1679
    %2369 = vmatprep.subr.bf16.mxu0 %v1692
    %2370 = vmatpush1.bf16.msra.mxu0 %v1691
    %2371 = vmatprep.subr.bf16.mxu0 %v1704
    %2372 = vmatpush1.bf16.msra.mxu0 %v1703
    %2373 = vmatprep.subr.bf16.mxu0 %v1716
    %2374 = vmatpush1.bf16.msra.mxu0 %v1715
    %2375 = vmatprep.subr.bf16.mxu0 %v1728
    %2376 = vmatpush1.bf16.msra.mxu0 %v1727
    %2377 = vmatprep.subr.bf16.mxu0 %v1740
    %2378 = vmatpush1.bf16.msra.mxu0 %v1739
    %2379 = vmatprep.subr.bf16.mxu0 %v1752
    %2380 = vmatpush1.bf16.msra.mxu0 %v1751
    %2381 = vmatprep.subr.bf16.mxu0 %v1764
    %2382 = vmatpush1.bf16.msra.mxu0 %v1763
    %2383 = vmatprep.mubr.bf16.mxu0 %v40
    %2384 = vmatmul.mubr.bf16.gmra.mrb[0].mxu0 %v39
    %v2385 = vpop.f32.mrb[0].mxu0
    %v2386 = vadd.f32 0.0, %v2385
    %v2387 = vpop.f32.mrb[0].mxu0
    %v2388 = vadd.f32 0.0, %v2387
    %v2389 = vpop.f32.mrb[0].mxu0
    %v2390 = vadd.f32 0.0, %v2389
    %v2391 = vpop.f32.mrb[0].mxu0
    %v2392 = vadd.f32 0.0, %v2391
    %2393 = vmatprep.mubr.bf16.mxu0 %v44
    %2394 = vmatmul.mubr.bf16.gmra.mrb[0].mxu0 %v43
    %v2395 = vpop.f32.mrb[0].mxu0
    %v2396 = vadd.f32 0.0, %v2395
    %v2397 = vpop.f32.mrb[0].mxu0
    %v2398 = vadd.f32 0.0, %v2397
    %v2399 = vpop.f32.mrb[0].mxu0
    %v2400 = vadd.f32 0.0, %v2399
    %v2401 = vpop.f32.mrb[0].mxu0
    %v2402 = vadd.f32 0.0, %v2401
    %2403 = vdwg.mxu0
    %2404 = vmatprep.subr.bf16.mxu0 %v1776
    %2405 = vmatpush1.bf16.msra.mxu0 %v1775
    %2406 = vmatprep.subr.bf16.mxu0 %v1788
    %2407 = vmatpush1.bf16.msra.mxu0 %v1787
    %2408 = vmatprep.subr.bf16.mxu0 %v1800
    %2409 = vmatpush1.bf16.msra.mxu0 %v1799
    %2410 = vmatprep.subr.bf16.mxu0 %v1812
    %2411 = vmatpush1.bf16.msra.mxu0 %v1811
    %2412 = vmatprep.subr.bf16.mxu0 %v1824
    %2413 = vmatpush1.bf16.msra.mxu0 %v1823
    %2414 = vmatprep.subr.bf16.mxu0 %v1836
    %2415 = vmatpush1.bf16.msra.mxu0 %v1835
    %2416 = vmatprep.subr.bf16.mxu0 %v1848
    %2417 = vmatpush1.bf16.msra.mxu0 %v1847
    %2418 = vmatprep.subr.bf16.mxu0 %v1860
    %2419 = vmatpush1.bf16.msra.mxu0 %v1859
    %2420 = vmatprep.subr.bf16.mxu0 %v1872
    %2421 = vmatpush1.bf16.msra.mxu0 %v1871
    %2422 = vmatprep.subr.bf16.mxu0 %v1884
    %2423 = vmatpush1.bf16.msra.mxu0 %v1883
    %2424 = vmatprep.subr.bf16.mxu0 %v1896
    %2425 = vmatpush1.bf16.msra.mxu0 %v1895
    %2426 = vmatprep.subr.bf16.mxu0 %v1908
    %2427 = vmatpush1.bf16.msra.mxu0 %v1907
    %2428 = vmatprep.subr.bf16.mxu0 %v1920
    %2429 = vmatpush1.bf16.msra.mxu0 %v1919
    %2430 = vmatprep.subr.bf16.mxu0 %v1932
    %2431 = vmatpush1.bf16.msra.mxu0 %v1931
    %2432 = vmatprep.subr.bf16.mxu0 %v1944
    %2433 = vmatpush1.bf16.msra.mxu0 %v1943
    %2434 = vmatprep.subr.bf16.mxu0 %v1956
    %2435 = vmatpush1.bf16.msra.mxu0 %v1955
    %2436 = vmatprep.mubr.bf16.mxu0 %v42
    %2437 = vmatmul.mubr.bf16.gmra.mrb[0].mxu0 %v41
    %v2438 = vpop.f32.mrb[0].mxu0
    %v2439 = vadd.f32 %v2386, %v2438
    %v2440 = vpop.f32.mrb[0].mxu0
    %v2441 = vadd.f32 %v2388, %v2440
    %v2442 = vpop.f32.mrb[0].mxu0
    %v2443 = vadd.f32 %v2390, %v2442
    %v2444 = vpop.f32.mrb[0].mxu0
    %v2445 = vadd.f32 %v2392, %v2444
    %2446 = vmatprep.mubr.bf16.mxu0 %v46
    %2447 = vmatmul.mubr.bf16.gmra.mrb[0].mxu0 %v45
    %v2448 = vpop.f32.mrb[0].mxu0
    %v2449 = vadd.f32 %v2396, %v2448
    %v2450 = vpop.f32.mrb[0].mxu0
    %v2451 = vadd.f32 %v2398, %v2450
    %v2452 = vpop.f32.mrb[0].mxu0
    %v2453 = vadd.f32 %v2400, %v2452
    %v2454 = vpop.f32.mrb[0].mxu0
    %v2455 = vadd.f32 %v2402, %v2454
    %2456 = vdwg.mxu0
    %2457 = vmatprep.subr.bf16.mxu0 %v1586
    %2458 = vmatpush1.bf16.msra.mxu0 %v1585
    %2459 = vmatprep.subr.bf16.mxu0 %v1598
    %2460 = vmatpush1.bf16.msra.mxu0 %v1597
    %2461 = vmatprep.subr.bf16.mxu0 %v1610
    %2462 = vmatpush1.bf16.msra.mxu0 %v1609
    %2463 = vmatprep.subr.bf16.mxu0 %v1622
    %2464 = vmatpush1.bf16.msra.mxu0 %v1621
    %2465 = vmatprep.subr.bf16.mxu0 %v1634
    %2466 = vmatpush1.bf16.msra.mxu0 %v1633
    %2467 = vmatprep.subr.bf16.mxu0 %v1646
    %2468 = vmatpush1.bf16.msra.mxu0 %v1645
    %2469 = vmatprep.subr.bf16.mxu0 %v1658
    %2470 = vmatpush1.bf16.msra.mxu0 %v1657
    %2471 = vmatprep.subr.bf16.mxu0 %v1670
    %2472 = vmatpush1.bf16.msra.mxu0 %v1669
    %2473 = vmatprep.subr.bf16.mxu0 %v1682
    %2474 = vmatpush1.bf16.msra.mxu0 %v1681
    %2475 = vmatprep.subr.bf16.mxu0 %v1694
    %2476 = vmatpush1.bf16.msra.mxu0 %v1693
    %2477 = vmatprep.subr.bf16.mxu0 %v1706
    %2478 = vmatpush1.bf16.msra.mxu0 %v1705
    %2479 = vmatprep.subr.bf16.mxu0 %v1718
    %2480 = vmatpush1.bf16.msra.mxu0 %v1717
    %2481 = vmatprep.subr.bf16.mxu0 %v1730
    %2482 = vmatpush1.bf16.msra.mxu0 %v1729
    %2483 = vmatprep.subr.bf16.mxu0 %v1742
    %2484 = vmatpush1.bf16.msra.mxu0 %v1741
    %2485 = vmatprep.subr.bf16.mxu0 %v1754
    %2486 = vmatpush1.bf16.msra.mxu0 %v1753
    %2487 = vmatprep.subr.bf16.mxu0 %v1766
    %2488 = vmatpush1.bf16.msra.mxu0 %v1765
    %2489 = vmatprep.mubr.bf16.mxu0 %v40
    %2490 = vmatmul.mubr.bf16.gmra.mrb[0].mxu0 %v39
    %v2491 = vpop.f32.mrb[0].mxu0
    %v2492 = vadd.f32 0.0, %v2491
    %v2493 = vpop.f32.mrb[0].mxu0
    %v2494 = vadd.f32 0.0, %v2493
    %v2495 = vpop.f32.mrb[0].mxu0
    %v2496 = vadd.f32 0.0, %v2495
    %v2497 = vpop.f32.mrb[0].mxu0
    %v2498 = vadd.f32 0.0, %v2497
    %2499 = vmatprep.mubr.bf16.mxu0 %v44
    %2500 = vmatmul.mubr.bf16.gmra.mrb[0].mxu0 %v43
    %v2501 = vpop.f32.mrb[0].mxu0
    %v2502 = vadd.f32 0.0, %v2501
    %v2503 = vpop.f32.mrb[0].mxu0
    %v2504 = vadd.f32 0.0, %v2503
    %v2505 = vpop.f32.mrb[0].mxu0
    %v2506 = vadd.f32 0.0, %v2505
    %v2507 = vpop.f32.mrb[0].mxu0
    %v2508 = vadd.f32 0.0, %v2507
    %2509 = vdwg.mxu0
    %2510 = vmatprep.subr.bf16.mxu0 %v1778
    %2511 = vmatpush1.bf16.msra.mxu0 %v1777
    %2512 = vmatprep.subr.bf16.mxu0 %v1790
    %2513 = vmatpush1.bf16.msra.mxu0 %v1789
    %2514 = vmatprep.subr.bf16.mxu0 %v1802
    %2515 = vmatpush1.bf16.msra.mxu0 %v1801
    %2516 = vmatprep.subr.bf16.mxu0 %v1814
    %2517 = vmatpush1.bf16.msra.mxu0 %v1813
    %2518 = vmatprep.subr.bf16.mxu0 %v1826
    %2519 = vmatpush1.bf16.msra.mxu0 %v1825
    %2520 = vmatprep.subr.bf16.mxu0 %v1838
    %2521 = vmatpush1.bf16.msra.mxu0 %v1837
    %2522 = vmatprep.subr.bf16.mxu0 %v1850
    %2523 = vmatpush1.bf16.msra.mxu0 %v1849
    %2524 = vmatprep.subr.bf16.mxu0 %v1862
    %2525 = vmatpush1.bf16.msra.mxu0 %v1861
    %2526 = vmatprep.subr.bf16.mxu0 %v1874
    %2527 = vmatpush1.bf16.msra.mxu0 %v1873
    %2528 = vmatprep.subr.bf16.mxu0 %v1886
    %2529 = vmatpush1.bf16.msra.mxu0 %v1885
    %2530 = vmatprep.subr.bf16.mxu0 %v1898
    %2531 = vmatpush1.bf16.msra.mxu0 %v1897
    %2532 = vmatprep.subr.bf16.mxu0 %v1910
    %2533 = vmatpush1.bf16.msra.mxu0 %v1909
    %2534 = vmatprep.subr.bf16.mxu0 %v1922
    %2535 = vmatpush1.bf16.msra.mxu0 %v1921
    %2536 = vmatprep.subr.bf16.mxu0 %v1934
    %2537 = vmatpush1.bf16.msra.mxu0 %v1933
    %2538 = vmatprep.subr.bf16.mxu0 %v1946
    %2539 = vmatpush1.bf16.msra.mxu0 %v1945
    %2540 = vmatprep.subr.bf16.mxu0 %v1958
    %2541 = vmatpush1.bf16.msra.mxu0 %v1957
    %2542 = vmatprep.mubr.bf16.mxu0 %v42
    %2543 = vmatmul.mubr.bf16.gmra.mrb[0].mxu0 %v41
    %v2544 = vpop.f32.mrb[0].mxu0
    %v2545 = vadd.f32 %v2492, %v2544
    %v2546 = vpop.f32.mrb[0].mxu0
    %v2547 = vadd.f32 %v2494, %v2546
    %v2548 = vpop.f32.mrb[0].mxu0
    %v2549 = vadd.f32 %v2496, %v2548
    %v2550 = vpop.f32.mrb[0].mxu0
    %v2551 = vadd.f32 %v2498, %v2550
    %2552 = vmatprep.mubr.bf16.mxu0 %v46
    %2553 = vmatmul.mubr.bf16.gmra.mrb[0].mxu0 %v45
    %v2554 = vpop.f32.mrb[0].mxu0
    %v2555 = vadd.f32 %v2502, %v2554
    %v2556 = vpop.f32.mrb[0].mxu0
    %v2557 = vadd.f32 %v2504, %v2556
    %v2558 = vpop.f32.mrb[0].mxu0
    %v2559 = vadd.f32 %v2506, %v2558
    %v2560 = vpop.f32.mrb[0].mxu0
    %v2561 = vadd.f32 %v2508, %v2560
    %2562 = vdwg.mxu0
    %2563 = vmatprep.subr.bf16.mxu0 %v1588
    %2564 = vmatpush1.bf16.msra.mxu0 %v1587
    %2565 = vmatprep.subr.bf16.mxu0 %v1600
    %2566 = vmatpush1.bf16.msra.mxu0 %v1599
    %2567 = vmatprep.subr.bf16.mxu0 %v1612
    %2568 = vmatpush1.bf16.msra.mxu0 %v1611
    %2569 = vmatprep.subr.bf16.mxu0 %v1624
    %2570 = vmatpush1.bf16.msra.mxu0 %v1623
    %2571 = vmatprep.subr.bf16.mxu0 %v1636
    %2572 = vmatpush1.bf16.msra.mxu0 %v1635
    %2573 = vmatprep.subr.bf16.mxu0 %v1648
    %2574 = vmatpush1.bf16.msra.mxu0 %v1647
    %2575 = vmatprep.subr.bf16.mxu0 %v1660
    %2576 = vmatpush1.bf16.msra.mxu0 %v1659
    %2577 = vmatprep.subr.bf16.mxu0 %v1672
    %2578 = vmatpush1.bf16.msra.mxu0 %v1671
    %2579 = vmatprep.subr.bf16.mxu0 %v1684
    %2580 = vmatpush1.bf16.msra.mxu0 %v1683
    %2581 = vmatprep.subr.bf16.mxu0 %v1696
    %2582 = vmatpush1.bf16.msra.mxu0 %v1695
    %2583 = vmatprep.subr.bf16.mxu0 %v1708
    %2584 = vmatpush1.bf16.msra.mxu0 %v1707
    %2585 = vmatprep.subr.bf16.mxu0 %v1720
    %2586 = vmatpush1.bf16.msra.mxu0 %v1719
    %2587 = vmatprep.subr.bf16.mxu0 %v1732
    %2588 = vmatpush1.bf16.msra.mxu0 %v1731
    %2589 = vmatprep.subr.bf16.mxu0 %v1744
    %2590 = vmatpush1.bf16.msra.mxu0 %v1743
    %2591 = vmatprep.subr.bf16.mxu0 %v1756
    %2592 = vmatpush1.bf16.msra.mxu0 %v1755
    %2593 = vmatprep.subr.bf16.mxu0 %v1768
    %2594 = vmatpush1.bf16.msra.mxu0 %v1767
    %2595 = vmatprep.mubr.bf16.mxu0 %v40
    %2596 = vmatmul.mubr.bf16.gmra.mrb[0].mxu0 %v39
    %v2597 = vpop.f32.mrb[0].mxu0
    %v2598 = vadd.f32 0.0, %v2597
    %v2599 = vpop.f32.mrb[0].mxu0
    %v2600 = vadd.f32 0.0, %v2599
    %v2601 = vpop.f32.mrb[0].mxu0
    %v2602 = vadd.f32 0.0, %v2601
    %v2603 = vpop.f32.mrb[0].mxu0
    %v2604 = vadd.f32 0.0, %v2603
    %2605 = vmatprep.mubr.bf16.mxu0 %v44
    %2606 = vmatmul.mubr.bf16.gmra.mrb[0].mxu0 %v43
    %v2607 = vpop.f32.mrb[0].mxu0
    %v2608 = vadd.f32 0.0, %v2607
    %v2609 = vpop.f32.mrb[0].mxu0
    %v2610 = vadd.f32 0.0, %v2609
    %v2611 = vpop.f32.mrb[0].mxu0
    %v2612 = vadd.f32 0.0, %v2611
    %v2613 = vpop.f32.mrb[0].mxu0
    %v2614 = vadd.f32 0.0, %v2613
    %2615 = vdwg.mxu0
    %2616 = vmatprep.subr.bf16.mxu0 %v1780
    %2617 = vmatpush1.bf16.msra.mxu0 %v1779
    %2618 = vmatprep.subr.bf16.mxu0 %v1792
    %2619 = vmatpush1.bf16.msra.mxu0 %v1791
    %2620 = vmatprep.subr.bf16.mxu0 %v1804
    %2621 = vmatpush1.bf16.msra.mxu0 %v1803
    %2622 = vmatprep.subr.bf16.mxu0 %v1816
    %2623 = vmatpush1.bf16.msra.mxu0 %v1815
    %2624 = vmatprep.subr.bf16.mxu0 %v1828
    %2625 = vmatpush1.bf16.msra.mxu0 %v1827
    %2626 = vmatprep.subr.bf16.mxu0 %v1840
    %2627 = vmatpush1.bf16.msra.mxu0 %v1839
    %2628 = vmatprep.subr.bf16.mxu0 %v1852
    %2629 = vmatpush1.bf16.msra.mxu0 %v1851
    %2630 = vmatprep.subr.bf16.mxu0 %v1864
    %2631 = vmatpush1.bf16.msra.mxu0 %v1863
    %2632 = vmatprep.subr.bf16.mxu0 %v1876
    %2633 = vmatpush1.bf16.msra.mxu0 %v1875
    %2634 = vmatprep.subr.bf16.mxu0 %v1888
    %2635 = vmatpush1.bf16.msra.mxu0 %v1887
    %2636 = vmatprep.subr.bf16.mxu0 %v1900
    %2637 = vmatpush1.bf16.msra.mxu0 %v1899
    %2638 = vmatprep.subr.bf16.mxu0 %v1912
    %2639 = vmatpush1.bf16.msra.mxu0 %v1911
    %2640 = vmatprep.subr.bf16.mxu0 %v1924
    %2641 = vmatpush1.bf16.msra.mxu0 %v1923
    %2642 = vmatprep.subr.bf16.mxu0 %v1936
    %2643 = vmatpush1.bf16.msra.mxu0 %v1935
    %2644 = vmatprep.subr.bf16.mxu0 %v1948
    %2645 = vmatpush1.bf16.msra.mxu0 %v1947
    %2646 = vmatprep.subr.bf16.mxu0 %v1960
    %2647 = vmatpush1.bf16.msra.mxu0 %v1959
    %2648 = vmatprep.mubr.bf16.mxu0 %v42
    %2649 = vmatmul.mubr.bf16.gmra.mrb[0].mxu0 %v41
    %v2650 = vpop.f32.mrb[0].mxu0
    %v2651 = vadd.f32 %v2598, %v2650
    %v2652 = vpop.f32.mrb[0].mxu0
    %v2653 = vadd.f32 %v2600, %v2652
    %v2654 = vpop.f32.mrb[0].mxu0
    %v2655 = vadd.f32 %v2602, %v2654
    %v2656 = vpop.f32.mrb[0].mxu0
    %v2657 = vadd.f32 %v2604, %v2656
    %2658 = vmatprep.mubr.bf16.mxu0 %v46
    %2659 = vmatmul.mubr.bf16.gmra.mrb[0].mxu0 %v45
    %v2660 = vpop.f32.mrb[0].mxu0
    %v2661 = vadd.f32 %v2608, %v2660
    %v2662 = vpop.f32.mrb[0].mxu0
    %v2663 = vadd.f32 %v2610, %v2662
    %v2664 = vpop.f32.mrb[0].mxu0
    %v2665 = vadd.f32 %v2612, %v2664
    %v2666 = vpop.f32.mrb[0].mxu0
    %v2667 = vadd.f32 %v2614, %v2666
    %2668 = vdwg.mxu0
    %2669 = vmatprep.subr.bf16.mxu0 %v1590
    %2670 = vmatpush1.bf16.msra.mxu0 %v1589
    %2671 = vmatprep.subr.bf16.mxu0 %v1602
    %2672 = vmatpush1.bf16.msra.mxu0 %v1601
    %2673 = vmatprep.subr.bf16.mxu0 %v1614
    %2674 = vmatpush1.bf16.msra.mxu0 %v1613
    %2675 = vmatprep.subr.bf16.mxu0 %v1626
    %2676 = vmatpush1.bf16.msra.mxu0 %v1625
    %2677 = vmatprep.subr.bf16.mxu0 %v1638
    %2678 = vmatpush1.bf16.msra.mxu0 %v1637
    %2679 = vmatprep.subr.bf16.mxu0 %v1650
    %2680 = vmatpush1.bf16.msra.mxu0 %v1649
    %2681 = vmatprep.subr.bf16.mxu0 %v1662
    %2682 = vmatpush1.bf16.msra.mxu0 %v1661
    %2683 = vmatprep.subr.bf16.mxu0 %v1674
    %2684 = vmatpush1.bf16.msra.mxu0 %v1673
    %2685 = vmatprep.subr.bf16.mxu0 %v1686
    %2686 = vmatpush1.bf16.msra.mxu0 %v1685
    %2687 = vmatprep.subr.bf16.mxu0 %v1698
    %2688 = vmatpush1.bf16.msra.mxu0 %v1697
    %2689 = vmatprep.subr.bf16.mxu0 %v1710
    %2690 = vmatpush1.bf16.msra.mxu0 %v1709
    %2691 = vmatprep.subr.bf16.mxu0 %v1722
    %2692 = vmatpush1.bf16.msra.mxu0 %v1721
    %2693 = vmatprep.subr.bf16.mxu0 %v1734
    %2694 = vmatpush1.bf16.msra.mxu0 %v1733
    %2695 = vmatprep.subr.bf16.mxu0 %v1746
    %2696 = vmatpush1.bf16.msra.mxu0 %v1745
    %2697 = vmatprep.subr.bf16.mxu0 %v1758
    %2698 = vmatpush1.bf16.msra.mxu0 %v1757
    %2699 = vmatprep.subr.bf16.mxu0 %v1770
    %2700 = vmatpush1.bf16.msra.mxu0 %v1769
    %2701 = vmatprep.mubr.bf16.mxu0 %v40
    %2702 = vmatmul.mubr.bf16.gmra.mrb[0].mxu0 %v39
    %v2703 = vpop.f32.mrb[0].mxu0
    %v2704 = vadd.f32 0.0, %v2703
    %v2705 = vpop.f32.mrb[0].mxu0
    %v2706 = vadd.f32 0.0, %v2705
    %v2707 = vpop.f32.mrb[0].mxu0
    %v2708 = vadd.f32 0.0, %v2707
    %v2709 = vpop.f32.mrb[0].mxu0
    %v2710 = vadd.f32 0.0, %v2709
    %2711 = vmatprep.mubr.bf16.mxu0 %v44
    %2712 = vmatmul.mubr.bf16.gmra.mrb[0].mxu0 %v43
    %v2713 = vpop.f32.mrb[0].mxu0
    %v2714 = vadd.f32 0.0, %v2713
    %v2715 = vpop.f32.mrb[0].mxu0
    %v2716 = vadd.f32 0.0, %v2715
    %v2717 = vpop.f32.mrb[0].mxu0
    %v2718 = vadd.f32 0.0, %v2717
    %v2719 = vpop.f32.mrb[0].mxu0
    %v2720 = vadd.f32 0.0, %v2719
    %2721 = vdwg.mxu0
    %2722 = vmatprep.subr.bf16.mxu0 %v1782
    %2723 = vmatpush1.bf16.msra.mxu0 %v1781
    %2724 = vmatprep.subr.bf16.mxu0 %v1794
    %2725 = vmatpush1.bf16.msra.mxu0 %v1793
    %2726 = vmatprep.subr.bf16.mxu0 %v1806
    %2727 = vmatpush1.bf16.msra.mxu0 %v1805
    %2728 = vmatprep.subr.bf16.mxu0 %v1818
    %2729 = vmatpush1.bf16.msra.mxu0 %v1817
    %2730 = vmatprep.subr.bf16.mxu0 %v1830
    %2731 = vmatpush1.bf16.msra.mxu0 %v1829
    %2732 = vmatprep.subr.bf16.mxu0 %v1842
    %2733 = vmatpush1.bf16.msra.mxu0 %v1841
    %2734 = vmatprep.subr.bf16.mxu0 %v1854
    %2735 = vmatpush1.bf16.msra.mxu0 %v1853
    %2736 = vmatprep.subr.bf16.mxu0 %v1866
    %2737 = vmatpush1.bf16.msra.mxu0 %v1865
    %2738 = vmatprep.subr.bf16.mxu0 %v1878
    %2739 = vmatpush1.bf16.msra.mxu0 %v1877
    %2740 = vmatprep.subr.bf16.mxu0 %v1890
    %2741 = vmatpush1.bf16.msra.mxu0 %v1889
    %2742 = vmatprep.subr.bf16.mxu0 %v1902
    %2743 = vmatpush1.bf16.msra.mxu0 %v1901
    %2744 = vmatprep.subr.bf16.mxu0 %v1914
    %2745 = vmatpush1.bf16.msra.mxu0 %v1913
    %2746 = vmatprep.subr.bf16.mxu0 %v1926
    %2747 = vmatpush1.bf16.msra.mxu0 %v1925
    %2748 = vmatprep.subr.bf16.mxu0 %v1938
    %2749 = vmatpush1.bf16.msra.mxu0 %v1937
    %2750 = vmatprep.subr.bf16.mxu0 %v1950
    %2751 = vmatpush1.bf16.msra.mxu0 %v1949
    %2752 = vmatprep.subr.bf16.mxu0 %v1962
    %2753 = vmatpush1.bf16.msra.mxu0 %v1961
    %2754 = vmatprep.mubr.bf16.mxu0 %v42
    %2755 = vmatmul.mubr.bf16.gmra.mrb[0].mxu0 %v41
    %v2756 = vpop.f32.mrb[0].mxu0
    %v2757 = vadd.f32 %v2704, %v2756
    %v2758 = vpop.f32.mrb[0].mxu0
    %v2759 = vadd.f32 %v2706, %v2758
    %v2760 = vpop.f32.mrb[0].mxu0
    %v2761 = vadd.f32 %v2708, %v2760
    %v2762 = vpop.f32.mrb[0].mxu0
    %v2763 = vadd.f32 %v2710, %v2762
    %2764 = vmatprep.mubr.bf16.mxu0 %v46
    %2765 = vmatmul.mubr.bf16.gmra.mrb[0].mxu0 %v45
    %v2766 = vpop.f32.mrb[0].mxu0
    %v2767 = vadd.f32 %v2714, %v2766
    %v2768 = vpop.f32.mrb[0].mxu0
    %v2769 = vadd.f32 %v2716, %v2768
    %v2770 = vpop.f32.mrb[0].mxu0
    %v2771 = vadd.f32 %v2718, %v2770
    %v2772 = vpop.f32.mrb[0].mxu0
    %v2773 = vadd.f32 %v2720, %v2772
    %2774 = vdwg.mxu0
    %2775 = vmatprep.subr.bf16.mxu0 %v1592
    %2776 = vmatpush1.bf16.msra.mxu0 %v1591
    %2777 = vmatprep.subr.bf16.mxu0 %v1604
    %2778 = vmatpush1.bf16.msra.mxu0 %v1603
    %2779 = vmatprep.subr.bf16.mxu0 %v1616
    %2780 = vmatpush1.bf16.msra.mxu0 %v1615
    %2781 = vmatprep.subr.bf16.mxu0 %v1628
    %2782 = vmatpush1.bf16.msra.mxu0 %v1627
    %2783 = vmatprep.subr.bf16.mxu0 %v1640
    %2784 = vmatpush1.bf16.msra.mxu0 %v1639
    %2785 = vmatprep.subr.bf16.mxu0 %v1652
    %2786 = vmatpush1.bf16.msra.mxu0 %v1651
    %2787 = vmatprep.subr.bf16.mxu0 %v1664
    %2788 = vmatpush1.bf16.msra.mxu0 %v1663
    %2789 = vmatprep.subr.bf16.mxu0 %v1676
    %2790 = vmatpush1.bf16.msra.mxu0 %v1675
    %2791 = vmatprep.subr.bf16.mxu0 %v1688
    %2792 = vmatpush1.bf16.msra.mxu0 %v1687
    %2793 = vmatprep.subr.bf16.mxu0 %v1700
    %2794 = vmatpush1.bf16.msra.mxu0 %v1699
    %2795 = vmatprep.subr.bf16.mxu0 %v1712
    %2796 = vmatpush1.bf16.msra.mxu0 %v1711
    %2797 = vmatprep.subr.bf16.mxu0 %v1724
    %2798 = vmatpush1.bf16.msra.mxu0 %v1723
    %2799 = vmatprep.subr.bf16.mxu0 %v1736
    %2800 = vmatpush1.bf16.msra.mxu0 %v1735
    %2801 = vmatprep.subr.bf16.mxu0 %v1748
    %2802 = vmatpush1.bf16.msra.mxu0 %v1747
    %2803 = vmatprep.subr.bf16.mxu0 %v1760
    %2804 = vmatpush1.bf16.msra.mxu0 %v1759
    %2805 = vmatprep.subr.bf16.mxu0 %v1772
    %2806 = vmatpush1.bf16.msra.mxu0 %v1771
    %2807 = vmatprep.mubr.bf16.mxu0 %v40
    %2808 = vmatmul.mubr.bf16.gmra.mrb[0].mxu0 %v39
    %v2809 = vpop.f32.mrb[0].mxu0
    %v2810 = vadd.f32 0.0, %v2809
    %v2811 = vpop.f32.mrb[0].mxu0
    %v2812 = vadd.f32 0.0, %v2811
    %v2813 = vpop.f32.mrb[0].mxu0
    %v2814 = vadd.f32 0.0, %v2813
    %v2815 = vpop.f32.mrb[0].mxu0
    %v2816 = vadd.f32 0.0, %v2815
    %2817 = vmatprep.mubr.bf16.mxu0 %v44
    %2818 = vmatmul.mubr.bf16.gmra.mrb[0].mxu0 %v43
    %v2819 = vpop.f32.mrb[0].mxu0
    %v2820 = vadd.f32 0.0, %v2819
    %v2821 = vpop.f32.mrb[0].mxu0
    %v2822 = vadd.f32 0.0, %v2821
    %v2823 = vpop.f32.mrb[0].mxu0
    %v2824 = vadd.f32 0.0, %v2823
    %v2825 = vpop.f32.mrb[0].mxu0
    %v2826 = vadd.f32 0.0, %v2825
    %2827 = vdwg.mxu0
    %2828 = vmatprep.subr.bf16.mxu0 %v1784
    %2829 = vmatpush1.bf16.msra.mxu0 %v1783
    %2830 = vmatprep.subr.bf16.mxu0 %v1796
    %2831 = vmatpush1.bf16.msra.mxu0 %v1795
    %2832 = vmatprep.subr.bf16.mxu0 %v1808
    %2833 = vmatpush1.bf16.msra.mxu0 %v1807
    %2834 = vmatprep.subr.bf16.mxu0 %v1820
    %2835 = vmatpush1.bf16.msra.mxu0 %v1819
    %2836 = vmatprep.subr.bf16.mxu0 %v1832
    %2837 = vmatpush1.bf16.msra.mxu0 %v1831
    %2838 = vmatprep.subr.bf16.mxu0 %v1844
    %2839 = vmatpush1.bf16.msra.mxu0 %v1843
    %2840 = vmatprep.subr.bf16.mxu0 %v1856
    %2841 = vmatpush1.bf16.msra.mxu0 %v1855
    %2842 = vmatprep.subr.bf16.mxu0 %v1868
    %2843 = vmatpush1.bf16.msra.mxu0 %v1867
    %2844 = vmatprep.subr.bf16.mxu0 %v1880
    %2845 = vmatpush1.bf16.msra.mxu0 %v1879
    %2846 = vmatprep.subr.bf16.mxu0 %v1892
    %2847 = vmatpush1.bf16.msra.mxu0 %v1891
    %2848 = vmatprep.subr.bf16.mxu0 %v1904
    %2849 = vmatpush1.bf16.msra.mxu0 %v1903
    %2850 = vmatprep.subr.bf16.mxu0 %v1916
    %2851 = vmatpush1.bf16.msra.mxu0 %v1915
    %2852 = vmatprep.subr.bf16.mxu0 %v1928
    %2853 = vmatpush1.bf16.msra.mxu0 %v1927
    %2854 = vmatprep.subr.bf16.mxu0 %v1940
    %2855 = vmatpush1.bf16.msra.mxu0 %v1939
    %2856 = vmatprep.subr.bf16.mxu0 %v1952
    %2857 = vmatpush1.bf16.msra.mxu0 %v1951
    %2858 = vmatprep.subr.bf16.mxu0 %v1964
    %2859 = vmatpush1.bf16.msra.mxu0 %v1963
    %2860 = vmatprep.mubr.bf16.mxu0 %v42
    %2861 = vmatmul.mubr.bf16.gmra.mrb[0].mxu0 %v41
    %v2862 = vpop.f32.mrb[0].mxu0
    %v2863 = vadd.f32 %v2810, %v2862
    %v2864 = vpop.f32.mrb[0].mxu0
    %v2865 = vadd.f32 %v2812, %v2864
    %v2866 = vpop.f32.mrb[0].mxu0
    %v2867 = vadd.f32 %v2814, %v2866
    %v2868 = vpop.f32.mrb[0].mxu0
    %v2869 = vadd.f32 %v2816, %v2868
    %2870 = vmatprep.mubr.bf16.mxu0 %v46
    %2871 = vmatmul.mubr.bf16.gmra.mrb[0].mxu0 %v45
    %v2872 = vpop.f32.mrb[0].mxu0
    %v2873 = vadd.f32 %v2820, %v2872
    %v2874 = vpop.f32.mrb[0].mxu0
    %v2875 = vadd.f32 %v2822, %v2874
    %v2876 = vpop.f32.mrb[0].mxu0
    %v2877 = vadd.f32 %v2824, %v2876
    %v2878 = vpop.f32.mrb[0].mxu0
    %v2879 = vadd.f32 %v2826, %v2878
    %2880 = vdwg.mxu0
    %2881 = vmatprep.subr.bf16.mxu0 %v1594
    %2882 = vmatpush1.bf16.msra.mxu0 %v1593
    %2883 = vmatprep.subr.bf16.mxu0 %v1606
    %2884 = vmatpush1.bf16.msra.mxu0 %v1605
    %2885 = vmatprep.subr.bf16.mxu0 %v1618
    %2886 = vmatpush1.bf16.msra.mxu0 %v1617
    %2887 = vmatprep.subr.bf16.mxu0 %v1630
    %2888 = vmatpush1.bf16.msra.mxu0 %v1629
    %2889 = vmatprep.subr.bf16.mxu0 %v1642
    %2890 = vmatpush1.bf16.msra.mxu0 %v1641
    %2891 = vmatprep.subr.bf16.mxu0 %v1654
    %2892 = vmatpush1.bf16.msra.mxu0 %v1653
    %2893 = vmatprep.subr.bf16.mxu0 %v1666
    %2894 = vmatpush1.bf16.msra.mxu0 %v1665
    %2895 = vmatprep.subr.bf16.mxu0 %v1678
    %2896 = vmatpush1.bf16.msra.mxu0 %v1677
    %2897 = vmatprep.subr.bf16.mxu0 %v1690
    %2898 = vmatpush1.bf16.msra.mxu0 %v1689
    %2899 = vmatprep.subr.bf16.mxu0 %v1702
    %2900 = vmatpush1.bf16.msra.mxu0 %v1701
    %2901 = vmatprep.subr.bf16.mxu0 %v1714
    %2902 = vmatpush1.bf16.msra.mxu0 %v1713
    %2903 = vmatprep.subr.bf16.mxu0 %v1726
    %2904 = vmatpush1.bf16.msra.mxu0 %v1725
    %2905 = vmatprep.subr.bf16.mxu0 %v1738
    %2906 = vmatpush1.bf16.msra.mxu0 %v1737
    %2907 = vmatprep.subr.bf16.mxu0 %v1750
    %2908 = vmatpush1.bf16.msra.mxu0 %v1749
    %2909 = vmatprep.subr.bf16.mxu0 %v1762
    %2910 = vmatpush1.bf16.msra.mxu0 %v1761
    %2911 = vmatprep.subr.bf16.mxu0 %v1774
    %2912 = vmatpush1.bf16.msra.mxu0 %v1773
    %2913 = vmatprep.mubr.bf16.mxu0 %v40
    %2914 = vmatmul.mubr.bf16.gmra.mrb[0].mxu0 %v39
    %v2915 = vpop.f32.mrb[0].mxu0
    %v2916 = vadd.f32 0.0, %v2915
    %v2917 = vpop.f32.mrb[0].mxu0
    %v2918 = vadd.f32 0.0, %v2917
    %v2919 = vpop.f32.mrb[0].mxu0
    %v2920 = vadd.f32 0.0, %v2919
    %v2921 = vpop.f32.mrb[0].mxu0
    %v2922 = vadd.f32 0.0, %v2921
    %2923 = vmatprep.mubr.bf16.mxu0 %v44
    %2924 = vmatmul.mubr.bf16.gmra.mrb[0].mxu0 %v43
    %v2925 = vpop.f32.mrb[0].mxu0
    %v2926 = vadd.f32 0.0, %v2925
    %v2927 = vpop.f32.mrb[0].mxu0
    %v2928 = vadd.f32 0.0, %v2927
    %v2929 = vpop.f32.mrb[0].mxu0
    %v2930 = vadd.f32 0.0, %v2929
    %v2931 = vpop.f32.mrb[0].mxu0
    %v2932 = vadd.f32 0.0, %v2931
    %2933 = vdwg.mxu0
    %2934 = vmatprep.subr.bf16.mxu0 %v1786
    %2935 = vmatpush1.bf16.msra.mxu0 %v1785
    %2936 = vmatprep.subr.bf16.mxu0 %v1798
    %2937 = vmatpush1.bf16.msra.mxu0 %v1797
    %2938 = vmatprep.subr.bf16.mxu0 %v1810
    %2939 = vmatpush1.bf16.msra.mxu0 %v1809
    %2940 = vmatprep.subr.bf16.mxu0 %v1822
    %2941 = vmatpush1.bf16.msra.mxu0 %v1821
    %2942 = vmatprep.subr.bf16.mxu0 %v1834
    %2943 = vmatpush1.bf16.msra.mxu0 %v1833
    %2944 = vmatprep.subr.bf16.mxu0 %v1846
    %2945 = vmatpush1.bf16.msra.mxu0 %v1845
    %2946 = vmatprep.subr.bf16.mxu0 %v1858
    %2947 = vmatpush1.bf16.msra.mxu0 %v1857
    %2948 = vmatprep.subr.bf16.mxu0 %v1870
    %2949 = vmatpush1.bf16.msra.mxu0 %v1869
    %2950 = vmatprep.subr.bf16.mxu0 %v1882
    %2951 = vmatpush1.bf16.msra.mxu0 %v1881
    %2952 = vmatprep.subr.bf16.mxu0 %v1894
    %2953 = vmatpush1.bf16.msra.mxu0 %v1893
    %2954 = vmatprep.subr.bf16.mxu0 %v1906
    %2955 = vmatpush1.bf16.msra.mxu0 %v1905
    %2956 = vmatprep.subr.bf16.mxu0 %v1918
    %2957 = vmatpush1.bf16.msra.mxu0 %v1917
    %2958 = vmatprep.subr.bf16.mxu0 %v1930
    %2959 = vmatpush1.bf16.msra.mxu0 %v1929
    %2960 = vmatprep.subr.bf16.mxu0 %v1942
    %2961 = vmatpush1.bf16.msra.mxu0 %v1941
    %2962 = vmatprep.subr.bf16.mxu0 %v1954
    %2963 = vmatpush1.bf16.msra.mxu0 %v1953
    %2964 = vmatprep.subr.bf16.mxu0 %v1966
    %2965 = vmatpush1.bf16.msra.mxu0 %v1965
    %2966 = vmatprep.mubr.bf16.mxu0 %v42
    %2967 = vmatmul.mubr.bf16.gmra.mrb[0].mxu0 %v41
    %v2968 = vpop.f32.mrb[0].mxu0
    %v2969 = vadd.f32 %v2916, %v2968
    %v2970 = vpop.f32.mrb[0].mxu0
    %v2971 = vadd.f32 %v2918, %v2970
    %v2972 = vpop.f32.mrb[0].mxu0
    %v2973 = vadd.f32 %v2920, %v2972
    %v2974 = vpop.f32.mrb[0].mxu0
    %v2975 = vadd.f32 %v2922, %v2974
    %2976 = vmatprep.mubr.bf16.mxu0 %v46
    %2977 = vmatmul.mubr.bf16.gmra.mrb[0].mxu0 %v45
    %v2978 = vpop.f32.mrb[0].mxu0
    %v2979 = vadd.f32 %v2926, %v2978
    %v2980 = vpop.f32.mrb[0].mxu0
    %v2981 = vadd.f32 %v2928, %v2980
    %v2982 = vpop.f32.mrb[0].mxu0
    %v2983 = vadd.f32 %v2930, %v2982
    %v2984 = vpop.f32.mrb[0].mxu0
    %v2985 = vadd.f32 %v2932, %v2984
    %2986 = vdwg.mxu0
    %v2987 = vpack.c.bf16 %v2443, %v2439
    %v2988 = vpack.c.bf16 %v2445, %v2441
    %v2989 = vpack.c.bf16 %v2549, %v2545
    %v2990 = vpack.c.bf16 %v2551, %v2547
    %v2991 = vpack.c.bf16 %v2655, %v2651
    %v2992 = vpack.c.bf16 %v2657, %v2653
    %v2993 = vpack.c.bf16 %v2761, %v2757
    %v2994 = vpack.c.bf16 %v2763, %v2759
    %v2995 = vpack.c.bf16 %v2867, %v2863
    %v2996 = vpack.c.bf16 %v2869, %v2865
    %v2997 = vpack.c.bf16 %v2973, %v2969
    %v2998 = vpack.c.bf16 %v2975, %v2971
    %v2999 = vpack.c.bf16 %v2453, %v2449
    %v3000 = vpack.c.bf16 %v2455, %v2451
    %v3001 = vpack.c.bf16 %v2559, %v2555
    %v3002 = vpack.c.bf16 %v2561, %v2557
    %v3003 = vpack.c.bf16 %v2665, %v2661
    %v3004 = vpack.c.bf16 %v2667, %v2663
    %v3005 = vpack.c.bf16 %v2771, %v2767
    %v3006 = vpack.c.bf16 %v2773, %v2769
    %v3007 = vpack.c.bf16 %v2877, %v2873
    %v3008 = vpack.c.bf16 %v2879, %v2875
    %v3009 = vpack.c.bf16 %v2983, %v2979
    %v3010 = vpack.c.bf16 %v2985, %v2981
    %3011 = vmatprep.subr.bf16.mxu0 0
    %3012 = vmatpush1.bf16.xpose.msra.mxu0 %v2991
    %3013 = vmatprep.subr.bf16.mxu0 0
    %3014 = vmatpush1.bf16.xpose.msra.mxu0 0
    %3015 = vmatprep.subr.bf16.mxu0 0
    %3016 = vmatpush1.bf16.xpose.msra.mxu0 0
    %3017 = vmatprep.subr.bf16.mxu0 0
    %3018 = vmatpush1.bf16.xpose.msra.mxu0 0
    %3019 = vmatprep.subr.bf16.mxu0 0
    %3020 = vmatpush1.bf16.xpose.msra.mxu0 0
    %3021 = vmatprep.subr.bf16.mxu0 0
    %3022 = vmatpush1.bf16.xpose.msra.mxu0 0
    %3023 = vmatprep.subr.bf16.mxu0 0
    %3024 = vmatpush1.bf16.xpose.msra.mxu0 0
    %3025 = vmatprep.subr.bf16.mxu0 0
    %3026 = vmatpush1.bf16.xpose.msra.mxu0 0
    %3027 = vmatprep.subr.bf16.mxu0 0
    %3028 = vmatpush1.bf16.xpose.msra.mxu0 0
    %3029 = vmatprep.subr.bf16.mxu0 0
    %3030 = vmatpush1.bf16.xpose.msra.mxu0 0
    %3031 = vmatprep.subr.bf16.mxu0 0
    %3032 = vmatpush1.bf16.xpose.msra.mxu0 0
    %3033 = vmatprep.subr.bf16.mxu0 0
    %3034 = vmatpush1.bf16.xpose.msra.mxu0 0
    %3035 = vmatprep.subr.bf16.mxu0 0
    %3036 = vmatpush1.bf16.xpose.msra.mxu0 0
    %3037 = vmatprep.subr.bf16.mxu0 0
    %3038 = vmatpush1.bf16.xpose.msra.mxu0 0
    %3039 = vmatprep.subr.bf16.mxu0 0
    %3040 = vmatpush1.bf16.xpose.msra.mxu0 0
    %3041 = vmatprep.subr.bf16.mxu0 0
    %3042 = vmatpush1.bf16.xpose.msra.mxu0 0
    %3043 = vmatprep.mubr.bf16.mxu0 0
    %3044 = vmatmul.mubr.bf16.gmra.mrb[0].mxu0 %v2987
    %v3045 = vpop.f32.mrb[0].mxu0
    %v3046 = vadd.f32 0.0, %v3045
    %v3047 = vpop.f32.mrb[0].mxu0
    %v3048 = vpop.f32.mrb[0].mxu0
    %v3049 = vadd.f32 0.0, %v3048
    %v3050 = vpop.f32.mrb[0].mxu0
    %3051 = vdwg.mxu0
    %vm3052 = vcmask 130048
    %v3053 = vsel %vm3052, %v3046, -inf
    %3054 = vmax.xlane.f32.xlu0 %v3053
    %v3055 = vpop.xlane.xlu0 %3054
    %v3056 = vsel %vm3052, %v3049, -inf
    %3057 = vmax.xlane.f32.xlu0 %v3056
    %v3058 = vpop.xlane.xlu0 %3057
    %v3059 = vsub.f32 %v3046, %v3055
    %v3060 = vsub.f32 %v3049, %v3058
    %v3061 = vmul.f32 %v3059, 1.442695
    %v3062 = vpow.pop %v3061
    %v3063 = vmul.f32 %v3060, 1.442695
    %v3064 = vpow.pop %v3063
    %v3065 = vsel %vm3052, %v3062, 0.0
    %3066 = vadd.xlane.f32.xlu0 %v3065
    %v3067 = vpop.xlane.xlu0 %3066
    %v3068 = vsel %vm3052, %v3064, 0.0
    %3069 = vadd.xlane.f32.xlu0 %v3068
    %v3070 = vpop.xlane.xlu0 %3069
    %v3071 = vrcp.pop %v3067
    %v3072 = vrcp.pop %v3070
    %v3073 = vmul.f32 %v3062, %v3071
    %v3074 = vmul.f32 %v3064, %v3072
    %v3075 = vpack.c.bf16 %v3074, %v3073
    %v3077 = vsel %vm3052, %v3075, 0
    %3079 = vmatprep.subr.bf16.mxu0 0
    %3080 = vmatpush1.bf16.msra.mxu0 %v2995
    %3081 = vmatprep.subr.bf16.mxu0 0
    %3082 = vmatpush1.bf16.msra.mxu0 0
    %3083 = vmatprep.subr.bf16.mxu0 0
    %3084 = vmatpush1.bf16.msra.mxu0 0
    %3085 = vmatprep.subr.bf16.mxu0 0
    %3086 = vmatpush1.bf16.msra.mxu0 0
    %3087 = vmatprep.subr.bf16.mxu0 0
    %3088 = vmatpush1.bf16.msra.mxu0 0
    %3089 = vmatprep.subr.bf16.mxu0 0
    %3090 = vmatpush1.bf16.msra.mxu0 0
    %3091 = vmatprep.subr.bf16.mxu0 0
    %3092 = vmatpush1.bf16.msra.mxu0 0
    %3093 = vmatprep.subr.bf16.mxu0 0
    %3094 = vmatpush1.bf16.msra.mxu0 0
    %3095 = vmatprep.subr.bf16.mxu0 0
    %3096 = vmatpush1.bf16.msra.mxu0 0
    %3097 = vmatprep.subr.bf16.mxu0 0
    %3098 = vmatpush1.bf16.msra.mxu0 0
    %3099 = vmatprep.subr.bf16.mxu0 0
    %3100 = vmatpush1.bf16.msra.mxu0 0
    %3101 = vmatprep.subr.bf16.mxu0 0
    %3102 = vmatpush1.bf16.msra.mxu0 0
    %3103 = vmatprep.subr.bf16.mxu0 0
    %3104 = vmatpush1.bf16.msra.mxu0 0
    %3105 = vmatprep.subr.bf16.mxu0 0
    %3106 = vmatpush1.bf16.msra.mxu0 0
    %3107 = vmatprep.subr.bf16.mxu0 0
    %3108 = vmatpush1.bf16.msra.mxu0 0
    %3109 = vmatprep.subr.bf16.mxu0 0
    %3110 = vmatpush1.bf16.msra.mxu0 0
    %3111 = vmatprep.mubr.bf16.mxu0 0
    %3112 = vmatmul.mubr.bf16.gmra.mrb[0].mxu0 %v3077
    %v3113 = vpop.f32.mrb[0].mxu0
    %v3114 = vadd.f32 0.0, %v3113
    %v3115 = vpop.f32.mrb[0].mxu0
    %v3116 = vpop.f32.mrb[0].mxu0
    %v3117 = vadd.f32 0.0, %v3116
    %v3118 = vpop.f32.mrb[0].mxu0
    %3119 = vdwg.mxu0
    %3120 = vst [vmem:[#allocation2] sm:$0xff] %v3114
    %3121 = vst [vmem:[#allocation2 + $0x20] sm:$0xff] %v3117
    %3122 = vmatprep.subr.bf16.mxu0 0
    %3123 = vmatpush1.bf16.xpose.msra.mxu0 %v2992
    %3124 = vmatprep.subr.bf16.mxu0 0
    %3125 = vmatpush1.bf16.xpose.msra.mxu0 0
    %3126 = vmatprep.subr.bf16.mxu0 0
    %3127 = vmatpush1.bf16.xpose.msra.mxu0 0
    %3128 = vmatprep.subr.bf16.mxu0 0
    %3129 = vmatpush1.bf16.xpose.msra.mxu0 0
    %3130 = vmatprep.subr.bf16.mxu0 0
    %3131 = vmatpush1.bf16.xpose.msra.mxu0 0
    %3132 = vmatprep.subr.bf16.mxu0 0
    %3133 = vmatpush1.bf16.xpose.msra.mxu0 0
    %3134 = vmatprep.subr.bf16.mxu0 0
    %3135 = vmatpush1.bf16.xpose.msra.mxu0 0
    %3136 = vmatprep.subr.bf16.mxu0 0
    %3137 = vmatpush1.bf16.xpose.msra.mxu0 0
    %3138 = vmatprep.subr.bf16.mxu0 0
    %3139 = vmatpush1.bf16.xpose.msra.mxu0 0
    %3140 = vmatprep.subr.bf16.mxu0 0
    %3141 = vmatpush1.bf16.xpose.msra.mxu0 0
    %3142 = vmatprep.subr.bf16.mxu0 0
    %3143 = vmatpush1.bf16.xpose.msra.mxu0 0
    %3144 = vmatprep.subr.bf16.mxu0 0
    %3145 = vmatpush1.bf16.xpose.msra.mxu0 0
    %3146 = vmatprep.subr.bf16.mxu0 0
    %3147 = vmatpush1.bf16.xpose.msra.mxu0 0
    %3148 = vmatprep.subr.bf16.mxu0 0
    %3149 = vmatpush1.bf16.xpose.msra.mxu0 0
    %3150 = vmatprep.subr.bf16.mxu0 0
    %3151 = vmatpush1.bf16.xpose.msra.mxu0 0
    %3152 = vmatprep.subr.bf16.mxu0 0
    %3153 = vmatpush1.bf16.xpose.msra.mxu0 0
    %3154 = vmatprep.mubr.bf16.mxu0 0
    %3155 = vmatmul.mubr.bf16.gmra.mrb[0].mxu0 %v2988
    %v3156 = vpop.f32.mrb[0].mxu0
    %v3157 = vadd.f32 0.0, %v3156
    %v3158 = vpop.f32.mrb[0].mxu0
    %v3159 = vpop.f32.mrb[0].mxu0
    %v3160 = vadd.f32 0.0, %v3159
    %v3161 = vpop.f32.mrb[0].mxu0
    %3162 = vdwg.mxu0
    %v3163 = vsel %vm3052, %v3157, -inf
    %3164 = vmax.xlane.f32.xlu0 %v3163
    %v3165 = vpop.xlane.xlu0 %3164
    %v3166 = vsel %vm3052, %v3160, -inf
    %3167 = vmax.xlane.f32.xlu0 %v3166
    %v3168 = vpop.xlane.xlu0 %3167
    %v3169 = vsub.f32 %v3157, %v3165
    %v3170 = vsub.f32 %v3160, %v3168
    %v3171 = vmul.f32 %v3169, 1.442695
    %v3172 = vpow.pop %v3171
    %v3173 = vmul.f32 %v3170, 1.442695
    %v3174 = vpow.pop %v3173
    %v3175 = vsel %vm3052, %v3172, 0.0
    %3176 = vadd.xlane.f32.xlu0 %v3175
    %v3177 = vpop.xlane.xlu0 %3176
    %v3178 = vsel %vm3052, %v3174, 0.0
    %3179 = vadd.xlane.f32.xlu0 %v3178
    %v3180 = vpop.xlane.xlu0 %3179
    %v3181 = vrcp.pop %v3177
    %v3182 = vrcp.pop %v3180
    %v3183 = vmul.f32 %v3172, %v3181
    %v3184 = vmul.f32 %v3174, %v3182
    %v3185 = vpack.c.bf16 %v3184, %v3183
    %v3187 = vsel %vm3052, %v3185, 0
    %3189 = vmatprep.subr.bf16.mxu0 0
    %3190 = vmatpush1.bf16.msra.mxu0 %v2996
    %3191 = vmatprep.subr.bf16.mxu0 0
    %3192 = vmatpush1.bf16.msra.mxu0 0
    %3193 = vmatprep.subr.bf16.mxu0 0
    %3194 = vmatpush1.bf16.msra.mxu0 0
    %3195 = vmatprep.subr.bf16.mxu0 0
    %3196 = vmatpush1.bf16.msra.mxu0 0
    %3197 = vmatprep.subr.bf16.mxu0 0
    %3198 = vmatpush1.bf16.msra.mxu0 0
    %3199 = vmatprep.subr.bf16.mxu0 0
    %3200 = vmatpush1.bf16.msra.mxu0 0
    %3201 = vmatprep.subr.bf16.mxu0 0
    %3202 = vmatpush1.bf16.msra.mxu0 0
    %3203 = vmatprep.subr.bf16.mxu0 0
    %3204 = vmatpush1.bf16.msra.mxu0 0
    %3205 = vmatprep.subr.bf16.mxu0 0
    %3206 = vmatpush1.bf16.msra.mxu0 0
    %3207 = vmatprep.subr.bf16.mxu0 0
    %3208 = vmatpush1.bf16.msra.mxu0 0
    %3209 = vmatprep.subr.bf16.mxu0 0
    %3210 = vmatpush1.bf16.msra.mxu0 0
    %3211 = vmatprep.subr.bf16.mxu0 0
    %3212 = vmatpush1.bf16.msra.mxu0 0
    %3213 = vmatprep.subr.bf16.mxu0 0
    %3214 = vmatpush1.bf16.msra.mxu0 0
    %3215 = vmatprep.subr.bf16.mxu0 0
    %3216 = vmatpush1.bf16.msra.mxu0 0
    %3217 = vmatprep.subr.bf16.mxu0 0
    %3218 = vmatpush1.bf16.msra.mxu0 0
    %3219 = vmatprep.subr.bf16.mxu0 0
    %3220 = vmatpush1.bf16.msra.mxu0 0
    %3221 = vmatprep.mubr.bf16.mxu0 0
    %3222 = vmatmul.mubr.bf16.gmra.mrb[0].mxu0 %v3187
    %v3223 = vpop.f32.mrb[0].mxu0
    %v3224 = vadd.f32 0.0, %v3223
    %v3225 = vpop.f32.mrb[0].mxu0
    %v3226 = vpop.f32.mrb[0].mxu0
    %v3227 = vadd.f32 0.0, %v3226
    %v3228 = vpop.f32.mrb[0].mxu0
    %3229 = vdwg.mxu0
    %3230 = vst [vmem:[#allocation2 + $0x8] sm:$0xff] %v3224
    %3231 = vst [vmem:[#allocation2 + $0x28] sm:$0xff] %v3227
    %3232 = vmatprep.subr.bf16.mxu0 0
    %3233 = vmatpush1.bf16.xpose.msra.mxu0 %v2993
    %3234 = vmatprep.subr.bf16.mxu0 0
    %3235 = vmatpush1.bf16.xpose.msra.mxu0 0
    %3236 = vmatprep.subr.bf16.mxu0 0
    %3237 = vmatpush1.bf16.xpose.msra.mxu0 0
    %3238 = vmatprep.subr.bf16.mxu0 0
    %3239 = vmatpush1.bf16.xpose.msra.mxu0 0
    %3240 = vmatprep.subr.bf16.mxu0 0
    %3241 = vmatpush1.bf16.xpose.msra.mxu0 0
    %3242 = vmatprep.subr.bf16.mxu0 0
    %3243 = vmatpush1.bf16.xpose.msra.mxu0 0
    %3244 = vmatprep.subr.bf16.mxu0 0
    %3245 = vmatpush1.bf16.xpose.msra.mxu0 0
    %3246 = vmatprep.subr.bf16.mxu0 0
    %3247 = vmatpush1.bf16.xpose.msra.mxu0 0
    %3248 = vmatprep.subr.bf16.mxu0 0
    %3249 = vmatpush1.bf16.xpose.msra.mxu0 0
    %3250 = vmatprep.subr.bf16.mxu0 0
    %3251 = vmatpush1.bf16.xpose.msra.mxu0 0
    %3252 = vmatprep.subr.bf16.mxu0 0
    %3253 = vmatpush1.bf16.xpose.msra.mxu0 0
    %3254 = vmatprep.subr.bf16.mxu0 0
    %3255 = vmatpush1.bf16.xpose.msra.mxu0 0
    %3256 = vmatprep.subr.bf16.mxu0 0
    %3257 = vmatpush1.bf16.xpose.msra.mxu0 0
    %3258 = vmatprep.subr.bf16.mxu0 0
    %3259 = vmatpush1.bf16.xpose.msra.mxu0 0
    %3260 = vmatprep.subr.bf16.mxu0 0
    %3261 = vmatpush1.bf16.xpose.msra.mxu0 0
    %3262 = vmatprep.subr.bf16.mxu0 0
    %3263 = vmatpush1.bf16.xpose.msra.mxu0 0
    %3264 = vmatprep.mubr.bf16.mxu0 0
    %3265 = vmatmul.mubr.bf16.gmra.mrb[0].mxu0 %v2989
    %v3266 = vpop.f32.mrb[0].mxu0
    %v3267 = vadd.f32 0.0, %v3266
    %v3268 = vpop.f32.mrb[0].mxu0
    %v3269 = vpop.f32.mrb[0].mxu0
    %v3270 = vadd.f32 0.0, %v3269
    %v3271 = vpop.f32.mrb[0].mxu0
    %3272 = vdwg.mxu0
    %v3273 = vsel %vm3052, %v3267, -inf
    %3274 = vmax.xlane.f32.xlu0 %v3273
    %v3275 = vpop.xlane.xlu0 %3274
    %v3276 = vsel %vm3052, %v3270, -inf
    %3277 = vmax.xlane.f32.xlu0 %v3276
    %v3278 = vpop.xlane.xlu0 %3277
    %v3279 = vsub.f32 %v3267, %v3275
    %v3280 = vsub.f32 %v3270, %v3278
    %v3281 = vmul.f32 %v3279, 1.442695
    %v3282 = vpow.pop %v3281
    %v3283 = vmul.f32 %v3280, 1.442695
    %v3284 = vpow.pop %v3283
    %v3285 = vsel %vm3052, %v3282, 0.0
    %3286 = vadd.xlane.f32.xlu0 %v3285
    %v3287 = vpop.xlane.xlu0 %3286
    %v3288 = vsel %vm3052, %v3284, 0.0
    %3289 = vadd.xlane.f32.xlu0 %v3288
    %v3290 = vpop.xlane.xlu0 %3289
    %v3291 = vrcp.pop %v3287
    %v3292 = vrcp.pop %v3290
    %v3293 = vmul.f32 %v3282, %v3291
    %v3294 = vmul.f32 %v3284, %v3292
    %v3295 = vpack.c.bf16 %v3294, %v3293
    %v3297 = vsel %vm3052, %v3295, 0
    %3299 = vmatprep.subr.bf16.mxu0 0
    %3300 = vmatpush1.bf16.msra.mxu0 %v2997
    %3301 = vmatprep.subr.bf16.mxu0 0
    %3302 = vmatpush1.bf16.msra.mxu0 0
    %3303 = vmatprep.subr.bf16.mxu0 0
    %3304 = vmatpush1.bf16.msra.mxu0 0
    %3305 = vmatprep.subr.bf16.mxu0 0
    %3306 = vmatpush1.bf16.msra.mxu0 0
    %3307 = vmatprep.subr.bf16.mxu0 0
    %3308 = vmatpush1.bf16.msra.mxu0 0
    %3309 = vmatprep.subr.bf16.mxu0 0
    %3310 = vmatpush1.bf16.msra.mxu0 0
    %3311 = vmatprep.subr.bf16.mxu0 0
    %3312 = vmatpush1.bf16.msra.mxu0 0
    %3313 = vmatprep.subr.bf16.mxu0 0
    %3314 = vmatpush1.bf16.msra.mxu0 0
    %3315 = vmatprep.subr.bf16.mxu0 0
    %3316 = vmatpush1.bf16.msra.mxu0 0
    %3317 = vmatprep.subr.bf16.mxu0 0
    %3318 = vmatpush1.bf16.msra.mxu0 0
    %3319 = vmatprep.subr.bf16.mxu0 0
    %3320 = vmatpush1.bf16.msra.mxu0 0
    %3321 = vmatprep.subr.bf16.mxu0 0
    %3322 = vmatpush1.bf16.msra.mxu0 0
    %3323 = vmatprep.subr.bf16.mxu0 0
    %3324 = vmatpush1.bf16.msra.mxu0 0
    %3325 = vmatprep.subr.bf16.mxu0 0
    %3326 = vmatpush1.bf16.msra.mxu0 0
    %3327 = vmatprep.subr.bf16.mxu0 0
    %3328 = vmatpush1.bf16.msra.mxu0 0
    %3329 = vmatprep.subr.bf16.mxu0 0
    %3330 = vmatpush1.bf16.msra.mxu0 0
    %3331 = vmatprep.mubr.bf16.mxu0 0
    %3332 = vmatmul.mubr.bf16.gmra.mrb[0].mxu0 %v3297
    %v3333 = vpop.f32.mrb[0].mxu0
    %v3334 = vadd.f32 0.0, %v3333
    %v3335 = vpop.f32.mrb[0].mxu0
    %v3336 = vpop.f32.mrb[0].mxu0
    %v3337 = vadd.f32 0.0, %v3336
    %v3338 = vpop.f32.mrb[0].mxu0
    %3339 = vdwg.mxu0
    %3340 = vst [vmem:[#allocation2 + $0x10] sm:$0xff] %v3334
    %3341 = vst [vmem:[#allocation2 + $0x30] sm:$0xff] %v3337
    %3342 = vmatprep.subr.bf16.mxu0 0
    %3343 = vmatpush1.bf16.xpose.msra.mxu0 %v2994
    %3344 = vmatprep.subr.bf16.mxu0 0
    %3345 = vmatpush1.bf16.xpose.msra.mxu0 0
    %3346 = vmatprep.subr.bf16.mxu0 0
    %3347 = vmatpush1.bf16.xpose.msra.mxu0 0
    %3348 = vmatprep.subr.bf16.mxu0 0
    %3349 = vmatpush1.bf16.xpose.msra.mxu0 0
    %3350 = vmatprep.subr.bf16.mxu0 0
    %3351 = vmatpush1.bf16.xpose.msra.mxu0 0
    %3352 = vmatprep.subr.bf16.mxu0 0
    %3353 = vmatpush1.bf16.xpose.msra.mxu0 0
    %3354 = vmatprep.subr.bf16.mxu0 0
    %3355 = vmatpush1.bf16.xpose.msra.mxu0 0
    %3356 = vmatprep.subr.bf16.mxu0 0
    %3357 = vmatpush1.bf16.xpose.msra.mxu0 0
    %3358 = vmatprep.subr.bf16.mxu0 0
    %3359 = vmatpush1.bf16.xpose.msra.mxu0 0
    %3360 = vmatprep.subr.bf16.mxu0 0
    %3361 = vmatpush1.bf16.xpose.msra.mxu0 0
    %3362 = vmatprep.subr.bf16.mxu0 0
    %3363 = vmatpush1.bf16.xpose.msra.mxu0 0
    %3364 = vmatprep.subr.bf16.mxu0 0
    %3365 = vmatpush1.bf16.xpose.msra.mxu0 0
    %3366 = vmatprep.subr.bf16.mxu0 0
    %3367 = vmatpush1.bf16.xpose.msra.mxu0 0
    %3368 = vmatprep.subr.bf16.mxu0 0
    %3369 = vmatpush1.bf16.xpose.msra.mxu0 0
    %3370 = vmatprep.subr.bf16.mxu0 0
    %3371 = vmatpush1.bf16.xpose.msra.mxu0 0
    %3372 = vmatprep.subr.bf16.mxu0 0
    %3373 = vmatpush1.bf16.xpose.msra.mxu0 0
    %3374 = vmatprep.mubr.bf16.mxu0 0
    %3375 = vmatmul.mubr.bf16.gmra.mrb[0].mxu0 %v2990
    %v3376 = vpop.f32.mrb[0].mxu0
    %v3377 = vadd.f32 0.0, %v3376
    %v3378 = vpop.f32.mrb[0].mxu0
    %v3379 = vpop.f32.mrb[0].mxu0
    %v3380 = vadd.f32 0.0, %v3379
    %v3381 = vpop.f32.mrb[0].mxu0
    %3382 = vdwg.mxu0
    %v3383 = vsel %vm3052, %v3377, -inf
    %3384 = vmax.xlane.f32.xlu0 %v3383
    %v3385 = vpop.xlane.xlu0 %3384
    %v3386 = vsel %vm3052, %v3380, -inf
    %3387 = vmax.xlane.f32.xlu0 %v3386
    %v3388 = vpop.xlane.xlu0 %3387
    %v3389 = vsub.f32 %v3377, %v3385
    %v3390 = vsub.f32 %v3380, %v3388
    %v3391 = vmul.f32 %v3389, 1.442695
    %v3392 = vpow.pop %v3391
    %v3393 = vmul.f32 %v3390, 1.442695
    %v3394 = vpow.pop %v3393
    %v3395 = vsel %vm3052, %v3392, 0.0
    %3396 = vadd.xlane.f32.xlu0 %v3395
    %v3397 = vpop.xlane.xlu0 %3396
    %v3398 = vsel %vm3052, %v3394, 0.0
    %3399 = vadd.xlane.f32.xlu0 %v3398
    %v3400 = vpop.xlane.xlu0 %3399
    %v3401 = vrcp.pop %v3397
    %v3402 = vrcp.pop %v3400
    %v3403 = vmul.f32 %v3392, %v3401
    %v3404 = vmul.f32 %v3394, %v3402
    %v3405 = vpack.c.bf16 %v3404, %v3403
    %v3407 = vsel %vm3052, %v3405, 0
    %3409 = vmatprep.subr.bf16.mxu0 0
    %3410 = vmatpush1.bf16.msra.mxu0 %v2998
    %3411 = vmatprep.subr.bf16.mxu0 0
    %3412 = vmatpush1.bf16.msra.mxu0 0
    %3413 = vmatprep.subr.bf16.mxu0 0
    %3414 = vmatpush1.bf16.msra.mxu0 0
    %3415 = vmatprep.subr.bf16.mxu0 0
    %3416 = vmatpush1.bf16.msra.mxu0 0
    %3417 = vmatprep.subr.bf16.mxu0 0
    %3418 = vmatpush1.bf16.msra.mxu0 0
    %3419 = vmatprep.subr.bf16.mxu0 0
    %3420 = vmatpush1.bf16.msra.mxu0 0
    %3421 = vmatprep.subr.bf16.mxu0 0
    %3422 = vmatpush1.bf16.msra.mxu0 0
    %3423 = vmatprep.subr.bf16.mxu0 0
    %3424 = vmatpush1.bf16.msra.mxu0 0
    %3425 = vmatprep.subr.bf16.mxu0 0
    %3426 = vmatpush1.bf16.msra.mxu0 0
    %3427 = vmatprep.subr.bf16.mxu0 0
    %3428 = vmatpush1.bf16.msra.mxu0 0
    %3429 = vmatprep.subr.bf16.mxu0 0
    %3430 = vmatpush1.bf16.msra.mxu0 0
    %3431 = vmatprep.subr.bf16.mxu0 0
    %3432 = vmatpush1.bf16.msra.mxu0 0
    %3433 = vmatprep.subr.bf16.mxu0 0
    %3434 = vmatpush1.bf16.msra.mxu0 0
    %3435 = vmatprep.subr.bf16.mxu0 0
    %3436 = vmatpush1.bf16.msra.mxu0 0
    %3437 = vmatprep.subr.bf16.mxu0 0
    %3438 = vmatpush1.bf16.msra.mxu0 0
    %3439 = vmatprep.subr.bf16.mxu0 0
    %3440 = vmatpush1.bf16.msra.mxu0 0
    %3441 = vmatprep.mubr.bf16.mxu0 0
    %3442 = vmatmul.mubr.bf16.gmra.mrb[0].mxu0 %v3407
    %v3443 = vpop.f32.mrb[0].mxu0
    %v3444 = vadd.f32 0.0, %v3443
    %v3445 = vpop.f32.mrb[0].mxu0
    %v3446 = vpop.f32.mrb[0].mxu0
    %v3447 = vadd.f32 0.0, %v3446
    %v3448 = vpop.f32.mrb[0].mxu0
    %3449 = vdwg.mxu0
    %3450 = vst [vmem:[#allocation2 + $0x18] sm:$0xff] %v3444
    %3451 = vst [vmem:[#allocation2 + $0x38] sm:$0xff] %v3447
    %3452 = vmatprep.subr.bf16.mxu0 0
    %3453 = vmatpush1.bf16.xpose.msra.mxu0 %v3003
    %3454 = vmatprep.subr.bf16.mxu0 0
    %3455 = vmatpush1.bf16.xpose.msra.mxu0 0
    %3456 = vmatprep.subr.bf16.mxu0 0
    %3457 = vmatpush1.bf16.xpose.msra.mxu0 0
    %3458 = vmatprep.subr.bf16.mxu0 0
    %3459 = vmatpush1.bf16.xpose.msra.mxu0 0
    %3460 = vmatprep.subr.bf16.mxu0 0
    %3461 = vmatpush1.bf16.xpose.msra.mxu0 0
    %3462 = vmatprep.subr.bf16.mxu0 0
    %3463 = vmatpush1.bf16.xpose.msra.mxu0 0
    %3464 = vmatprep.subr.bf16.mxu0 0
    %3465 = vmatpush1.bf16.xpose.msra.mxu0 0
    %3466 = vmatprep.subr.bf16.mxu0 0
    %3467 = vmatpush1.bf16.xpose.msra.mxu0 0
    %3468 = vmatprep.subr.bf16.mxu0 0
    %3469 = vmatpush1.bf16.xpose.msra.mxu0 0
    %3470 = vmatprep.subr.bf16.mxu0 0
    %3471 = vmatpush1.bf16.xpose.msra.mxu0 0
    %3472 = vmatprep.subr.bf16.mxu0 0
    %3473 = vmatpush1.bf16.xpose.msra.mxu0 0
    %3474 = vmatprep.subr.bf16.mxu0 0
    %3475 = vmatpush1.bf16.xpose.msra.mxu0 0
    %3476 = vmatprep.subr.bf16.mxu0 0
    %3477 = vmatpush1.bf16.xpose.msra.mxu0 0
    %3478 = vmatprep.subr.bf16.mxu0 0
    %3479 = vmatpush1.bf16.xpose.msra.mxu0 0
    %3480 = vmatprep.subr.bf16.mxu0 0
    %3481 = vmatpush1.bf16.xpose.msra.mxu0 0
    %3482 = vmatprep.subr.bf16.mxu0 0
    %3483 = vmatpush1.bf16.xpose.msra.mxu0 0
    %3484 = vmatprep.mubr.bf16.mxu0 0
    %3485 = vmatmul.mubr.bf16.gmra.mrb[0].mxu0 %v2999
    %v3486 = vpop.f32.mrb[0].mxu0
    %v3487 = vadd.f32 0.0, %v3486
    %v3488 = vpop.f32.mrb[0].mxu0
    %v3489 = vpop.f32.mrb[0].mxu0
    %v3490 = vadd.f32 0.0, %v3489
    %v3491 = vpop.f32.mrb[0].mxu0
    %3492 = vdwg.mxu0
    %v3493 = vsel %vm3052, %v3487, -inf
    %3494 = vmax.xlane.f32.xlu0 %v3493
    %v3495 = vpop.xlane.xlu0 %3494
    %v3496 = vsel %vm3052, %v3490, -inf
    %3497 = vmax.xlane.f32.xlu0 %v3496
    %v3498 = vpop.xlane.xlu0 %3497
    %v3499 = vsub.f32 %v3487, %v3495
    %v3500 = vsub.f32 %v3490, %v3498
    %v3501 = vmul.f32 %v3499, 1.442695
    %v3502 = vpow.pop %v3501
    %v3503 = vmul.f32 %v3500, 1.442695
    %v3504 = vpow.pop %v3503
    %v3505 = vsel %vm3052, %v3502, 0.0
    %3506 = vadd.xlane.f32.xlu0 %v3505
    %v3507 = vpop.xlane.xlu0 %3506
    %v3508 = vsel %vm3052, %v3504, 0.0
    %3509 = vadd.xlane.f32.xlu0 %v3508
    %v3510 = vpop.xlane.xlu0 %3509
    %v3511 = vrcp.pop %v3507
    %v3512 = vrcp.pop %v3510
    %v3513 = vmul.f32 %v3502, %v3511
    %v3514 = vmul.f32 %v3504, %v3512
    %v3515 = vpack.c.bf16 %v3514, %v3513
    %v3517 = vsel %vm3052, %v3515, 0
    %3519 = vmatprep.subr.bf16.mxu0 0
    %3520 = vmatpush1.bf16.msra.mxu0 %v3007
    %3521 = vmatprep.subr.bf16.mxu0 0
    %3522 = vmatpush1.bf16.msra.mxu0 0
    %3523 = vmatprep.subr.bf16.mxu0 0
    %3524 = vmatpush1.bf16.msra.mxu0 0
    %3525 = vmatprep.subr.bf16.mxu0 0
    %3526 = vmatpush1.bf16.msra.mxu0 0
    %3527 = vmatprep.subr.bf16.mxu0 0
    %3528 = vmatpush1.bf16.msra.mxu0 0
    %3529 = vmatprep.subr.bf16.mxu0 0
    %3530 = vmatpush1.bf16.msra.mxu0 0
    %3531 = vmatprep.subr.bf16.mxu0 0
    %3532 = vmatpush1.bf16.msra.mxu0 0
    %3533 = vmatprep.subr.bf16.mxu0 0
    %3534 = vmatpush1.bf16.msra.mxu0 0
    %3535 = vmatprep.subr.bf16.mxu0 0
    %3536 = vmatpush1.bf16.msra.mxu0 0
    %3537 = vmatprep.subr.bf16.mxu0 0
    %3538 = vmatpush1.bf16.msra.mxu0 0
    %3539 = vmatprep.subr.bf16.mxu0 0
    %3540 = vmatpush1.bf16.msra.mxu0 0
    %3541 = vmatprep.subr.bf16.mxu0 0
    %3542 = vmatpush1.bf16.msra.mxu0 0
    %3543 = vmatprep.subr.bf16.mxu0 0
    %3544 = vmatpush1.bf16.msra.mxu0 0
    %3545 = vmatprep.subr.bf16.mxu0 0
    %3546 = vmatpush1.bf16.msra.mxu0 0
    %3547 = vmatprep.subr.bf16.mxu0 0
    %3548 = vmatpush1.bf16.msra.mxu0 0
    %3549 = vmatprep.subr.bf16.mxu0 0
    %3550 = vmatpush1.bf16.msra.mxu0 0
    %3551 = vmatprep.mubr.bf16.mxu0 0
    %3552 = vmatmul.mubr.bf16.gmra.mrb[0].mxu0 %v3517
    %v3553 = vpop.f32.mrb[0].mxu0
    %v3554 = vadd.f32 0.0, %v3553
    %v3555 = vpop.f32.mrb[0].mxu0
    %v3556 = vpop.f32.mrb[0].mxu0
    %v3557 = vadd.f32 0.0, %v3556
    %v3558 = vpop.f32.mrb[0].mxu0
    %3559 = vdwg.mxu0
    %3560 = vst [vmem:[#allocation2 + $0x40] sm:$0xff] %v3554
    %3561 = vst [vmem:[#allocation2 + $0x60] sm:$0xff] %v3557
    %3562 = vmatprep.subr.bf16.mxu0 0
    %3563 = vmatpush1.bf16.xpose.msra.mxu0 %v3004
    %3564 = vmatprep.subr.bf16.mxu0 0
    %3565 = vmatpush1.bf16.xpose.msra.mxu0 0
    %3566 = vmatprep.subr.bf16.mxu0 0
    %3567 = vmatpush1.bf16.xpose.msra.mxu0 0
    %3568 = vmatprep.subr.bf16.mxu0 0
    %3569 = vmatpush1.bf16.xpose.msra.mxu0 0
    %3570 = vmatprep.subr.bf16.mxu0 0
    %3571 = vmatpush1.bf16.xpose.msra.mxu0 0
    %3572 = vmatprep.subr.bf16.mxu0 0
    %3573 = vmatpush1.bf16.xpose.msra.mxu0 0
    %3574 = vmatprep.subr.bf16.mxu0 0
    %3575 = vmatpush1.bf16.xpose.msra.mxu0 0
    %3576 = vmatprep.subr.bf16.mxu0 0
    %3577 = vmatpush1.bf16.xpose.msra.mxu0 0
    %3578 = vmatprep.subr.bf16.mxu0 0
    %3579 = vmatpush1.bf16.xpose.msra.mxu0 0
    %3580 = vmatprep.subr.bf16.mxu0 0
    %3581 = vmatpush1.bf16.xpose.msra.mxu0 0
    %3582 = vmatprep.subr.bf16.mxu0 0
    %3583 = vmatpush1.bf16.xpose.msra.mxu0 0
    %3584 = vmatprep.subr.bf16.mxu0 0
    %3585 = vmatpush1.bf16.xpose.msra.mxu0 0
    %3586 = vmatprep.subr.bf16.mxu0 0
    %3587 = vmatpush1.bf16.xpose.msra.mxu0 0
    %3588 = vmatprep.subr.bf16.mxu0 0
    %3589 = vmatpush1.bf16.xpose.msra.mxu0 0
    %3590 = vmatprep.subr.bf16.mxu0 0
    %3591 = vmatpush1.bf16.xpose.msra.mxu0 0
    %3592 = vmatprep.subr.bf16.mxu0 0
    %3593 = vmatpush1.bf16.xpose.msra.mxu0 0
    %3594 = vmatprep.mubr.bf16.mxu0 0
    %3595 = vmatmul.mubr.bf16.gmra.mrb[0].mxu0 %v3000
    %v3596 = vpop.f32.mrb[0].mxu0
    %v3597 = vadd.f32 0.0, %v3596
    %v3598 = vpop.f32.mrb[0].mxu0
    %v3599 = vpop.f32.mrb[0].mxu0
    %v3600 = vadd.f32 0.0, %v3599
    %v3601 = vpop.f32.mrb[0].mxu0
    %3602 = vdwg.mxu0
    %v3603 = vsel %vm3052, %v3597, -inf
    %3604 = vmax.xlane.f32.xlu0 %v3603
    %v3605 = vpop.xlane.xlu0 %3604
    %v3606 = vsel %vm3052, %v3600, -inf
    %3607 = vmax.xlane.f32.xlu0 %v3606
    %v3608 = vpop.xlane.xlu0 %3607
    %v3609 = vsub.f32 %v3597, %v3605
    %v3610 = vsub.f32 %v3600, %v3608
    %v3611 = vmul.f32 %v3609, 1.442695
    %v3612 = vpow.pop %v3611
    %v3613 = vmul.f32 %v3610, 1.442695
    %v3614 = vpow.pop %v3613
    %v3615 = vsel %vm3052, %v3612, 0.0
    %3616 = vadd.xlane.f32.xlu0 %v3615
    %v3617 = vpop.xlane.xlu0 %3616
    %v3618 = vsel %vm3052, %v3614, 0.0
    %3619 = vadd.xlane.f32.xlu0 %v3618
    %v3620 = vpop.xlane.xlu0 %3619
    %v3621 = vrcp.pop %v3617
    %v3622 = vrcp.pop %v3620
    %v3623 = vmul.f32 %v3612, %v3621
    %v3624 = vmul.f32 %v3614, %v3622
    %v3625 = vpack.c.bf16 %v3624, %v3623
    %v3627 = vsel %vm3052, %v3625, 0
    %3629 = vmatprep.subr.bf16.mxu0 0
    %3630 = vmatpush1.bf16.msra.mxu0 %v3008
    %3631 = vmatprep.subr.bf16.mxu0 0
    %3632 = vmatpush1.bf16.msra.mxu0 0
    %3633 = vmatprep.subr.bf16.mxu0 0
    %3634 = vmatpush1.bf16.msra.mxu0 0
    %3635 = vmatprep.subr.bf16.mxu0 0
    %3636 = vmatpush1.bf16.msra.mxu0 0
    %3637 = vmatprep.subr.bf16.mxu0 0
    %3638 = vmatpush1.bf16.msra.mxu0 0
    %3639 = vmatprep.subr.bf16.mxu0 0
    %3640 = vmatpush1.bf16.msra.mxu0 0
    %3641 = vmatprep.subr.bf16.mxu0 0
    %3642 = vmatpush1.bf16.msra.mxu0 0
    %3643 = vmatprep.subr.bf16.mxu0 0
    %3644 = vmatpush1.bf16.msra.mxu0 0
    %3645 = vmatprep.subr.bf16.mxu0 0
    %3646 = vmatpush1.bf16.msra.mxu0 0
    %3647 = vmatprep.subr.bf16.mxu0 0
    %3648 = vmatpush1.bf16.msra.mxu0 0
    %3649 = vmatprep.subr.bf16.mxu0 0
    %3650 = vmatpush1.bf16.msra.mxu0 0
    %3651 = vmatprep.subr.bf16.mxu0 0
    %3652 = vmatpush1.bf16.msra.mxu0 0
    %3653 = vmatprep.subr.bf16.mxu0 0
    %3654 = vmatpush1.bf16.msra.mxu0 0
    %3655 = vmatprep.subr.bf16.mxu0 0
    %3656 = vmatpush1.bf16.msra.mxu0 0
    %3657 = vmatprep.subr.bf16.mxu0 0
    %3658 = vmatpush1.bf16.msra.mxu0 0
    %3659 = vmatprep.subr.bf16.mxu0 0
    %3660 = vmatpush1.bf16.msra.mxu0 0
    %3661 = vmatprep.mubr.bf16.mxu0 0
    %3662 = vmatmul.mubr.bf16.gmra.mrb[0].mxu0 %v3627
    %v3663 = vpop.f32.mrb[0].mxu0
    %v3664 = vadd.f32 0.0, %v3663
    %v3665 = vpop.f32.mrb[0].mxu0
    %v3666 = vpop.f32.mrb[0].mxu0
    %v3667 = vadd.f32 0.0, %v3666
    %v3668 = vpop.f32.mrb[0].mxu0
    %3669 = vdwg.mxu0
    %3670 = vst [vmem:[#allocation2 + $0x48] sm:$0xff] %v3664
    %3671 = vst [vmem:[#allocation2 + $0x68] sm:$0xff] %v3667
    %3672 = vmatprep.subr.bf16.mxu0 0
    %3673 = vmatpush1.bf16.xpose.msra.mxu0 %v3005
    %3674 = vmatprep.subr.bf16.mxu0 0
    %3675 = vmatpush1.bf16.xpose.msra.mxu0 0
    %3676 = vmatprep.subr.bf16.mxu0 0
    %3677 = vmatpush1.bf16.xpose.msra.mxu0 0
    %3678 = vmatprep.subr.bf16.mxu0 0
    %3679 = vmatpush1.bf16.xpose.msra.mxu0 0
    %3680 = vmatprep.subr.bf16.mxu0 0
    %3681 = vmatpush1.bf16.xpose.msra.mxu0 0
    %3682 = vmatprep.subr.bf16.mxu0 0
    %3683 = vmatpush1.bf16.xpose.msra.mxu0 0
    %3684 = vmatprep.subr.bf16.mxu0 0
    %3685 = vmatpush1.bf16.xpose.msra.mxu0 0
    %3686 = vmatprep.subr.bf16.mxu0 0
    %3687 = vmatpush1.bf16.xpose.msra.mxu0 0
    %3688 = vmatprep.subr.bf16.mxu0 0
    %3689 = vmatpush1.bf16.xpose.msra.mxu0 0
    %3690 = vmatprep.subr.bf16.mxu0 0
    %3691 = vmatpush1.bf16.xpose.msra.mxu0 0
    %3692 = vmatprep.subr.bf16.mxu0 0
    %3693 = vmatpush1.bf16.xpose.msra.mxu0 0
    %3694 = vmatprep.subr.bf16.mxu0 0
    %3695 = vmatpush1.bf16.xpose.msra.mxu0 0
    %3696 = vmatprep.subr.bf16.mxu0 0
    %3697 = vmatpush1.bf16.xpose.msra.mxu0 0
    %3698 = vmatprep.subr.bf16.mxu0 0
    %3699 = vmatpush1.bf16.xpose.msra.mxu0 0
    %3700 = vmatprep.subr.bf16.mxu0 0
    %3701 = vmatpush1.bf16.xpose.msra.mxu0 0
    %3702 = vmatprep.subr.bf16.mxu0 0
    %3703 = vmatpush1.bf16.xpose.msra.mxu0 0
    %3704 = vmatprep.mubr.bf16.mxu0 0
    %3705 = vmatmul.mubr.bf16.gmra.mrb[0].mxu0 %v3001
    %v3706 = vpop.f32.mrb[0].mxu0
    %v3707 = vadd.f32 0.0, %v3706
    %v3708 = vpop.f32.mrb[0].mxu0
    %v3709 = vpop.f32.mrb[0].mxu0
    %v3710 = vadd.f32 0.0, %v3709
    %v3711 = vpop.f32.mrb[0].mxu0
    %3712 = vdwg.mxu0
    %v3713 = vsel %vm3052, %v3707, -inf
    %3714 = vmax.xlane.f32.xlu0 %v3713
    %v3715 = vpop.xlane.xlu0 %3714
    %v3716 = vsel %vm3052, %v3710, -inf
    %3717 = vmax.xlane.f32.xlu0 %v3716
    %v3718 = vpop.xlane.xlu0 %3717
    %v3719 = vsub.f32 %v3707, %v3715
    %v3720 = vsub.f32 %v3710, %v3718
    %v3721 = vmul.f32 %v3719, 1.442695
    %v3722 = vpow.pop %v3721
    %v3723 = vmul.f32 %v3720, 1.442695
    %v3724 = vpow.pop %v3723
    %v3725 = vsel %vm3052, %v3722, 0.0
    %3726 = vadd.xlane.f32.xlu0 %v3725
    %v3727 = vpop.xlane.xlu0 %3726
    %v3728 = vsel %vm3052, %v3724, 0.0
    %3729 = vadd.xlane.f32.xlu0 %v3728
    %v3730 = vpop.xlane.xlu0 %3729
    %v3731 = vrcp.pop %v3727
    %v3732 = vrcp.pop %v3730
    %v3733 = vmul.f32 %v3722, %v3731
    %v3734 = vmul.f32 %v3724, %v3732
    %v3735 = vpack.c.bf16 %v3734, %v3733
    %v3737 = vsel %vm3052, %v3735, 0
    %3739 = vmatprep.subr.bf16.mxu0 0
    %3740 = vmatpush1.bf16.msra.mxu0 %v3009
    %3741 = vmatprep.subr.bf16.mxu0 0
    %3742 = vmatpush1.bf16.msra.mxu0 0
    %3743 = vmatprep.subr.bf16.mxu0 0
    %3744 = vmatpush1.bf16.msra.mxu0 0
    %3745 = vmatprep.subr.bf16.mxu0 0
    %3746 = vmatpush1.bf16.msra.mxu0 0
    %3747 = vmatprep.subr.bf16.mxu0 0
    %3748 = vmatpush1.bf16.msra.mxu0 0
    %3749 = vmatprep.subr.bf16.mxu0 0
    %3750 = vmatpush1.bf16.msra.mxu0 0
    %3751 = vmatprep.subr.bf16.mxu0 0
    %3752 = vmatpush1.bf16.msra.mxu0 0
    %3753 = vmatprep.subr.bf16.mxu0 0
    %3754 = vmatpush1.bf16.msra.mxu0 0
    %3755 = vmatprep.subr.bf16.mxu0 0
    %3756 = vmatpush1.bf16.msra.mxu0 0
    %3757 = vmatprep.subr.bf16.mxu0 0
    %3758 = vmatpush1.bf16.msra.mxu0 0
    %3759 = vmatprep.subr.bf16.mxu0 0
    %3760 = vmatpush1.bf16.msra.mxu0 0
    %3761 = vmatprep.subr.bf16.mxu0 0
    %3762 = vmatpush1.bf16.msra.mxu0 0
    %3763 = vmatprep.subr.bf16.mxu0 0
    %3764 = vmatpush1.bf16.msra.mxu0 0
    %3765 = vmatprep.subr.bf16.mxu0 0
    %3766 = vmatpush1.bf16.msra.mxu0 0
    %3767 = vmatprep.subr.bf16.mxu0 0
    %3768 = vmatpush1.bf16.msra.mxu0 0
    %3769 = vmatprep.subr.bf16.mxu0 0
    %3770 = vmatpush1.bf16.msra.mxu0 0
    %3771 = vmatprep.mubr.bf16.mxu0 0
    %3772 = vmatmul.mubr.bf16.gmra.mrb[0].mxu0 %v3737
    %v3773 = vpop.f32.mrb[0].mxu0
    %v3774 = vadd.f32 0.0, %v3773
    %v3775 = vpop.f32.mrb[0].mxu0
    %v3776 = vpop.f32.mrb[0].mxu0
    %v3777 = vadd.f32 0.0, %v3776
    %v3778 = vpop.f32.mrb[0].mxu0
    %3779 = vdwg.mxu0
    %3780 = vst [vmem:[#allocation2 + $0x50] sm:$0xff] %v3774
    %3781 = vst [vmem:[#allocation2 + $0x70] sm:$0xff] %v3777
    %3782 = vmatprep.subr.bf16.mxu0 0
    %3783 = vmatpush1.bf16.xpose.msra.mxu0 %v3006
    %3784 = vmatprep.subr.bf16.mxu0 0
    %3785 = vmatpush1.bf16.xpose.msra.mxu0 0
    %3786 = vmatprep.subr.bf16.mxu0 0
    %3787 = vmatpush1.bf16.xpose.msra.mxu0 0
    %3788 = vmatprep.subr.bf16.mxu0 0
    %3789 = vmatpush1.bf16.xpose.msra.mxu0 0
    %3790 = vmatprep.subr.bf16.mxu0 0
    %3791 = vmatpush1.bf16.xpose.msra.mxu0 0
    %3792 = vmatprep.subr.bf16.mxu0 0
    %3793 = vmatpush1.bf16.xpose.msra.mxu0 0
    %3794 = vmatprep.subr.bf16.mxu0 0
    %3795 = vmatpush1.bf16.xpose.msra.mxu0 0
    %3796 = vmatprep.subr.bf16.mxu0 0
    %3797 = vmatpush1.bf16.xpose.msra.mxu0 0
    %3798 = vmatprep.subr.bf16.mxu0 0
    %3799 = vmatpush1.bf16.xpose.msra.mxu0 0
    %3800 = vmatprep.subr.bf16.mxu0 0
    %3801 = vmatpush1.bf16.xpose.msra.mxu0 0
    %3802 = vmatprep.subr.bf16.mxu0 0
    %3803 = vmatpush1.bf16.xpose.msra.mxu0 0
    %3804 = vmatprep.subr.bf16.mxu0 0
    %3805 = vmatpush1.bf16.xpose.msra.mxu0 0
    %3806 = vmatprep.subr.bf16.mxu0 0
    %3807 = vmatpush1.bf16.xpose.msra.mxu0 0
    %3808 = vmatprep.subr.bf16.mxu0 0
    %3809 = vmatpush1.bf16.xpose.msra.mxu0 0
    %3810 = vmatprep.subr.bf16.mxu0 0
    %3811 = vmatpush1.bf16.xpose.msra.mxu0 0
    %3812 = vmatprep.subr.bf16.mxu0 0
    %3813 = vmatpush1.bf16.xpose.msra.mxu0 0
    %3814 = vmatprep.mubr.bf16.mxu0 0
    %3815 = vmatmul.mubr.bf16.gmra.mrb[0].mxu0 %v3002
    %v3816 = vpop.f32.mrb[0].mxu0
    %v3817 = vadd.f32 0.0, %v3816
    %v3818 = vpop.f32.mrb[0].mxu0
    %v3819 = vpop.f32.mrb[0].mxu0
    %v3820 = vadd.f32 0.0, %v3819
    %v3821 = vpop.f32.mrb[0].mxu0
    %3822 = vdwg.mxu0
    %v3823 = vsel %vm3052, %v3817, -inf
    %3824 = vmax.xlane.f32.xlu0 %v3823
    %v3825 = vpop.xlane.xlu0 %3824
    %v3826 = vsel %vm3052, %v3820, -inf
    %3827 = vmax.xlane.f32.xlu0 %v3826
    %v3828 = vpop.xlane.xlu0 %3827
    %v3829 = vsub.f32 %v3817, %v3825
    %v3830 = vsub.f32 %v3820, %v3828
    %v3831 = vmul.f32 %v3829, 1.442695
    %v3832 = vpow.pop %v3831
    %v3833 = vmul.f32 %v3830, 1.442695
    %v3834 = vpow.pop %v3833
    %v3835 = vsel %vm3052, %v3832, 0.0
    %3836 = vadd.xlane.f32.xlu0 %v3835
    %v3837 = vpop.xlane.xlu0 %3836
    %v3838 = vsel %vm3052, %v3834, 0.0
    %3839 = vadd.xlane.f32.xlu0 %v3838
    %v3840 = vpop.xlane.xlu0 %3839
    %v3841 = vrcp.pop %v3837
    %v3842 = vrcp.pop %v3840
    %v3843 = vmul.f32 %v3832, %v3841
    %v3844 = vmul.f32 %v3834, %v3842
    %v3845 = vpack.c.bf16 %v3844, %v3843
    %v3847 = vsel %vm3052, %v3845, 0
    %3849 = vmatprep.subr.bf16.mxu0 0
    %3850 = vmatpush1.bf16.msra.mxu0 %v3010
    %3851 = vmatprep.subr.bf16.mxu0 0
    %3852 = vmatpush1.bf16.msra.mxu0 0
    %3853 = vmatprep.subr.bf16.mxu0 0
    %3854 = vmatpush1.bf16.msra.mxu0 0
    %3855 = vmatprep.subr.bf16.mxu0 0
    %3856 = vmatpush1.bf16.msra.mxu0 0
    %3857 = vmatprep.subr.bf16.mxu0 0
    %3858 = vmatpush1.bf16.msra.mxu0 0
    %3859 = vmatprep.subr.bf16.mxu0 0
    %3860 = vmatpush1.bf16.msra.mxu0 0
    %3861 = vmatprep.subr.bf16.mxu0 0
    %3862 = vmatpush1.bf16.msra.mxu0 0
    %3863 = vmatprep.subr.bf16.mxu0 0
    %3864 = vmatpush1.bf16.msra.mxu0 0
    %3865 = vmatprep.subr.bf16.mxu0 0
    %3866 = vmatpush1.bf16.msra.mxu0 0
    %3867 = vmatprep.subr.bf16.mxu0 0
    %3868 = vmatpush1.bf16.msra.mxu0 0
    %3869 = vmatprep.subr.bf16.mxu0 0
    %3870 = vmatpush1.bf16.msra.mxu0 0
    %3871 = vmatprep.subr.bf16.mxu0 0
    %3872 = vmatpush1.bf16.msra.mxu0 0
    %3873 = vmatprep.subr.bf16.mxu0 0
    %3874 = vmatpush1.bf16.msra.mxu0 0
    %3875 = vmatprep.subr.bf16.mxu0 0
    %3876 = vmatpush1.bf16.msra.mxu0 0
    %3877 = vmatprep.subr.bf16.mxu0 0
    %3878 = vmatpush1.bf16.msra.mxu0 0
    %3879 = vmatprep.subr.bf16.mxu0 0
    %3880 = vmatpush1.bf16.msra.mxu0 0
    %3881 = vmatprep.mubr.bf16.mxu0 0
    %3882 = vmatmul.mubr.bf16.gmra.mrb[0].mxu0 %v3847
    %v3883 = vpop.f32.mrb[0].mxu0
    %v3884 = vadd.f32 0.0, %v3883
    %v3885 = vpop.f32.mrb[0].mxu0
    %v3886 = vpop.f32.mrb[0].mxu0
    %v3887 = vadd.f32 0.0, %v3886
    %v3888 = vpop.f32.mrb[0].mxu0
    %3889 = vdwg.mxu0
    %3890 = vst [vmem:[#allocation2 + $0x58] sm:$0xff] %v3884
    %3891 = vst [vmem:[#allocation2 + $0x78] sm:$0xff] %v3887
    %v3892 = vld [vmem:[#allocation2] sm:$0xff]
    %v3893 = vld [vmem:[#allocation2 + $0x8] sm:$0xff]
    %v3894 = vld [vmem:[#allocation2 + $0x10] sm:$0xff]
    %v3895 = vld [vmem:[#allocation2 + $0x18] sm:$0xff]
    %v3896 = vld [vmem:[#allocation2 + $0x20] sm:$0xff]
    %v3897 = vld [vmem:[#allocation2 + $0x28] sm:$0xff]
    %v3898 = vld [vmem:[#allocation2 + $0x30] sm:$0xff]
    %v3899 = vld [vmem:[#allocation2 + $0x38] sm:$0xff]
    %v3900 = vld [vmem:[#allocation2 + $0x40] sm:$0xff]
    %v3901 = vld [vmem:[#allocation2 + $0x48] sm:$0xff]
    %v3902 = vld [vmem:[#allocation2 + $0x50] sm:$0xff]
    %v3903 = vld [vmem:[#allocation2 + $0x58] sm:$0xff]
    %v3904 = vld [vmem:[#allocation2 + $0x60] sm:$0xff]
    %v3905 = vld [vmem:[#allocation2 + $0x68] sm:$0xff]
    %v3906 = vld [vmem:[#allocation2 + $0x70] sm:$0xff]
    %v3907 = vld [vmem:[#allocation2 + $0x78] sm:$0xff]
    %v3908 = vadd.f32 %v3892, %v23
    %v3909 = vadd.f32 %v3893, %v24
    %v3910 = vadd.f32 %v3894, %v25
    %v3911 = vadd.f32 %v3895, %v26
    %v3912 = vadd.f32 %v3896, %v27
    %v3913 = vadd.f32 %v3897, %v28
    %v3914 = vadd.f32 %v3898, %v29
    %v3915 = vadd.f32 %v3899, %v30
    %v3916 = vadd.f32 %v3900, %v31
    %v3917 = vadd.f32 %v3901, %v32
    %v3918 = vadd.f32 %v3902, %v33
    %v3919 = vadd.f32 %v3903, %v34
    %v3920 = vadd.f32 %v3904, %v35
    %v3921 = vadd.f32 %v3905, %v36
    %v3922 = vadd.f32 %v3906, %v37
    %v3923 = vadd.f32 %v3907, %v38
    %v3924 = vadd.f32 %v3908, %v3909
    %v3925 = vadd.f32 %v3924, %v3910
    %v3926 = vadd.f32 %v3925, %v3911
    %3927 = vadd.xlane.f32.xlu0 %v3926
    %v3928 = vpop.xlane.xlu0 %3927
    %v3929 = vadd.f32 %v3912, %v3913
    %v3930 = vadd.f32 %v3929, %v3914
    %v3931 = vadd.f32 %v3930, %v3915
    %3932 = vadd.xlane.f32.xlu0 %v3931
    %v3933 = vpop.xlane.xlu0 %3932
    %v3934 = vadd.f32 %v3916, %v3917
    %v3935 = vadd.f32 %v3934, %v3918
    %v3936 = vadd.f32 %v3935, %v3919
    %3937 = vadd.xlane.f32.xlu0 %v3936
    %v3938 = vpop.xlane.xlu0 %3937
    %v3939 = vadd.f32 %v3920, %v3921
    %v3940 = vadd.f32 %v3939, %v3922
    %v3941 = vadd.f32 %v3940, %v3923
    %3942 = vadd.xlane.f32.xlu0 %v3941
    %v3943 = vpop.xlane.xlu0 %3942
    %v3944 = vrcp.pop 512.0
    %v3945 = vmul.f32 %v3928, %v3944
    %v3946 = vmul.f32 %v3933, %v3944
    %v3947 = vmul.f32 %v3938, %v3944
    %v3948 = vmul.f32 %v3943, %v3944
    %v3949 = vsub.f32 %v3908, %v3945
    %v3950 = vsub.f32 %v3909, %v3945
    %v3951 = vsub.f32 %v3910, %v3945
    %v3952 = vsub.f32 %v3911, %v3945
    %v3953 = vsub.f32 %v3912, %v3946
    %v3954 = vsub.f32 %v3913, %v3946
    %v3955 = vsub.f32 %v3914, %v3946
    %v3956 = vsub.f32 %v3915, %v3946
    %v3957 = vsub.f32 %v3916, %v3947
    %v3958 = vsub.f32 %v3917, %v3947
    %v3959 = vsub.f32 %v3918, %v3947
    %v3960 = vsub.f32 %v3919, %v3947
    %v3961 = vsub.f32 %v3920, %v3948
    %v3962 = vsub.f32 %v3921, %v3948
    %v3963 = vsub.f32 %v3922, %v3948
    %v3964 = vsub.f32 %v3923, %v3948
    %v3965 = vmul.f32 %v3949, %v3949
    %v3966 = vmul.f32 %v3950, %v3950
    %v3967 = vmul.f32 %v3951, %v3951
    %v3968 = vmul.f32 %v3952, %v3952
    %v3969 = vmul.f32 %v3953, %v3953
    %v3970 = vmul.f32 %v3954, %v3954
    %v3971 = vmul.f32 %v3955, %v3955
    %v3972 = vmul.f32 %v3956, %v3956
    %v3973 = vmul.f32 %v3957, %v3957
    %v3974 = vmul.f32 %v3958, %v3958
    %v3975 = vmul.f32 %v3959, %v3959
    %v3976 = vmul.f32 %v3960, %v3960
    %v3977 = vmul.f32 %v3961, %v3961
    %v3978 = vmul.f32 %v3962, %v3962
    %v3979 = vmul.f32 %v3963, %v3963
    %v3980 = vmul.f32 %v3964, %v3964
    %v3981 = vadd.f32 %v3965, %v3966
    %v3982 = vadd.f32 %v3981, %v3967
    %v3983 = vadd.f32 %v3982, %v3968
    %3984 = vadd.xlane.f32.xlu0 %v3983
    %v3985 = vpop.xlane.xlu0 %3984
    %v3986 = vadd.f32 %v3969, %v3970
    %v3987 = vadd.f32 %v3986, %v3971
    %v3988 = vadd.f32 %v3987, %v3972
    %3989 = vadd.xlane.f32.xlu0 %v3988
    %v3990 = vpop.xlane.xlu0 %3989
    %v3991 = vadd.f32 %v3973, %v3974
    %v3992 = vadd.f32 %v3991, %v3975
    %v3993 = vadd.f32 %v3992, %v3976
    %3994 = vadd.xlane.f32.xlu0 %v3993
    %v3995 = vpop.xlane.xlu0 %3994
    %v3996 = vadd.f32 %v3977, %v3978
    %v3997 = vadd.f32 %v3996, %v3979
    %v3998 = vadd.f32 %v3997, %v3980
    %3999 = vadd.xlane.f32.xlu0 %v3998
    %v4000 = vpop.xlane.xlu0 %3999
    %v4001 = vmul.f32 %v3985, %v3944
    %v4002 = vmul.f32 %v3990, %v3944
    %v4003 = vmul.f32 %v3995, %v3944
    %v4004 = vmul.f32 %v4000, %v3944
    %v4005 = vadd.f32 %v4001, 1e-05
    %v4006 = vadd.f32 %v4002, 1e-05
    %v4007 = vadd.f32 %v4003, 1e-05
    %v4008 = vadd.f32 %v4004, 1e-05
    %v4009 = vrsqrt.pop %v4005
    %v4010 = vrsqrt.pop %v4006
    %v4011 = vrsqrt.pop %v4007
    %v4012 = vrsqrt.pop %v4008
    %v4013 = vmul.f32 %v3949, %v4009
    %v4014 = vmul.f32 %v3950, %v4009
    %v4015 = vmul.f32 %v3951, %v4009
    %v4016 = vmul.f32 %v3952, %v4009
    %v4017 = vmul.f32 %v3953, %v4010
    %v4018 = vmul.f32 %v3954, %v4010
    %v4019 = vmul.f32 %v3955, %v4010
    %v4020 = vmul.f32 %v3956, %v4010
    %v4021 = vmul.f32 %v3957, %v4011
    %v4022 = vmul.f32 %v3958, %v4011
    %v4023 = vmul.f32 %v3959, %v4011
    %v4024 = vmul.f32 %v3960, %v4011
    %v4025 = vmul.f32 %v3961, %v4012
    %v4026 = vmul.f32 %v3962, %v4012
    %v4027 = vmul.f32 %v3963, %v4012
    %v4028 = vmul.f32 %v3964, %v4012
    %v4029 = vlaneseq
    %v4030 = vshrl.u32 %v4029, 7
    %v4031 = vsub.s32 1, %v4030
    %v4032 = vrot.slane %v19, %v4031
    %v4033 = vlaneseq
    %v4034 = vshrl.u32 %v4033, 7
    %v4035 = vsub.s32 1, %v4034
    %v4036 = vrot.slane %v20, %v4035
    %v4037 = vlaneseq
    %v4038 = vshrl.u32 %v4037, 7
    %v4039 = vsub.s32 1, %v4038
    %v4040 = vrot.slane %v21, %v4039
    %v4041 = vlaneseq
    %v4042 = vshrl.u32 %v4041, 7
    %v4043 = vsub.s32 1, %v4042
    %v4044 = vrot.slane %v22, %v4043
    %v4045 = vmul.f32 %v4013, %v4032
    %v4046 = vmul.f32 %v4014, %v4036
    %v4047 = vmul.f32 %v4015, %v4040
    %v4048 = vmul.f32 %v4016, %v4044
    %v4049 = vmul.f32 %v4017, %v4032
    %v4050 = vmul.f32 %v4018, %v4036
    %v4051 = vmul.f32 %v4019, %v4040
    %v4052 = vmul.f32 %v4020, %v4044
    %v4053 = vmul.f32 %v4021, %v4032
    %v4054 = vmul.f32 %v4022, %v4036
    %v4055 = vmul.f32 %v4023, %v4040
    %v4056 = vmul.f32 %v4024, %v4044
    %v4057 = vmul.f32 %v4025, %v4032
    %v4058 = vmul.f32 %v4026, %v4036
    %v4059 = vmul.f32 %v4027, %v4040
    %v4060 = vmul.f32 %v4028, %v4044
    %v4061 = vlaneseq
    %v4062 = vshrl.u32 %v4061, 7
    %v4063 = vsub.s32 2, %v4062
    %v4064 = vrot.slane %v19, %v4063
    %v4065 = vlaneseq
    %v4066 = vshrl.u32 %v4065, 7
    %v4067 = vsub.s32 2, %v4066
    %v4068 = vrot.slane %v20, %v4067
    %v4069 = vlaneseq
    %v4070 = vshrl.u32 %v4069, 7
    %v4071 = vsub.s32 2, %v4070
    %v4072 = vrot.slane %v21, %v4071
    %v4073 = vlaneseq
    %v4074 = vshrl.u32 %v4073, 7
    %v4075 = vsub.s32 2, %v4074
    %v4076 = vrot.slane %v22, %v4075
    %v4077 = vadd.f32 %v4045, %v4064
    %v4078 = vadd.f32 %v4046, %v4068
    %v4079 = vadd.f32 %v4047, %v4072
    %v4080 = vadd.f32 %v4048, %v4076
    %v4081 = vadd.f32 %v4049, %v4064
    %v4082 = vadd.f32 %v4050, %v4068
    %v4083 = vadd.f32 %v4051, %v4072
    %v4084 = vadd.f32 %v4052, %v4076
    %v4085 = vadd.f32 %v4053, %v4064
    %v4086 = vadd.f32 %v4054, %v4068
    %v4087 = vadd.f32 %v4055, %v4072
    %v4088 = vadd.f32 %v4056, %v4076
    %v4089 = vadd.f32 %v4057, %v4064
    %v4090 = vadd.f32 %v4058, %v4068
    %v4091 = vadd.f32 %v4059, %v4072
    %v4092 = vadd.f32 %v4060, %v4076
    %v4093 = vpack.c.bf16 %v4081, %v4077
    %v4094 = vpack.c.bf16 %v4082, %v4078
    %v4095 = vpack.c.bf16 %v4083, %v4079
    %v4096 = vpack.c.bf16 %v4084, %v4080
    %v4097 = vpack.c.bf16 %v4089, %v4085
    %v4098 = vpack.c.bf16 %v4090, %v4086
    %v4099 = vpack.c.bf16 %v4091, %v4087
    %v4100 = vpack.c.bf16 %v4092, %v4088
    %v4101 = vld [vmem:[%s2] sm:$0xff]
    %v4102 = vld [vmem:[%s2 + $0x8] sm:$0xff]
    %v4103 = vld [vmem:[%s2 + $0x10] sm:$0xff]
    %v4104 = vld [vmem:[%s2 + $0x18] sm:$0xff]
    %v4105 = vld [vmem:[%s2 + $0x20] sm:$0xff]
    %v4106 = vld [vmem:[%s2 + $0x28] sm:$0xff]
    %v4107 = vld [vmem:[%s2 + $0x30] sm:$0xff]
    %v4108 = vld [vmem:[%s2 + $0x38] sm:$0xff]
    %v4109 = vld [vmem:[%s2 + $0x40] sm:$0xff]
    %v4110 = vld [vmem:[%s2 + $0x48] sm:$0xff]
    %v4111 = vld [vmem:[%s2 + $0x50] sm:$0xff]
    %v4112 = vld [vmem:[%s2 + $0x58] sm:$0xff]
    %v4113 = vld [vmem:[%s2 + $0x60] sm:$0xff]
    %v4114 = vld [vmem:[%s2 + $0x68] sm:$0xff]
    %v4115 = vld [vmem:[%s2 + $0x70] sm:$0xff]
    %v4116 = vld [vmem:[%s2 + $0x78] sm:$0xff]
    %v4117 = vld [vmem:[%s2 + $0x80] sm:$0xff]
    %v4118 = vld [vmem:[%s2 + $0x88] sm:$0xff]
    %v4119 = vld [vmem:[%s2 + $0x90] sm:$0xff]
    %v4120 = vld [vmem:[%s2 + $0x98] sm:$0xff]
    %v4121 = vld [vmem:[%s2 + $0xa0] sm:$0xff]
    %v4122 = vld [vmem:[%s2 + $0xa8] sm:$0xff]
    %v4123 = vld [vmem:[%s2 + $0xb0] sm:$0xff]
    %v4124 = vld [vmem:[%s2 + $0xb8] sm:$0xff]
    %v4125 = vld [vmem:[%s2 + $0xc0] sm:$0xff]
    %v4126 = vld [vmem:[%s2 + $0xc8] sm:$0xff]
    %v4127 = vld [vmem:[%s2 + $0xd0] sm:$0xff]
    %v4128 = vld [vmem:[%s2 + $0xd8] sm:$0xff]
    %v4129 = vld [vmem:[%s2 + $0xe0] sm:$0xff]
    %v4130 = vld [vmem:[%s2 + $0xe8] sm:$0xff]
    %v4131 = vld [vmem:[%s2 + $0xf0] sm:$0xff]
    %v4132 = vld [vmem:[%s2 + $0xf8] sm:$0xff]
    %v4133 = vld [vmem:[%s2 + $0x100] sm:$0xff]
    %v4134 = vld [vmem:[%s2 + $0x108] sm:$0xff]
    %v4135 = vld [vmem:[%s2 + $0x110] sm:$0xff]
    %v4136 = vld [vmem:[%s2 + $0x118] sm:$0xff]
    %v4137 = vld [vmem:[%s2 + $0x120] sm:$0xff]
    %v4138 = vld [vmem:[%s2 + $0x128] sm:$0xff]
    %v4139 = vld [vmem:[%s2 + $0x130] sm:$0xff]
    %v4140 = vld [vmem:[%s2 + $0x138] sm:$0xff]
    %v4141 = vld [vmem:[%s2 + $0x140] sm:$0xff]
    %v4142 = vld [vmem:[%s2 + $0x148] sm:$0xff]
    %v4143 = vld [vmem:[%s2 + $0x150] sm:$0xff]
    %v4144 = vld [vmem:[%s2 + $0x158] sm:$0xff]
    %v4145 = vld [vmem:[%s2 + $0x160] sm:$0xff]
    %v4146 = vld [vmem:[%s2 + $0x168] sm:$0xff]
    %v4147 = vld [vmem:[%s2 + $0x170] sm:$0xff]
    %v4148 = vld [vmem:[%s2 + $0x178] sm:$0xff]
    %v4149 = vld [vmem:[%s2 + $0x180] sm:$0xff]
    %v4150 = vld [vmem:[%s2 + $0x188] sm:$0xff]
    %v4151 = vld [vmem:[%s2 + $0x190] sm:$0xff]
    %v4152 = vld [vmem:[%s2 + $0x198] sm:$0xff]
    %v4153 = vld [vmem:[%s2 + $0x1a0] sm:$0xff]
    %v4154 = vld [vmem:[%s2 + $0x1a8] sm:$0xff]
    %v4155 = vld [vmem:[%s2 + $0x1b0] sm:$0xff]
    %v4156 = vld [vmem:[%s2 + $0x1b8] sm:$0xff]
    %v4157 = vld [vmem:[%s2 + $0x1c0] sm:$0xff]
    %v4158 = vld [vmem:[%s2 + $0x1c8] sm:$0xff]
    %v4159 = vld [vmem:[%s2 + $0x1d0] sm:$0xff]
    %v4160 = vld [vmem:[%s2 + $0x1d8] sm:$0xff]
    %v4161 = vld [vmem:[%s2 + $0x1e0] sm:$0xff]
    %v4162 = vld [vmem:[%s2 + $0x1e8] sm:$0xff]
    %v4163 = vld [vmem:[%s2 + $0x1f0] sm:$0xff]
    %v4164 = vld [vmem:[%s2 + $0x1f8] sm:$0xff]
    %v4165 = vld [vmem:[%s2 + $0x200] sm:$0xff]
    %v4166 = vld [vmem:[%s2 + $0x208] sm:$0xff]
    %v4167 = vld [vmem:[%s2 + $0x210] sm:$0xff]
    %v4168 = vld [vmem:[%s2 + $0x218] sm:$0xff]
    %v4169 = vld [vmem:[%s2 + $0x220] sm:$0xff]
    %v4170 = vld [vmem:[%s2 + $0x228] sm:$0xff]
    %v4171 = vld [vmem:[%s2 + $0x230] sm:$0xff]
    %v4172 = vld [vmem:[%s2 + $0x238] sm:$0xff]
    %v4173 = vld [vmem:[%s2 + $0x240] sm:$0xff]
    %v4174 = vld [vmem:[%s2 + $0x248] sm:$0xff]
    %v4175 = vld [vmem:[%s2 + $0x250] sm:$0xff]
    %v4176 = vld [vmem:[%s2 + $0x258] sm:$0xff]
    %v4177 = vld [vmem:[%s2 + $0x260] sm:$0xff]
    %v4178 = vld [vmem:[%s2 + $0x268] sm:$0xff]
    %v4179 = vld [vmem:[%s2 + $0x270] sm:$0xff]
    %v4180 = vld [vmem:[%s2 + $0x278] sm:$0xff]
    %v4181 = vld [vmem:[%s2 + $0x280] sm:$0xff]
    %v4182 = vld [vmem:[%s2 + $0x288] sm:$0xff]
    %v4183 = vld [vmem:[%s2 + $0x290] sm:$0xff]
    %v4184 = vld [vmem:[%s2 + $0x298] sm:$0xff]
    %v4185 = vld [vmem:[%s2 + $0x2a0] sm:$0xff]
    %v4186 = vld [vmem:[%s2 + $0x2a8] sm:$0xff]
    %v4187 = vld [vmem:[%s2 + $0x2b0] sm:$0xff]
    %v4188 = vld [vmem:[%s2 + $0x2b8] sm:$0xff]
    %v4189 = vld [vmem:[%s2 + $0x2c0] sm:$0xff]
    %v4190 = vld [vmem:[%s2 + $0x2c8] sm:$0xff]
    %v4191 = vld [vmem:[%s2 + $0x2d0] sm:$0xff]
    %v4192 = vld [vmem:[%s2 + $0x2d8] sm:$0xff]
    %v4193 = vld [vmem:[%s2 + $0x2e0] sm:$0xff]
    %v4194 = vld [vmem:[%s2 + $0x2e8] sm:$0xff]
    %v4195 = vld [vmem:[%s2 + $0x2f0] sm:$0xff]
    %v4196 = vld [vmem:[%s2 + $0x2f8] sm:$0xff]
    %v4197 = vld [vmem:[%s2 + $0x300] sm:$0xff]
    %v4198 = vld [vmem:[%s2 + $0x308] sm:$0xff]
    %v4199 = vld [vmem:[%s2 + $0x310] sm:$0xff]
    %v4200 = vld [vmem:[%s2 + $0x318] sm:$0xff]
    %v4201 = vld [vmem:[%s2 + $0x320] sm:$0xff]
    %v4202 = vld [vmem:[%s2 + $0x328] sm:$0xff]
    %v4203 = vld [vmem:[%s2 + $0x330] sm:$0xff]
    %v4204 = vld [vmem:[%s2 + $0x338] sm:$0xff]
    %v4205 = vld [vmem:[%s2 + $0x340] sm:$0xff]
    %v4206 = vld [vmem:[%s2 + $0x348] sm:$0xff]
    %v4207 = vld [vmem:[%s2 + $0x350] sm:$0xff]
    %v4208 = vld [vmem:[%s2 + $0x358] sm:$0xff]
    %v4209 = vld [vmem:[%s2 + $0x360] sm:$0xff]
    %v4210 = vld [vmem:[%s2 + $0x368] sm:$0xff]
    %v4211 = vld [vmem:[%s2 + $0x370] sm:$0xff]
    %v4212 = vld [vmem:[%s2 + $0x378] sm:$0xff]
    %v4213 = vld [vmem:[%s2 + $0x380] sm:$0xff]
    %v4214 = vld [vmem:[%s2 + $0x388] sm:$0xff]
    %v4215 = vld [vmem:[%s2 + $0x390] sm:$0xff]
    %v4216 = vld [vmem:[%s2 + $0x398] sm:$0xff]
    %v4217 = vld [vmem:[%s2 + $0x3a0] sm:$0xff]
    %v4218 = vld [vmem:[%s2 + $0x3a8] sm:$0xff]
    %v4219 = vld [vmem:[%s2 + $0x3b0] sm:$0xff]
    %v4220 = vld [vmem:[%s2 + $0x3b8] sm:$0xff]
    %v4221 = vld [vmem:[%s2 + $0x3c0] sm:$0xff]
    %v4222 = vld [vmem:[%s2 + $0x3c8] sm:$0xff]
    %v4223 = vld [vmem:[%s2 + $0x3d0] sm:$0xff]
    %v4224 = vld [vmem:[%s2 + $0x3d8] sm:$0xff]
    %v4225 = vld [vmem:[%s2 + $0x3e0] sm:$0xff]
    %v4226 = vld [vmem:[%s2 + $0x3e8] sm:$0xff]
    %v4227 = vld [vmem:[%s2 + $0x3f0] sm:$0xff]
    %v4228 = vld [vmem:[%s2 + $0x3f8] sm:$0xff]
    %v4229 = vlaneseq
    %v4230 = vshrl.u32 %v4229, 7
    %v4231 = vsub.s32 0, %v4230
    %v4232 = vrot.slane %v19, %v4231
    %v4233 = vlaneseq
    %v4234 = vshrl.u32 %v4233, 7
    %v4235 = vsub.s32 0, %v4234
    %v4236 = vrot.slane %v20, %v4235
    %v4237 = vlaneseq
    %v4238 = vshrl.u32 %v4237, 7
    %v4239 = vsub.s32 0, %v4238
    %v4240 = vrot.slane %v21, %v4239
    %v4241 = vlaneseq
    %v4242 = vshrl.u32 %v4241, 7
    %v4243 = vsub.s32 0, %v4242
    %v4244 = vrot.slane %v22, %v4243
    %v4373 = vunpack.c.l.b16 %v4101
    %v4374 = vunpack.c.h.b16 %v4101
    %v4375 = vunpack.c.l.b16 %v4102
    %v4376 = vunpack.c.h.b16 %v4102
    %v4377 = vunpack.c.l.b16 %v4103
    %v4378 = vunpack.c.h.b16 %v4103
    %v4379 = vunpack.c.l.b16 %v4104
    %v4380 = vunpack.c.h.b16 %v4104
    %v4381 = vunpack.c.l.b16 %v4105
    %v4382 = vunpack.c.h.b16 %v4105
    %v4383 = vunpack.c.l.b16 %v4106
    %v4384 = vunpack.c.h.b16 %v4106
    %v4385 = vunpack.c.l.b16 %v4107
    %v4386 = vunpack.c.h.b16 %v4107
    %v4387 = vunpack.c.l.b16 %v4108
    %v4388 = vunpack.c.h.b16 %v4108
    %v4389 = vunpack.c.l.b16 %v4109
    %v4390 = vunpack.c.h.b16 %v4109
    %v4391 = vunpack.c.l.b16 %v4110
    %v4392 = vunpack.c.h.b16 %v4110
    %v4393 = vunpack.c.l.b16 %v4111
    %v4394 = vunpack.c.h.b16 %v4111
    %v4395 = vunpack.c.l.b16 %v4112
    %v4396 = vunpack.c.h.b16 %v4112
    %v4397 = vunpack.c.l.b16 %v4113
    %v4398 = vunpack.c.h.b16 %v4113
    %v4399 = vunpack.c.l.b16 %v4114
    %v4400 = vunpack.c.h.b16 %v4114
    %v4401 = vunpack.c.l.b16 %v4115
    %v4402 = vunpack.c.h.b16 %v4115
    %v4403 = vunpack.c.l.b16 %v4116
    %v4404 = vunpack.c.h.b16 %v4116
    %v4405 = vunpack.c.l.b16 %v4117
    %v4406 = vunpack.c.h.b16 %v4117
    %v4407 = vunpack.c.l.b16 %v4118
    %v4408 = vunpack.c.h.b16 %v4118
    %v4409 = vunpack.c.l.b16 %v4119
    %v4410 = vunpack.c.h.b16 %v4119
    %v4411 = vunpack.c.l.b16 %v4120
    %v4412 = vunpack.c.h.b16 %v4120
    %v4413 = vunpack.c.l.b16 %v4121
    %v4414 = vunpack.c.h.b16 %v4121
    %v4415 = vunpack.c.l.b16 %v4122
    %v4416 = vunpack.c.h.b16 %v4122
    %v4417 = vunpack.c.l.b16 %v4123
    %v4418 = vunpack.c.h.b16 %v4123
    %v4419 = vunpack.c.l.b16 %v4124
    %v4420 = vunpack.c.h.b16 %v4124
    %v4421 = vunpack.c.l.b16 %v4125
    %v4422 = vunpack.c.h.b16 %v4125
    %v4423 = vunpack.c.l.b16 %v4126
    %v4424 = vunpack.c.h.b16 %v4126
    %v4425 = vunpack.c.l.b16 %v4127
    %v4426 = vunpack.c.h.b16 %v4127
    %v4427 = vunpack.c.l.b16 %v4128
    %v4428 = vunpack.c.h.b16 %v4128
    %v4429 = vunpack.c.l.b16 %v4129
    %v4430 = vunpack.c.h.b16 %v4129
    %v4431 = vunpack.c.l.b16 %v4130
    %v4432 = vunpack.c.h.b16 %v4130
    %v4433 = vunpack.c.l.b16 %v4131
    %v4434 = vunpack.c.h.b16 %v4131
    %v4435 = vunpack.c.l.b16 %v4132
    %v4436 = vunpack.c.h.b16 %v4132
    %v4437 = vunpack.c.l.b16 %v4133
    %v4438 = vunpack.c.h.b16 %v4133
    %v4439 = vunpack.c.l.b16 %v4134
    %v4440 = vunpack.c.h.b16 %v4134
    %v4441 = vunpack.c.l.b16 %v4135
    %v4442 = vunpack.c.h.b16 %v4135
    %v4443 = vunpack.c.l.b16 %v4136
    %v4444 = vunpack.c.h.b16 %v4136
    %v4445 = vunpack.c.l.b16 %v4137
    %v4446 = vunpack.c.h.b16 %v4137
    %v4447 = vunpack.c.l.b16 %v4138
    %v4448 = vunpack.c.h.b16 %v4138
    %v4449 = vunpack.c.l.b16 %v4139
    %v4450 = vunpack.c.h.b16 %v4139
    %v4451 = vunpack.c.l.b16 %v4140
    %v4452 = vunpack.c.h.b16 %v4140
    %v4453 = vunpack.c.l.b16 %v4141
    %v4454 = vunpack.c.h.b16 %v4141
    %v4455 = vunpack.c.l.b16 %v4142
    %v4456 = vunpack.c.h.b16 %v4142
    %v4457 = vunpack.c.l.b16 %v4143
    %v4458 = vunpack.c.h.b16 %v4143
    %v4459 = vunpack.c.l.b16 %v4144
    %v4460 = vunpack.c.h.b16 %v4144
    %v4461 = vunpack.c.l.b16 %v4145
    %v4462 = vunpack.c.h.b16 %v4145
    %v4463 = vunpack.c.l.b16 %v4146
    %v4464 = vunpack.c.h.b16 %v4146
    %v4465 = vunpack.c.l.b16 %v4147
    %v4466 = vunpack.c.h.b16 %v4147
    %v4467 = vunpack.c.l.b16 %v4148
    %v4468 = vunpack.c.h.b16 %v4148
    %v4469 = vunpack.c.l.b16 %v4149
    %v4470 = vunpack.c.h.b16 %v4149
    %v4471 = vunpack.c.l.b16 %v4150
    %v4472 = vunpack.c.h.b16 %v4150
    %v4473 = vunpack.c.l.b16 %v4151
    %v4474 = vunpack.c.h.b16 %v4151
    %v4475 = vunpack.c.l.b16 %v4152
    %v4476 = vunpack.c.h.b16 %v4152
    %v4477 = vunpack.c.l.b16 %v4153
    %v4478 = vunpack.c.h.b16 %v4153
    %v4479 = vunpack.c.l.b16 %v4154
    %v4480 = vunpack.c.h.b16 %v4154
    %v4481 = vunpack.c.l.b16 %v4155
    %v4482 = vunpack.c.h.b16 %v4155
    %v4483 = vunpack.c.l.b16 %v4156
    %v4484 = vunpack.c.h.b16 %v4156
    %v4485 = vunpack.c.l.b16 %v4157
    %v4486 = vunpack.c.h.b16 %v4157
    %v4487 = vunpack.c.l.b16 %v4158
    %v4488 = vunpack.c.h.b16 %v4158
    %v4489 = vunpack.c.l.b16 %v4159
    %v4490 = vunpack.c.h.b16 %v4159
    %v4491 = vunpack.c.l.b16 %v4160
    %v4492 = vunpack.c.h.b16 %v4160
    %v4493 = vunpack.c.l.b16 %v4161
    %v4494 = vunpack.c.h.b16 %v4161
    %v4495 = vunpack.c.l.b16 %v4162
    %v4496 = vunpack.c.h.b16 %v4162
    %v4497 = vunpack.c.l.b16 %v4163
    %v4498 = vunpack.c.h.b16 %v4163
    %v4499 = vunpack.c.l.b16 %v4164
    %v4500 = vunpack.c.h.b16 %v4164
    %v4501 = vunpack.c.l.b16 %v4165
    %v4502 = vunpack.c.h.b16 %v4165
    %v4503 = vunpack.c.l.b16 %v4166
    %v4504 = vunpack.c.h.b16 %v4166
    %v4505 = vunpack.c.l.b16 %v4167
    %v4506 = vunpack.c.h.b16 %v4167
    %v4507 = vunpack.c.l.b16 %v4168
    %v4508 = vunpack.c.h.b16 %v4168
    %v4509 = vunpack.c.l.b16 %v4169
    %v4510 = vunpack.c.h.b16 %v4169
    %v4511 = vunpack.c.l.b16 %v4170
    %v4512 = vunpack.c.h.b16 %v4170
    %v4513 = vunpack.c.l.b16 %v4171
    %v4514 = vunpack.c.h.b16 %v4171
    %v4515 = vunpack.c.l.b16 %v4172
    %v4516 = vunpack.c.h.b16 %v4172
    %v4517 = vunpack.c.l.b16 %v4173
    %v4518 = vunpack.c.h.b16 %v4173
    %v4519 = vunpack.c.l.b16 %v4174
    %v4520 = vunpack.c.h.b16 %v4174
    %v4521 = vunpack.c.l.b16 %v4175
    %v4522 = vunpack.c.h.b16 %v4175
    %v4523 = vunpack.c.l.b16 %v4176
    %v4524 = vunpack.c.h.b16 %v4176
    %v4525 = vunpack.c.l.b16 %v4177
    %v4526 = vunpack.c.h.b16 %v4177
    %v4527 = vunpack.c.l.b16 %v4178
    %v4528 = vunpack.c.h.b16 %v4178
    %v4529 = vunpack.c.l.b16 %v4179
    %v4530 = vunpack.c.h.b16 %v4179
    %v4531 = vunpack.c.l.b16 %v4180
    %v4532 = vunpack.c.h.b16 %v4180
    %v4533 = vunpack.c.l.b16 %v4181
    %v4534 = vunpack.c.h.b16 %v4181
    %v4535 = vunpack.c.l.b16 %v4182
    %v4536 = vunpack.c.h.b16 %v4182
    %v4537 = vunpack.c.l.b16 %v4183
    %v4538 = vunpack.c.h.b16 %v4183
    %v4539 = vunpack.c.l.b16 %v4184
    %v4540 = vunpack.c.h.b16 %v4184
    %v4541 = vunpack.c.l.b16 %v4185
    %v4542 = vunpack.c.h.b16 %v4185
    %v4543 = vunpack.c.l.b16 %v4186
    %v4544 = vunpack.c.h.b16 %v4186
    %v4545 = vunpack.c.l.b16 %v4187
    %v4546 = vunpack.c.h.b16 %v4187
    %v4547 = vunpack.c.l.b16 %v4188
    %v4548 = vunpack.c.h.b16 %v4188
    %v4549 = vunpack.c.l.b16 %v4189
    %v4550 = vunpack.c.h.b16 %v4189
    %v4551 = vunpack.c.l.b16 %v4190
    %v4552 = vunpack.c.h.b16 %v4190
    %v4553 = vunpack.c.l.b16 %v4191
    %v4554 = vunpack.c.h.b16 %v4191
    %v4555 = vunpack.c.l.b16 %v4192
    %v4556 = vunpack.c.h.b16 %v4192
    %v4557 = vunpack.c.l.b16 %v4193
    %v4558 = vunpack.c.h.b16 %v4193
    %v4559 = vunpack.c.l.b16 %v4194
    %v4560 = vunpack.c.h.b16 %v4194
    %v4561 = vunpack.c.l.b16 %v4195
    %v4562 = vunpack.c.h.b16 %v4195
    %v4563 = vunpack.c.l.b16 %v4196
    %v4564 = vunpack.c.h.b16 %v4196
    %v4565 = vunpack.c.l.b16 %v4197
    %v4566 = vunpack.c.h.b16 %v4197
    %v4567 = vunpack.c.l.b16 %v4198
    %v4568 = vunpack.c.h.b16 %v4198
    %v4569 = vunpack.c.l.b16 %v4199
    %v4570 = vunpack.c.h.b16 %v4199
    %v4571 = vunpack.c.l.b16 %v4200
    %v4572 = vunpack.c.h.b16 %v4200
    %v4573 = vunpack.c.l.b16 %v4201
    %v4574 = vunpack.c.h.b16 %v4201
    %v4575 = vunpack.c.l.b16 %v4202
    %v4576 = vunpack.c.h.b16 %v4202
    %v4577 = vunpack.c.l.b16 %v4203
    %v4578 = vunpack.c.h.b16 %v4203
    %v4579 = vunpack.c.l.b16 %v4204
    %v4580 = vunpack.c.h.b16 %v4204
    %v4581 = vunpack.c.l.b16 %v4205
    %v4582 = vunpack.c.h.b16 %v4205
    %v4583 = vunpack.c.l.b16 %v4206
    %v4584 = vunpack.c.h.b16 %v4206
    %v4585 = vunpack.c.l.b16 %v4207
    %v4586 = vunpack.c.h.b16 %v4207
    %v4587 = vunpack.c.l.b16 %v4208
    %v4588 = vunpack.c.h.b16 %v4208
    %v4589 = vunpack.c.l.b16 %v4209
    %v4590 = vunpack.c.h.b16 %v4209
    %v4591 = vunpack.c.l.b16 %v4210
    %v4592 = vunpack.c.h.b16 %v4210
    %v4593 = vunpack.c.l.b16 %v4211
    %v4594 = vunpack.c.h.b16 %v4211
    %v4595 = vunpack.c.l.b16 %v4212
    %v4596 = vunpack.c.h.b16 %v4212
    %v4597 = vunpack.c.l.b16 %v4213
    %v4598 = vunpack.c.h.b16 %v4213
    %v4599 = vunpack.c.l.b16 %v4214
    %v4600 = vunpack.c.h.b16 %v4214
    %v4601 = vunpack.c.l.b16 %v4215
    %v4602 = vunpack.c.h.b16 %v4215
    %v4603 = vunpack.c.l.b16 %v4216
    %v4604 = vunpack.c.h.b16 %v4216
    %v4605 = vunpack.c.l.b16 %v4217
    %v4606 = vunpack.c.h.b16 %v4217
    %v4607 = vunpack.c.l.b16 %v4218
    %v4608 = vunpack.c.h.b16 %v4218
    %v4609 = vunpack.c.l.b16 %v4219
    %v4610 = vunpack.c.h.b16 %v4219
    %v4611 = vunpack.c.l.b16 %v4220
    %v4612 = vunpack.c.h.b16 %v4220
    %v4613 = vunpack.c.l.b16 %v4221
    %v4614 = vunpack.c.h.b16 %v4221
    %v4615 = vunpack.c.l.b16 %v4222
    %v4616 = vunpack.c.h.b16 %v4222
    %v4617 = vunpack.c.l.b16 %v4223
    %v4618 = vunpack.c.h.b16 %v4223
    %v4619 = vunpack.c.l.b16 %v4224
    %v4620 = vunpack.c.h.b16 %v4224
    %v4621 = vunpack.c.l.b16 %v4225
    %v4622 = vunpack.c.h.b16 %v4225
    %v4623 = vunpack.c.l.b16 %v4226
    %v4624 = vunpack.c.h.b16 %v4226
    %v4625 = vunpack.c.l.b16 %v4227
    %v4626 = vunpack.c.h.b16 %v4227
    %v4627 = vunpack.c.l.b16 %v4228
    %v4628 = vunpack.c.h.b16 %v4228
    %v4629 = vpack.c.b16 %v4377, %v4373
    %v4630 = vpack.c.b16 %v4378, %v4374
    %v4631 = vpack.c.b16 %v4379, %v4375
    %v4632 = vpack.c.b16 %v4380, %v4376
    %v4633 = vpack.c.b16 %v4385, %v4381
    %v4634 = vpack.c.b16 %v4386, %v4382
    %v4635 = vpack.c.b16 %v4387, %v4383
    %v4636 = vpack.c.b16 %v4388, %v4384
    %v4637 = vpack.c.b16 %v4393, %v4389
    %v4638 = vpack.c.b16 %v4394, %v4390
    %v4639 = vpack.c.b16 %v4395, %v4391
    %v4640 = vpack.c.b16 %v4396, %v4392
    %v4641 = vpack.c.b16 %v4401, %v4397
    %v4642 = vpack.c.b16 %v4402, %v4398
    %v4643 = vpack.c.b16 %v4403, %v4399
    %v4644 = vpack.c.b16 %v4404, %v4400
    %v4645 = vpack.c.b16 %v4409, %v4405
    %v4646 = vpack.c.b16 %v4410, %v4406
    %v4647 = vpack.c.b16 %v4411, %v4407
    %v4648 = vpack.c.b16 %v4412, %v4408
    %v4649 = vpack.c.b16 %v4417, %v4413
    %v4650 = vpack.c.b16 %v4418, %v4414
    %v4651 = vpack.c.b16 %v4419, %v4415
    %v4652 = vpack.c.b16 %v4420, %v4416
    %v4653 = vpack.c.b16 %v4425, %v4421
    %v4654 = vpack.c.b16 %v4426, %v4422
    %v4655 = vpack.c.b16 %v4427, %v4423
    %v4656 = vpack.c.b16 %v4428, %v4424
    %v4657 = vpack.c.b16 %v4433, %v4429
    %v4658 = vpack.c.b16 %v4434, %v4430
    %v4659 = vpack.c.b16 %v4435, %v4431
    %v4660 = vpack.c.b16 %v4436, %v4432
    %v4661 = vpack.c.b16 %v4441, %v4437
    %v4662 = vpack.c.b16 %v4442, %v4438
    %v4663 = vpack.c.b16 %v4443, %v4439
    %v4664 = vpack.c.b16 %v4444, %v4440
    %v4665 = vpack.c.b16 %v4449, %v4445
    %v4666 = vpack.c.b16 %v4450, %v4446
    %v4667 = vpack.c.b16 %v4451, %v4447
    %v4668 = vpack.c.b16 %v4452, %v4448
    %v4669 = vpack.c.b16 %v4457, %v4453
    %v4670 = vpack.c.b16 %v4458, %v4454
    %v4671 = vpack.c.b16 %v4459, %v4455
    %v4672 = vpack.c.b16 %v4460, %v4456
    %v4673 = vpack.c.b16 %v4465, %v4461
    %v4674 = vpack.c.b16 %v4466, %v4462
    %v4675 = vpack.c.b16 %v4467, %v4463
    %v4676 = vpack.c.b16 %v4468, %v4464
    %v4677 = vpack.c.b16 %v4473, %v4469
    %v4678 = vpack.c.b16 %v4474, %v4470
    %v4679 = vpack.c.b16 %v4475, %v4471
    %v4680 = vpack.c.b16 %v4476, %v4472
    %v4681 = vpack.c.b16 %v4481, %v4477
    %v4682 = vpack.c.b16 %v4482, %v4478
    %v4683 = vpack.c.b16 %v4483, %v4479
    %v4684 = vpack.c.b16 %v4484, %v4480
    %v4685 = vpack.c.b16 %v4489, %v4485
    %v4686 = vpack.c.b16 %v4490, %v4486
    %v4687 = vpack.c.b16 %v4491, %v4487
    %v4688 = vpack.c.b16 %v4492, %v4488
    %v4689 = vpack.c.b16 %v4497, %v4493
    %v4690 = vpack.c.b16 %v4498, %v4494
    %v4691 = vpack.c.b16 %v4499, %v4495
    %v4692 = vpack.c.b16 %v4500, %v4496
    %v4693 = vpack.c.b16 %v4505, %v4501
    %v4694 = vpack.c.b16 %v4506, %v4502
    %v4695 = vpack.c.b16 %v4507, %v4503
    %v4696 = vpack.c.b16 %v4508, %v4504
    %v4697 = vpack.c.b16 %v4513, %v4509
    %v4698 = vpack.c.b16 %v4514, %v4510
    %v4699 = vpack.c.b16 %v4515, %v4511
    %v4700 = vpack.c.b16 %v4516, %v4512
    %v4701 = vpack.c.b16 %v4521, %v4517
    %v4702 = vpack.c.b16 %v4522, %v4518
    %v4703 = vpack.c.b16 %v4523, %v4519
    %v4704 = vpack.c.b16 %v4524, %v4520
    %v4705 = vpack.c.b16 %v4529, %v4525
    %v4706 = vpack.c.b16 %v4530, %v4526
    %v4707 = vpack.c.b16 %v4531, %v4527
    %v4708 = vpack.c.b16 %v4532, %v4528
    %v4709 = vpack.c.b16 %v4537, %v4533
    %v4710 = vpack.c.b16 %v4538, %v4534
    %v4711 = vpack.c.b16 %v4539, %v4535
    %v4712 = vpack.c.b16 %v4540, %v4536
    %v4713 = vpack.c.b16 %v4545, %v4541
    %v4714 = vpack.c.b16 %v4546, %v4542
    %v4715 = vpack.c.b16 %v4547, %v4543
    %v4716 = vpack.c.b16 %v4548, %v4544
    %v4717 = vpack.c.b16 %v4553, %v4549
    %v4718 = vpack.c.b16 %v4554, %v4550
    %v4719 = vpack.c.b16 %v4555, %v4551
    %v4720 = vpack.c.b16 %v4556, %v4552
    %v4721 = vpack.c.b16 %v4561, %v4557
    %v4722 = vpack.c.b16 %v4562, %v4558
    %v4723 = vpack.c.b16 %v4563, %v4559
    %v4724 = vpack.c.b16 %v4564, %v4560
    %v4725 = vpack.c.b16 %v4569, %v4565
    %v4726 = vpack.c.b16 %v4570, %v4566
    %v4727 = vpack.c.b16 %v4571, %v4567
    %v4728 = vpack.c.b16 %v4572, %v4568
    %v4729 = vpack.c.b16 %v4577, %v4573
    %v4730 = vpack.c.b16 %v4578, %v4574
    %v4731 = vpack.c.b16 %v4579, %v4575
    %v4732 = vpack.c.b16 %v4580, %v4576
    %v4733 = vpack.c.b16 %v4585, %v4581
    %v4734 = vpack.c.b16 %v4586, %v4582
    %v4735 = vpack.c.b16 %v4587, %v4583
    %v4736 = vpack.c.b16 %v4588, %v4584
    %v4737 = vpack.c.b16 %v4593, %v4589
    %v4738 = vpack.c.b16 %v4594, %v4590
    %v4739 = vpack.c.b16 %v4595, %v4591
    %v4740 = vpack.c.b16 %v4596, %v4592
    %v4741 = vpack.c.b16 %v4601, %v4597
    %v4742 = vpack.c.b16 %v4602, %v4598
    %v4743 = vpack.c.b16 %v4603, %v4599
    %v4744 = vpack.c.b16 %v4604, %v4600
    %v4745 = vpack.c.b16 %v4609, %v4605
    %v4746 = vpack.c.b16 %v4610, %v4606
    %v4747 = vpack.c.b16 %v4611, %v4607
    %v4748 = vpack.c.b16 %v4612, %v4608
    %v4749 = vpack.c.b16 %v4617, %v4613
    %v4750 = vpack.c.b16 %v4618, %v4614
    %v4751 = vpack.c.b16 %v4619, %v4615
    %v4752 = vpack.c.b16 %v4620, %v4616
    %v4753 = vpack.c.b16 %v4625, %v4621
    %v4754 = vpack.c.b16 %v4626, %v4622
    %v4755 = vpack.c.b16 %v4627, %v4623
    %v4756 = vpack.c.b16 %v4628, %v4624
    %4885 = vmatprep.subr.bf16.mxu0 %v4630
    %4886 = vmatpush1.bf16.msra.mxu0 %v4629
    %4887 = vmatprep.subr.bf16.mxu0 %v4634
    %4888 = vmatpush1.bf16.msra.mxu0 %v4633
    %4889 = vmatprep.subr.bf16.mxu0 %v4638
    %4890 = vmatpush1.bf16.msra.mxu0 %v4637
    %4891 = vmatprep.subr.bf16.mxu0 %v4642
    %4892 = vmatpush1.bf16.msra.mxu0 %v4641
    %4893 = vmatprep.subr.bf16.mxu0 %v4646
    %4894 = vmatpush1.bf16.msra.mxu0 %v4645
    %4895 = vmatprep.subr.bf16.mxu0 %v4650
    %4896 = vmatpush1.bf16.msra.mxu0 %v4649
    %4897 = vmatprep.subr.bf16.mxu0 %v4654
    %4898 = vmatpush1.bf16.msra.mxu0 %v4653
    %4899 = vmatprep.subr.bf16.mxu0 %v4658
    %4900 = vmatpush1.bf16.msra.mxu0 %v4657
    %4901 = vmatprep.subr.bf16.mxu0 %v4662
    %4902 = vmatpush1.bf16.msra.mxu0 %v4661
    %4903 = vmatprep.subr.bf16.mxu0 %v4666
    %4904 = vmatpush1.bf16.msra.mxu0 %v4665
    %4905 = vmatprep.subr.bf16.mxu0 %v4670
    %4906 = vmatpush1.bf16.msra.mxu0 %v4669
    %4907 = vmatprep.subr.bf16.mxu0 %v4674
    %4908 = vmatpush1.bf16.msra.mxu0 %v4673
    %4909 = vmatprep.subr.bf16.mxu0 %v4678
    %4910 = vmatpush1.bf16.msra.mxu0 %v4677
    %4911 = vmatprep.subr.bf16.mxu0 %v4682
    %4912 = vmatpush1.bf16.msra.mxu0 %v4681
    %4913 = vmatprep.subr.bf16.mxu0 %v4686
    %4914 = vmatpush1.bf16.msra.mxu0 %v4685
    %4915 = vmatprep.subr.bf16.mxu0 %v4690
    %4916 = vmatpush1.bf16.msra.mxu0 %v4689
    %4917 = vmatprep.mubr.bf16.mxu0 %v4094
    %4918 = vmatmul.mubr.bf16.gmra.mrb[0].mxu0 %v4093
    %v4919 = vpop.f32.mrb[0].mxu0
    %v4920 = vadd.f32 %v4232, %v4919
    %v4921 = vpop.f32.mrb[0].mxu0
    %v4922 = vadd.f32 %v4236, %v4921
    %v4923 = vpop.f32.mrb[0].mxu0
    %v4924 = vadd.f32 %v4232, %v4923
    %v4925 = vpop.f32.mrb[0].mxu0
    %v4926 = vadd.f32 %v4236, %v4925
    %4927 = vmatprep.mubr.bf16.mxu0 %v4098
    %4928 = vmatmul.mubr.bf16.gmra.mrb[0].mxu0 %v4097
    %v4929 = vpop.f32.mrb[0].mxu0
    %v4930 = vadd.f32 %v4232, %v4929
    %v4931 = vpop.f32.mrb[0].mxu0
    %v4932 = vadd.f32 %v4236, %v4931
    %v4933 = vpop.f32.mrb[0].mxu0
    %v4934 = vadd.f32 %v4232, %v4933
    %v4935 = vpop.f32.mrb[0].mxu0
    %v4936 = vadd.f32 %v4236, %v4935
    %4937 = vdwg.mxu0
    %4938 = vmatprep.subr.bf16.mxu0 %v4694
    %4939 = vmatpush1.bf16.msra.mxu0 %v4693
    %4940 = vmatprep.subr.bf16.mxu0 %v4698
    %4941 = vmatpush1.bf16.msra.mxu0 %v4697
    %4942 = vmatprep.subr.bf16.mxu0 %v4702
    %4943 = vmatpush1.bf16.msra.mxu0 %v4701
    %4944 = vmatprep.subr.bf16.mxu0 %v4706
    %4945 = vmatpush1.bf16.msra.mxu0 %v4705
    %4946 = vmatprep.subr.bf16.mxu0 %v4710
    %4947 = vmatpush1.bf16.msra.mxu0 %v4709
    %4948 = vmatprep.subr.bf16.mxu0 %v4714
    %4949 = vmatpush1.bf16.msra.mxu0 %v4713
    %4950 = vmatprep.subr.bf16.mxu0 %v4718
    %4951 = vmatpush1.bf16.msra.mxu0 %v4717
    %4952 = vmatprep.subr.bf16.mxu0 %v4722
    %4953 = vmatpush1.bf16.msra.mxu0 %v4721
    %4954 = vmatprep.subr.bf16.mxu0 %v4726
    %4955 = vmatpush1.bf16.msra.mxu0 %v4725
    %4956 = vmatprep.subr.bf16.mxu0 %v4730
    %4957 = vmatpush1.bf16.msra.mxu0 %v4729
    %4958 = vmatprep.subr.bf16.mxu0 %v4734
    %4959 = vmatpush1.bf16.msra.mxu0 %v4733
    %4960 = vmatprep.subr.bf16.mxu0 %v4738
    %4961 = vmatpush1.bf16.msra.mxu0 %v4737
    %4962 = vmatprep.subr.bf16.mxu0 %v4742
    %4963 = vmatpush1.bf16.msra.mxu0 %v4741
    %4964 = vmatprep.subr.bf16.mxu0 %v4746
    %4965 = vmatpush1.bf16.msra.mxu0 %v4745
    %4966 = vmatprep.subr.bf16.mxu0 %v4750
    %4967 = vmatpush1.bf16.msra.mxu0 %v4749
    %4968 = vmatprep.subr.bf16.mxu0 %v4754
    %4969 = vmatpush1.bf16.msra.mxu0 %v4753
    %4970 = vmatprep.mubr.bf16.mxu0 %v4096
    %4971 = vmatmul.mubr.bf16.gmra.mrb[0].mxu0 %v4095
    %v4972 = vpop.f32.mrb[0].mxu0
    %v4973 = vadd.f32 %v4920, %v4972
    %v4974 = vpop.f32.mrb[0].mxu0
    %v4975 = vadd.f32 %v4922, %v4974
    %v4976 = vpop.f32.mrb[0].mxu0
    %v4977 = vadd.f32 %v4924, %v4976
    %v4978 = vpop.f32.mrb[0].mxu0
    %v4979 = vadd.f32 %v4926, %v4978
    %4980 = vmatprep.mubr.bf16.mxu0 %v4100
    %4981 = vmatmul.mubr.bf16.gmra.mrb[0].mxu0 %v4099
    %v4982 = vpop.f32.mrb[0].mxu0
    %v4983 = vadd.f32 %v4930, %v4982
    %v4984 = vpop.f32.mrb[0].mxu0
    %v4985 = vadd.f32 %v4932, %v4984
    %v4986 = vpop.f32.mrb[0].mxu0
    %v4987 = vadd.f32 %v4934, %v4986
    %v4988 = vpop.f32.mrb[0].mxu0
    %v4989 = vadd.f32 %v4936, %v4988
    %4990 = vdwg.mxu0
    %4991 = vmatprep.subr.bf16.mxu0 %v4632
    %4992 = vmatpush1.bf16.msra.mxu0 %v4631
    %4993 = vmatprep.subr.bf16.mxu0 %v4636
    %4994 = vmatpush1.bf16.msra.mxu0 %v4635
    %4995 = vmatprep.subr.bf16.mxu0 %v4640
    %4996 = vmatpush1.bf16.msra.mxu0 %v4639
    %4997 = vmatprep.subr.bf16.mxu0 %v4644
    %4998 = vmatpush1.bf16.msra.mxu0 %v4643
    %4999 = vmatprep.subr.bf16.mxu0 %v4648
    %5000 = vmatpush1.bf16.msra.mxu0 %v4647
    %5001 = vmatprep.subr.bf16.mxu0 %v4652
    %5002 = vmatpush1.bf16.msra.mxu0 %v4651
    %5003 = vmatprep.subr.bf16.mxu0 %v4656
    %5004 = vmatpush1.bf16.msra.mxu0 %v4655
    %5005 = vmatprep.subr.bf16.mxu0 %v4660
    %5006 = vmatpush1.bf16.msra.mxu0 %v4659
    %5007 = vmatprep.subr.bf16.mxu0 %v4664
    %5008 = vmatpush1.bf16.msra.mxu0 %v4663
    %5009 = vmatprep.subr.bf16.mxu0 %v4668
    %5010 = vmatpush1.bf16.msra.mxu0 %v4667
    %5011 = vmatprep.subr.bf16.mxu0 %v4672
    %5012 = vmatpush1.bf16.msra.mxu0 %v4671
    %5013 = vmatprep.subr.bf16.mxu0 %v4676
    %5014 = vmatpush1.bf16.msra.mxu0 %v4675
    %5015 = vmatprep.subr.bf16.mxu0 %v4680
    %5016 = vmatpush1.bf16.msra.mxu0 %v4679
    %5017 = vmatprep.subr.bf16.mxu0 %v4684
    %5018 = vmatpush1.bf16.msra.mxu0 %v4683
    %5019 = vmatprep.subr.bf16.mxu0 %v4688
    %5020 = vmatpush1.bf16.msra.mxu0 %v4687
    %5021 = vmatprep.subr.bf16.mxu0 %v4692
    %5022 = vmatpush1.bf16.msra.mxu0 %v4691
    %5023 = vmatprep.mubr.bf16.mxu0 %v4094
    %5024 = vmatmul.mubr.bf16.gmra.mrb[0].mxu0 %v4093
    %v5025 = vpop.f32.mrb[0].mxu0
    %v5026 = vadd.f32 %v4240, %v5025
    %v5027 = vpop.f32.mrb[0].mxu0
    %v5028 = vadd.f32 %v4244, %v5027
    %v5029 = vpop.f32.mrb[0].mxu0
    %v5030 = vadd.f32 %v4240, %v5029
    %v5031 = vpop.f32.mrb[0].mxu0
    %v5032 = vadd.f32 %v4244, %v5031
    %5033 = vmatprep.mubr.bf16.mxu0 %v4098
    %5034 = vmatmul.mubr.bf16.gmra.mrb[0].mxu0 %v4097
    %v5035 = vpop.f32.mrb[0].mxu0
    %v5036 = vadd.f32 %v4240, %v5035
    %v5037 = vpop.f32.mrb[0].mxu0
    %v5038 = vadd.f32 %v4244, %v5037
    %v5039 = vpop.f32.mrb[0].mxu0
    %v5040 = vadd.f32 %v4240, %v5039
    %v5041 = vpop.f32.mrb[0].mxu0
    %v5042 = vadd.f32 %v4244, %v5041
    %5043 = vdwg.mxu0
    %5044 = vmatprep.subr.bf16.mxu0 %v4696
    %5045 = vmatpush1.bf16.msra.mxu0 %v4695
    %5046 = vmatprep.subr.bf16.mxu0 %v4700
    %5047 = vmatpush1.bf16.msra.mxu0 %v4699
    %5048 = vmatprep.subr.bf16.mxu0 %v4704
    %5049 = vmatpush1.bf16.msra.mxu0 %v4703
    %5050 = vmatprep.subr.bf16.mxu0 %v4708
    %5051 = vmatpush1.bf16.msra.mxu0 %v4707
    %5052 = vmatprep.subr.bf16.mxu0 %v4712
    %5053 = vmatpush1.bf16.msra.mxu0 %v4711
    %5054 = vmatprep.subr.bf16.mxu0 %v4716
    %5055 = vmatpush1.bf16.msra.mxu0 %v4715
    %5056 = vmatprep.subr.bf16.mxu0 %v4720
    %5057 = vmatpush1.bf16.msra.mxu0 %v4719
    %5058 = vmatprep.subr.bf16.mxu0 %v4724
    %5059 = vmatpush1.bf16.msra.mxu0 %v4723
    %5060 = vmatprep.subr.bf16.mxu0 %v4728
    %5061 = vmatpush1.bf16.msra.mxu0 %v4727
    %5062 = vmatprep.subr.bf16.mxu0 %v4732
    %5063 = vmatpush1.bf16.msra.mxu0 %v4731
    %5064 = vmatprep.subr.bf16.mxu0 %v4736
    %5065 = vmatpush1.bf16.msra.mxu0 %v4735
    %5066 = vmatprep.subr.bf16.mxu0 %v4740
    %5067 = vmatpush1.bf16.msra.mxu0 %v4739
    %5068 = vmatprep.subr.bf16.mxu0 %v4744
    %5069 = vmatpush1.bf16.msra.mxu0 %v4743
    %5070 = vmatprep.subr.bf16.mxu0 %v4748
    %5071 = vmatpush1.bf16.msra.mxu0 %v4747
    %5072 = vmatprep.subr.bf16.mxu0 %v4752
    %5073 = vmatpush1.bf16.msra.mxu0 %v4751
    %5074 = vmatprep.subr.bf16.mxu0 %v4756
    %5075 = vmatpush1.bf16.msra.mxu0 %v4755
    %5076 = vmatprep.mubr.bf16.mxu0 %v4096
    %5077 = vmatmul.mubr.bf16.gmra.mrb[0].mxu0 %v4095
    %v5078 = vpop.f32.mrb[0].mxu0
    %v5079 = vadd.f32 %v5026, %v5078
    %v5080 = vpop.f32.mrb[0].mxu0
    %v5081 = vadd.f32 %v5028, %v5080
    %v5082 = vpop.f32.mrb[0].mxu0
    %v5083 = vadd.f32 %v5030, %v5082
    %v5084 = vpop.f32.mrb[0].mxu0
    %v5085 = vadd.f32 %v5032, %v5084
    %5086 = vmatprep.mubr.bf16.mxu0 %v4100
    %5087 = vmatmul.mubr.bf16.gmra.mrb[0].mxu0 %v4099
    %v5088 = vpop.f32.mrb[0].mxu0
    %v5089 = vadd.f32 %v5036, %v5088
    %v5090 = vpop.f32.mrb[0].mxu0
    %v5091 = vadd.f32 %v5038, %v5090
    %v5092 = vpop.f32.mrb[0].mxu0
    %v5093 = vadd.f32 %v5040, %v5092
    %v5094 = vpop.f32.mrb[0].mxu0
    %v5095 = vadd.f32 %v5042, %v5094
    %5096 = vdwg.mxu0
    %v5097 = vadd.f32 %v4973, %v4077
    %v5098 = vadd.f32 %v4975, %v4078
    %v5099 = vadd.f32 %v5079, %v4079
    %v5100 = vadd.f32 %v5081, %v4080
    %v5101 = vadd.f32 %v4977, %v4081
    %v5102 = vadd.f32 %v4979, %v4082
    %v5103 = vadd.f32 %v5083, %v4083
    %v5104 = vadd.f32 %v5085, %v4084
    %v5105 = vadd.f32 %v4983, %v4085
    %v5106 = vadd.f32 %v4985, %v4086
    %v5107 = vadd.f32 %v5089, %v4087
    %v5108 = vadd.f32 %v5091, %v4088
    %v5109 = vadd.f32 %v4987, %v4089
    %v5110 = vadd.f32 %v4989, %v4090
    %v5111 = vadd.f32 %v5093, %v4091
    %v5112 = vadd.f32 %v5095, %v4092
    %v5113 = vadd.f32 %v5097, %v5098
    %v5114 = vadd.f32 %v5113, %v5099
    %v5115 = vadd.f32 %v5114, %v5100
    %5116 = vadd.xlane.f32.xlu0 %v5115
    %v5117 = vpop.xlane.xlu0 %5116
    %v5118 = vadd.f32 %v5101, %v5102
    %v5119 = vadd.f32 %v5118, %v5103
    %v5120 = vadd.f32 %v5119, %v5104
    %5121 = vadd.xlane.f32.xlu0 %v5120
    %v5122 = vpop.xlane.xlu0 %5121
    %v5123 = vadd.f32 %v5105, %v5106
    %v5124 = vadd.f32 %v5123, %v5107
    %v5125 = vadd.f32 %v5124, %v5108
    %5126 = vadd.xlane.f32.xlu0 %v5125
    %v5127 = vpop.xlane.xlu0 %5126
    %v5128 = vadd.f32 %v5109, %v5110
    %v5129 = vadd.f32 %v5128, %v5111
    %v5130 = vadd.f32 %v5129, %v5112
    %5131 = vadd.xlane.f32.xlu0 %v5130
    %v5132 = vpop.xlane.xlu0 %5131
    %v5133 = vmul.f32 %v5117, %v3944
    %v5134 = vmul.f32 %v5122, %v3944
    %v5135 = vmul.f32 %v5127, %v3944
    %v5136 = vmul.f32 %v5132, %v3944
    %v5137 = vsub.f32 %v5097, %v5133
    %v5138 = vsub.f32 %v5098, %v5133
    %v5139 = vsub.f32 %v5099, %v5133
    %v5140 = vsub.f32 %v5100, %v5133
    %v5141 = vsub.f32 %v5101, %v5134
    %v5142 = vsub.f32 %v5102, %v5134
    %v5143 = vsub.f32 %v5103, %v5134
    %v5144 = vsub.f32 %v5104, %v5134
    %v5145 = vsub.f32 %v5105, %v5135
    %v5146 = vsub.f32 %v5106, %v5135
    %v5147 = vsub.f32 %v5107, %v5135
    %v5148 = vsub.f32 %v5108, %v5135
    %v5149 = vsub.f32 %v5109, %v5136
    %v5150 = vsub.f32 %v5110, %v5136
    %v5151 = vsub.f32 %v5111, %v5136
    %v5152 = vsub.f32 %v5112, %v5136
    %v5153 = vmul.f32 %v5137, %v5137
    %v5154 = vmul.f32 %v5138, %v5138
    %v5155 = vmul.f32 %v5139, %v5139
    %v5156 = vmul.f32 %v5140, %v5140
    %v5157 = vmul.f32 %v5141, %v5141
    %v5158 = vmul.f32 %v5142, %v5142
    %v5159 = vmul.f32 %v5143, %v5143
    %v5160 = vmul.f32 %v5144, %v5144
    %v5161 = vmul.f32 %v5145, %v5145
    %v5162 = vmul.f32 %v5146, %v5146
    %v5163 = vmul.f32 %v5147, %v5147
    %v5164 = vmul.f32 %v5148, %v5148
    %v5165 = vmul.f32 %v5149, %v5149
    %v5166 = vmul.f32 %v5150, %v5150
    %v5167 = vmul.f32 %v5151, %v5151
    %v5168 = vmul.f32 %v5152, %v5152
    %v5169 = vadd.f32 %v5153, %v5154
    %v5170 = vadd.f32 %v5169, %v5155
    %v5171 = vadd.f32 %v5170, %v5156
    %5172 = vadd.xlane.f32.xlu0 %v5171
    %v5173 = vpop.xlane.xlu0 %5172
    %v5174 = vadd.f32 %v5157, %v5158
    %v5175 = vadd.f32 %v5174, %v5159
    %v5176 = vadd.f32 %v5175, %v5160
    %5177 = vadd.xlane.f32.xlu0 %v5176
    %v5178 = vpop.xlane.xlu0 %5177
    %v5179 = vadd.f32 %v5161, %v5162
    %v5180 = vadd.f32 %v5179, %v5163
    %v5181 = vadd.f32 %v5180, %v5164
    %5182 = vadd.xlane.f32.xlu0 %v5181
    %v5183 = vpop.xlane.xlu0 %5182
    %v5184 = vadd.f32 %v5165, %v5166
    %v5185 = vadd.f32 %v5184, %v5167
    %v5186 = vadd.f32 %v5185, %v5168
    %5187 = vadd.xlane.f32.xlu0 %v5186
    %v5188 = vpop.xlane.xlu0 %5187
    %v5189 = vmul.f32 %v5173, %v3944
    %v5190 = vmul.f32 %v5178, %v3944
    %v5191 = vmul.f32 %v5183, %v3944
    %v5192 = vmul.f32 %v5188, %v3944
    %v5193 = vadd.f32 %v5189, 1e-05
    %v5194 = vadd.f32 %v5190, 1e-05
    %v5195 = vadd.f32 %v5191, 1e-05
    %v5196 = vadd.f32 %v5192, 1e-05
    %v5197 = vrsqrt.pop %v5193
    %v5198 = vrsqrt.pop %v5194
    %v5199 = vrsqrt.pop %v5195
    %v5200 = vrsqrt.pop %v5196
    %v5201 = vmul.f32 %v5137, %v5197
    %v5202 = vmul.f32 %v5138, %v5197
    %v5203 = vmul.f32 %v5139, %v5197
    %v5204 = vmul.f32 %v5140, %v5197
    %v5205 = vmul.f32 %v5141, %v5198
    %v5206 = vmul.f32 %v5142, %v5198
    %v5207 = vmul.f32 %v5143, %v5198
    %v5208 = vmul.f32 %v5144, %v5198
    %v5209 = vmul.f32 %v5145, %v5199
    %v5210 = vmul.f32 %v5146, %v5199
    %v5211 = vmul.f32 %v5147, %v5199
    %v5212 = vmul.f32 %v5148, %v5199
    %v5213 = vmul.f32 %v5149, %v5200
    %v5214 = vmul.f32 %v5150, %v5200
    %v5215 = vmul.f32 %v5151, %v5200
    %v5216 = vmul.f32 %v5152, %v5200
    %v5217 = vlaneseq
    %v5218 = vshrl.u32 %v5217, 7
    %v5219 = vsub.s32 3, %v5218
    %v5220 = vrot.slane %v19, %v5219
    %v5221 = vlaneseq
    %v5222 = vshrl.u32 %v5221, 7
    %v5223 = vsub.s32 3, %v5222
    %v5224 = vrot.slane %v20, %v5223
    %v5225 = vlaneseq
    %v5226 = vshrl.u32 %v5225, 7
    %v5227 = vsub.s32 3, %v5226
    %v5228 = vrot.slane %v21, %v5227
    %v5229 = vlaneseq
    %v5230 = vshrl.u32 %v5229, 7
    %v5231 = vsub.s32 3, %v5230
    %v5232 = vrot.slane %v22, %v5231
    %v5233 = vmul.f32 %v5201, %v5220
    %v5234 = vmul.f32 %v5202, %v5224
    %v5235 = vmul.f32 %v5203, %v5228
    %v5236 = vmul.f32 %v5204, %v5232
    %v5237 = vmul.f32 %v5205, %v5220
    %v5238 = vmul.f32 %v5206, %v5224
    %v5239 = vmul.f32 %v5207, %v5228
    %v5240 = vmul.f32 %v5208, %v5232
    %v5241 = vmul.f32 %v5209, %v5220
    %v5242 = vmul.f32 %v5210, %v5224
    %v5243 = vmul.f32 %v5211, %v5228
    %v5244 = vmul.f32 %v5212, %v5232
    %v5245 = vmul.f32 %v5213, %v5220
    %v5246 = vmul.f32 %v5214, %v5224
    %v5247 = vmul.f32 %v5215, %v5228
    %v5248 = vmul.f32 %v5216, %v5232
    %v5249 = vlaneseq
    %v5250 = vshrl.u32 %v5249, 7
    %v5251 = vsub.s32 4, %v5250
    %v5252 = vrot.slane %v19, %v5251
    %v5253 = vlaneseq
    %v5254 = vshrl.u32 %v5253, 7
    %v5255 = vsub.s32 4, %v5254
    %v5256 = vrot.slane %v20, %v5255
    %v5257 = vlaneseq
    %v5258 = vshrl.u32 %v5257, 7
    %v5259 = vsub.s32 4, %v5258
    %v5260 = vrot.slane %v21, %v5259
    %v5261 = vlaneseq
    %v5262 = vshrl.u32 %v5261, 7
    %v5263 = vsub.s32 4, %v5262
    %v5264 = vrot.slane %v22, %v5263
    %v5265 = vadd.f32 %v5233, %v5252
    %v5266 = vadd.f32 %v5234, %v5256
    %v5267 = vadd.f32 %v5235, %v5260
    %v5268 = vadd.f32 %v5236, %v5264
    %v5269 = vadd.f32 %v5237, %v5252
    %v5270 = vadd.f32 %v5238, %v5256
    %v5271 = vadd.f32 %v5239, %v5260
    %v5272 = vadd.f32 %v5240, %v5264
    %v5273 = vadd.f32 %v5241, %v5252
    %v5274 = vadd.f32 %v5242, %v5256
    %v5275 = vadd.f32 %v5243, %v5260
    %v5276 = vadd.f32 %v5244, %v5264
    %v5277 = vadd.f32 %v5245, %v5252
    %v5278 = vadd.f32 %v5246, %v5256
    %v5279 = vadd.f32 %v5247, %v5260
    %v5280 = vadd.f32 %v5248, %v5264
    %5281 = vst [vmem:[#allocation3] sm:$0xff] %v5265
    %5282 = vst [vmem:[#allocation3 + $0x8] sm:$0xff] %v5266
    %5283 = vst [vmem:[#allocation3 + $0x10] sm:$0xff] %v5267
    %5284 = vst [vmem:[#allocation3 + $0x18] sm:$0xff] %v5268
    %5285 = vst [vmem:[#allocation3 + $0x20] sm:$0xff] %v5269
    %5286 = vst [vmem:[#allocation3 + $0x28] sm:$0xff] %v5270
    %5287 = vst [vmem:[#allocation3 + $0x30] sm:$0xff] %v5271
    %5288 = vst [vmem:[#allocation3 + $0x38] sm:$0xff] %v5272
    %5289 = vst [vmem:[#allocation3 + $0x40] sm:$0xff] %v5273
    %5290 = vst [vmem:[#allocation3 + $0x48] sm:$0xff] %v5274
    %5291 = vst [vmem:[#allocation3 + $0x50] sm:$0xff] %v5275
    %5292 = vst [vmem:[#allocation3 + $0x58] sm:$0xff] %v5276
    %5293 = vst [vmem:[#allocation3 + $0x60] sm:$0xff] %v5277
    %5294 = vst [vmem:[#allocation3 + $0x68] sm:$0xff] %v5278
    %5295 = vst [vmem:[#allocation3 + $0x70] sm:$0xff] %v5279
    %5296 = vst [vmem:[#allocation3 + $0x78] sm:$0xff] %v5280
    // Predicated region
    $region18: #{transformer_encoder_forward.3} parent=1 // pred_check
      _
    $region19: #{transformer_encoder_forward.3} parent=1 // pred_check_branch
      %5298 = sbr.rel (0) target = $region21
    $region20: #{transformer_encoder_forward.3} parent=1 // pred_region
      %s5300 = ssub.s32 2048, 2048
      %5301 = vsyncadd [#allocation4], %s5300
      %s5302 = sshll.u32 [#allocation3], 4
      %s5303 = int_to_ptr.vmem [resolvable:$true] %s5302
      %5308 = dma.vmem_to_hbm [thread:$0]  %s5303, 2048, %s4, [#allocation4], 512, 512, 32
    $region21: #{transformer_encoder_forward.3} parent=1 // pred_fallthru
      _
    // Predicated region
    $region22: #{transformer_encoder_forward.3} parent=1 // pred_check
      _
    $region23: #{transformer_encoder_forward.3} parent=1 // pred_check_branch
      %5310 = sbr.rel (0) target = $region25
    $region24: #{transformer_encoder_forward.3} parent=1 // pred_region
      %5311 = dma.done [#allocation4], 2048
    $region25: #{transformer_encoder_forward.3} parent=1 // pred_fallthru
      _
    %5312 = vsyncpa [#allocation4], 1

</llo_original>
